<compile_context>
chip_gen: v5e
topology: v5e:2x2
jax: 0.10.0
libtpu: 0.0.40
codegen_flags: <defaults>
</compile_context>

<pallas_src>
import jax
import jax.numpy as jnp
from jax import lax
from jax.experimental import pallas as pl
from jax.experimental.pallas import tpu as pltpu

# ---- model hyperparameters (match simpleVIT(in_channels=4, emb_size=32)) ----
IN_CHANNELS = 4
EMB = 32
PATCH = 2
KSIZE = 2 * PATCH + 1          # conv kernel = 5, padding = 2 ("same")
NUM_HEADS = 4
HEAD_DIM = EMB // NUM_HEADS    # 8
DEPTH = 1
LN_EPS = 1e-5

CK = IN_CHANNELS * KSIZE * KSIZE    # 100  (im2col contraction length)
CK_PAD = 128                        # padded to one full lane register; row CK holds the bias "ones"

# --- row offsets inside the packed (6E, E) weight stack (PyTorch (out, in) layout) ---
_WQKV = 0 * EMB            # rows [0, 3E): [wq; wk; wv/sqrt(E)]
_WP   = 3 * EMB            # projection
_W1   = 4 * EMB            # FF linear 1
_W2   = 5 * EMB            # FF linear 2

# --- row offsets inside the packed (10E, 1) bias/LN column stack ---
_LN1W, _LN1B = 0 * EMB, 1 * EMB
_BQKV        = 2 * EMB     # rows [2E, 5E): [bq; bk; bv/sqrt(E)]
_BP          = 5 * EMB
_LN2W, _LN2B = 6 * EMB, 7 * EMB
_B1,   _B2   = 8 * EMB, 9 * EMB


# --------------------------- in-kernel helpers -------------------------------

def _layernorm_cols(x, w, b):
    # x: (E, N) feature-major; normalize over the feature (sublane) axis.
    # w, b: (E, 1) columns.
    mu = jnp.mean(x, axis=0, keepdims=True)
    var = jnp.mean((x - mu) ** 2, axis=0, keepdims=True)
    return (x - mu) * lax.rsqrt(var + LN_EPS) * w + b


def _gelu_exact(x):
    # PyTorch nn.GELU() default: exact erf formulation.
    return 0.5 * x * (1.0 + lax.erf(x * (2.0 ** -0.5)))


def _softmax_lanes(e):
    # softmax along the lane (last) axis; multiply by reciprocal of the (N, 1)
    # row sums instead of dividing the whole (N, N) tile.
    m = jnp.max(e, axis=-1, keepdims=True)
    p = jnp.exp(e - m)
    denom = jnp.sum(p, axis=-1, keepdims=True)
    return p * pl.reciprocal(denom, approx=False)


# --------------------------- fused kernel ------------------------------------

def _fused_vit_kernel(cols_ref, wconv_ref, wpack_ref, vpack_ref, out_ref):
    # cols_ref : (1, CK_PAD, N)    im2col columns (token axis on lanes), row CK == 1.0
    # wconv_ref: (E, CK_PAD)       conv weight, column CK == conv bias
    # wpack_ref: (DEPTH, 6E, E)    stacked block weights, PyTorch (out, in) layout
    # vpack_ref: (DEPTH, 10E, 1)   stacked biases / LN params as columns
    # out_ref  : (1, E, N)         lane-dense output (channel-major tokens)

    # ---- conv projection (bias folded into the matmul) ----
    x = jnp.dot(wconv_ref[...], cols_ref[0],
                preferred_element_type=jnp.float32)          # (E, N)

    for d in range(DEPTH):                                    # static unroll over depth
        W = wpack_ref[d]                                      # (6E, E)
        V = vpack_ref[d]                                      # (10E, 1)

        ln1_w, ln1_b = V[_LN1W:_LN1W + EMB, :], V[_LN1B:_LN1B + EMB, :]
        ln2_w, ln2_b = V[_LN2W:_LN2W + EMB, :], V[_LN2B:_LN2B + EMB, :]
        bqkv = V[_BQKV:_BQKV + 3 * EMB, :]
        bp = V[_BP:_BP + EMB, :]
        b1 = V[_B1:_B1 + EMB, :]
        b2 = V[_B2:_B2 + EMB, :]

        w_qkv = W[_WQKV:_WQKV + 3 * EMB, :]                   # (3E, E)
        w_p = W[_WP:_WP + EMB, :]                             # (E, E)
        w_1 = W[_W1:_W1 + EMB, :]
        w_2 = W[_W2:_W2 + EMB, :]

        # ---- MultiHeadAttention(LayerNorm(x)) + x ----
        xn = _layernorm_cols(x, ln1_w, ln1_b)                 # (E, N)
        # fused QKV:  (3E, E) @ (E, N) + (3E, 1)
        qkv = jnp.dot(w_qkv, xn, preferred_element_type=jnp.float32) + bqkv

        attn = jnp.zeros_like(x)                              # (E, N) accumulator
        for h in range(NUM_HEADS):                            # static unroll over heads
            r0 = h * HEAD_DIM
            qh = qkv[r0:r0 + HEAD_DIM, :]                     # (HD, N)
            kh = qkv[EMB + r0:EMB + r0 + HEAD_DIM, :]         # (HD, N)
            vh = qkv[2 * EMB + r0:2 * EMB + r0 + HEAD_DIM, :]  # (HD, N), pre-scaled by 1/sqrt(E)

            # energy[q, k] = sum_d q[q, d] * k[k, d]
            energy = jnp.dot(qh.T, kh, preferred_element_type=jnp.float32)   # (N, N)
            # NOTE: reference divides by sqrt(E) AFTER softmax; the division is
            # folded into vh (wv/bv scaled at pack time) -> same math reassociated.
            att = _softmax_lanes(energy)                      # (N, N)
            # head[d, q] = sum_k vh[d, k] * att[q, k]
            head = lax.dot_general(vh, att, (((1,), (1,)), ((), ())),
                                   preferred_element_type=jnp.float32)       # (HD, N)
            # accumulate straight into the output projection (no lane concat)
            attn = attn + jnp.dot(w_p[:, r0:r0 + HEAD_DIM], head,
                                  preferred_element_type=jnp.float32)        # (E, N)
        x = x + attn + bp                                     # residual + projection bias

        # ---- FeedForward(x) + x   (FF = LN -> Linear -> GELU -> Linear) ----
        xn2 = _layernorm_cols(x, ln2_w, ln2_b)
        h1 = jnp.dot(w_1, xn2, preferred_element_type=jnp.float32) + b1
        h1 = _gelu_exact(h1)
        x = x + jnp.dot(w_2, h1, preferred_element_type=jnp.float32) + b2

    out_ref[...] = x[None, :, :]                              # lane-dense (1, E, N) store


# --------------------------- host-side packing -------------------------------

def _im2col_t(x):
    """NCHW -> (B, CK_PAD, H*W) im2col, token axis last; row CK is the bias ones-row."""
    B, C, H, W = x.shape
    xp = jnp.pad(x, ((0, 0), (0, 0), (PATCH, PATCH), (PATCH, PATCH)))
    patches = [xp[:, :, ky:ky + H, kx:kx + W]
               for ky in range(KSIZE) for kx in range(KSIZE)]
    cols = jnp.stack(patches, axis=2)                    # (B, C, K*K, H, W)
    cols = cols.reshape(B, CK, H * W)                    # row index = c*K*K + ky*K + kx
    ones = jnp.ones((B, 1, H * W), cols.dtype)
    pad = jnp.zeros((B, CK_PAD - CK - 1, H * W), cols.dtype)
    return jnp.concatenate([cols, ones, pad], axis=1)    # (B, CK_PAD, N)


def _pack_conv(w_conv, b_conv):
    """(E, C, K, K) + (E,) -> (E, CK_PAD) with the bias in column CK."""
    wc = w_conv.reshape(EMB, CK)                         # column index = c*K*K + ky*K + kx
    pad = jnp.zeros((EMB, CK_PAD - CK - 1), wc.dtype)
    return jnp.concatenate([wc, b_conv[:, None], pad], axis=1)


def _pack_blocks(blocks):
    """Pack per-block params into (DEPTH, 6E, E) weights and (DEPTH, 10E, 1) vectors."""
    scale = 1.0 / (float(EMB) ** 0.5)                    # post-softmax scaling folded into v
    w_all, v_all = [], []
    for blk in blocks:
        wv_s = blk["wv"] * scale
        bv_s = blk["bv"] * scale
        w_all.append(jnp.concatenate(
            [blk["wq"], blk["wk"], wv_s, blk["wp"], blk["w1"], blk["w2"]], axis=0))
        v_all.append(jnp.concatenate(
            [blk["ln1_w"], blk["ln1_b"], blk["bq"], blk["bk"], bv_s, blk["bp"],
             blk["ffln_w"], blk["ffln_b"], blk["b1"], blk["b2"]], axis=0)[:, None])
    return jnp.stack(w_all, axis=0), jnp.stack(v_all, axis=0)


# --------------------------- forward ------------------------------------------

def simple_vit_forward(x, params):
    B, _, H, W = x.shape
    N = H * W

    cols = _im2col_t(x)                                        # (B, CK_PAD, N)
    wconv = _pack_conv(params["w_conv"], params["b_conv"])     # (E, CK_PAD)
    w_pack, v_pack = _pack_blocks(params["blocks"])            # (D,6E,E), (D,10E,1)

    out = pl.pallas_call(
        _fused_vit_kernel,
        out_shape=jax.ShapeDtypeStruct((B, EMB, N), jnp.float32),
        grid_spec=pltpu.PrefetchScalarGridSpec(
            num_scalar_prefetch=0,
            grid=(B,),
            in_specs=[pl.BlockSpec((1, CK_PAD, N), lambda b: (b, 0, 0)),
                      pl.BlockSpec((EMB, CK_PAD), lambda b: (0, 0)),
                      pl.BlockSpec((DEPTH, 6 * EMB, EMB), lambda b: (0, 0, 0)),
                      pl.BlockSpec((DEPTH, 10 * EMB, 1), lambda b: (0, 0, 0))],
            out_specs=pl.BlockSpec((1, EMB, N), lambda b: (b, 0, 0)),
        ),
        compiler_params=pltpu.CompilerParams(
            dimension_semantics=("parallel",)),                # batch elements independent -> megacore
    )(cols, wconv, w_pack, v_pack)

    # reference: x.transpose(1, 2).reshape(B, emb_size, -1, P) with P = W.
    # kernel already emits channel-major (B, E, N), so only a free reshape remains.
    return out.reshape(B, EMB, H, W)


# --------------------------- parameter init ----------------------------------

def init_params(key):
    keys = jax.random.split(key, 1 + DEPTH)
    # Conv: kaiming_normal_(mode='fan_out', nonlinearity='relu'), bias = 0
    fan_out = EMB * KSIZE * KSIZE
    w_conv = jax.random.normal(keys[0], (EMB, IN_CHANNELS, KSIZE, KSIZE),
                               jnp.float32) * (2.0 / fan_out) ** 0.5
    b_conv = jnp.zeros((EMB,), jnp.float32)

    def linear(k, fin, fout):
        # PyTorch nn.Linear default init, weight stored in (out, in) layout.
        bound = 1.0 / (fin ** 0.5)
        kw, kb = jax.random.split(k)
        w = jax.random.uniform(kw, (fout, fin), jnp.float32, -bound, bound)
        b = jax.random.uniform(kb, (fout,), jnp.float32, -bound, bound)
        return w, b

    blocks = []
    for d in range(DEPTH):
        bkeys = jax.random.split(keys[1 + d], 6)
        blk = {"ln1_w": jnp.ones((EMB,), jnp.float32),
               "ln1_b": jnp.zeros((EMB,), jnp.float32),
               "ffln_w": jnp.ones((EMB,), jnp.float32),
               "ffln_b": jnp.zeros((EMB,), jnp.float32)}
        blk["wq"], blk["bq"] = linear(bkeys[0], EMB, EMB)
        blk["wk"], blk["bk"] = linear(bkeys[1], EMB, EMB)
        blk["wv"], blk["bv"] = linear(bkeys[2], EMB, EMB)
        blk["wp"], blk["bp"] = linear(bkeys[3], EMB, EMB)
        blk["w1"], blk["b1"] = linear(bkeys[4], EMB, EMB)   # FeedForward(dim, dim)
        blk["w2"], blk["b2"] = linear(bkeys[5], EMB, EMB)
        blocks.append(blk)

    return {"w_conv": w_conv, "b_conv": b_conv, "blocks": blocks}


# --------------------------- main ---------------------------------------------

if __name__ == "__main__":
    key = jax.random.PRNGKey(0)
    pkey, xkey = jax.random.split(key)
    params = init_params(pkey)

    # input: (B, C_in, H, W) NCHW, small shapes
    x = jax.random.normal(xkey, (2, IN_CHANNELS, 16, 16), jnp.float32)

    out = jax.jit(simple_vit_forward)(x, params)
    out = jax.block_until_ready(out)

    assert out.shape == (2, EMB, 16, 16), out.shape
    assert jnp.all(jnp.isfinite(out))
    print("KERNEL_OK")
</pallas_src>

<mosaic_0001>
module attributes {stable_mosaic.version = 11 : i64} {
  func.func @_fused_vit_kernel(%arg0: i32, %arg1: memref<1x128x256xf32, #tpu.memory_space<vmem>>, %arg2: memref<32x128xf32, #tpu.memory_space<vmem>>, %arg3: memref<1x192x32xf32, #tpu.memory_space<vmem>>, %arg4: memref<1x320x1xf32, #tpu.memory_space<vmem>>, %arg5: memref<1x32x256xf32, #tpu.memory_space<vmem>>) attributes {dimension_semantics = [#tpu.dimension_semantics<parallel>], iteration_bounds = array<i64: 2>, scalar_prefetch = 0 : i64, scratch_operands = 0 : i64, tpu.core_type = #tpu.core_type<tc>, window_params = [{transform_indices = @transform_0, window_bounds = array<i64: 1, 128, 256>}, {pipeline_mode = #tpu.pipeline_mode<synchronous>, transform_indices = @transform_1, window_bounds = array<i64: 32, 128>}, {pipeline_mode = #tpu.pipeline_mode<synchronous>, transform_indices = @transform_2, window_bounds = array<i64: 1, 192, 32>}, {pipeline_mode = #tpu.pipeline_mode<synchronous>, transform_indices = @transform_3, window_bounds = array<i64: 1, 320, 1>}, {transform_indices = @transform_4, window_bounds = array<i64: 1, 32, 256>}]} {
    %c0 = arith.constant 0 : index
    %c0_0 = arith.constant 0 : index
    %0 = vector.load %arg2[%c0, %c0_0] : memref<32x128xf32, #tpu.memory_space<vmem>>, vector<32x128xf32>
    %c0_1 = arith.constant 0 : index
    %c0_2 = arith.constant 0 : index
    %c0_3 = arith.constant 0 : index
    %1 = vector.load %arg1[%c0_1, %c0_2, %c0_3] : memref<1x128x256xf32, #tpu.memory_space<vmem>>, vector<1x128x256xf32>
    %2 = vector.shape_cast %1 : vector<1x128x256xf32> to vector<128x256xf32>
    %cst = arith.constant dense<0.000000e+00> : vector<32x256xf32>
    %3 = tpu.matmul %0, %2, %cst {dimension_numbers = #tpu.dot_dimension_numbers<[1], [0], [0], [1], [0, 0, 1, 1], [], []>} : vector<32x128xf32>, vector<128x256xf32>, vector<32x256xf32> -> vector<32x256xf32>
    %c0_4 = arith.constant 0 : index
    %c0_5 = arith.constant 0 : index
    %c0_6 = arith.constant 0 : index
    %4 = vector.load %arg3[%c0_4, %c0_5, %c0_6] : memref<1x192x32xf32, #tpu.memory_space<vmem>>, vector<1x192x32xf32>
    %5 = vector.shape_cast %4 : vector<1x192x32xf32> to vector<192x32xf32>
    %c0_7 = arith.constant 0 : index
    %c0_8 = arith.constant 0 : index
    %c0_9 = arith.constant 0 : index
    %6 = vector.load %arg4[%c0_7, %c0_8, %c0_9] : memref<1x320x1xf32, #tpu.memory_space<vmem>>, vector<1x320x1xf32>
    %7 = vector.shape_cast %6 : vector<1x320x1xf32> to vector<320x1xf32>
    %8 = vector.extract_strided_slice %7 {offsets = [0, 0], sizes = [32, 1], strides = [1, 1]} : vector<320x1xf32> to vector<32x1xf32>
    %9 = vector.extract_strided_slice %7 {offsets = [32, 0], sizes = [32, 1], strides = [1, 1]} : vector<320x1xf32> to vector<32x1xf32>
    %10 = vector.extract_strided_slice %7 {offsets = [192, 0], sizes = [32, 1], strides = [1, 1]} : vector<320x1xf32> to vector<32x1xf32>
    %11 = vector.extract_strided_slice %7 {offsets = [224, 0], sizes = [32, 1], strides = [1, 1]} : vector<320x1xf32> to vector<32x1xf32>
    %12 = vector.extract_strided_slice %7 {offsets = [64, 0], sizes = [96, 1], strides = [1, 1]} : vector<320x1xf32> to vector<96x1xf32>
    %13 = vector.extract_strided_slice %7 {offsets = [160, 0], sizes = [32, 1], strides = [1, 1]} : vector<320x1xf32> to vector<32x1xf32>
    %14 = vector.extract_strided_slice %7 {offsets = [256, 0], sizes = [32, 1], strides = [1, 1]} : vector<320x1xf32> to vector<32x1xf32>
    %15 = vector.extract_strided_slice %7 {offsets = [288, 0], sizes = [32, 1], strides = [1, 1]} : vector<320x1xf32> to vector<32x1xf32>
    %16 = vector.extract_strided_slice %5 {offsets = [0, 0], sizes = [96, 32], strides = [1, 1]} : vector<192x32xf32> to vector<96x32xf32>
    %17 = vector.extract_strided_slice %5 {offsets = [96, 0], sizes = [32, 32], strides = [1, 1]} : vector<192x32xf32> to vector<32x32xf32>
    %18 = vector.extract_strided_slice %5 {offsets = [128, 0], sizes = [32, 32], strides = [1, 1]} : vector<192x32xf32> to vector<32x32xf32>
    %19 = vector.extract_strided_slice %5 {offsets = [160, 0], sizes = [32, 32], strides = [1, 1]} : vector<192x32xf32> to vector<32x32xf32>
    %cst_10 = arith.constant dense<0.000000e+00> : vector<256xf32>
    %20 = vector.multi_reduction <add>, %3, %cst_10 [0] : vector<32x256xf32> to vector<256xf32>
    %21 = vector.shape_cast %20 : vector<256xf32> to vector<1x256xf32>
    %cst_11 = arith.constant 3.200000e+01 : f32
    %22 = vector.broadcast %cst_11 : f32 to vector<1x256xf32>
    %23 = arith.divf %21, %22 : vector<1x256xf32>
    %24 = vector.broadcast %23 : vector<1x256xf32> to vector<32x256xf32>
    %25 = arith.subf %3, %24 : vector<32x256xf32>
    %26 = arith.mulf %25, %25 : vector<32x256xf32>
    %cst_12 = arith.constant dense<0.000000e+00> : vector<256xf32>
    %27 = vector.multi_reduction <add>, %26, %cst_12 [0] : vector<32x256xf32> to vector<256xf32>
    %28 = vector.shape_cast %27 : vector<256xf32> to vector<1x256xf32>
    %cst_13 = arith.constant 3.200000e+01 : f32
    %29 = vector.broadcast %cst_13 : f32 to vector<1x256xf32>
    %30 = arith.divf %28, %29 : vector<1x256xf32>
    %31 = vector.broadcast %23 : vector<1x256xf32> to vector<32x256xf32>
    %32 = arith.subf %3, %31 : vector<32x256xf32>
    %cst_14 = arith.constant 9.99999974E-6 : f32
    %33 = vector.broadcast %cst_14 : f32 to vector<1x256xf32>
    %34 = arith.addf %30, %33 : vector<1x256xf32>
    %35 = math.rsqrt %34 : vector<1x256xf32>
    %36 = vector.broadcast %35 : vector<1x256xf32> to vector<32x256xf32>
    %37 = arith.mulf %32, %36 : vector<32x256xf32>
    %38 = vector.broadcast %8 : vector<32x1xf32> to vector<32x256xf32>
    %39 = arith.mulf %37, %38 : vector<32x256xf32>
    %40 = vector.broadcast %9 : vector<32x1xf32> to vector<32x256xf32>
    %41 = arith.addf %39, %40 : vector<32x256xf32>
    %cst_15 = arith.constant dense<0.000000e+00> : vector<96x256xf32>
    %42 = tpu.matmul %16, %41, %cst_15 {dimension_numbers = #tpu.dot_dimension_numbers<[1], [0], [0], [1], [0, 0, 1, 1], [], []>} : vector<96x32xf32>, vector<32x256xf32>, vector<96x256xf32> -> vector<96x256xf32>
    %43 = vector.broadcast %12 : vector<96x1xf32> to vector<96x256xf32>
    %44 = arith.addf %42, %43 : vector<96x256xf32>
    %cst_16 = arith.constant 0.000000e+00 : f32
    %45 = vector.broadcast %cst_16 : f32 to vector<32x256xf32>
    %46 = vector.extract_strided_slice %44 {offsets = [0, 0], sizes = [8, 256], strides = [1, 1]} : vector<96x256xf32> to vector<8x256xf32>
    %47 = vector.extract_strided_slice %44 {offsets = [32, 0], sizes = [8, 256], strides = [1, 1]} : vector<96x256xf32> to vector<8x256xf32>
    %48 = vector.extract_strided_slice %44 {offsets = [64, 0], sizes = [8, 256], strides = [1, 1]} : vector<96x256xf32> to vector<8x256xf32>
    %49 = tpu.transpose %46, [1, 0] : vector<8x256xf32> -> vector<256x8xf32>
    %cst_17 = arith.constant dense<0.000000e+00> : vector<256x256xf32>
    %50 = tpu.matmul %49, %47, %cst_17 {dimension_numbers = #tpu.dot_dimension_numbers<[1], [0], [0], [1], [0, 0, 1, 1], [], []>} : vector<256x8xf32>, vector<8x256xf32>, vector<256x256xf32> -> vector<256x256xf32>
    %cst_18 = arith.constant dense<0xFF800000> : vector<256xf32>
    %51 = vector.multi_reduction <maximumf>, %50, %cst_18 [1] : vector<256x256xf32> to vector<256xf32>
    %52 = vector.shape_cast %51 : vector<256xf32> to vector<256x1xf32>
    %53 = vector.broadcast %52 : vector<256x1xf32> to vector<256x256xf32>
    %54 = arith.subf %50, %53 : vector<256x256xf32>
    %55 = math.exp %54 : vector<256x256xf32>
    %cst_19 = arith.constant dense<0.000000e+00> : vector<256xf32>
    %56 = vector.multi_reduction <add>, %55, %cst_19 [1] : vector<256x256xf32> to vector<256xf32>
    %57 = vector.shape_cast %56 : vector<256xf32> to vector<256x1xf32>
    %58 = tpu.reciprocal %57 : vector<256x1xf32> -> vector<256x1xf32>
    %59 = vector.broadcast %58 : vector<256x1xf32> to vector<256x256xf32>
    %60 = arith.mulf %55, %59 : vector<256x256xf32>
    %cst_20 = arith.constant dense<0.000000e+00> : vector<8x256xf32>
    %61 = tpu.matmul %48, %60, %cst_20 {dimension_numbers = #tpu.dot_dimension_numbers<[1], [1], [0], [0], [0, 0, 1, 0], [], []>} : vector<8x256xf32>, vector<256x256xf32>, vector<8x256xf32> -> vector<8x256xf32>
    %62 = vector.extract_strided_slice %17 {offsets = [0, 0], sizes = [32, 8], strides = [1, 1]} : vector<32x32xf32> to vector<32x8xf32>
    %cst_21 = arith.constant dense<0.000000e+00> : vector<32x256xf32>
    %63 = tpu.matmul %62, %61, %cst_21 {dimension_numbers = #tpu.dot_dimension_numbers<[1], [0], [0], [1], [0, 0, 1, 1], [], []>} : vector<32x8xf32>, vector<8x256xf32>, vector<32x256xf32> -> vector<32x256xf32>
    %64 = arith.addf %45, %63 : vector<32x256xf32>
    %65 = vector.extract_strided_slice %44 {offsets = [8, 0], sizes = [8, 256], strides = [1, 1]} : vector<96x256xf32> to vector<8x256xf32>
    %66 = vector.extract_strided_slice %44 {offsets = [40, 0], sizes = [8, 256], strides = [1, 1]} : vector<96x256xf32> to vector<8x256xf32>
    %67 = vector.extract_strided_slice %44 {offsets = [72, 0], sizes = [8, 256], strides = [1, 1]} : vector<96x256xf32> to vector<8x256xf32>
    %68 = tpu.transpose %65, [1, 0] : vector<8x256xf32> -> vector<256x8xf32>
    %cst_22 = arith.constant dense<0.000000e+00> : vector<256x256xf32>
    %69 = tpu.matmul %68, %66, %cst_22 {dimension_numbers = #tpu.dot_dimension_numbers<[1], [0], [0], [1], [0, 0, 1, 1], [], []>} : vector<256x8xf32>, vector<8x256xf32>, vector<256x256xf32> -> vector<256x256xf32>
    %cst_23 = arith.constant dense<0xFF800000> : vector<256xf32>
    %70 = vector.multi_reduction <maximumf>, %69, %cst_23 [1] : vector<256x256xf32> to vector<256xf32>
    %71 = vector.shape_cast %70 : vector<256xf32> to vector<256x1xf32>
    %72 = vector.broadcast %71 : vector<256x1xf32> to vector<256x256xf32>
    %73 = arith.subf %69, %72 : vector<256x256xf32>
    %74 = math.exp %73 : vector<256x256xf32>
    %cst_24 = arith.constant dense<0.000000e+00> : vector<256xf32>
    %75 = vector.multi_reduction <add>, %74, %cst_24 [1] : vector<256x256xf32> to vector<256xf32>
    %76 = vector.shape_cast %75 : vector<256xf32> to vector<256x1xf32>
    %77 = tpu.reciprocal %76 : vector<256x1xf32> -> vector<256x1xf32>
    %78 = vector.broadcast %77 : vector<256x1xf32> to vector<256x256xf32>
    %79 = arith.mulf %74, %78 : vector<256x256xf32>
    %cst_25 = arith.constant dense<0.000000e+00> : vector<8x256xf32>
    %80 = tpu.matmul %67, %79, %cst_25 {dimension_numbers = #tpu.dot_dimension_numbers<[1], [1], [0], [0], [0, 0, 1, 0], [], []>} : vector<8x256xf32>, vector<256x256xf32>, vector<8x256xf32> -> vector<8x256xf32>
    %81 = vector.extract_strided_slice %17 {offsets = [0, 8], sizes = [32, 8], strides = [1, 1]} : vector<32x32xf32> to vector<32x8xf32>
    %cst_26 = arith.constant dense<0.000000e+00> : vector<32x256xf32>
    %82 = tpu.matmul %81, %80, %cst_26 {dimension_numbers = #tpu.dot_dimension_numbers<[1], [0], [0], [1], [0, 0, 1, 1], [], []>} : vector<32x8xf32>, vector<8x256xf32>, vector<32x256xf32> -> vector<32x256xf32>
    %83 = arith.addf %64, %82 : vector<32x256xf32>
    %84 = vector.extract_strided_slice %44 {offsets = [16, 0], sizes = [8, 256], strides = [1, 1]} : vector<96x256xf32> to vector<8x256xf32>
    %85 = vector.extract_strided_slice %44 {offsets = [48, 0], sizes = [8, 256], strides = [1, 1]} : vector<96x256xf32> to vector<8x256xf32>
    %86 = vector.extract_strided_slice %44 {offsets = [80, 0], sizes = [8, 256], strides = [1, 1]} : vector<96x256xf32> to vector<8x256xf32>
    %87 = tpu.transpose %84, [1, 0] : vector<8x256xf32> -> vector<256x8xf32>
    %cst_27 = arith.constant dense<0.000000e+00> : vector<256x256xf32>
    %88 = tpu.matmul %87, %85, %cst_27 {dimension_numbers = #tpu.dot_dimension_numbers<[1], [0], [0], [1], [0, 0, 1, 1], [], []>} : vector<256x8xf32>, vector<8x256xf32>, vector<256x256xf32> -> vector<256x256xf32>
    %cst_28 = arith.constant dense<0xFF800000> : vector<256xf32>
    %89 = vector.multi_reduction <maximumf>, %88, %cst_28 [1] : vector<256x256xf32> to vector<256xf32>
    %90 = vector.shape_cast %89 : vector<256xf32> to vector<256x1xf32>
    %91 = vector.broadcast %90 : vector<256x1xf32> to vector<256x256xf32>
    %92 = arith.subf %88, %91 : vector<256x256xf32>
    %93 = math.exp %92 : vector<256x256xf32>
    %cst_29 = arith.constant dense<0.000000e+00> : vector<256xf32>
    %94 = vector.multi_reduction <add>, %93, %cst_29 [1] : vector<256x256xf32> to vector<256xf32>
    %95 = vector.shape_cast %94 : vector<256xf32> to vector<256x1xf32>
    %96 = tpu.reciprocal %95 : vector<256x1xf32> -> vector<256x1xf32>
    %97 = vector.broadcast %96 : vector<256x1xf32> to vector<256x256xf32>
    %98 = arith.mulf %93, %97 : vector<256x256xf32>
    %cst_30 = arith.constant dense<0.000000e+00> : vector<8x256xf32>
    %99 = tpu.matmul %86, %98, %cst_30 {dimension_numbers = #tpu.dot_dimension_numbers<[1], [1], [0], [0], [0, 0, 1, 0], [], []>} : vector<8x256xf32>, vector<256x256xf32>, vector<8x256xf32> -> vector<8x256xf32>
    %100 = vector.extract_strided_slice %17 {offsets = [0, 16], sizes = [32, 8], strides = [1, 1]} : vector<32x32xf32> to vector<32x8xf32>
    %cst_31 = arith.constant dense<0.000000e+00> : vector<32x256xf32>
    %101 = tpu.matmul %100, %99, %cst_31 {dimension_numbers = #tpu.dot_dimension_numbers<[1], [0], [0], [1], [0, 0, 1, 1], [], []>} : vector<32x8xf32>, vector<8x256xf32>, vector<32x256xf32> -> vector<32x256xf32>
    %102 = arith.addf %83, %101 : vector<32x256xf32>
    %103 = vector.extract_strided_slice %44 {offsets = [24, 0], sizes = [8, 256], strides = [1, 1]} : vector<96x256xf32> to vector<8x256xf32>
    %104 = vector.extract_strided_slice %44 {offsets = [56, 0], sizes = [8, 256], strides = [1, 1]} : vector<96x256xf32> to vector<8x256xf32>
    %105 = vector.extract_strided_slice %44 {offsets = [88, 0], sizes = [8, 256], strides = [1, 1]} : vector<96x256xf32> to vector<8x256xf32>
    %106 = tpu.transpose %103, [1, 0] : vector<8x256xf32> -> vector<256x8xf32>
    %cst_32 = arith.constant dense<0.000000e+00> : vector<256x256xf32>
    %107 = tpu.matmul %106, %104, %cst_32 {dimension_numbers = #tpu.dot_dimension_numbers<[1], [0], [0], [1], [0, 0, 1, 1], [], []>} : vector<256x8xf32>, vector<8x256xf32>, vector<256x256xf32> -> vector<256x256xf32>
    %cst_33 = arith.constant dense<0xFF800000> : vector<256xf32>
    %108 = vector.multi_reduction <maximumf>, %107, %cst_33 [1] : vector<256x256xf32> to vector<256xf32>
    %109 = vector.shape_cast %108 : vector<256xf32> to vector<256x1xf32>
    %110 = vector.broadcast %109 : vector<256x1xf32> to vector<256x256xf32>
    %111 = arith.subf %107, %110 : vector<256x256xf32>
    %112 = math.exp %111 : vector<256x256xf32>
    %cst_34 = arith.constant dense<0.000000e+00> : vector<256xf32>
    %113 = vector.multi_reduction <add>, %112, %cst_34 [1] : vector<256x256xf32> to vector<256xf32>
    %114 = vector.shape_cast %113 : vector<256xf32> to vector<256x1xf32>
    %115 = tpu.reciprocal %114 : vector<256x1xf32> -> vector<256x1xf32>
    %116 = vector.broadcast %115 : vector<256x1xf32> to vector<256x256xf32>
    %117 = arith.mulf %112, %116 : vector<256x256xf32>
    %cst_35 = arith.constant dense<0.000000e+00> : vector<8x256xf32>
    %118 = tpu.matmul %105, %117, %cst_35 {dimension_numbers = #tpu.dot_dimension_numbers<[1], [1], [0], [0], [0, 0, 1, 0], [], []>} : vector<8x256xf32>, vector<256x256xf32>, vector<8x256xf32> -> vector<8x256xf32>
    %119 = vector.extract_strided_slice %17 {offsets = [0, 24], sizes = [32, 8], strides = [1, 1]} : vector<32x32xf32> to vector<32x8xf32>
    %cst_36 = arith.constant dense<0.000000e+00> : vector<32x256xf32>
    %120 = tpu.matmul %119, %118, %cst_36 {dimension_numbers = #tpu.dot_dimension_numbers<[1], [0], [0], [1], [0, 0, 1, 1], [], []>} : vector<32x8xf32>, vector<8x256xf32>, vector<32x256xf32> -> vector<32x256xf32>
    %121 = arith.addf %102, %120 : vector<32x256xf32>
    %122 = arith.addf %3, %121 : vector<32x256xf32>
    %123 = vector.broadcast %13 : vector<32x1xf32> to vector<32x256xf32>
    %124 = arith.addf %122, %123 : vector<32x256xf32>
    %cst_37 = arith.constant dense<0.000000e+00> : vector<256xf32>
    %125 = vector.multi_reduction <add>, %124, %cst_37 [0] : vector<32x256xf32> to vector<256xf32>
    %126 = vector.shape_cast %125 : vector<256xf32> to vector<1x256xf32>
    %cst_38 = arith.constant 3.200000e+01 : f32
    %127 = vector.broadcast %cst_38 : f32 to vector<1x256xf32>
    %128 = arith.divf %126, %127 : vector<1x256xf32>
    %129 = vector.broadcast %128 : vector<1x256xf32> to vector<32x256xf32>
    %130 = arith.subf %124, %129 : vector<32x256xf32>
    %131 = arith.mulf %130, %130 : vector<32x256xf32>
    %cst_39 = arith.constant dense<0.000000e+00> : vector<256xf32>
    %132 = vector.multi_reduction <add>, %131, %cst_39 [0] : vector<32x256xf32> to vector<256xf32>
    %133 = vector.shape_cast %132 : vector<256xf32> to vector<1x256xf32>
    %cst_40 = arith.constant 3.200000e+01 : f32
    %134 = vector.broadcast %cst_40 : f32 to vector<1x256xf32>
    %135 = arith.divf %133, %134 : vector<1x256xf32>
    %136 = vector.broadcast %128 : vector<1x256xf32> to vector<32x256xf32>
    %137 = arith.subf %124, %136 : vector<32x256xf32>
    %cst_41 = arith.constant 9.99999974E-6 : f32
    %138 = vector.broadcast %cst_41 : f32 to vector<1x256xf32>
    %139 = arith.addf %135, %138 : vector<1x256xf32>
    %140 = math.rsqrt %139 : vector<1x256xf32>
    %141 = vector.broadcast %140 : vector<1x256xf32> to vector<32x256xf32>
    %142 = arith.mulf %137, %141 : vector<32x256xf32>
    %143 = vector.broadcast %10 : vector<32x1xf32> to vector<32x256xf32>
    %144 = arith.mulf %142, %143 : vector<32x256xf32>
    %145 = vector.broadcast %11 : vector<32x1xf32> to vector<32x256xf32>
    %146 = arith.addf %144, %145 : vector<32x256xf32>
    %cst_42 = arith.constant dense<0.000000e+00> : vector<32x256xf32>
    %147 = tpu.matmul %18, %146, %cst_42 {dimension_numbers = #tpu.dot_dimension_numbers<[1], [0], [0], [1], [0, 0, 1, 1], [], []>} : vector<32x32xf32>, vector<32x256xf32>, vector<32x256xf32> -> vector<32x256xf32>
    %148 = vector.broadcast %14 : vector<32x1xf32> to vector<32x256xf32>
    %149 = arith.addf %147, %148 : vector<32x256xf32>
    %cst_43 = arith.constant 5.000000e-01 : f32
    %150 = vector.broadcast %cst_43 : f32 to vector<32x256xf32>
    %151 = arith.mulf %150, %149 : vector<32x256xf32>
    %cst_44 = arith.constant 0.707106769 : f32
    %152 = vector.broadcast %cst_44 : f32 to vector<32x256xf32>
    %153 = arith.mulf %149, %152 : vector<32x256xf32>
    %154 = math.erf %153 : vector<32x256xf32>
    %cst_45 = arith.constant 1.000000e+00 : f32
    %155 = vector.broadcast %cst_45 : f32 to vector<32x256xf32>
    %156 = arith.addf %155, %154 : vector<32x256xf32>
    %157 = arith.mulf %151, %156 : vector<32x256xf32>
    %cst_46 = arith.constant dense<0.000000e+00> : vector<32x256xf32>
    %158 = tpu.matmul %19, %157, %cst_46 {dimension_numbers = #tpu.dot_dimension_numbers<[1], [0], [0], [1], [0, 0, 1, 1], [], []>} : vector<32x32xf32>, vector<32x256xf32>, vector<32x256xf32> -> vector<32x256xf32>
    %159 = arith.addf %124, %158 : vector<32x256xf32>
    %160 = vector.broadcast %15 : vector<32x1xf32> to vector<32x256xf32>
    %161 = arith.addf %159, %160 : vector<32x256xf32>
    %162 = vector.shape_cast %161 : vector<32x256xf32> to vector<1x32x256xf32>
    %c0_47 = arith.constant 0 : index
    %c0_48 = arith.constant 0 : index
    %c0_49 = arith.constant 0 : index
    %163 = vector.load %arg5[%c0_47, %c0_48, %c0_49] : memref<1x32x256xf32, #tpu.memory_space<vmem>>, vector<1x32x256xf32>
    tpu.vector_store %arg5[%c0_47, %c0_48, %c0_49], %162 {strides = array<i32>} : memref<1x32x256xf32, #tpu.memory_space<vmem>>, vector<1x32x256xf32>,
    return
  }
  func.func @transform_0(%arg0: i32) -> (i32, i32, i32) {
    %c0_i32 = arith.constant 0 : i32
    %c0_i32_0 = arith.constant 0 : i32
    %c0_i32_1 = arith.constant 0 : i32
    return %arg0, %c0_i32, %c0_i32_0 : i32, i32, i32
  }
  func.func @transform_1(%arg0: i32) -> (i32, i32) {
    %c0_i32 = arith.constant 0 : i32
    %c0_i32_0 = arith.constant 0 : i32
    %c0_i32_1 = arith.constant 0 : i32
    return %c0_i32, %c0_i32_0 : i32, i32
  }
  func.func @transform_2(%arg0: i32) -> (i32, i32, i32) {
    %c0_i32 = arith.constant 0 : i32
    %c0_i32_0 = arith.constant 0 : i32
    %c0_i32_1 = arith.constant 0 : i32
    %c0_i32_2 = arith.constant 0 : i32
    return %c0_i32, %c0_i32_0, %c0_i32_1 : i32, i32, i32
  }
  func.func @transform_3(%arg0: i32) -> (i32, i32, i32) {
    %c0_i32 = arith.constant 0 : i32
    %c0_i32_0 = arith.constant 0 : i32
    %c0_i32_1 = arith.constant 0 : i32
    %c0_i32_2 = arith.constant 0 : i32
    return %c0_i32, %c0_i32_0, %c0_i32_1 : i32, i32, i32
  }
  func.func @transform_4(%arg0: i32) -> (i32, i32, i32) {
    %c0_i32 = arith.constant 0 : i32
    %c0_i32_0 = arith.constant 0 : i32
    %c0_i32_1 = arith.constant 0 : i32
    return %arg0, %c0_i32, %c0_i32_0 : i32, i32, i32
  }
}

</mosaic_0001>

<llo_original>
// kernel: simple_vit_forward.1
$region0: #{simple_vit_forward.1}
  #allocation0 [shape = 'u32[]', space=smem, size = 0x4, offset = 0x4, fixed_abs, tag = 'smem constant byte address 0x4 - core index']
  #allocation1 [shape = 'u32[72,128]{1,0:T(1,128)}', space=vmem, size = 0x9000, scoped, tag = 'internal scratch']
  %s0 = inlined_call_operand.vmem [shape: f32[2,128,256], index: 0, kind: input, shape index: {}]
  %s1 = inlined_call_operand.vmem [shape: f32[32,128], index: 1, kind: input, shape index: {}]
  %s2 = inlined_call_operand.vmem [shape: f32[1,192,32], index: 2, kind: input, shape index: {}]
  %s3 = inlined_call_operand.vmem [shape: f32[1,320,1], index: 3, kind: input, shape index: {}]
  %s4 = inlined_call_operand.vmem [shape: f32[2,32,256], index: 4, kind: output, shape index: {}]
  %s5 = sld [smem:[#allocation0]]
  $region49: #{simple_vit_forward.1} parent=0
    _
  %s7 = ssub.s32 1, %s5
  %s8 = scalar_select 0, %s7, %s5
  loop: start=0, step=1, limit=4
  $region2: #{simple_vit_forward.1} parent=0 // loop_pre_header
    _
  $region3: #{simple_vit_forward.1} parent=0 // loop_header
    %s10 = sphi 0, %s14
    %p11 = scmp.ge.s32.totalorder %s10, 4
    %s20 = sphi 0, %s22
    %s23 = sphi 0, %s20
    %s24 = sphi 0, %s23
    %s40 = sphi 0, %s24
    %s44 = sphi 0, %s44
    %s46 = sphi 0, %s44
    %s47 = sphi 0, %s46
    %s61 = sphi 0, %s47
    %s65 = sphi 0, %s65
    %s67 = sphi 0, %s65
    %s68 = sphi 0, %s67
    %s82 = sphi 0, %s68
    %s86 = sphi 0, %s86
    %s88 = sphi 0, %s86
    %s89 = sphi 0, %s88
    %s103 = sphi 0, %s89
    %s109 = sphi 0, %s111
    %s112 = sphi 0, %s109
    %s113 = sphi 0, %s112
    %s129 = sphi 0, %s113
  $region4: #{simple_vit_forward.1} parent=0 // loop_header_branch
    %13 = sbr.rel (%p11) target = $region8
  $region5: #{simple_vit_forward.1} parent=0 // loop_body
    %s15 = ssub.s32 %s10, 1
    %s16 = ssub.s32 %s10, 2
    %s17 = sadd.s32 %s10, 1
    %s18 = ssub.s32 %s10, %s17
    %p19 = scmp.eq.s32.totalorder %s18, 0
    %s21 = sadd.s32 %s20, 1
    %s22 = scalar_select %p19, %s20, %s21
    %p25 = pneg %p19
    %p26 = scmp.eq.s32.totalorder %s10, 1
    %p27 = por %p25, %p26
    %p28 = scmp.ne.s32.totalorder %s20, %s23
    %p29 = scmp.eq.s32.totalorder %s10, 0
    %p30 = por %p28, %p29
    %p31 = scmp.ne.s32.totalorder %s20, %s23
    %p32 = scmp.eq.s32.totalorder %s15, 1
    %p33 = por %p31, %p32
    %p34 = scmp.ne.s32.totalorder %s23, %s24
    %p35 = scmp.eq.s32.totalorder %s15, 0
    %p36 = por %p34, %p35
    %p37 = scmp.ne.s32.totalorder %s23, %s24
    %p38 = scmp.eq.s32.totalorder %s16, 1
    %p39 = por %p37, %p38
    %p41 = scmp.ne.s32.totalorder %s24, %s40
    %p42 = scmp.eq.s32.totalorder %s16, 0
    %p43 = por %p41, %p42
    %s45 = sadd.s32 %s44, 1
    %p48 = scmp.eq.s32.totalorder %s10, 1
    %p49 = scmp.ne.s32.totalorder %s44, %s46
    %p50 = scmp.eq.s32.totalorder %s10, 0
    %p51 = por %p49, %p50
    %p52 = scmp.ne.s32.totalorder %s44, %s46
    %p53 = scmp.eq.s32.totalorder %s15, 1
    %p54 = por %p52, %p53
    %p55 = scmp.ne.s32.totalorder %s46, %s47
    %p56 = scmp.eq.s32.totalorder %s15, 0
    %p57 = por %p55, %p56
    %p58 = scmp.ne.s32.totalorder %s46, %s47
    %p59 = scmp.eq.s32.totalorder %s16, 1
    %p60 = por %p58, %p59
    %p62 = scmp.ne.s32.totalorder %s47, %s61
    %p63 = scmp.eq.s32.totalorder %s16, 0
    %p64 = por %p62, %p63
    %s66 = sadd.s32 %s65, 1
    %p69 = scmp.eq.s32.totalorder %s10, 1
    %p70 = scmp.ne.s32.totalorder %s65, %s67
    %p71 = scmp.eq.s32.totalorder %s10, 0
    %p72 = por %p70, %p71
    %p73 = scmp.ne.s32.totalorder %s65, %s67
    %p74 = scmp.eq.s32.totalorder %s15, 1
    %p75 = por %p73, %p74
    %p76 = scmp.ne.s32.totalorder %s67, %s68
    %p77 = scmp.eq.s32.totalorder %s15, 0
    %p78 = por %p76, %p77
    %p79 = scmp.ne.s32.totalorder %s67, %s68
    %p80 = scmp.eq.s32.totalorder %s16, 1
    %p81 = por %p79, %p80
    %p83 = scmp.ne.s32.totalorder %s68, %s82
    %p84 = scmp.eq.s32.totalorder %s16, 0
    %p85 = por %p83, %p84
    %s87 = sadd.s32 %s86, 1
    %p90 = scmp.eq.s32.totalorder %s10, 1
    %p91 = scmp.ne.s32.totalorder %s86, %s88
    %p92 = scmp.eq.s32.totalorder %s10, 0
    %p93 = por %p91, %p92
    %p94 = scmp.ne.s32.totalorder %s86, %s88
    %p95 = scmp.eq.s32.totalorder %s15, 1
    %p96 = por %p94, %p95
    %p97 = scmp.ne.s32.totalorder %s88, %s89
    %p98 = scmp.eq.s32.totalorder %s15, 0
    %p99 = por %p97, %p98
    %p100 = scmp.ne.s32.totalorder %s88, %s89
    %p101 = scmp.eq.s32.totalorder %s16, 1
    %p102 = por %p100, %p101
    %p104 = scmp.ne.s32.totalorder %s89, %s103
    %p105 = scmp.eq.s32.totalorder %s16, 0
    %p106 = por %p104, %p105
    %s107 = ssub.s32 %s10, %s17
    %p108 = scmp.eq.s32.totalorder %s107, 0
    %s110 = sadd.s32 %s109, 1
    %s111 = scalar_select %p108, %s109, %s110
    %p114 = pneg %p108
    %p115 = scmp.eq.s32.totalorder %s10, 1
    %p116 = por %p114, %p115
    %p117 = scmp.ne.s32.totalorder %s109, %s112
    %p118 = scmp.eq.s32.totalorder %s10, 0
    %p119 = por %p117, %p118
    %p120 = scmp.ne.s32.totalorder %s109, %s112
    %p121 = scmp.eq.s32.totalorder %s15, 1
    %p122 = por %p120, %p121
    %p123 = scmp.ne.s32.totalorder %s112, %s113
    %p124 = scmp.eq.s32.totalorder %s15, 0
    %p125 = por %p123, %p124
    %p126 = scmp.ne.s32.totalorder %s112, %s113
    %p127 = scmp.eq.s32.totalorder %s16, 1
    %p128 = por %p126, %p127
    %p130 = scmp.ne.s32.totalorder %s113, %s129
    %p131 = scmp.eq.s32.totalorder %s16, 0
    %p132 = por %p130, %p131
    %p133 = scmp.le.s32.totalorder 1, %s10
    %p134 = scmp.lt.s32.totalorder %s10, 3
    %p135 = pnand %p133, %p134
    %p136 = pneg %p135
    // Predicated region
    $region9: #{simple_vit_forward.1} parent=5 // pred_check
      _
    $region10: #{simple_vit_forward.1} parent=5 // pred_check_branch
      %138 = sbr.rel (%p135) target = $region12
    $region11: #{simple_vit_forward.1} parent=5 // pred_region
      %s139 = ssub.s32 %s10, 1
      // Predicated region
      $region13: #{simple_vit_forward.1} parent=11 // pred_check
        %p140 = pneg %p57
      $region14: #{simple_vit_forward.1} parent=11 // pred_check_branch
        %142 = sbr.rel (%p140) target = $region16
      $region15: #{simple_vit_forward.1} parent=11 // pred_region
        _
      $region16: #{simple_vit_forward.1} parent=11 // pred_fallthru
        _
      // Predicated region
      $region17: #{simple_vit_forward.1} parent=11 // pred_check
        %p143 = pneg %p78
      $region18: #{simple_vit_forward.1} parent=11 // pred_check_branch
        %145 = sbr.rel (%p143) target = $region20
      $region19: #{simple_vit_forward.1} parent=11 // pred_region
        _
      $region20: #{simple_vit_forward.1} parent=11 // pred_fallthru
        _
      // Predicated region
      $region21: #{simple_vit_forward.1} parent=11 // pred_check
        %p146 = pneg %p99
      $region22: #{simple_vit_forward.1} parent=11 // pred_check_branch
        %148 = sbr.rel (%p146) target = $region24
      $region23: #{simple_vit_forward.1} parent=11 // pred_region
        _
      $region24: #{simple_vit_forward.1} parent=11 // pred_fallthru
        _
    $region12: #{simple_vit_forward.1} parent=5 // pred_fallthru
      _
    %p149 = scmp.lt.s32.totalorder %s10, 2
    // Predicated region
    $region25: #{simple_vit_forward.1} parent=5 // pred_check
      %p150 = pneg %p149
    $region26: #{simple_vit_forward.1} parent=5 // pred_check_branch
      %152 = sbr.rel (%p150) target = $region28
    $region27: #{simple_vit_forward.1} parent=5 // pred_region
      // Predicated region
      $region29: #{simple_vit_forward.1} parent=27 // pred_check
        %p153 = pneg %p30
      $region30: #{simple_vit_forward.1} parent=27 // pred_check_branch
        %155 = sbr.rel (%p153) target = $region32
      $region31: #{simple_vit_forward.1} parent=27 // pred_region
        %p156 = scmp.lt.s32.totalorder %s10, 1
        %s157 = scalar_select %p156, %s10, 1
        %s158 = smul.addr %s157, 32
        %s159 = smul.addr %s158, 8
        %s160 = scalar_lea.vmem %s0, %s159
      $region32: #{simple_vit_forward.1} parent=27 // pred_fallthru
        _
    $region28: #{simple_vit_forward.1} parent=5 // pred_fallthru
      _
    %p161 = scmp.le.s32.totalorder 1, %s10
    %p162 = scmp.lt.s32.totalorder %s10, 3
    %p163 = pnand %p161, %p162
    %p164 = pneg %p163
    // Predicated region
    $region33: #{simple_vit_forward.1} parent=5 // pred_check
      _
    $region34: #{simple_vit_forward.1} parent=5 // pred_check_branch
      %166 = sbr.rel (%p163) target = $region36
    $region35: #{simple_vit_forward.1} parent=5 // pred_region
      %s167 = ssub.s32 %s10, 1
      %p168 = scmp.lt.s32.totalorder %s15, 1
      %s169 = scalar_select %p168, %s15, 1
      %s170 = smul.addr %s169, 32
      %s171 = smul.addr %s170, 8
      %s172 = scalar_lea.vmem %s0, %s171
      %p173 = pneg %p36
      %p174 = pneg %p33
      %p175 = pneg %p57
      %p176 = pneg %p54
      %p177 = pneg %p78
      %p178 = pneg %p75
      %p179 = pneg %p99
      %p180 = pneg %p96
      %p181 = pneg %p125
      %p182 = pneg %p122
      %p183 = scmp.lt.s32.totalorder %s15, 1
      %s184 = scalar_select %p183, %s15, 1
      %s185 = smul.addr %s184, 8
      %s186 = smul.addr %s185, 8
      %s187 = scalar_lea.vmem %s4, %s186
      %p188 = scmp.lt.s32.totalorder %s15, 1
      %s189 = scalar_select %p188, %s15, 1
      %s190 = smul.addr %s189, 32
      %s191 = smul.addr %s190, 8
      %s192 = scalar_lea.vmem %s0, %s191
      %p193 = scmp.lt.s32.totalorder %s15, 1
      %s194 = scalar_select %p193, %s15, 1
      %s195 = smul.addr %s194, 8
      %s196 = smul.addr %s195, 8
      %s197 = scalar_lea.vmem %s4, %s196
      %v198 = vld [vmem:[%s1] sm:$0xff]
      %v199 = vld [vmem:[%s1 + $0x8] sm:$0xff]
      %v200 = vld [vmem:[%s1 + $0x10] sm:$0xff]
      %v201 = vld [vmem:[%s1 + $0x18] sm:$0xff]
      %v202 = vld [vmem:[%s192] sm:$0xff]
      %v203 = vld [vmem:[%s192 + $0x8] sm:$0xff]
      %v204 = vld [vmem:[%s192 + $0x10] sm:$0xff]
      %v205 = vld [vmem:[%s192 + $0x18] sm:$0xff]
      %v206 = vld [vmem:[%s192 + $0x20] sm:$0xff]
      %v207 = vld [vmem:[%s192 + $0x28] sm:$0xff]
      %v208 = vld [vmem:[%s192 + $0x30] sm:$0xff]
      %v209 = vld [vmem:[%s192 + $0x38] sm:$0xff]
      %v210 = vld [vmem:[%s192 + $0x40] sm:$0xff]
      %v211 = vld [vmem:[%s192 + $0x48] sm:$0xff]
      %v212 = vld [vmem:[%s192 + $0x50] sm:$0xff]
      %v213 = vld [vmem:[%s192 + $0x58] sm:$0xff]
      %v214 = vld [vmem:[%s192 + $0x60] sm:$0xff]
      %v215 = vld [vmem:[%s192 + $0x68] sm:$0xff]
      %v216 = vld [vmem:[%s192 + $0x70] sm:$0xff]
      %v217 = vld [vmem:[%s192 + $0x78] sm:$0xff]
      %v218 = vld [vmem:[%s192 + $0x80] sm:$0xff]
      %v219 = vld [vmem:[%s192 + $0x88] sm:$0xff]
      %v220 = vld [vmem:[%s192 + $0x90] sm:$0xff]
      %v221 = vld [vmem:[%s192 + $0x98] sm:$0xff]
      %v222 = vld [vmem:[%s192 + $0xa0] sm:$0xff]
      %v223 = vld [vmem:[%s192 + $0xa8] sm:$0xff]
      %v224 = vld [vmem:[%s192 + $0xb0] sm:$0xff]
      %v225 = vld [vmem:[%s192 + $0xb8] sm:$0xff]
      %v226 = vld [vmem:[%s192 + $0xc0] sm:$0xff]
      %v227 = vld [vmem:[%s192 + $0xc8] sm:$0xff]
      %v228 = vld [vmem:[%s192 + $0xd0] sm:$0xff]
      %v229 = vld [vmem:[%s192 + $0xd8] sm:$0xff]
      %v230 = vld [vmem:[%s192 + $0xe0] sm:$0xff]
      %v231 = vld [vmem:[%s192 + $0xe8] sm:$0xff]
      %v232 = vld [vmem:[%s192 + $0xf0] sm:$0xff]
      %v233 = vld [vmem:[%s192 + $0xf8] sm:$0xff]
      %234 = vmatpush.msra.mxu0 %v232
      %235 = vmatpush.msra.mxu0 %v230
      %236 = vmatpush.msra.mxu0 %v228
      %237 = vmatpush.msra.mxu0 %v226
      %238 = vmatpush.msra.mxu0 %v224
      %239 = vmatpush.msra.mxu0 %v222
      %240 = vmatpush.msra.mxu0 %v220
      %241 = vmatpush.msra.mxu0 %v218
      %242 = vmatpush.msra.mxu0 %v216
      %243 = vmatpush.msra.mxu0 %v214
      %244 = vmatpush.msra.mxu0 %v212
      %245 = vmatpush.msra.mxu0 %v210
      %246 = vmatpush.msra.mxu0 %v208
      %247 = vmatpush.msra.mxu0 %v206
      %248 = vmatpush.msra.mxu0 %v204
      %249 = vmatpush.msra.mxu0 %v202
      %250 = vmatmul.f32.gmra.mxu0 %v198
      %v251 = vpop.f32.mrf.mxu0
      %v252 = vadd.f32 0.0, %v251
      %253 = vmatmul.f32.gmra.mxu0 %v199
      %v254 = vpop.f32.mrf.mxu0
      %v255 = vadd.f32 0.0, %v254
      %256 = vmatmul.f32.gmra.mxu0 %v200
      %v257 = vpop.f32.mrf.mxu0
      %v258 = vadd.f32 0.0, %v257
      %259 = vmatmul.f32.gmra.mxu0 %v201
      %v260 = vpop.f32.mrf.mxu0
      %v261 = vadd.f32 0.0, %v260
      %262 = vdwg.mxu0
      %263 = vmatpush.msra.mxu0 %v233
      %264 = vmatpush.msra.mxu0 %v231
      %265 = vmatpush.msra.mxu0 %v229
      %266 = vmatpush.msra.mxu0 %v227
      %267 = vmatpush.msra.mxu0 %v225
      %268 = vmatpush.msra.mxu0 %v223
      %269 = vmatpush.msra.mxu0 %v221
      %270 = vmatpush.msra.mxu0 %v219
      %271 = vmatpush.msra.mxu0 %v217
      %272 = vmatpush.msra.mxu0 %v215
      %273 = vmatpush.msra.mxu0 %v213
      %274 = vmatpush.msra.mxu0 %v211
      %275 = vmatpush.msra.mxu0 %v209
      %276 = vmatpush.msra.mxu0 %v207
      %277 = vmatpush.msra.mxu0 %v205
      %278 = vmatpush.msra.mxu0 %v203
      %279 = vmatmul.f32.gmra.mxu0 %v198
      %v280 = vpop.f32.mrf.mxu0
      %v281 = vadd.f32 0.0, %v280
      %282 = vmatmul.f32.gmra.mxu0 %v199
      %v283 = vpop.f32.mrf.mxu0
      %v284 = vadd.f32 0.0, %v283
      %285 = vmatmul.f32.gmra.mxu0 %v200
      %v286 = vpop.f32.mrf.mxu0
      %v287 = vadd.f32 0.0, %v286
      %288 = vmatmul.f32.gmra.mxu0 %v201
      %v289 = vpop.f32.mrf.mxu0
      %v290 = vadd.f32 0.0, %v289
      %291 = vdwg.mxu0
      %v292 = vld [vmem:[%s2] sm:$0xff]
      %v293 = vld [vmem:[%s2 + $0x8] sm:$0xff]
      %v294 = vld [vmem:[%s2 + $0x10] sm:$0xff]
      %v295 = vld [vmem:[%s2 + $0x18] sm:$0xff]
      %v296 = vld [vmem:[%s2 + $0x20] sm:$0xff]
      %v297 = vld [vmem:[%s2 + $0x28] sm:$0xff]
      %v298 = vld [vmem:[%s2 + $0x30] sm:$0xff]
      %v299 = vld [vmem:[%s2 + $0x38] sm:$0xff]
      %v300 = vld [vmem:[%s2 + $0x40] sm:$0xff]
      %v301 = vld [vmem:[%s2 + $0x48] sm:$0xff]
      %v302 = vld [vmem:[%s2 + $0x50] sm:$0xff]
      %v303 = vld [vmem:[%s2 + $0x58] sm:$0xff]
      %v304 = vld [vmem:[%s2 + $0x60] sm:$0xff]
      %v305 = vld [vmem:[%s2 + $0x68] sm:$0xff]
      %v306 = vld [vmem:[%s2 + $0x70] sm:$0xff]
      %v307 = vld [vmem:[%s2 + $0x78] sm:$0xff]
      %v308 = vld [vmem:[%s2 + $0x80] sm:$0xff]
      %v309 = vld [vmem:[%s2 + $0x88] sm:$0xff]
      %v310 = vld [vmem:[%s2 + $0x90] sm:$0xff]
      %v311 = vld [vmem:[%s2 + $0x98] sm:$0xff]
      %v312 = vld [vmem:[%s2 + $0xa0] sm:$0xff]
      %v313 = vld [vmem:[%s2 + $0xa8] sm:$0xff]
      %v314 = vld [vmem:[%s2 + $0xb0] sm:$0xff]
      %v315 = vld [vmem:[%s2 + $0xb8] sm:$0xff]
      %v316 = vld [vmem:[%s3] sm:$0xff]
      %v317 = vld [vmem:[%s3 + $0x8] sm:$0xff]
      %v318 = vld [vmem:[%s3 + $0x10] sm:$0xff]
      %v319 = vld [vmem:[%s3 + $0x18] sm:$0xff]
      %v320 = vld [vmem:[%s3 + $0x20] sm:$0xff]
      %v321 = vld [vmem:[%s3 + $0x28] sm:$0xff]
      %v322 = vld [vmem:[%s3 + $0x30] sm:$0xff]
      %v323 = vld [vmem:[%s3 + $0x38] sm:$0xff]
      %v324 = vld [vmem:[%s3 + $0x40] sm:$0xff]
      %v325 = vld [vmem:[%s3 + $0x48] sm:$0xff]
      %v326 = vld [vmem:[%s3 + $0x50] sm:$0xff]
      %v327 = vld [vmem:[%s3 + $0x58] sm:$0xff]
      %v328 = vld [vmem:[%s3 + $0x60] sm:$0xff]
      %v329 = vld [vmem:[%s3 + $0x68] sm:$0xff]
      %v330 = vld [vmem:[%s3 + $0x70] sm:$0xff]
      %v331 = vld [vmem:[%s3 + $0x78] sm:$0xff]
      %v332 = vld [vmem:[%s3 + $0x80] sm:$0xff]
      %v333 = vld [vmem:[%s3 + $0x88] sm:$0xff]
      %v334 = vld [vmem:[%s3 + $0x90] sm:$0xff]
      %v335 = vld [vmem:[%s3 + $0x98] sm:$0xff]
      %v336 = vld [vmem:[%s3 + $0xa0] sm:$0xff]
      %v337 = vld [vmem:[%s3 + $0xa8] sm:$0xff]
      %v338 = vld [vmem:[%s3 + $0xb0] sm:$0xff]
      %v339 = vld [vmem:[%s3 + $0xb8] sm:$0xff]
      %v340 = vld [vmem:[%s3 + $0xc0] sm:$0xff]
      %v341 = vld [vmem:[%s3 + $0xc8] sm:$0xff]
      %v342 = vld [vmem:[%s3 + $0xd0] sm:$0xff]
      %v343 = vld [vmem:[%s3 + $0xd8] sm:$0xff]
      %v344 = vld [vmem:[%s3 + $0xe0] sm:$0xff]
      %v345 = vld [vmem:[%s3 + $0xe8] sm:$0xff]
      %v346 = vld [vmem:[%s3 + $0xf0] sm:$0xff]
      %v347 = vld [vmem:[%s3 + $0xf8] sm:$0xff]
      %v348 = vld [vmem:[%s3 + $0x100] sm:$0xff]
      %v349 = vld [vmem:[%s3 + $0x108] sm:$0xff]
      %v350 = vld [vmem:[%s3 + $0x110] sm:$0xff]
      %v351 = vld [vmem:[%s3 + $0x118] sm:$0xff]
      %v352 = vld [vmem:[%s3 + $0x120] sm:$0xff]
      %v353 = vld [vmem:[%s3 + $0x128] sm:$0xff]
      %v354 = vld [vmem:[%s3 + $0x130] sm:$0xff]
      %v355 = vld [vmem:[%s3 + $0x138] sm:$0xff]
      %v356 = vadd.f32 %v252, %v255
      %v357 = vadd.f32 %v356, %v258
      %v358 = vadd.f32 %v357, %v261
      %v359 = vrot.slane %v358, 4
      %v360 = vadd.f32 %v358, %v359
      %v361 = vrot.slane %v360, 2
      %v362 = vadd.f32 %v360, %v361
      %v363 = vrot.slane %v362, 1
      %v364 = vadd.f32 %v362, %v363
      %v365 = vadd.f32 %v281, %v284
      %v366 = vadd.f32 %v365, %v287
      %v367 = vadd.f32 %v366, %v290
      %v368 = vrot.slane %v367, 4
      %v369 = vadd.f32 %v367, %v368
      %v370 = vrot.slane %v369, 2
      %v371 = vadd.f32 %v369, %v370
      %v372 = vrot.slane %v371, 1
      %v373 = vadd.f32 %v371, %v372
      %v374 = vrcp.pop 32.0
      %v375 = vmul.f32 32.0, %v374
      %v376 = vsub.f32 1.0, %v375
      %v377 = vmul.f32 %v374, %v376
      %v378 = vadd.f32 %v374, %v377
      %vm379 = vweird.f32 %v374
      %v380 = vsel %vm379, %v374, %v378
      %v381 = vmul.f32 %v364, %v380
      %v382 = vmul.f32 %v373, %v380
      %v383 = vsub.f32 %v252, %v381
      %v384 = vsub.f32 %v281, %v382
      %v385 = vsub.f32 %v255, %v381
      %v386 = vsub.f32 %v284, %v382
      %v387 = vsub.f32 %v258, %v381
      %v388 = vsub.f32 %v287, %v382
      %v389 = vsub.f32 %v261, %v381
      %v390 = vsub.f32 %v290, %v382
      %v391 = vmul.f32 %v383, %v383
      %v392 = vmul.f32 %v384, %v384
      %v393 = vmul.f32 %v385, %v385
      %v394 = vmul.f32 %v386, %v386
      %v395 = vmul.f32 %v387, %v387
      %v396 = vmul.f32 %v388, %v388
      %v397 = vmul.f32 %v389, %v389
      %v398 = vmul.f32 %v390, %v390
      %v399 = vadd.f32 %v391, %v393
      %v400 = vadd.f32 %v399, %v395
      %v401 = vadd.f32 %v400, %v397
      %v402 = vrot.slane %v401, 4
      %v403 = vadd.f32 %v401, %v402
      %v404 = vrot.slane %v403, 2
      %v405 = vadd.f32 %v403, %v404
      %v406 = vrot.slane %v405, 1
      %v407 = vadd.f32 %v405, %v406
      %v408 = vadd.f32 %v392, %v394
      %v409 = vadd.f32 %v408, %v396
      %v410 = vadd.f32 %v409, %v398
      %v411 = vrot.slane %v410, 4
      %v412 = vadd.f32 %v410, %v411
      %v413 = vrot.slane %v412, 2
      %v414 = vadd.f32 %v412, %v413
      %v415 = vrot.slane %v414, 1
      %v416 = vadd.f32 %v414, %v415
      %v417 = vmul.f32 %v407, %v380
      %v418 = vmul.f32 %v416, %v380
      %v419 = vadd.f32 %v417, 1e-05
      %v420 = vadd.f32 %v418, 1e-05
      %v421 = vrsqrt.pop %v419
      %v422 = vmul.f32 %v421, %v419
      %v423 = vmul.f32 %v422, %v421
      %v424 = vmul.f32 0.5, %v423
      %v425 = vsub.f32 1.5, %v424
      %v426 = vmul.f32 %v421, %v425
      %vm427 = vweird.f32 %v419
      %vm428 = vweird.f32 %v421
      %vm429 = vmor %vm427, %vm428
      %v430 = vsel %vm429, %v421, %v426
      %v431 = vrsqrt.pop %v420
      %v432 = vmul.f32 %v431, %v420
      %v433 = vmul.f32 %v432, %v431
      %v434 = vmul.f32 0.5, %v433
      %v435 = vsub.f32 1.5, %v434
      %v436 = vmul.f32 %v431, %v435
      %vm437 = vweird.f32 %v420
      %vm438 = vweird.f32 %v431
      %vm439 = vmor %vm437, %vm438
      %v440 = vsel %vm439, %v431, %v436
      %v441 = vmul.f32 %v383, %v430
      %v442 = vmul.f32 %v384, %v440
      %v443 = vmul.f32 %v385, %v430
      %v444 = vmul.f32 %v386, %v440
      %v445 = vmul.f32 %v387, %v430
      %v446 = vmul.f32 %v388, %v440
      %v447 = vmul.f32 %v389, %v430
      %v448 = vmul.f32 %v390, %v440
      %450 = vset.pattern.permute.xlu0 0
      %451 = vperm.xlu0 %450, %v316
      %v452 = vpop.permute.xlu0 %451
      %455 = vset.pattern.permute.xlu0 0
      %456 = vperm.xlu0 %455, %v317
      %v457 = vpop.permute.xlu0 %456
      %460 = vset.pattern.permute.xlu0 0
      %461 = vperm.xlu0 %460, %v318
      %v462 = vpop.permute.xlu0 %461
      %465 = vset.pattern.permute.xlu0 0
      %466 = vperm.xlu0 %465, %v319
      %v467 = vpop.permute.xlu0 %466
      %v469 = vmul.f32 %v441, %v452
      %v470 = vmul.f32 %v442, %v452
      %v471 = vmul.f32 %v443, %v457
      %v472 = vmul.f32 %v444, %v457
      %v473 = vmul.f32 %v445, %v462
      %v474 = vmul.f32 %v446, %v462
      %v475 = vmul.f32 %v447, %v467
      %v476 = vmul.f32 %v448, %v467
      %478 = vset.pattern.permute.xlu0 0
      %479 = vperm.xlu0 %478, %v320
      %v480 = vpop.permute.xlu0 %479
      %483 = vset.pattern.permute.xlu0 0
      %484 = vperm.xlu0 %483, %v321
      %v485 = vpop.permute.xlu0 %484
      %488 = vset.pattern.permute.xlu0 0
      %489 = vperm.xlu0 %488, %v322
      %v490 = vpop.permute.xlu0 %489
      %493 = vset.pattern.permute.xlu0 0
      %494 = vperm.xlu0 %493, %v323
      %v495 = vpop.permute.xlu0 %494
      %v497 = vadd.f32 %v469, %v480
      %v498 = vadd.f32 %v470, %v480
      %v499 = vadd.f32 %v471, %v485
      %v500 = vadd.f32 %v472, %v485
      %v501 = vadd.f32 %v473, %v490
      %v502 = vadd.f32 %v474, %v490
      %v503 = vadd.f32 %v475, %v495
      %v504 = vadd.f32 %v476, %v495
      %506 = vset.pattern.permute.xlu0 0
      %507 = vperm.xlu0 %506, %v324
      %v508 = vpop.permute.xlu0 %507
      %511 = vset.pattern.permute.xlu0 0
      %512 = vperm.xlu0 %511, %v325
      %v513 = vpop.permute.xlu0 %512
      %516 = vset.pattern.permute.xlu0 0
      %517 = vperm.xlu0 %516, %v326
      %v518 = vpop.permute.xlu0 %517
      %521 = vset.pattern.permute.xlu0 0
      %522 = vperm.xlu0 %521, %v327
      %v523 = vpop.permute.xlu0 %522
      %526 = vset.pattern.permute.xlu0 0
      %527 = vperm.xlu0 %526, %v328
      %v528 = vpop.permute.xlu0 %527
      %531 = vset.pattern.permute.xlu0 0
      %532 = vperm.xlu0 %531, %v329
      %v533 = vpop.permute.xlu0 %532
      %536 = vset.pattern.permute.xlu0 0
      %537 = vperm.xlu0 %536, %v330
      %v538 = vpop.permute.xlu0 %537
      %541 = vset.pattern.permute.xlu0 0
      %542 = vperm.xlu0 %541, %v331
      %v543 = vpop.permute.xlu0 %542
      %546 = vset.pattern.permute.xlu0 0
      %547 = vperm.xlu0 %546, %v332
      %v548 = vpop.permute.xlu0 %547
      %551 = vset.pattern.permute.xlu0 0
      %552 = vperm.xlu0 %551, %v333
      %v553 = vpop.permute.xlu0 %552
      %556 = vset.pattern.permute.xlu0 0
      %557 = vperm.xlu0 %556, %v334
      %v558 = vpop.permute.xlu0 %557
      %561 = vset.pattern.permute.xlu0 0
      %562 = vperm.xlu0 %561, %v335
      %v563 = vpop.permute.xlu0 %562
      %vm565 = vcmask 261120
      %v567 = vsel %vm565, %v292, 0
      %v570 = vsel %vm565, %v293, 0
      %v573 = vsel %vm565, %v294, 0
      %v576 = vsel %vm565, %v295, 0
      %v579 = vsel %vm565, %v296, 0
      %v582 = vsel %vm565, %v297, 0
      %v585 = vsel %vm565, %v298, 0
      %v588 = vsel %vm565, %v299, 0
      %v591 = vsel %vm565, %v300, 0
      %v594 = vsel %vm565, %v301, 0
      %v597 = vsel %vm565, %v302, 0
      %v600 = vsel %vm565, %v303, 0
      %602 = vmatpush.msra.mxu0 0.0
      %603 = vmatpush.msra.mxu0 0.0
      %604 = vmatpush.msra.mxu0 0.0
      %605 = vmatpush.msra.mxu0 0.0
      %606 = vmatpush.msra.mxu0 0.0
      %607 = vmatpush.msra.mxu0 0.0
      %608 = vmatpush.msra.mxu0 0.0
      %609 = vmatpush.msra.mxu0 0.0
      %610 = vmatpush.msra.mxu0 0.0
      %611 = vmatpush.msra.mxu0 0.0
      %612 = vmatpush.msra.mxu0 0.0
      %613 = vmatpush.msra.mxu0 0.0
      %614 = vmatpush.msra.mxu0 %v503
      %615 = vmatpush.msra.mxu0 %v501
      %616 = vmatpush.msra.mxu0 %v499
      %617 = vmatpush.msra.mxu0 %v497
      %618 = vmatmul.f32.gmra.mxu0 %v567
      %v619 = vpop.f32.mrf.mxu0
      %v620 = vadd.f32 %v508, %v619
      %621 = vmatmul.f32.gmra.mxu0 %v570
      %v622 = vpop.f32.mrf.mxu0
      %v623 = vadd.f32 %v513, %v622
      %624 = vmatmul.f32.gmra.mxu0 %v573
      %v625 = vpop.f32.mrf.mxu0
      %v626 = vadd.f32 %v518, %v625
      %627 = vmatmul.f32.gmra.mxu0 %v576
      %v628 = vpop.f32.mrf.mxu0
      %v629 = vadd.f32 %v523, %v628
      %630 = vmatmul.f32.gmra.mxu0 %v579
      %v631 = vpop.f32.mrf.mxu0
      %v632 = vadd.f32 %v528, %v631
      %633 = vmatmul.f32.gmra.mxu0 %v582
      %v634 = vpop.f32.mrf.mxu0
      %v635 = vadd.f32 %v533, %v634
      %636 = vmatmul.f32.gmra.mxu0 %v585
      %v637 = vpop.f32.mrf.mxu0
      %v638 = vadd.f32 %v538, %v637
      %639 = vmatmul.f32.gmra.mxu0 %v588
      %v640 = vpop.f32.mrf.mxu0
      %v641 = vadd.f32 %v543, %v640
      %642 = vmatmul.f32.gmra.mxu0 %v591
      %v643 = vpop.f32.mrf.mxu0
      %v644 = vadd.f32 %v548, %v643
      %645 = vmatmul.f32.gmra.mxu0 %v594
      %v646 = vpop.f32.mrf.mxu0
      %v647 = vadd.f32 %v553, %v646
      %648 = vmatmul.f32.gmra.mxu0 %v597
      %v649 = vpop.f32.mrf.mxu0
      %v650 = vadd.f32 %v558, %v649
      %651 = vmatmul.f32.gmra.mxu0 %v600
      %v652 = vpop.f32.mrf.mxu0
      %v653 = vadd.f32 %v563, %v652
      %654 = vdwg.mxu0
      %655 = vmatpush.msra.mxu0 0.0
      %656 = vmatpush.msra.mxu0 0.0
      %657 = vmatpush.msra.mxu0 0.0
      %658 = vmatpush.msra.mxu0 0.0
      %659 = vmatpush.msra.mxu0 0.0
      %660 = vmatpush.msra.mxu0 0.0
      %661 = vmatpush.msra.mxu0 0.0
      %662 = vmatpush.msra.mxu0 0.0
      %663 = vmatpush.msra.mxu0 0.0
      %664 = vmatpush.msra.mxu0 0.0
      %665 = vmatpush.msra.mxu0 0.0
      %666 = vmatpush.msra.mxu0 0.0
      %667 = vmatpush.msra.mxu0 %v504
      %668 = vmatpush.msra.mxu0 %v502
      %669 = vmatpush.msra.mxu0 %v500
      %670 = vmatpush.msra.mxu0 %v498
      %671 = vmatmul.f32.gmra.mxu0 %v567
      %v672 = vpop.f32.mrf.mxu0
      %v673 = vadd.f32 %v508, %v672
      %674 = vmatmul.f32.gmra.mxu0 %v570
      %v675 = vpop.f32.mrf.mxu0
      %v676 = vadd.f32 %v513, %v675
      %677 = vmatmul.f32.gmra.mxu0 %v573
      %v678 = vpop.f32.mrf.mxu0
      %v679 = vadd.f32 %v518, %v678
      %680 = vmatmul.f32.gmra.mxu0 %v576
      %v681 = vpop.f32.mrf.mxu0
      %v682 = vadd.f32 %v523, %v681
      %683 = vmatmul.f32.gmra.mxu0 %v579
      %v684 = vpop.f32.mrf.mxu0
      %v685 = vadd.f32 %v528, %v684
      %686 = vmatmul.f32.gmra.mxu0 %v582
      %v687 = vpop.f32.mrf.mxu0
      %v688 = vadd.f32 %v533, %v687
      %689 = vmatmul.f32.gmra.mxu0 %v585
      %v690 = vpop.f32.mrf.mxu0
      %v691 = vadd.f32 %v538, %v690
      %692 = vmatmul.f32.gmra.mxu0 %v588
      %v693 = vpop.f32.mrf.mxu0
      %v694 = vadd.f32 %v543, %v693
      %695 = vmatmul.f32.gmra.mxu0 %v591
      %v696 = vpop.f32.mrf.mxu0
      %v697 = vadd.f32 %v548, %v696
      %698 = vmatmul.f32.gmra.mxu0 %v594
      %v699 = vpop.f32.mrf.mxu0
      %v700 = vadd.f32 %v553, %v699
      %701 = vmatmul.f32.gmra.mxu0 %v597
      %v702 = vpop.f32.mrf.mxu0
      %v703 = vadd.f32 %v558, %v702
      %704 = vmatmul.f32.gmra.mxu0 %v600
      %v705 = vpop.f32.mrf.mxu0
      %v706 = vadd.f32 %v563, %v705
      %707 = vdwg.mxu0
      %708 = vxpose.xlu0.b32.start [1/16] %v620, 128
      %709 = vxpose.xlu0.b32.cont [2/16] 0.0, 128
      %710 = vxpose.xlu0.b32.cont [3/16] 0.0, 128
      %711 = vxpose.xlu0.b32.cont [4/16] 0.0, 128
      %712 = vxpose.xlu0.b32.cont [5/16] 0.0, 128
      %713 = vxpose.xlu0.b32.cont [6/16] 0.0, 128
      %714 = vxpose.xlu0.b32.cont [7/16] 0.0, 128
      %715 = vxpose.xlu0.b32.cont [8/16] 0.0, 128
      %716 = vxpose.xlu0.b32.cont [9/16] 0.0, 128
      %717 = vxpose.xlu0.b32.cont [10/16] 0.0, 128
      %718 = vxpose.xlu0.b32.cont [11/16] 0.0, 128
      %719 = vxpose.xlu0.b32.cont [12/16] 0.0, 128
      %720 = vxpose.xlu0.b32.cont [13/16] 0.0, 128
      %721 = vxpose.xlu0.b32.cont [14/16] 0.0, 128
      %722 = vxpose.xlu0.b32.cont [15/16] 0.0, 128
      %723 = vxpose.xlu0.b32.end [16/16] 0.0, 128
      %v724 = vpop.trf.xlu0
      %v725 = vpop.trf.xlu0
      %v726 = vpop.trf.xlu0
      %v727 = vpop.trf.xlu0
      %v728 = vpop.trf.xlu0
      %v729 = vpop.trf.xlu0
      %v730 = vpop.trf.xlu0
      %v731 = vpop.trf.xlu0
      %v732 = vpop.trf.xlu0
      %v733 = vpop.trf.xlu0
      %v734 = vpop.trf.xlu0
      %v735 = vpop.trf.xlu0
      %v736 = vpop.trf.xlu0
      %v737 = vpop.trf.xlu0
      %v738 = vpop.trf.xlu0
      %v739 = vpop.trf.xlu0
      %740 = vxpose.xlu0.b32.start [1/16] %v673, 128
      %741 = vxpose.xlu0.b32.cont [2/16] 0.0, 128
      %742 = vxpose.xlu0.b32.cont [3/16] 0.0, 128
      %743 = vxpose.xlu0.b32.cont [4/16] 0.0, 128
      %744 = vxpose.xlu0.b32.cont [5/16] 0.0, 128
      %745 = vxpose.xlu0.b32.cont [6/16] 0.0, 128
      %746 = vxpose.xlu0.b32.cont [7/16] 0.0, 128
      %747 = vxpose.xlu0.b32.cont [8/16] 0.0, 128
      %748 = vxpose.xlu0.b32.cont [9/16] 0.0, 128
      %749 = vxpose.xlu0.b32.cont [10/16] 0.0, 128
      %750 = vxpose.xlu0.b32.cont [11/16] 0.0, 128
      %751 = vxpose.xlu0.b32.cont [12/16] 0.0, 128
      %752 = vxpose.xlu0.b32.cont [13/16] 0.0, 128
      %753 = vxpose.xlu0.b32.cont [14/16] 0.0, 128
      %754 = vxpose.xlu0.b32.cont [15/16] 0.0, 128
      %755 = vxpose.xlu0.b32.end [16/16] 0.0, 128
      %v756 = vpop.trf.xlu0
      %v757 = vpop.trf.xlu0
      %v758 = vpop.trf.xlu0
      %v759 = vpop.trf.xlu0
      %v760 = vpop.trf.xlu0
      %v761 = vpop.trf.xlu0
      %v762 = vpop.trf.xlu0
      %v763 = vpop.trf.xlu0
      %v764 = vpop.trf.xlu0
      %v765 = vpop.trf.xlu0
      %v766 = vpop.trf.xlu0
      %v767 = vpop.trf.xlu0
      %v768 = vpop.trf.xlu0
      %v769 = vpop.trf.xlu0
      %v770 = vpop.trf.xlu0
      %v771 = vpop.trf.xlu0
      %vm772 = vcmask 64512
      %v774 = vsel %vm772, %v724, 0
      %v777 = vsel %vm772, %v725, 0
      %v780 = vsel %vm772, %v726, 0
      %v783 = vsel %vm772, %v727, 0
      %v786 = vsel %vm772, %v728, 0
      %v789 = vsel %vm772, %v729, 0
      %v792 = vsel %vm772, %v730, 0
      %v795 = vsel %vm772, %v731, 0
      %v798 = vsel %vm772, %v732, 0
      %v801 = vsel %vm772, %v733, 0
      %v804 = vsel %vm772, %v734, 0
      %v807 = vsel %vm772, %v735, 0
      %v810 = vsel %vm772, %v736, 0
      %v813 = vsel %vm772, %v737, 0
      %v816 = vsel %vm772, %v738, 0
      %v819 = vsel %vm772, %v739, 0
      %v822 = vsel %vm772, %v756, 0
      %v825 = vsel %vm772, %v757, 0
      %v828 = vsel %vm772, %v758, 0
      %v831 = vsel %vm772, %v759, 0
      %v834 = vsel %vm772, %v760, 0
      %v837 = vsel %vm772, %v761, 0
      %v840 = vsel %vm772, %v762, 0
      %v843 = vsel %vm772, %v763, 0
      %v846 = vsel %vm772, %v764, 0
      %v849 = vsel %vm772, %v765, 0
      %v852 = vsel %vm772, %v766, 0
      %v855 = vsel %vm772, %v767, 0
      %v858 = vsel %vm772, %v768, 0
      %v861 = vsel %vm772, %v769, 0
      %v864 = vsel %vm772, %v770, 0
      %v867 = vsel %vm772, %v771, 0
      %869 = vmatpush.msra.mxu0 0.0
      %870 = vmatpush.msra.mxu0 0.0
      %871 = vmatpush.msra.mxu0 0.0
      %872 = vmatpush.msra.mxu0 0.0
      %873 = vmatpush.msra.mxu0 0.0
      %874 = vmatpush.msra.mxu0 0.0
      %875 = vmatpush.msra.mxu0 0.0
      %876 = vmatpush.msra.mxu0 0.0
      %877 = vmatpush.msra.mxu0 0.0
      %878 = vmatpush.msra.mxu0 0.0
      %879 = vmatpush.msra.mxu0 0.0
      %880 = vmatpush.msra.mxu0 0.0
      %881 = vmatpush.msra.mxu0 0.0
      %882 = vmatpush.msra.mxu0 0.0
      %883 = vmatpush.msra.mxu0 0.0
      %884 = vmatpush.msra.mxu0 %v632
      %885 = vmatmul.f32.gmra.mxu0 %v774
      %v886 = vpop.f32.mrf.mxu0
      %v887 = vadd.f32 0.0, %v886
      %888 = vmatmul.f32.gmra.mxu0 %v777
      %v889 = vpop.f32.mrf.mxu0
      %v890 = vadd.f32 0.0, %v889
      %891 = vmatmul.f32.gmra.mxu0 %v780
      %v892 = vpop.f32.mrf.mxu0
      %v893 = vadd.f32 0.0, %v892
      %894 = vmatmul.f32.gmra.mxu0 %v783
      %v895 = vpop.f32.mrf.mxu0
      %v896 = vadd.f32 0.0, %v895
      %897 = vmatmul.f32.gmra.mxu0 %v786
      %v898 = vpop.f32.mrf.mxu0
      %v899 = vadd.f32 0.0, %v898
      %900 = vmatmul.f32.gmra.mxu0 %v789
      %v901 = vpop.f32.mrf.mxu0
      %v902 = vadd.f32 0.0, %v901
      %903 = vmatmul.f32.gmra.mxu0 %v792
      %v904 = vpop.f32.mrf.mxu0
      %v905 = vadd.f32 0.0, %v904
      %906 = vmatmul.f32.gmra.mxu0 %v795
      %v907 = vpop.f32.mrf.mxu0
      %v908 = vadd.f32 0.0, %v907
      %909 = vmatmul.f32.gmra.mxu0 %v798
      %v910 = vpop.f32.mrf.mxu0
      %v911 = vadd.f32 0.0, %v910
      %912 = vmatmul.f32.gmra.mxu0 %v801
      %v913 = vpop.f32.mrf.mxu0
      %v914 = vadd.f32 0.0, %v913
      %915 = vmatmul.f32.gmra.mxu0 %v804
      %v916 = vpop.f32.mrf.mxu0
      %v917 = vadd.f32 0.0, %v916
      %918 = vmatmul.f32.gmra.mxu0 %v807
      %v919 = vpop.f32.mrf.mxu0
      %v920 = vadd.f32 0.0, %v919
      %921 = vmatmul.f32.gmra.mxu0 %v810
      %v922 = vpop.f32.mrf.mxu0
      %v923 = vadd.f32 0.0, %v922
      %924 = vmatmul.f32.gmra.mxu0 %v813
      %v925 = vpop.f32.mrf.mxu0
      %v926 = vadd.f32 0.0, %v925
      %927 = vmatmul.f32.gmra.mxu0 %v816
      %v928 = vpop.f32.mrf.mxu0
      %v929 = vadd.f32 0.0, %v928
      %930 = vmatmul.f32.gmra.mxu0 %v819
      %v931 = vpop.f32.mrf.mxu0
      %v932 = vadd.f32 0.0, %v931
      %933 = vmatmul.f32.gmra.mxu0 %v822
      %v934 = vpop.f32.mrf.mxu0
      %v935 = vadd.f32 0.0, %v934
      %936 = vmatmul.f32.gmra.mxu0 %v825
      %v937 = vpop.f32.mrf.mxu0
      %v938 = vadd.f32 0.0, %v937
      %939 = vmatmul.f32.gmra.mxu0 %v828
      %v940 = vpop.f32.mrf.mxu0
      %v941 = vadd.f32 0.0, %v940
      %942 = vmatmul.f32.gmra.mxu0 %v831
      %v943 = vpop.f32.mrf.mxu0
      %v944 = vadd.f32 0.0, %v943
      %945 = vmatmul.f32.gmra.mxu0 %v834
      %v946 = vpop.f32.mrf.mxu0
      %v947 = vadd.f32 0.0, %v946
      %948 = vmatmul.f32.gmra.mxu0 %v837
      %v949 = vpop.f32.mrf.mxu0
      %v950 = vadd.f32 0.0, %v949
      %951 = vmatmul.f32.gmra.mxu0 %v840
      %v952 = vpop.f32.mrf.mxu0
      %v953 = vadd.f32 0.0, %v952
      %954 = vmatmul.f32.gmra.mxu0 %v843
      %v955 = vpop.f32.mrf.mxu0
      %v956 = vadd.f32 0.0, %v955
      %957 = vmatmul.f32.gmra.mxu0 %v846
      %v958 = vpop.f32.mrf.mxu0
      %v959 = vadd.f32 0.0, %v958
      %960 = vmatmul.f32.gmra.mxu0 %v849
      %v961 = vpop.f32.mrf.mxu0
      %v962 = vadd.f32 0.0, %v961
      %963 = vmatmul.f32.gmra.mxu0 %v852
      %v964 = vpop.f32.mrf.mxu0
      %v965 = vadd.f32 0.0, %v964
      %966 = vmatmul.f32.gmra.mxu0 %v855
      %v967 = vpop.f32.mrf.mxu0
      %v968 = vadd.f32 0.0, %v967
      %969 = vmatmul.f32.gmra.mxu0 %v858
      %v970 = vpop.f32.mrf.mxu0
      %v971 = vadd.f32 0.0, %v970
      %972 = vmatmul.f32.gmra.mxu0 %v861
      %v973 = vpop.f32.mrf.mxu0
      %v974 = vadd.f32 0.0, %v973
      %975 = vmatmul.f32.gmra.mxu0 %v864
      %v976 = vpop.f32.mrf.mxu0
      %v977 = vadd.f32 0.0, %v976
      %978 = vmatmul.f32.gmra.mxu0 %v867
      %v979 = vpop.f32.mrf.mxu0
      %v980 = vadd.f32 0.0, %v979
      %981 = vdwg.mxu0
      %982 = vmatpush.msra.mxu0 0.0
      %983 = vmatpush.msra.mxu0 0.0
      %984 = vmatpush.msra.mxu0 0.0
      %985 = vmatpush.msra.mxu0 0.0
      %986 = vmatpush.msra.mxu0 0.0
      %987 = vmatpush.msra.mxu0 0.0
      %988 = vmatpush.msra.mxu0 0.0
      %989 = vmatpush.msra.mxu0 0.0
      %990 = vmatpush.msra.mxu0 0.0
      %991 = vmatpush.msra.mxu0 0.0
      %992 = vmatpush.msra.mxu0 0.0
      %993 = vmatpush.msra.mxu0 0.0
      %994 = vmatpush.msra.mxu0 0.0
      %995 = vmatpush.msra.mxu0 0.0
      %996 = vmatpush.msra.mxu0 0.0
      %997 = vmatpush.msra.mxu0 %v685
      %998 = vmatmul.f32.gmra.mxu0 %v774
      %v999 = vpop.f32.mrf.mxu0
      %v1000 = vadd.f32 0.0, %v999
      %1001 = vmatmul.f32.gmra.mxu0 %v777
      %v1002 = vpop.f32.mrf.mxu0
      %v1003 = vadd.f32 0.0, %v1002
      %1004 = vmatmul.f32.gmra.mxu0 %v780
      %v1005 = vpop.f32.mrf.mxu0
      %v1006 = vadd.f32 0.0, %v1005
      %1007 = vmatmul.f32.gmra.mxu0 %v783
      %v1008 = vpop.f32.mrf.mxu0
      %v1009 = vadd.f32 0.0, %v1008
      %1010 = vmatmul.f32.gmra.mxu0 %v786
      %v1011 = vpop.f32.mrf.mxu0
      %v1012 = vadd.f32 0.0, %v1011
      %1013 = vmatmul.f32.gmra.mxu0 %v789
      %v1014 = vpop.f32.mrf.mxu0
      %v1015 = vadd.f32 0.0, %v1014
      %1016 = vmatmul.f32.gmra.mxu0 %v792
      %v1017 = vpop.f32.mrf.mxu0
      %v1018 = vadd.f32 0.0, %v1017
      %1019 = vmatmul.f32.gmra.mxu0 %v795
      %v1020 = vpop.f32.mrf.mxu0
      %v1021 = vadd.f32 0.0, %v1020
      %1022 = vmatmul.f32.gmra.mxu0 %v798
      %v1023 = vpop.f32.mrf.mxu0
      %v1024 = vadd.f32 0.0, %v1023
      %1025 = vmatmul.f32.gmra.mxu0 %v801
      %v1026 = vpop.f32.mrf.mxu0
      %v1027 = vadd.f32 0.0, %v1026
      %1028 = vmatmul.f32.gmra.mxu0 %v804
      %v1029 = vpop.f32.mrf.mxu0
      %v1030 = vadd.f32 0.0, %v1029
      %1031 = vmatmul.f32.gmra.mxu0 %v807
      %v1032 = vpop.f32.mrf.mxu0
      %v1033 = vadd.f32 0.0, %v1032
      %1034 = vmatmul.f32.gmra.mxu0 %v810
      %v1035 = vpop.f32.mrf.mxu0
      %v1036 = vadd.f32 0.0, %v1035
      %1037 = vmatmul.f32.gmra.mxu0 %v813
      %v1038 = vpop.f32.mrf.mxu0
      %v1039 = vadd.f32 0.0, %v1038
      %1040 = vmatmul.f32.gmra.mxu0 %v816
      %v1041 = vpop.f32.mrf.mxu0
      %v1042 = vadd.f32 0.0, %v1041
      %1043 = vmatmul.f32.gmra.mxu0 %v819
      %v1044 = vpop.f32.mrf.mxu0
      %v1045 = vadd.f32 0.0, %v1044
      %1046 = vmatmul.f32.gmra.mxu0 %v822
      %v1047 = vpop.f32.mrf.mxu0
      %v1048 = vadd.f32 0.0, %v1047
      %1049 = vmatmul.f32.gmra.mxu0 %v825
      %v1050 = vpop.f32.mrf.mxu0
      %v1051 = vadd.f32 0.0, %v1050
      %1052 = vmatmul.f32.gmra.mxu0 %v828
      %v1053 = vpop.f32.mrf.mxu0
      %v1054 = vadd.f32 0.0, %v1053
      %1055 = vmatmul.f32.gmra.mxu0 %v831
      %v1056 = vpop.f32.mrf.mxu0
      %v1057 = vadd.f32 0.0, %v1056
      %1058 = vmatmul.f32.gmra.mxu0 %v834
      %v1059 = vpop.f32.mrf.mxu0
      %v1060 = vadd.f32 0.0, %v1059
      %1061 = vmatmul.f32.gmra.mxu0 %v837
      %v1062 = vpop.f32.mrf.mxu0
      %v1063 = vadd.f32 0.0, %v1062
      %1064 = vmatmul.f32.gmra.mxu0 %v840
      %v1065 = vpop.f32.mrf.mxu0
      %v1066 = vadd.f32 0.0, %v1065
      %1067 = vmatmul.f32.gmra.mxu0 %v843
      %v1068 = vpop.f32.mrf.mxu0
      %v1069 = vadd.f32 0.0, %v1068
      %1070 = vmatmul.f32.gmra.mxu0 %v846
      %v1071 = vpop.f32.mrf.mxu0
      %v1072 = vadd.f32 0.0, %v1071
      %1073 = vmatmul.f32.gmra.mxu0 %v849
      %v1074 = vpop.f32.mrf.mxu0
      %v1075 = vadd.f32 0.0, %v1074
      %1076 = vmatmul.f32.gmra.mxu0 %v852
      %v1077 = vpop.f32.mrf.mxu0
      %v1078 = vadd.f32 0.0, %v1077
      %1079 = vmatmul.f32.gmra.mxu0 %v855
      %v1080 = vpop.f32.mrf.mxu0
      %v1081 = vadd.f32 0.0, %v1080
      %1082 = vmatmul.f32.gmra.mxu0 %v858
      %v1083 = vpop.f32.mrf.mxu0
      %v1084 = vadd.f32 0.0, %v1083
      %1085 = vmatmul.f32.gmra.mxu0 %v861
      %v1086 = vpop.f32.mrf.mxu0
      %v1087 = vadd.f32 0.0, %v1086
      %1088 = vmatmul.f32.gmra.mxu0 %v864
      %v1089 = vpop.f32.mrf.mxu0
      %v1090 = vadd.f32 0.0, %v1089
      %1091 = vmatmul.f32.gmra.mxu0 %v867
      %v1092 = vpop.f32.mrf.mxu0
      %v1093 = vadd.f32 0.0, %v1092
      %1094 = vdwg.mxu0
      %v1095 = vmax.f32 %v887, %v1000
      %1096 = vmax.xlane.f32.xlu0 %v1095
      %v1097 = vpop.xlane.xlu0 %1096
      %v1098 = vmax.f32 %v890, %v1003
      %1099 = vmax.xlane.f32.xlu0 %v1098
      %v1100 = vpop.xlane.xlu0 %1099
      %v1101 = vmax.f32 %v893, %v1006
      %1102 = vmax.xlane.f32.xlu0 %v1101
      %v1103 = vpop.xlane.xlu0 %1102
      %v1104 = vmax.f32 %v896, %v1009
      %1105 = vmax.xlane.f32.xlu0 %v1104
      %v1106 = vpop.xlane.xlu0 %1105
      %v1107 = vmax.f32 %v899, %v1012
      %1108 = vmax.xlane.f32.xlu0 %v1107
      %v1109 = vpop.xlane.xlu0 %1108
      %v1110 = vmax.f32 %v902, %v1015
      %1111 = vmax.xlane.f32.xlu0 %v1110
      %v1112 = vpop.xlane.xlu0 %1111
      %v1113 = vmax.f32 %v905, %v1018
      %1114 = vmax.xlane.f32.xlu0 %v1113
      %v1115 = vpop.xlane.xlu0 %1114
      %v1116 = vmax.f32 %v908, %v1021
      %1117 = vmax.xlane.f32.xlu0 %v1116
      %v1118 = vpop.xlane.xlu0 %1117
      %v1119 = vmax.f32 %v911, %v1024
      %1120 = vmax.xlane.f32.xlu0 %v1119
      %v1121 = vpop.xlane.xlu0 %1120
      %v1122 = vmax.f32 %v914, %v1027
      %1123 = vmax.xlane.f32.xlu0 %v1122
      %v1124 = vpop.xlane.xlu0 %1123
      %v1125 = vmax.f32 %v917, %v1030
      %1126 = vmax.xlane.f32.xlu0 %v1125
      %v1127 = vpop.xlane.xlu0 %1126
      %v1128 = vmax.f32 %v920, %v1033
      %1129 = vmax.xlane.f32.xlu0 %v1128
      %v1130 = vpop.xlane.xlu0 %1129
      %v1131 = vmax.f32 %v923, %v1036
      %1132 = vmax.xlane.f32.xlu0 %v1131
      %v1133 = vpop.xlane.xlu0 %1132
      %v1134 = vmax.f32 %v926, %v1039
      %1135 = vmax.xlane.f32.xlu0 %v1134
      %v1136 = vpop.xlane.xlu0 %1135
      %v1137 = vmax.f32 %v929, %v1042
      %1138 = vmax.xlane.f32.xlu0 %v1137
      %v1139 = vpop.xlane.xlu0 %1138
      %v1140 = vmax.f32 %v932, %v1045
      %1141 = vmax.xlane.f32.xlu0 %v1140
      %v1142 = vpop.xlane.xlu0 %1141
      %v1143 = vmax.f32 %v935, %v1048
      %1144 = vmax.xlane.f32.xlu0 %v1143
      %v1145 = vpop.xlane.xlu0 %1144
      %v1146 = vmax.f32 %v938, %v1051
      %1147 = vmax.xlane.f32.xlu0 %v1146
      %v1148 = vpop.xlane.xlu0 %1147
      %v1149 = vmax.f32 %v941, %v1054
      %1150 = vmax.xlane.f32.xlu0 %v1149
      %v1151 = vpop.xlane.xlu0 %1150
      %v1152 = vmax.f32 %v944, %v1057
      %1153 = vmax.xlane.f32.xlu0 %v1152
      %v1154 = vpop.xlane.xlu0 %1153
      %v1155 = vmax.f32 %v947, %v1060
      %1156 = vmax.xlane.f32.xlu0 %v1155
      %v1157 = vpop.xlane.xlu0 %1156
      %v1158 = vmax.f32 %v950, %v1063
      %1159 = vmax.xlane.f32.xlu0 %v1158
      %v1160 = vpop.xlane.xlu0 %1159
      %v1161 = vmax.f32 %v953, %v1066
      %1162 = vmax.xlane.f32.xlu0 %v1161
      %v1163 = vpop.xlane.xlu0 %1162
      %v1164 = vmax.f32 %v956, %v1069
      %1165 = vmax.xlane.f32.xlu0 %v1164
      %v1166 = vpop.xlane.xlu0 %1165
      %v1167 = vmax.f32 %v959, %v1072
      %1168 = vmax.xlane.f32.xlu0 %v1167
      %v1169 = vpop.xlane.xlu0 %1168
      %v1170 = vmax.f32 %v962, %v1075
      %1171 = vmax.xlane.f32.xlu0 %v1170
      %v1172 = vpop.xlane.xlu0 %1171
      %v1173 = vmax.f32 %v965, %v1078
      %1174 = vmax.xlane.f32.xlu0 %v1173
      %v1175 = vpop.xlane.xlu0 %1174
      %v1176 = vmax.f32 %v968, %v1081
      %1177 = vmax.xlane.f32.xlu0 %v1176
      %v1178 = vpop.xlane.xlu0 %1177
      %v1179 = vmax.f32 %v971, %v1084
      %1180 = vmax.xlane.f32.xlu0 %v1179
      %v1181 = vpop.xlane.xlu0 %1180
      %v1182 = vmax.f32 %v974, %v1087
      %1183 = vmax.xlane.f32.xlu0 %v1182
      %v1184 = vpop.xlane.xlu0 %1183
      %v1185 = vmax.f32 %v977, %v1090
      %1186 = vmax.xlane.f32.xlu0 %v1185
      %v1187 = vpop.xlane.xlu0 %1186
      %v1188 = vmax.f32 %v980, %v1093
      %1189 = vmax.xlane.f32.xlu0 %v1188
      %v1190 = vpop.xlane.xlu0 %1189
      %v1191 = vsub.f32 %v887, %v1097
      %v1192 = vsub.f32 %v1000, %v1097
      %v1193 = vsub.f32 %v890, %v1100
      %v1194 = vsub.f32 %v1003, %v1100
      %v1195 = vsub.f32 %v893, %v1103
      %v1196 = vsub.f32 %v1006, %v1103
      %v1197 = vsub.f32 %v896, %v1106
      %v1198 = vsub.f32 %v1009, %v1106
      %v1199 = vsub.f32 %v899, %v1109
      %v1200 = vsub.f32 %v1012, %v1109
      %v1201 = vsub.f32 %v902, %v1112
      %v1202 = vsub.f32 %v1015, %v1112
      %v1203 = vsub.f32 %v905, %v1115
      %v1204 = vsub.f32 %v1018, %v1115
      %v1205 = vsub.f32 %v908, %v1118
      %v1206 = vsub.f32 %v1021, %v1118
      %v1207 = vsub.f32 %v911, %v1121
      %v1208 = vsub.f32 %v1024, %v1121
      %v1209 = vsub.f32 %v914, %v1124
      %v1210 = vsub.f32 %v1027, %v1124
      %v1211 = vsub.f32 %v917, %v1127
      %v1212 = vsub.f32 %v1030, %v1127
      %v1213 = vsub.f32 %v920, %v1130
      %v1214 = vsub.f32 %v1033, %v1130
      %v1215 = vsub.f32 %v923, %v1133
      %v1216 = vsub.f32 %v1036, %v1133
      %v1217 = vsub.f32 %v926, %v1136
      %v1218 = vsub.f32 %v1039, %v1136
      %v1219 = vsub.f32 %v929, %v1139
      %v1220 = vsub.f32 %v1042, %v1139
      %v1221 = vsub.f32 %v932, %v1142
      %v1222 = vsub.f32 %v1045, %v1142
      %v1223 = vsub.f32 %v935, %v1145
      %v1224 = vsub.f32 %v1048, %v1145
      %v1225 = vsub.f32 %v938, %v1148
      %v1226 = vsub.f32 %v1051, %v1148
      %v1227 = vsub.f32 %v941, %v1151
      %v1228 = vsub.f32 %v1054, %v1151
      %v1229 = vsub.f32 %v944, %v1154
      %v1230 = vsub.f32 %v1057, %v1154
      %v1231 = vsub.f32 %v947, %v1157
      %v1232 = vsub.f32 %v1060, %v1157
      %v1233 = vsub.f32 %v950, %v1160
      %v1234 = vsub.f32 %v1063, %v1160
      %v1235 = vsub.f32 %v953, %v1163
      %v1236 = vsub.f32 %v1066, %v1163
      %v1237 = vsub.f32 %v956, %v1166
      %v1238 = vsub.f32 %v1069, %v1166
      %v1239 = vsub.f32 %v959, %v1169
      %v1240 = vsub.f32 %v1072, %v1169
      %v1241 = vsub.f32 %v962, %v1172
      %v1242 = vsub.f32 %v1075, %v1172
      %v1243 = vsub.f32 %v965, %v1175
      %v1244 = vsub.f32 %v1078, %v1175
      %v1245 = vsub.f32 %v968, %v1178
      %v1246 = vsub.f32 %v1081, %v1178
      %v1247 = vsub.f32 %v971, %v1181
      %v1248 = vsub.f32 %v1084, %v1181
      %v1249 = vsub.f32 %v974, %v1184
      %v1250 = vsub.f32 %v1087, %v1184
      %v1251 = vsub.f32 %v977, %v1187
      %v1252 = vsub.f32 %v1090, %v1187
      %v1253 = vsub.f32 %v980, %v1190
      %v1254 = vsub.f32 %v1093, %v1190
      %v1255 = vmul.f32 %v1191, 1.442695
      %v1256 = vpow.pop %v1255
      %v1257 = vmul.f32 %v1192, 1.442695
      %v1258 = vpow.pop %v1257
      %v1259 = vmul.f32 %v1193, 1.442695
      %v1260 = vpow.pop %v1259
      %v1261 = vmul.f32 %v1194, 1.442695
      %v1262 = vpow.pop %v1261
      %v1263 = vmul.f32 %v1195, 1.442695
      %v1264 = vpow.pop %v1263
      %v1265 = vmul.f32 %v1196, 1.442695
      %v1266 = vpow.pop %v1265
      %v1267 = vmul.f32 %v1197, 1.442695
      %v1268 = vpow.pop %v1267
      %v1269 = vmul.f32 %v1198, 1.442695
      %v1270 = vpow.pop %v1269
      %v1271 = vmul.f32 %v1199, 1.442695
      %v1272 = vpow.pop %v1271
      %v1273 = vmul.f32 %v1200, 1.442695
      %v1274 = vpow.pop %v1273
      %v1275 = vmul.f32 %v1201, 1.442695
      %v1276 = vpow.pop %v1275
      %v1277 = vmul.f32 %v1202, 1.442695
      %v1278 = vpow.pop %v1277
      %v1279 = vmul.f32 %v1203, 1.442695
      %v1280 = vpow.pop %v1279
      %v1281 = vmul.f32 %v1204, 1.442695
      %v1282 = vpow.pop %v1281
      %v1283 = vmul.f32 %v1205, 1.442695
      %v1284 = vpow.pop %v1283
      %v1285 = vmul.f32 %v1206, 1.442695
      %v1286 = vpow.pop %v1285
      %v1287 = vmul.f32 %v1207, 1.442695
      %v1288 = vpow.pop %v1287
      %v1289 = vmul.f32 %v1208, 1.442695
      %v1290 = vpow.pop %v1289
      %v1291 = vmul.f32 %v1209, 1.442695
      %v1292 = vpow.pop %v1291
      %v1293 = vmul.f32 %v1210, 1.442695
      %v1294 = vpow.pop %v1293
      %v1295 = vmul.f32 %v1211, 1.442695
      %v1296 = vpow.pop %v1295
      %v1297 = vmul.f32 %v1212, 1.442695
      %v1298 = vpow.pop %v1297
      %v1299 = vmul.f32 %v1213, 1.442695
      %v1300 = vpow.pop %v1299
      %v1301 = vmul.f32 %v1214, 1.442695
      %v1302 = vpow.pop %v1301
      %v1303 = vmul.f32 %v1215, 1.442695
      %v1304 = vpow.pop %v1303
      %v1305 = vmul.f32 %v1216, 1.442695
      %v1306 = vpow.pop %v1305
      %v1307 = vmul.f32 %v1217, 1.442695
      %v1308 = vpow.pop %v1307
      %v1309 = vmul.f32 %v1218, 1.442695
      %v1310 = vpow.pop %v1309
      %v1311 = vmul.f32 %v1219, 1.442695
      %v1312 = vpow.pop %v1311
      %v1313 = vmul.f32 %v1220, 1.442695
      %v1314 = vpow.pop %v1313
      %v1315 = vmul.f32 %v1221, 1.442695
      %v1316 = vpow.pop %v1315
      %v1317 = vmul.f32 %v1222, 1.442695
      %v1318 = vpow.pop %v1317
      %v1319 = vmul.f32 %v1223, 1.442695
      %v1320 = vpow.pop %v1319
      %v1321 = vmul.f32 %v1224, 1.442695
      %v1322 = vpow.pop %v1321
      %v1323 = vmul.f32 %v1225, 1.442695
      %v1324 = vpow.pop %v1323
      %v1325 = vmul.f32 %v1226, 1.442695
      %v1326 = vpow.pop %v1325
      %v1327 = vmul.f32 %v1227, 1.442695
      %v1328 = vpow.pop %v1327
      %v1329 = vmul.f32 %v1228, 1.442695
      %v1330 = vpow.pop %v1329
      %v1331 = vmul.f32 %v1229, 1.442695
      %v1332 = vpow.pop %v1331
      %v1333 = vmul.f32 %v1230, 1.442695
      %v1334 = vpow.pop %v1333
      %v1335 = vmul.f32 %v1231, 1.442695
      %v1336 = vpow.pop %v1335
      %v1337 = vmul.f32 %v1232, 1.442695
      %v1338 = vpow.pop %v1337
      %v1339 = vmul.f32 %v1233, 1.442695
      %v1340 = vpow.pop %v1339
      %v1341 = vmul.f32 %v1234, 1.442695
      %v1342 = vpow.pop %v1341
      %v1343 = vmul.f32 %v1235, 1.442695
      %v1344 = vpow.pop %v1343
      %v1345 = vmul.f32 %v1236, 1.442695
      %v1346 = vpow.pop %v1345
      %v1347 = vmul.f32 %v1237, 1.442695
      %v1348 = vpow.pop %v1347
      %v1349 = vmul.f32 %v1238, 1.442695
      %v1350 = vpow.pop %v1349
      %v1351 = vmul.f32 %v1239, 1.442695
      %v1352 = vpow.pop %v1351
      %v1353 = vmul.f32 %v1240, 1.442695
      %v1354 = vpow.pop %v1353
      %v1355 = vmul.f32 %v1241, 1.442695
      %v1356 = vpow.pop %v1355
      %v1357 = vmul.f32 %v1242, 1.442695
      %v1358 = vpow.pop %v1357
      %v1359 = vmul.f32 %v1243, 1.442695
      %v1360 = vpow.pop %v1359
      %v1361 = vmul.f32 %v1244, 1.442695
      %v1362 = vpow.pop %v1361
      %v1363 = vmul.f32 %v1245, 1.442695
      %v1364 = vpow.pop %v1363
      %v1365 = vmul.f32 %v1246, 1.442695
      %v1366 = vpow.pop %v1365
      %v1367 = vmul.f32 %v1247, 1.442695
      %v1368 = vpow.pop %v1367
      %v1369 = vmul.f32 %v1248, 1.442695
      %v1370 = vpow.pop %v1369
      %v1371 = vmul.f32 %v1249, 1.442695
      %v1372 = vpow.pop %v1371
      %v1373 = vmul.f32 %v1250, 1.442695
      %v1374 = vpow.pop %v1373
      %v1375 = vmul.f32 %v1251, 1.442695
      %v1376 = vpow.pop %v1375
      %v1377 = vmul.f32 %v1252, 1.442695
      %v1378 = vpow.pop %v1377
      %v1379 = vmul.f32 %v1253, 1.442695
      %v1380 = vpow.pop %v1379
      %v1381 = vmul.f32 %v1254, 1.442695
      %v1382 = vpow.pop %v1381
      %v1383 = vadd.f32 %v1256, %v1258
      %1384 = vadd.xlane.f32.xlu0 %v1383
      %v1385 = vpop.xlane.xlu0 %1384
      %v1386 = vadd.f32 %v1260, %v1262
      %1387 = vadd.xlane.f32.xlu0 %v1386
      %v1388 = vpop.xlane.xlu0 %1387
      %v1389 = vadd.f32 %v1264, %v1266
      %1390 = vadd.xlane.f32.xlu0 %v1389
      %v1391 = vpop.xlane.xlu0 %1390
      %v1392 = vadd.f32 %v1268, %v1270
      %1393 = vadd.xlane.f32.xlu0 %v1392
      %v1394 = vpop.xlane.xlu0 %1393
      %v1395 = vadd.f32 %v1272, %v1274
      %1396 = vadd.xlane.f32.xlu0 %v1395
      %v1397 = vpop.xlane.xlu0 %1396
      %v1398 = vadd.f32 %v1276, %v1278
      %1399 = vadd.xlane.f32.xlu0 %v1398
      %v1400 = vpop.xlane.xlu0 %1399
      %v1401 = vadd.f32 %v1280, %v1282
      %1402 = vadd.xlane.f32.xlu0 %v1401
      %v1403 = vpop.xlane.xlu0 %1402
      %v1404 = vadd.f32 %v1284, %v1286
      %1405 = vadd.xlane.f32.xlu0 %v1404
      %v1406 = vpop.xlane.xlu0 %1405
      %v1407 = vadd.f32 %v1288, %v1290
      %1408 = vadd.xlane.f32.xlu0 %v1407
      %v1409 = vpop.xlane.xlu0 %1408
      %v1410 = vadd.f32 %v1292, %v1294
      %1411 = vadd.xlane.f32.xlu0 %v1410
      %v1412 = vpop.xlane.xlu0 %1411
      %v1413 = vadd.f32 %v1296, %v1298
      %1414 = vadd.xlane.f32.xlu0 %v1413
      %v1415 = vpop.xlane.xlu0 %1414
      %v1416 = vadd.f32 %v1300, %v1302
      %1417 = vadd.xlane.f32.xlu0 %v1416
      %v1418 = vpop.xlane.xlu0 %1417
      %v1419 = vadd.f32 %v1304, %v1306
      %1420 = vadd.xlane.f32.xlu0 %v1419
      %v1421 = vpop.xlane.xlu0 %1420
      %v1422 = vadd.f32 %v1308, %v1310
      %1423 = vadd.xlane.f32.xlu0 %v1422
      %v1424 = vpop.xlane.xlu0 %1423
      %v1425 = vadd.f32 %v1312, %v1314
      %1426 = vadd.xlane.f32.xlu0 %v1425
      %v1427 = vpop.xlane.xlu0 %1426
      %v1428 = vadd.f32 %v1316, %v1318
      %1429 = vadd.xlane.f32.xlu0 %v1428
      %v1430 = vpop.xlane.xlu0 %1429
      %v1431 = vadd.f32 %v1320, %v1322
      %1432 = vadd.xlane.f32.xlu0 %v1431
      %v1433 = vpop.xlane.xlu0 %1432
      %v1434 = vadd.f32 %v1324, %v1326
      %1435 = vadd.xlane.f32.xlu0 %v1434
      %v1436 = vpop.xlane.xlu0 %1435
      %v1437 = vadd.f32 %v1328, %v1330
      %1438 = vadd.xlane.f32.xlu0 %v1437
      %v1439 = vpop.xlane.xlu0 %1438
      %v1440 = vadd.f32 %v1332, %v1334
      %1441 = vadd.xlane.f32.xlu0 %v1440
      %v1442 = vpop.xlane.xlu0 %1441
      %v1443 = vadd.f32 %v1336, %v1338
      %1444 = vadd.xlane.f32.xlu0 %v1443
      %v1445 = vpop.xlane.xlu0 %1444
      %v1446 = vadd.f32 %v1340, %v1342
      %1447 = vadd.xlane.f32.xlu0 %v1446
      %v1448 = vpop.xlane.xlu0 %1447
      %v1449 = vadd.f32 %v1344, %v1346
      %1450 = vadd.xlane.f32.xlu0 %v1449
      %v1451 = vpop.xlane.xlu0 %1450
      %v1452 = vadd.f32 %v1348, %v1350
      %1453 = vadd.xlane.f32.xlu0 %v1452
      %v1454 = vpop.xlane.xlu0 %1453
      %v1455 = vadd.f32 %v1352, %v1354
      %1456 = vadd.xlane.f32.xlu0 %v1455
      %v1457 = vpop.xlane.xlu0 %1456
      %v1458 = vadd.f32 %v1356, %v1358
      %1459 = vadd.xlane.f32.xlu0 %v1458
      %v1460 = vpop.xlane.xlu0 %1459
      %v1461 = vadd.f32 %v1360, %v1362
      %1462 = vadd.xlane.f32.xlu0 %v1461
      %v1463 = vpop.xlane.xlu0 %1462
      %v1464 = vadd.f32 %v1364, %v1366
      %1465 = vadd.xlane.f32.xlu0 %v1464
      %v1466 = vpop.xlane.xlu0 %1465
      %v1467 = vadd.f32 %v1368, %v1370
      %1468 = vadd.xlane.f32.xlu0 %v1467
      %v1469 = vpop.xlane.xlu0 %1468
      %v1470 = vadd.f32 %v1372, %v1374
      %1471 = vadd.xlane.f32.xlu0 %v1470
      %v1472 = vpop.xlane.xlu0 %1471
      %v1473 = vadd.f32 %v1376, %v1378
      %1474 = vadd.xlane.f32.xlu0 %v1473
      %v1475 = vpop.xlane.xlu0 %1474
      %v1476 = vadd.f32 %v1380, %v1382
      %1477 = vadd.xlane.f32.xlu0 %v1476
      %v1478 = vpop.xlane.xlu0 %1477
      %v1479 = vrcp.pop %v1385
      %v1480 = vmul.f32 %v1385, %v1479
      %v1481 = vsub.f32 1.0, %v1480
      %v1482 = vmul.f32 %v1479, %v1481
      %v1483 = vadd.f32 %v1479, %v1482
      %vm1484 = vweird.f32 %v1385
      %vm1485 = vweird.f32 %v1479
      %vm1486 = vmor %vm1484, %vm1485
      %v1487 = vsel %vm1486, %v1479, %v1483
      %v1488 = vand.u32 2147483647, %v1385
      %vm1489 = vcmp.eq.f32.partialorder %v1488, 8.507059e+37
      %v1490 = vand.u32 %v1385, 2147483648
      %v1491 = vor.u32 1.1754944e-38, %v1490
      %v1492 = vsel %vm1489, %v1491, %v1487
      %v1493 = vrcp.pop %v1388
      %v1494 = vmul.f32 %v1388, %v1493
      %v1495 = vsub.f32 1.0, %v1494
      %v1496 = vmul.f32 %v1493, %v1495
      %v1497 = vadd.f32 %v1493, %v1496
      %vm1498 = vweird.f32 %v1388
      %vm1499 = vweird.f32 %v1493
      %vm1500 = vmor %vm1498, %vm1499
      %v1501 = vsel %vm1500, %v1493, %v1497
      %v1502 = vand.u32 2147483647, %v1388
      %vm1503 = vcmp.eq.f32.partialorder %v1502, 8.507059e+37
      %v1504 = vand.u32 %v1388, 2147483648
      %v1505 = vor.u32 1.1754944e-38, %v1504
      %v1506 = vsel %vm1503, %v1505, %v1501
      %v1507 = vrcp.pop %v1391
      %v1508 = vmul.f32 %v1391, %v1507
      %v1509 = vsub.f32 1.0, %v1508
      %v1510 = vmul.f32 %v1507, %v1509
      %v1511 = vadd.f32 %v1507, %v1510
      %vm1512 = vweird.f32 %v1391
      %vm1513 = vweird.f32 %v1507
      %vm1514 = vmor %vm1512, %vm1513
      %v1515 = vsel %vm1514, %v1507, %v1511
      %v1516 = vand.u32 2147483647, %v1391
      %vm1517 = vcmp.eq.f32.partialorder %v1516, 8.507059e+37
      %v1518 = vand.u32 %v1391, 2147483648
      %v1519 = vor.u32 1.1754944e-38, %v1518
      %v1520 = vsel %vm1517, %v1519, %v1515
      %v1521 = vrcp.pop %v1394
      %v1522 = vmul.f32 %v1394, %v1521
      %v1523 = vsub.f32 1.0, %v1522
      %v1524 = vmul.f32 %v1521, %v1523
      %v1525 = vadd.f32 %v1521, %v1524
      %vm1526 = vweird.f32 %v1394
      %vm1527 = vweird.f32 %v1521
      %vm1528 = vmor %vm1526, %vm1527
      %v1529 = vsel %vm1528, %v1521, %v1525
      %v1530 = vand.u32 2147483647, %v1394
      %vm1531 = vcmp.eq.f32.partialorder %v1530, 8.507059e+37
      %v1532 = vand.u32 %v1394, 2147483648
      %v1533 = vor.u32 1.1754944e-38, %v1532
      %v1534 = vsel %vm1531, %v1533, %v1529
      %v1535 = vrcp.pop %v1397
      %v1536 = vmul.f32 %v1397, %v1535
      %v1537 = vsub.f32 1.0, %v1536
      %v1538 = vmul.f32 %v1535, %v1537
      %v1539 = vadd.f32 %v1535, %v1538
      %vm1540 = vweird.f32 %v1397
      %vm1541 = vweird.f32 %v1535
      %vm1542 = vmor %vm1540, %vm1541
      %v1543 = vsel %vm1542, %v1535, %v1539
      %v1544 = vand.u32 2147483647, %v1397
      %vm1545 = vcmp.eq.f32.partialorder %v1544, 8.507059e+37
      %v1546 = vand.u32 %v1397, 2147483648
      %v1547 = vor.u32 1.1754944e-38, %v1546
      %v1548 = vsel %vm1545, %v1547, %v1543
      %v1549 = vrcp.pop %v1400
      %v1550 = vmul.f32 %v1400, %v1549
      %v1551 = vsub.f32 1.0, %v1550
      %v1552 = vmul.f32 %v1549, %v1551
      %v1553 = vadd.f32 %v1549, %v1552
      %vm1554 = vweird.f32 %v1400
      %vm1555 = vweird.f32 %v1549
      %vm1556 = vmor %vm1554, %vm1555
      %v1557 = vsel %vm1556, %v1549, %v1553
      %v1558 = vand.u32 2147483647, %v1400
      %vm1559 = vcmp.eq.f32.partialorder %v1558, 8.507059e+37
      %v1560 = vand.u32 %v1400, 2147483648
      %v1561 = vor.u32 1.1754944e-38, %v1560
      %v1562 = vsel %vm1559, %v1561, %v1557
      %v1563 = vrcp.pop %v1403
      %v1564 = vmul.f32 %v1403, %v1563
      %v1565 = vsub.f32 1.0, %v1564
      %v1566 = vmul.f32 %v1563, %v1565
      %v1567 = vadd.f32 %v1563, %v1566
      %vm1568 = vweird.f32 %v1403
      %vm1569 = vweird.f32 %v1563
      %vm1570 = vmor %vm1568, %vm1569
      %v1571 = vsel %vm1570, %v1563, %v1567
      %v1572 = vand.u32 2147483647, %v1403
      %vm1573 = vcmp.eq.f32.partialorder %v1572, 8.507059e+37
      %v1574 = vand.u32 %v1403, 2147483648
      %v1575 = vor.u32 1.1754944e-38, %v1574
      %v1576 = vsel %vm1573, %v1575, %v1571
      %v1577 = vrcp.pop %v1406
      %v1578 = vmul.f32 %v1406, %v1577
      %v1579 = vsub.f32 1.0, %v1578
      %v1580 = vmul.f32 %v1577, %v1579
      %v1581 = vadd.f32 %v1577, %v1580
      %vm1582 = vweird.f32 %v1406
      %vm1583 = vweird.f32 %v1577
      %vm1584 = vmor %vm1582, %vm1583
      %v1585 = vsel %vm1584, %v1577, %v1581
      %v1586 = vand.u32 2147483647, %v1406
      %vm1587 = vcmp.eq.f32.partialorder %v1586, 8.507059e+37
      %v1588 = vand.u32 %v1406, 2147483648
      %v1589 = vor.u32 1.1754944e-38, %v1588
      %v1590 = vsel %vm1587, %v1589, %v1585
      %v1591 = vrcp.pop %v1409
      %v1592 = vmul.f32 %v1409, %v1591
      %v1593 = vsub.f32 1.0, %v1592
      %v1594 = vmul.f32 %v1591, %v1593
      %v1595 = vadd.f32 %v1591, %v1594
      %vm1596 = vweird.f32 %v1409
      %vm1597 = vweird.f32 %v1591
      %vm1598 = vmor %vm1596, %vm1597
      %v1599 = vsel %vm1598, %v1591, %v1595
      %v1600 = vand.u32 2147483647, %v1409
      %vm1601 = vcmp.eq.f32.partialorder %v1600, 8.507059e+37
      %v1602 = vand.u32 %v1409, 2147483648
      %v1603 = vor.u32 1.1754944e-38, %v1602
      %v1604 = vsel %vm1601, %v1603, %v1599
      %v1605 = vrcp.pop %v1412
      %v1606 = vmul.f32 %v1412, %v1605
      %v1607 = vsub.f32 1.0, %v1606
      %v1608 = vmul.f32 %v1605, %v1607
      %v1609 = vadd.f32 %v1605, %v1608
      %vm1610 = vweird.f32 %v1412
      %vm1611 = vweird.f32 %v1605
      %vm1612 = vmor %vm1610, %vm1611
      %v1613 = vsel %vm1612, %v1605, %v1609
      %v1614 = vand.u32 2147483647, %v1412
      %vm1615 = vcmp.eq.f32.partialorder %v1614, 8.507059e+37
      %v1616 = vand.u32 %v1412, 2147483648
      %v1617 = vor.u32 1.1754944e-38, %v1616
      %v1618 = vsel %vm1615, %v1617, %v1613
      %v1619 = vrcp.pop %v1415
      %v1620 = vmul.f32 %v1415, %v1619
      %v1621 = vsub.f32 1.0, %v1620
      %v1622 = vmul.f32 %v1619, %v1621
      %v1623 = vadd.f32 %v1619, %v1622
      %vm1624 = vweird.f32 %v1415
      %vm1625 = vweird.f32 %v1619
      %vm1626 = vmor %vm1624, %vm1625
      %v1627 = vsel %vm1626, %v1619, %v1623
      %v1628 = vand.u32 2147483647, %v1415
      %vm1629 = vcmp.eq.f32.partialorder %v1628, 8.507059e+37
      %v1630 = vand.u32 %v1415, 2147483648
      %v1631 = vor.u32 1.1754944e-38, %v1630
      %v1632 = vsel %vm1629, %v1631, %v1627
      %v1633 = vrcp.pop %v1418
      %v1634 = vmul.f32 %v1418, %v1633
      %v1635 = vsub.f32 1.0, %v1634
      %v1636 = vmul.f32 %v1633, %v1635
      %v1637 = vadd.f32 %v1633, %v1636
      %vm1638 = vweird.f32 %v1418
      %vm1639 = vweird.f32 %v1633
      %vm1640 = vmor %vm1638, %vm1639
      %v1641 = vsel %vm1640, %v1633, %v1637
      %v1642 = vand.u32 2147483647, %v1418
      %vm1643 = vcmp.eq.f32.partialorder %v1642, 8.507059e+37
      %v1644 = vand.u32 %v1418, 2147483648
      %v1645 = vor.u32 1.1754944e-38, %v1644
      %v1646 = vsel %vm1643, %v1645, %v1641
      %v1647 = vrcp.pop %v1421
      %v1648 = vmul.f32 %v1421, %v1647
      %v1649 = vsub.f32 1.0, %v1648
      %v1650 = vmul.f32 %v1647, %v1649
      %v1651 = vadd.f32 %v1647, %v1650
      %vm1652 = vweird.f32 %v1421
      %vm1653 = vweird.f32 %v1647
      %vm1654 = vmor %vm1652, %vm1653
      %v1655 = vsel %vm1654, %v1647, %v1651
      %v1656 = vand.u32 2147483647, %v1421
      %vm1657 = vcmp.eq.f32.partialorder %v1656, 8.507059e+37
      %v1658 = vand.u32 %v1421, 2147483648
      %v1659 = vor.u32 1.1754944e-38, %v1658
      %v1660 = vsel %vm1657, %v1659, %v1655
      %v1661 = vrcp.pop %v1424
      %v1662 = vmul.f32 %v1424, %v1661
      %v1663 = vsub.f32 1.0, %v1662
      %v1664 = vmul.f32 %v1661, %v1663
      %v1665 = vadd.f32 %v1661, %v1664
      %vm1666 = vweird.f32 %v1424
      %vm1667 = vweird.f32 %v1661
      %vm1668 = vmor %vm1666, %vm1667
      %v1669 = vsel %vm1668, %v1661, %v1665
      %v1670 = vand.u32 2147483647, %v1424
      %vm1671 = vcmp.eq.f32.partialorder %v1670, 8.507059e+37
      %v1672 = vand.u32 %v1424, 2147483648
      %v1673 = vor.u32 1.1754944e-38, %v1672
      %v1674 = vsel %vm1671, %v1673, %v1669
      %v1675 = vrcp.pop %v1427
      %v1676 = vmul.f32 %v1427, %v1675
      %v1677 = vsub.f32 1.0, %v1676
      %v1678 = vmul.f32 %v1675, %v1677
      %v1679 = vadd.f32 %v1675, %v1678
      %vm1680 = vweird.f32 %v1427
      %vm1681 = vweird.f32 %v1675
      %vm1682 = vmor %vm1680, %vm1681
      %v1683 = vsel %vm1682, %v1675, %v1679
      %v1684 = vand.u32 2147483647, %v1427
      %vm1685 = vcmp.eq.f32.partialorder %v1684, 8.507059e+37
      %v1686 = vand.u32 %v1427, 2147483648
      %v1687 = vor.u32 1.1754944e-38, %v1686
      %v1688 = vsel %vm1685, %v1687, %v1683
      %v1689 = vrcp.pop %v1430
      %v1690 = vmul.f32 %v1430, %v1689
      %v1691 = vsub.f32 1.0, %v1690
      %v1692 = vmul.f32 %v1689, %v1691
      %v1693 = vadd.f32 %v1689, %v1692
      %vm1694 = vweird.f32 %v1430
      %vm1695 = vweird.f32 %v1689
      %vm1696 = vmor %vm1694, %vm1695
      %v1697 = vsel %vm1696, %v1689, %v1693
      %v1698 = vand.u32 2147483647, %v1430
      %vm1699 = vcmp.eq.f32.partialorder %v1698, 8.507059e+37
      %v1700 = vand.u32 %v1430, 2147483648
      %v1701 = vor.u32 1.1754944e-38, %v1700
      %v1702 = vsel %vm1699, %v1701, %v1697
      %v1703 = vrcp.pop %v1433
      %v1704 = vmul.f32 %v1433, %v1703
      %v1705 = vsub.f32 1.0, %v1704
      %v1706 = vmul.f32 %v1703, %v1705
      %v1707 = vadd.f32 %v1703, %v1706
      %vm1708 = vweird.f32 %v1433
      %vm1709 = vweird.f32 %v1703
      %vm1710 = vmor %vm1708, %vm1709
      %v1711 = vsel %vm1710, %v1703, %v1707
      %v1712 = vand.u32 2147483647, %v1433
      %vm1713 = vcmp.eq.f32.partialorder %v1712, 8.507059e+37
      %v1714 = vand.u32 %v1433, 2147483648
      %v1715 = vor.u32 1.1754944e-38, %v1714
      %v1716 = vsel %vm1713, %v1715, %v1711
      %v1717 = vrcp.pop %v1436
      %v1718 = vmul.f32 %v1436, %v1717
      %v1719 = vsub.f32 1.0, %v1718
      %v1720 = vmul.f32 %v1717, %v1719
      %v1721 = vadd.f32 %v1717, %v1720
      %vm1722 = vweird.f32 %v1436
      %vm1723 = vweird.f32 %v1717
      %vm1724 = vmor %vm1722, %vm1723
      %v1725 = vsel %vm1724, %v1717, %v1721
      %v1726 = vand.u32 2147483647, %v1436
      %vm1727 = vcmp.eq.f32.partialorder %v1726, 8.507059e+37
      %v1728 = vand.u32 %v1436, 2147483648
      %v1729 = vor.u32 1.1754944e-38, %v1728
      %v1730 = vsel %vm1727, %v1729, %v1725
      %v1731 = vrcp.pop %v1439
      %v1732 = vmul.f32 %v1439, %v1731
      %v1733 = vsub.f32 1.0, %v1732
      %v1734 = vmul.f32 %v1731, %v1733
      %v1735 = vadd.f32 %v1731, %v1734
      %vm1736 = vweird.f32 %v1439
      %vm1737 = vweird.f32 %v1731
      %vm1738 = vmor %vm1736, %vm1737
      %v1739 = vsel %vm1738, %v1731, %v1735
      %v1740 = vand.u32 2147483647, %v1439
      %vm1741 = vcmp.eq.f32.partialorder %v1740, 8.507059e+37
      %v1742 = vand.u32 %v1439, 2147483648
      %v1743 = vor.u32 1.1754944e-38, %v1742
      %v1744 = vsel %vm1741, %v1743, %v1739
      %v1745 = vrcp.pop %v1442
      %v1746 = vmul.f32 %v1442, %v1745
      %v1747 = vsub.f32 1.0, %v1746
      %v1748 = vmul.f32 %v1745, %v1747
      %v1749 = vadd.f32 %v1745, %v1748
      %vm1750 = vweird.f32 %v1442
      %vm1751 = vweird.f32 %v1745
      %vm1752 = vmor %vm1750, %vm1751
      %v1753 = vsel %vm1752, %v1745, %v1749
      %v1754 = vand.u32 2147483647, %v1442
      %vm1755 = vcmp.eq.f32.partialorder %v1754, 8.507059e+37
      %v1756 = vand.u32 %v1442, 2147483648
      %v1757 = vor.u32 1.1754944e-38, %v1756
      %v1758 = vsel %vm1755, %v1757, %v1753
      %v1759 = vrcp.pop %v1445
      %v1760 = vmul.f32 %v1445, %v1759
      %v1761 = vsub.f32 1.0, %v1760
      %v1762 = vmul.f32 %v1759, %v1761
      %v1763 = vadd.f32 %v1759, %v1762
      %vm1764 = vweird.f32 %v1445
      %vm1765 = vweird.f32 %v1759
      %vm1766 = vmor %vm1764, %vm1765
      %v1767 = vsel %vm1766, %v1759, %v1763
      %v1768 = vand.u32 2147483647, %v1445
      %vm1769 = vcmp.eq.f32.partialorder %v1768, 8.507059e+37
      %v1770 = vand.u32 %v1445, 2147483648
      %v1771 = vor.u32 1.1754944e-38, %v1770
      %v1772 = vsel %vm1769, %v1771, %v1767
      %v1773 = vrcp.pop %v1448
      %v1774 = vmul.f32 %v1448, %v1773
      %v1775 = vsub.f32 1.0, %v1774
      %v1776 = vmul.f32 %v1773, %v1775
      %v1777 = vadd.f32 %v1773, %v1776
      %vm1778 = vweird.f32 %v1448
      %vm1779 = vweird.f32 %v1773
      %vm1780 = vmor %vm1778, %vm1779
      %v1781 = vsel %vm1780, %v1773, %v1777
      %v1782 = vand.u32 2147483647, %v1448
      %vm1783 = vcmp.eq.f32.partialorder %v1782, 8.507059e+37
      %v1784 = vand.u32 %v1448, 2147483648
      %v1785 = vor.u32 1.1754944e-38, %v1784
      %v1786 = vsel %vm1783, %v1785, %v1781
      %v1787 = vrcp.pop %v1451
      %v1788 = vmul.f32 %v1451, %v1787
      %v1789 = vsub.f32 1.0, %v1788
      %v1790 = vmul.f32 %v1787, %v1789
      %v1791 = vadd.f32 %v1787, %v1790
      %vm1792 = vweird.f32 %v1451
      %vm1793 = vweird.f32 %v1787
      %vm1794 = vmor %vm1792, %vm1793
      %v1795 = vsel %vm1794, %v1787, %v1791
      %v1796 = vand.u32 2147483647, %v1451
      %vm1797 = vcmp.eq.f32.partialorder %v1796, 8.507059e+37
      %v1798 = vand.u32 %v1451, 2147483648
      %v1799 = vor.u32 1.1754944e-38, %v1798
      %v1800 = vsel %vm1797, %v1799, %v1795
      %v1801 = vrcp.pop %v1454
      %v1802 = vmul.f32 %v1454, %v1801
      %v1803 = vsub.f32 1.0, %v1802
      %v1804 = vmul.f32 %v1801, %v1803
      %v1805 = vadd.f32 %v1801, %v1804
      %vm1806 = vweird.f32 %v1454
      %vm1807 = vweird.f32 %v1801
      %vm1808 = vmor %vm1806, %vm1807
      %v1809 = vsel %vm1808, %v1801, %v1805
      %v1810 = vand.u32 2147483647, %v1454
      %vm1811 = vcmp.eq.f32.partialorder %v1810, 8.507059e+37
      %v1812 = vand.u32 %v1454, 2147483648
      %v1813 = vor.u32 1.1754944e-38, %v1812
      %v1814 = vsel %vm1811, %v1813, %v1809
      %v1815 = vrcp.pop %v1457
      %v1816 = vmul.f32 %v1457, %v1815
      %v1817 = vsub.f32 1.0, %v1816
      %v1818 = vmul.f32 %v1815, %v1817
      %v1819 = vadd.f32 %v1815, %v1818
      %vm1820 = vweird.f32 %v1457
      %vm1821 = vweird.f32 %v1815
      %vm1822 = vmor %vm1820, %vm1821
      %v1823 = vsel %vm1822, %v1815, %v1819
      %v1824 = vand.u32 2147483647, %v1457
      %vm1825 = vcmp.eq.f32.partialorder %v1824, 8.507059e+37
      %v1826 = vand.u32 %v1457, 2147483648
      %v1827 = vor.u32 1.1754944e-38, %v1826
      %v1828 = vsel %vm1825, %v1827, %v1823
      %v1829 = vrcp.pop %v1460
      %v1830 = vmul.f32 %v1460, %v1829
      %v1831 = vsub.f32 1.0, %v1830
      %v1832 = vmul.f32 %v1829, %v1831
      %v1833 = vadd.f32 %v1829, %v1832
      %vm1834 = vweird.f32 %v1460
      %vm1835 = vweird.f32 %v1829
      %vm1836 = vmor %vm1834, %vm1835
      %v1837 = vsel %vm1836, %v1829, %v1833
      %v1838 = vand.u32 2147483647, %v1460
      %vm1839 = vcmp.eq.f32.partialorder %v1838, 8.507059e+37
      %v1840 = vand.u32 %v1460, 2147483648
      %v1841 = vor.u32 1.1754944e-38, %v1840
      %v1842 = vsel %vm1839, %v1841, %v1837
      %v1843 = vrcp.pop %v1463
      %v1844 = vmul.f32 %v1463, %v1843
      %v1845 = vsub.f32 1.0, %v1844
      %v1846 = vmul.f32 %v1843, %v1845
      %v1847 = vadd.f32 %v1843, %v1846
      %vm1848 = vweird.f32 %v1463
      %vm1849 = vweird.f32 %v1843
      %vm1850 = vmor %vm1848, %vm1849
      %v1851 = vsel %vm1850, %v1843, %v1847
      %v1852 = vand.u32 2147483647, %v1463
      %vm1853 = vcmp.eq.f32.partialorder %v1852, 8.507059e+37
      %v1854 = vand.u32 %v1463, 2147483648
      %v1855 = vor.u32 1.1754944e-38, %v1854
      %v1856 = vsel %vm1853, %v1855, %v1851
      %v1857 = vrcp.pop %v1466
      %v1858 = vmul.f32 %v1466, %v1857
      %v1859 = vsub.f32 1.0, %v1858
      %v1860 = vmul.f32 %v1857, %v1859
      %v1861 = vadd.f32 %v1857, %v1860
      %vm1862 = vweird.f32 %v1466
      %vm1863 = vweird.f32 %v1857
      %vm1864 = vmor %vm1862, %vm1863
      %v1865 = vsel %vm1864, %v1857, %v1861
      %v1866 = vand.u32 2147483647, %v1466
      %vm1867 = vcmp.eq.f32.partialorder %v1866, 8.507059e+37
      %v1868 = vand.u32 %v1466, 2147483648
      %v1869 = vor.u32 1.1754944e-38, %v1868
      %v1870 = vsel %vm1867, %v1869, %v1865
      %v1871 = vrcp.pop %v1469
      %v1872 = vmul.f32 %v1469, %v1871
      %v1873 = vsub.f32 1.0, %v1872
      %v1874 = vmul.f32 %v1871, %v1873
      %v1875 = vadd.f32 %v1871, %v1874
      %vm1876 = vweird.f32 %v1469
      %vm1877 = vweird.f32 %v1871
      %vm1878 = vmor %vm1876, %vm1877
      %v1879 = vsel %vm1878, %v1871, %v1875
      %v1880 = vand.u32 2147483647, %v1469
      %vm1881 = vcmp.eq.f32.partialorder %v1880, 8.507059e+37
      %v1882 = vand.u32 %v1469, 2147483648
      %v1883 = vor.u32 1.1754944e-38, %v1882
      %v1884 = vsel %vm1881, %v1883, %v1879
      %v1885 = vrcp.pop %v1472
      %v1886 = vmul.f32 %v1472, %v1885
      %v1887 = vsub.f32 1.0, %v1886
      %v1888 = vmul.f32 %v1885, %v1887
      %v1889 = vadd.f32 %v1885, %v1888
      %vm1890 = vweird.f32 %v1472
      %vm1891 = vweird.f32 %v1885
      %vm1892 = vmor %vm1890, %vm1891
      %v1893 = vsel %vm1892, %v1885, %v1889
      %v1894 = vand.u32 2147483647, %v1472
      %vm1895 = vcmp.eq.f32.partialorder %v1894, 8.507059e+37
      %v1896 = vand.u32 %v1472, 2147483648
      %v1897 = vor.u32 1.1754944e-38, %v1896
      %v1898 = vsel %vm1895, %v1897, %v1893
      %v1899 = vrcp.pop %v1475
      %v1900 = vmul.f32 %v1475, %v1899
      %v1901 = vsub.f32 1.0, %v1900
      %v1902 = vmul.f32 %v1899, %v1901
      %v1903 = vadd.f32 %v1899, %v1902
      %vm1904 = vweird.f32 %v1475
      %vm1905 = vweird.f32 %v1899
      %vm1906 = vmor %vm1904, %vm1905
      %v1907 = vsel %vm1906, %v1899, %v1903
      %v1908 = vand.u32 2147483647, %v1475
      %vm1909 = vcmp.eq.f32.partialorder %v1908, 8.507059e+37
      %v1910 = vand.u32 %v1475, 2147483648
      %v1911 = vor.u32 1.1754944e-38, %v1910
      %v1912 = vsel %vm1909, %v1911, %v1907
      %v1913 = vrcp.pop %v1478
      %v1914 = vmul.f32 %v1478, %v1913
      %v1915 = vsub.f32 1.0, %v1914
      %v1916 = vmul.f32 %v1913, %v1915
      %v1917 = vadd.f32 %v1913, %v1916
      %vm1918 = vweird.f32 %v1478
      %vm1919 = vweird.f32 %v1913
      %vm1920 = vmor %vm1918, %vm1919
      %v1921 = vsel %vm1920, %v1913, %v1917
      %v1922 = vand.u32 2147483647, %v1478
      %vm1923 = vcmp.eq.f32.partialorder %v1922, 8.507059e+37
      %v1924 = vand.u32 %v1478, 2147483648
      %v1925 = vor.u32 1.1754944e-38, %v1924
      %v1926 = vsel %vm1923, %v1925, %v1921
      %v1927 = vmul.f32 %v1256, %v1492
      %v1928 = vmul.f32 %v1258, %v1492
      %v1929 = vmul.f32 %v1260, %v1506
      %v1930 = vmul.f32 %v1262, %v1506
      %v1931 = vmul.f32 %v1264, %v1520
      %v1932 = vmul.f32 %v1266, %v1520
      %v1933 = vmul.f32 %v1268, %v1534
      %v1934 = vmul.f32 %v1270, %v1534
      %v1935 = vmul.f32 %v1272, %v1548
      %v1936 = vmul.f32 %v1274, %v1548
      %v1937 = vmul.f32 %v1276, %v1562
      %v1938 = vmul.f32 %v1278, %v1562
      %v1939 = vmul.f32 %v1280, %v1576
      %v1940 = vmul.f32 %v1282, %v1576
      %v1941 = vmul.f32 %v1284, %v1590
      %v1942 = vmul.f32 %v1286, %v1590
      %v1943 = vmul.f32 %v1288, %v1604
      %v1944 = vmul.f32 %v1290, %v1604
      %v1945 = vmul.f32 %v1292, %v1618
      %v1946 = vmul.f32 %v1294, %v1618
      %v1947 = vmul.f32 %v1296, %v1632
      %v1948 = vmul.f32 %v1298, %v1632
      %v1949 = vmul.f32 %v1300, %v1646
      %v1950 = vmul.f32 %v1302, %v1646
      %v1951 = vmul.f32 %v1304, %v1660
      %v1952 = vmul.f32 %v1306, %v1660
      %v1953 = vmul.f32 %v1308, %v1674
      %v1954 = vmul.f32 %v1310, %v1674
      %v1955 = vmul.f32 %v1312, %v1688
      %v1956 = vmul.f32 %v1314, %v1688
      %v1957 = vmul.f32 %v1316, %v1702
      %v1958 = vmul.f32 %v1318, %v1702
      %v1959 = vmul.f32 %v1320, %v1716
      %v1960 = vmul.f32 %v1322, %v1716
      %v1961 = vmul.f32 %v1324, %v1730
      %v1962 = vmul.f32 %v1326, %v1730
      %v1963 = vmul.f32 %v1328, %v1744
      %v1964 = vmul.f32 %v1330, %v1744
      %v1965 = vmul.f32 %v1332, %v1758
      %v1966 = vmul.f32 %v1334, %v1758
      %v1967 = vmul.f32 %v1336, %v1772
      %v1968 = vmul.f32 %v1338, %v1772
      %v1969 = vmul.f32 %v1340, %v1786
      %v1970 = vmul.f32 %v1342, %v1786
      %v1971 = vmul.f32 %v1344, %v1800
      %v1972 = vmul.f32 %v1346, %v1800
      %v1973 = vmul.f32 %v1348, %v1814
      %v1974 = vmul.f32 %v1350, %v1814
      %v1975 = vmul.f32 %v1352, %v1828
      %v1976 = vmul.f32 %v1354, %v1828
      %v1977 = vmul.f32 %v1356, %v1842
      %v1978 = vmul.f32 %v1358, %v1842
      %v1979 = vmul.f32 %v1360, %v1856
      %v1980 = vmul.f32 %v1362, %v1856
      %v1981 = vmul.f32 %v1364, %v1870
      %v1982 = vmul.f32 %v1366, %v1870
      %v1983 = vmul.f32 %v1368, %v1884
      %v1984 = vmul.f32 %v1370, %v1884
      %v1985 = vmul.f32 %v1372, %v1898
      %v1986 = vmul.f32 %v1374, %v1898
      %v1987 = vmul.f32 %v1376, %v1912
      %v1988 = vmul.f32 %v1378, %v1912
      %v1989 = vmul.f32 %v1380, %v1926
      %v1990 = vmul.f32 %v1382, %v1926
      %1991 = vmatpush.xpose.msra.mxu0 %v1957
      %1992 = vmatpush.xpose.msra.mxu0 %v1955
      %1993 = vmatpush.xpose.msra.mxu0 %v1953
      %1994 = vmatpush.xpose.msra.mxu0 %v1951
      %1995 = vmatpush.xpose.msra.mxu0 %v1949
      %1996 = vmatpush.xpose.msra.mxu0 %v1947
      %1997 = vmatpush.xpose.msra.mxu0 %v1945
      %1998 = vmatpush.xpose.msra.mxu0 %v1943
      %1999 = vmatpush.xpose.msra.mxu0 %v1941
      %2000 = vmatpush.xpose.msra.mxu0 %v1939
      %2001 = vmatpush.xpose.msra.mxu0 %v1937
      %2002 = vmatpush.xpose.msra.mxu0 %v1935
      %2003 = vmatpush.xpose.msra.mxu0 %v1933
      %2004 = vmatpush.xpose.msra.mxu0 %v1931
      %2005 = vmatpush.xpose.msra.mxu0 %v1929
      %2006 = vmatpush.xpose.msra.mxu0 %v1927
      %2007 = vmatmul.f32.gmra.mxu0 %v644
      %v2008 = vpop.f32.mrf.mxu0
      %v2009 = vadd.f32 0.0, %v2008
      %2010 = vdwg.mxu0
      %2011 = vmatpush.xpose.msra.mxu0 %v1958
      %2012 = vmatpush.xpose.msra.mxu0 %v1956
      %2013 = vmatpush.xpose.msra.mxu0 %v1954
      %2014 = vmatpush.xpose.msra.mxu0 %v1952
      %2015 = vmatpush.xpose.msra.mxu0 %v1950
      %2016 = vmatpush.xpose.msra.mxu0 %v1948
      %2017 = vmatpush.xpose.msra.mxu0 %v1946
      %2018 = vmatpush.xpose.msra.mxu0 %v1944
      %2019 = vmatpush.xpose.msra.mxu0 %v1942
      %2020 = vmatpush.xpose.msra.mxu0 %v1940
      %2021 = vmatpush.xpose.msra.mxu0 %v1938
      %2022 = vmatpush.xpose.msra.mxu0 %v1936
      %2023 = vmatpush.xpose.msra.mxu0 %v1934
      %2024 = vmatpush.xpose.msra.mxu0 %v1932
      %2025 = vmatpush.xpose.msra.mxu0 %v1930
      %2026 = vmatpush.xpose.msra.mxu0 %v1928
      %2027 = vmatmul.f32.gmra.mxu0 %v697
      %v2028 = vpop.f32.mrf.mxu0
      %v2029 = vadd.f32 %v2009, %v2028
      %2030 = vdwg.mxu0
      %2031 = vmatpush.xpose.msra.mxu0 %v1989
      %2032 = vmatpush.xpose.msra.mxu0 %v1987
      %2033 = vmatpush.xpose.msra.mxu0 %v1985
      %2034 = vmatpush.xpose.msra.mxu0 %v1983
      %2035 = vmatpush.xpose.msra.mxu0 %v1981
      %2036 = vmatpush.xpose.msra.mxu0 %v1979
      %2037 = vmatpush.xpose.msra.mxu0 %v1977
      %2038 = vmatpush.xpose.msra.mxu0 %v1975
      %2039 = vmatpush.xpose.msra.mxu0 %v1973
      %2040 = vmatpush.xpose.msra.mxu0 %v1971
      %2041 = vmatpush.xpose.msra.mxu0 %v1969
      %2042 = vmatpush.xpose.msra.mxu0 %v1967
      %2043 = vmatpush.xpose.msra.mxu0 %v1965
      %2044 = vmatpush.xpose.msra.mxu0 %v1963
      %2045 = vmatpush.xpose.msra.mxu0 %v1961
      %2046 = vmatpush.xpose.msra.mxu0 %v1959
      %2047 = vmatmul.f32.gmra.mxu0 %v644
      %v2048 = vpop.f32.mrf.mxu0
      %v2049 = vadd.f32 0.0, %v2048
      %2050 = vdwg.mxu0
      %2051 = vmatpush.xpose.msra.mxu0 %v1990
      %2052 = vmatpush.xpose.msra.mxu0 %v1988
      %2053 = vmatpush.xpose.msra.mxu0 %v1986
      %2054 = vmatpush.xpose.msra.mxu0 %v1984
      %2055 = vmatpush.xpose.msra.mxu0 %v1982
      %2056 = vmatpush.xpose.msra.mxu0 %v1980
      %2057 = vmatpush.xpose.msra.mxu0 %v1978
      %2058 = vmatpush.xpose.msra.mxu0 %v1976
      %2059 = vmatpush.xpose.msra.mxu0 %v1974
      %2060 = vmatpush.xpose.msra.mxu0 %v1972
      %2061 = vmatpush.xpose.msra.mxu0 %v1970
      %2062 = vmatpush.xpose.msra.mxu0 %v1968
      %2063 = vmatpush.xpose.msra.mxu0 %v1966
      %2064 = vmatpush.xpose.msra.mxu0 %v1964
      %2065 = vmatpush.xpose.msra.mxu0 %v1962
      %2066 = vmatpush.xpose.msra.mxu0 %v1960
      %2067 = vmatmul.f32.gmra.mxu0 %v697
      %v2068 = vpop.f32.mrf.mxu0
      %v2069 = vadd.f32 %v2049, %v2068
      %2070 = vdwg.mxu0
      %2071 = vxpose.xlu0.b32.start [1/16] %v623, 128
      %2072 = vxpose.xlu0.b32.cont [2/16] 0.0, 128
      %2073 = vxpose.xlu0.b32.cont [3/16] 0.0, 128
      %2074 = vxpose.xlu0.b32.cont [4/16] 0.0, 128
      %2075 = vxpose.xlu0.b32.cont [5/16] 0.0, 128
      %2076 = vxpose.xlu0.b32.cont [6/16] 0.0, 128
      %2077 = vxpose.xlu0.b32.cont [7/16] 0.0, 128
      %2078 = vxpose.xlu0.b32.cont [8/16] 0.0, 128
      %2079 = vxpose.xlu0.b32.cont [9/16] 0.0, 128
      %2080 = vxpose.xlu0.b32.cont [10/16] 0.0, 128
      %2081 = vxpose.xlu0.b32.cont [11/16] 0.0, 128
      %2082 = vxpose.xlu0.b32.cont [12/16] 0.0, 128
      %2083 = vxpose.xlu0.b32.cont [13/16] 0.0, 128
      %2084 = vxpose.xlu0.b32.cont [14/16] 0.0, 128
      %2085 = vxpose.xlu0.b32.cont [15/16] 0.0, 128
      %2086 = vxpose.xlu0.b32.end [16/16] 0.0, 128
      %v2087 = vpop.trf.xlu0
      %v2088 = vpop.trf.xlu0
      %v2089 = vpop.trf.xlu0
      %v2090 = vpop.trf.xlu0
      %v2091 = vpop.trf.xlu0
      %v2092 = vpop.trf.xlu0
      %v2093 = vpop.trf.xlu0
      %v2094 = vpop.trf.xlu0
      %v2095 = vpop.trf.xlu0
      %v2096 = vpop.trf.xlu0
      %v2097 = vpop.trf.xlu0
      %v2098 = vpop.trf.xlu0
      %v2099 = vpop.trf.xlu0
      %v2100 = vpop.trf.xlu0
      %v2101 = vpop.trf.xlu0
      %v2102 = vpop.trf.xlu0
      %2103 = vxpose.xlu0.b32.start [1/16] %v676, 128
      %2104 = vxpose.xlu0.b32.cont [2/16] 0.0, 128
      %2105 = vxpose.xlu0.b32.cont [3/16] 0.0, 128
      %2106 = vxpose.xlu0.b32.cont [4/16] 0.0, 128
      %2107 = vxpose.xlu0.b32.cont [5/16] 0.0, 128
      %2108 = vxpose.xlu0.b32.cont [6/16] 0.0, 128
      %2109 = vxpose.xlu0.b32.cont [7/16] 0.0, 128
      %2110 = vxpose.xlu0.b32.cont [8/16] 0.0, 128
      %2111 = vxpose.xlu0.b32.cont [9/16] 0.0, 128
      %2112 = vxpose.xlu0.b32.cont [10/16] 0.0, 128
      %2113 = vxpose.xlu0.b32.cont [11/16] 0.0, 128
      %2114 = vxpose.xlu0.b32.cont [12/16] 0.0, 128
      %2115 = vxpose.xlu0.b32.cont [13/16] 0.0, 128
      %2116 = vxpose.xlu0.b32.cont [14/16] 0.0, 128
      %2117 = vxpose.xlu0.b32.cont [15/16] 0.0, 128
      %2118 = vxpose.xlu0.b32.end [16/16] 0.0, 128
      %v2119 = vpop.trf.xlu0
      %v2120 = vpop.trf.xlu0
      %v2121 = vpop.trf.xlu0
      %v2122 = vpop.trf.xlu0
      %v2123 = vpop.trf.xlu0
      %v2124 = vpop.trf.xlu0
      %v2125 = vpop.trf.xlu0
      %v2126 = vpop.trf.xlu0
      %v2127 = vpop.trf.xlu0
      %v2128 = vpop.trf.xlu0
      %v2129 = vpop.trf.xlu0
      %v2130 = vpop.trf.xlu0
      %v2131 = vpop.trf.xlu0
      %v2132 = vpop.trf.xlu0
      %v2133 = vpop.trf.xlu0
      %v2134 = vpop.trf.xlu0
      %v2136 = vsel %vm772, %v2087, 0
      %v2139 = vsel %vm772, %v2088, 0
      %v2142 = vsel %vm772, %v2089, 0
      %v2145 = vsel %vm772, %v2090, 0
      %v2148 = vsel %vm772, %v2091, 0
      %v2151 = vsel %vm772, %v2092, 0
      %v2154 = vsel %vm772, %v2093, 0
      %v2157 = vsel %vm772, %v2094, 0
      %v2160 = vsel %vm772, %v2095, 0
      %v2163 = vsel %vm772, %v2096, 0
      %v2166 = vsel %vm772, %v2097, 0
      %v2169 = vsel %vm772, %v2098, 0
      %v2172 = vsel %vm772, %v2099, 0
      %v2175 = vsel %vm772, %v2100, 0
      %v2178 = vsel %vm772, %v2101, 0
      %v2181 = vsel %vm772, %v2102, 0
      %v2184 = vsel %vm772, %v2119, 0
      %v2187 = vsel %vm772, %v2120, 0
      %v2190 = vsel %vm772, %v2121, 0
      %v2193 = vsel %vm772, %v2122, 0
      %v2196 = vsel %vm772, %v2123, 0
      %v2199 = vsel %vm772, %v2124, 0
      %v2202 = vsel %vm772, %v2125, 0
      %v2205 = vsel %vm772, %v2126, 0
      %v2208 = vsel %vm772, %v2127, 0
      %v2211 = vsel %vm772, %v2128, 0
      %v2214 = vsel %vm772, %v2129, 0
      %v2217 = vsel %vm772, %v2130, 0
      %v2220 = vsel %vm772, %v2131, 0
      %v2223 = vsel %vm772, %v2132, 0
      %v2226 = vsel %vm772, %v2133, 0
      %v2229 = vsel %vm772, %v2134, 0
      %2231 = vmatpush.msra.mxu0 0.0
      %2232 = vmatpush.msra.mxu0 0.0
      %2233 = vmatpush.msra.mxu0 0.0
      %2234 = vmatpush.msra.mxu0 0.0
      %2235 = vmatpush.msra.mxu0 0.0
      %2236 = vmatpush.msra.mxu0 0.0
      %2237 = vmatpush.msra.mxu0 0.0
      %2238 = vmatpush.msra.mxu0 0.0
      %2239 = vmatpush.msra.mxu0 0.0
      %2240 = vmatpush.msra.mxu0 0.0
      %2241 = vmatpush.msra.mxu0 0.0
      %2242 = vmatpush.msra.mxu0 0.0
      %2243 = vmatpush.msra.mxu0 0.0
      %2244 = vmatpush.msra.mxu0 0.0
      %2245 = vmatpush.msra.mxu0 0.0
      %2246 = vmatpush.msra.mxu0 %v635
      %2247 = vmatmul.f32.gmra.mxu0 %v2136
      %v2248 = vpop.f32.mrf.mxu0
      %v2249 = vadd.f32 0.0, %v2248
      %2250 = vmatmul.f32.gmra.mxu0 %v2139
      %v2251 = vpop.f32.mrf.mxu0
      %v2252 = vadd.f32 0.0, %v2251
      %2253 = vmatmul.f32.gmra.mxu0 %v2142
      %v2254 = vpop.f32.mrf.mxu0
      %v2255 = vadd.f32 0.0, %v2254
      %2256 = vmatmul.f32.gmra.mxu0 %v2145
      %v2257 = vpop.f32.mrf.mxu0
      %v2258 = vadd.f32 0.0, %v2257
      %2259 = vmatmul.f32.gmra.mxu0 %v2148
      %v2260 = vpop.f32.mrf.mxu0
      %v2261 = vadd.f32 0.0, %v2260
      %2262 = vmatmul.f32.gmra.mxu0 %v2151
      %v2263 = vpop.f32.mrf.mxu0
      %v2264 = vadd.f32 0.0, %v2263
      %2265 = vmatmul.f32.gmra.mxu0 %v2154
      %v2266 = vpop.f32.mrf.mxu0
      %v2267 = vadd.f32 0.0, %v2266
      %2268 = vmatmul.f32.gmra.mxu0 %v2157
      %v2269 = vpop.f32.mrf.mxu0
      %v2270 = vadd.f32 0.0, %v2269
      %2271 = vmatmul.f32.gmra.mxu0 %v2160
      %v2272 = vpop.f32.mrf.mxu0
      %v2273 = vadd.f32 0.0, %v2272
      %2274 = vmatmul.f32.gmra.mxu0 %v2163
      %v2275 = vpop.f32.mrf.mxu0
      %v2276 = vadd.f32 0.0, %v2275
      %2277 = vmatmul.f32.gmra.mxu0 %v2166
      %v2278 = vpop.f32.mrf.mxu0
      %v2279 = vadd.f32 0.0, %v2278
      %2280 = vmatmul.f32.gmra.mxu0 %v2169
      %v2281 = vpop.f32.mrf.mxu0
      %v2282 = vadd.f32 0.0, %v2281
      %2283 = vmatmul.f32.gmra.mxu0 %v2172
      %v2284 = vpop.f32.mrf.mxu0
      %v2285 = vadd.f32 0.0, %v2284
      %2286 = vmatmul.f32.gmra.mxu0 %v2175
      %v2287 = vpop.f32.mrf.mxu0
      %v2288 = vadd.f32 0.0, %v2287
      %2289 = vmatmul.f32.gmra.mxu0 %v2178
      %v2290 = vpop.f32.mrf.mxu0
      %v2291 = vadd.f32 0.0, %v2290
      %2292 = vmatmul.f32.gmra.mxu0 %v2181
      %v2293 = vpop.f32.mrf.mxu0
      %v2294 = vadd.f32 0.0, %v2293
      %2295 = vmatmul.f32.gmra.mxu0 %v2184
      %v2296 = vpop.f32.mrf.mxu0
      %v2297 = vadd.f32 0.0, %v2296
      %2298 = vmatmul.f32.gmra.mxu0 %v2187
      %v2299 = vpop.f32.mrf.mxu0
      %v2300 = vadd.f32 0.0, %v2299
      %2301 = vmatmul.f32.gmra.mxu0 %v2190
      %v2302 = vpop.f32.mrf.mxu0
      %v2303 = vadd.f32 0.0, %v2302
      %2304 = vmatmul.f32.gmra.mxu0 %v2193
      %v2305 = vpop.f32.mrf.mxu0
      %v2306 = vadd.f32 0.0, %v2305
      %2307 = vmatmul.f32.gmra.mxu0 %v2196
      %v2308 = vpop.f32.mrf.mxu0
      %v2309 = vadd.f32 0.0, %v2308
      %2310 = vmatmul.f32.gmra.mxu0 %v2199
      %v2311 = vpop.f32.mrf.mxu0
      %v2312 = vadd.f32 0.0, %v2311
      %2313 = vmatmul.f32.gmra.mxu0 %v2202
      %v2314 = vpop.f32.mrf.mxu0
      %v2315 = vadd.f32 0.0, %v2314
      %2316 = vmatmul.f32.gmra.mxu0 %v2205
      %v2317 = vpop.f32.mrf.mxu0
      %v2318 = vadd.f32 0.0, %v2317
      %2319 = vmatmul.f32.gmra.mxu0 %v2208
      %v2320 = vpop.f32.mrf.mxu0
      %v2321 = vadd.f32 0.0, %v2320
      %2322 = vmatmul.f32.gmra.mxu0 %v2211
      %v2323 = vpop.f32.mrf.mxu0
      %v2324 = vadd.f32 0.0, %v2323
      %2325 = vmatmul.f32.gmra.mxu0 %v2214
      %v2326 = vpop.f32.mrf.mxu0
      %v2327 = vadd.f32 0.0, %v2326
      %2328 = vmatmul.f32.gmra.mxu0 %v2217
      %v2329 = vpop.f32.mrf.mxu0
      %v2330 = vadd.f32 0.0, %v2329
      %2331 = vmatmul.f32.gmra.mxu0 %v2220
      %v2332 = vpop.f32.mrf.mxu0
      %v2333 = vadd.f32 0.0, %v2332
      %2334 = vmatmul.f32.gmra.mxu0 %v2223
      %v2335 = vpop.f32.mrf.mxu0
      %v2336 = vadd.f32 0.0, %v2335
      %2337 = vmatmul.f32.gmra.mxu0 %v2226
      %v2338 = vpop.f32.mrf.mxu0
      %v2339 = vadd.f32 0.0, %v2338
      %2340 = vmatmul.f32.gmra.mxu0 %v2229
      %v2341 = vpop.f32.mrf.mxu0
      %v2342 = vadd.f32 0.0, %v2341
      %2343 = vdwg.mxu0
      %2344 = vmatpush.msra.mxu0 0.0
      %2345 = vmatpush.msra.mxu0 0.0
      %2346 = vmatpush.msra.mxu0 0.0
      %2347 = vmatpush.msra.mxu0 0.0
      %2348 = vmatpush.msra.mxu0 0.0
      %2349 = vmatpush.msra.mxu0 0.0
      %2350 = vmatpush.msra.mxu0 0.0
      %2351 = vmatpush.msra.mxu0 0.0
      %2352 = vmatpush.msra.mxu0 0.0
      %2353 = vmatpush.msra.mxu0 0.0
      %2354 = vmatpush.msra.mxu0 0.0
      %2355 = vmatpush.msra.mxu0 0.0
      %2356 = vmatpush.msra.mxu0 0.0
      %2357 = vmatpush.msra.mxu0 0.0
      %2358 = vmatpush.msra.mxu0 0.0
      %2359 = vmatpush.msra.mxu0 %v688
      %2360 = vmatmul.f32.gmra.mxu0 %v2136
      %v2361 = vpop.f32.mrf.mxu0
      %v2362 = vadd.f32 0.0, %v2361
      %2363 = vmatmul.f32.gmra.mxu0 %v2139
      %v2364 = vpop.f32.mrf.mxu0
      %v2365 = vadd.f32 0.0, %v2364
      %2366 = vmatmul.f32.gmra.mxu0 %v2142
      %v2367 = vpop.f32.mrf.mxu0
      %v2368 = vadd.f32 0.0, %v2367
      %2369 = vmatmul.f32.gmra.mxu0 %v2145
      %v2370 = vpop.f32.mrf.mxu0
      %v2371 = vadd.f32 0.0, %v2370
      %2372 = vmatmul.f32.gmra.mxu0 %v2148
      %v2373 = vpop.f32.mrf.mxu0
      %v2374 = vadd.f32 0.0, %v2373
      %2375 = vmatmul.f32.gmra.mxu0 %v2151
      %v2376 = vpop.f32.mrf.mxu0
      %v2377 = vadd.f32 0.0, %v2376
      %2378 = vmatmul.f32.gmra.mxu0 %v2154
      %v2379 = vpop.f32.mrf.mxu0
      %v2380 = vadd.f32 0.0, %v2379
      %2381 = vmatmul.f32.gmra.mxu0 %v2157
      %v2382 = vpop.f32.mrf.mxu0
      %v2383 = vadd.f32 0.0, %v2382
      %2384 = vmatmul.f32.gmra.mxu0 %v2160
      %v2385 = vpop.f32.mrf.mxu0
      %v2386 = vadd.f32 0.0, %v2385
      %2387 = vmatmul.f32.gmra.mxu0 %v2163
      %v2388 = vpop.f32.mrf.mxu0
      %v2389 = vadd.f32 0.0, %v2388
      %2390 = vmatmul.f32.gmra.mxu0 %v2166
      %v2391 = vpop.f32.mrf.mxu0
      %v2392 = vadd.f32 0.0, %v2391
      %2393 = vmatmul.f32.gmra.mxu0 %v2169
      %v2394 = vpop.f32.mrf.mxu0
      %v2395 = vadd.f32 0.0, %v2394
      %2396 = vmatmul.f32.gmra.mxu0 %v2172
      %v2397 = vpop.f32.mrf.mxu0
      %v2398 = vadd.f32 0.0, %v2397
      %2399 = vmatmul.f32.gmra.mxu0 %v2175
      %v2400 = vpop.f32.mrf.mxu0
      %v2401 = vadd.f32 0.0, %v2400
      %2402 = vmatmul.f32.gmra.mxu0 %v2178
      %v2403 = vpop.f32.mrf.mxu0
      %v2404 = vadd.f32 0.0, %v2403
      %2405 = vmatmul.f32.gmra.mxu0 %v2181
      %v2406 = vpop.f32.mrf.mxu0
      %v2407 = vadd.f32 0.0, %v2406
      %2408 = vmatmul.f32.gmra.mxu0 %v2184
      %v2409 = vpop.f32.mrf.mxu0
      %v2410 = vadd.f32 0.0, %v2409
      %2411 = vmatmul.f32.gmra.mxu0 %v2187
      %v2412 = vpop.f32.mrf.mxu0
      %v2413 = vadd.f32 0.0, %v2412
      %2414 = vmatmul.f32.gmra.mxu0 %v2190
      %v2415 = vpop.f32.mrf.mxu0
      %v2416 = vadd.f32 0.0, %v2415
      %2417 = vmatmul.f32.gmra.mxu0 %v2193
      %v2418 = vpop.f32.mrf.mxu0
      %v2419 = vadd.f32 0.0, %v2418
      %2420 = vmatmul.f32.gmra.mxu0 %v2196
      %v2421 = vpop.f32.mrf.mxu0
      %v2422 = vadd.f32 0.0, %v2421
      %2423 = vmatmul.f32.gmra.mxu0 %v2199
      %v2424 = vpop.f32.mrf.mxu0
      %v2425 = vadd.f32 0.0, %v2424
      %2426 = vmatmul.f32.gmra.mxu0 %v2202
      %v2427 = vpop.f32.mrf.mxu0
      %v2428 = vadd.f32 0.0, %v2427
      %2429 = vmatmul.f32.gmra.mxu0 %v2205
      %v2430 = vpop.f32.mrf.mxu0
      %v2431 = vadd.f32 0.0, %v2430
      %2432 = vmatmul.f32.gmra.mxu0 %v2208
      %v2433 = vpop.f32.mrf.mxu0
      %v2434 = vadd.f32 0.0, %v2433
      %2435 = vmatmul.f32.gmra.mxu0 %v2211
      %v2436 = vpop.f32.mrf.mxu0
      %v2437 = vadd.f32 0.0, %v2436
      %2438 = vmatmul.f32.gmra.mxu0 %v2214
      %v2439 = vpop.f32.mrf.mxu0
      %v2440 = vadd.f32 0.0, %v2439
      %2441 = vmatmul.f32.gmra.mxu0 %v2217
      %v2442 = vpop.f32.mrf.mxu0
      %v2443 = vadd.f32 0.0, %v2442
      %2444 = vmatmul.f32.gmra.mxu0 %v2220
      %v2445 = vpop.f32.mrf.mxu0
      %v2446 = vadd.f32 0.0, %v2445
      %2447 = vmatmul.f32.gmra.mxu0 %v2223
      %v2448 = vpop.f32.mrf.mxu0
      %v2449 = vadd.f32 0.0, %v2448
      %2450 = vmatmul.f32.gmra.mxu0 %v2226
      %v2451 = vpop.f32.mrf.mxu0
      %v2452 = vadd.f32 0.0, %v2451
      %2453 = vmatmul.f32.gmra.mxu0 %v2229
      %v2454 = vpop.f32.mrf.mxu0
      %v2455 = vadd.f32 0.0, %v2454
      %2456 = vdwg.mxu0
      %v2457 = vmax.f32 %v2249, %v2362
      %2458 = vmax.xlane.f32.xlu0 %v2457
      %v2459 = vpop.xlane.xlu0 %2458
      %v2460 = vmax.f32 %v2252, %v2365
      %2461 = vmax.xlane.f32.xlu0 %v2460
      %v2462 = vpop.xlane.xlu0 %2461
      %v2463 = vmax.f32 %v2255, %v2368
      %2464 = vmax.xlane.f32.xlu0 %v2463
      %v2465 = vpop.xlane.xlu0 %2464
      %v2466 = vmax.f32 %v2258, %v2371
      %2467 = vmax.xlane.f32.xlu0 %v2466
      %v2468 = vpop.xlane.xlu0 %2467
      %v2469 = vmax.f32 %v2261, %v2374
      %2470 = vmax.xlane.f32.xlu0 %v2469
      %v2471 = vpop.xlane.xlu0 %2470
      %v2472 = vmax.f32 %v2264, %v2377
      %2473 = vmax.xlane.f32.xlu0 %v2472
      %v2474 = vpop.xlane.xlu0 %2473
      %v2475 = vmax.f32 %v2267, %v2380
      %2476 = vmax.xlane.f32.xlu0 %v2475
      %v2477 = vpop.xlane.xlu0 %2476
      %v2478 = vmax.f32 %v2270, %v2383
      %2479 = vmax.xlane.f32.xlu0 %v2478
      %v2480 = vpop.xlane.xlu0 %2479
      %v2481 = vmax.f32 %v2273, %v2386
      %2482 = vmax.xlane.f32.xlu0 %v2481
      %v2483 = vpop.xlane.xlu0 %2482
      %v2484 = vmax.f32 %v2276, %v2389
      %2485 = vmax.xlane.f32.xlu0 %v2484
      %v2486 = vpop.xlane.xlu0 %2485
      %v2487 = vmax.f32 %v2279, %v2392
      %2488 = vmax.xlane.f32.xlu0 %v2487
      %v2489 = vpop.xlane.xlu0 %2488
      %v2490 = vmax.f32 %v2282, %v2395
      %2491 = vmax.xlane.f32.xlu0 %v2490
      %v2492 = vpop.xlane.xlu0 %2491
      %v2493 = vmax.f32 %v2285, %v2398
      %2494 = vmax.xlane.f32.xlu0 %v2493
      %v2495 = vpop.xlane.xlu0 %2494
      %v2496 = vmax.f32 %v2288, %v2401
      %2497 = vmax.xlane.f32.xlu0 %v2496
      %v2498 = vpop.xlane.xlu0 %2497
      %v2499 = vmax.f32 %v2291, %v2404
      %2500 = vmax.xlane.f32.xlu0 %v2499
      %v2501 = vpop.xlane.xlu0 %2500
      %v2502 = vmax.f32 %v2294, %v2407
      %2503 = vmax.xlane.f32.xlu0 %v2502
      %v2504 = vpop.xlane.xlu0 %2503
      %v2505 = vmax.f32 %v2297, %v2410
      %2506 = vmax.xlane.f32.xlu0 %v2505
      %v2507 = vpop.xlane.xlu0 %2506
      %v2508 = vmax.f32 %v2300, %v2413
      %2509 = vmax.xlane.f32.xlu0 %v2508
      %v2510 = vpop.xlane.xlu0 %2509
      %v2511 = vmax.f32 %v2303, %v2416
      %2512 = vmax.xlane.f32.xlu0 %v2511
      %v2513 = vpop.xlane.xlu0 %2512
      %v2514 = vmax.f32 %v2306, %v2419
      %2515 = vmax.xlane.f32.xlu0 %v2514
      %v2516 = vpop.xlane.xlu0 %2515
      %v2517 = vmax.f32 %v2309, %v2422
      %2518 = vmax.xlane.f32.xlu0 %v2517
      %v2519 = vpop.xlane.xlu0 %2518
      %v2520 = vmax.f32 %v2312, %v2425
      %2521 = vmax.xlane.f32.xlu0 %v2520
      %v2522 = vpop.xlane.xlu0 %2521
      %v2523 = vmax.f32 %v2315, %v2428
      %2524 = vmax.xlane.f32.xlu0 %v2523
      %v2525 = vpop.xlane.xlu0 %2524
      %v2526 = vmax.f32 %v2318, %v2431
      %2527 = vmax.xlane.f32.xlu0 %v2526
      %v2528 = vpop.xlane.xlu0 %2527
      %v2529 = vmax.f32 %v2321, %v2434
      %2530 = vmax.xlane.f32.xlu0 %v2529
      %v2531 = vpop.xlane.xlu0 %2530
      %v2532 = vmax.f32 %v2324, %v2437
      %2533 = vmax.xlane.f32.xlu0 %v2532
      %v2534 = vpop.xlane.xlu0 %2533
      %v2535 = vmax.f32 %v2327, %v2440
      %2536 = vmax.xlane.f32.xlu0 %v2535
      %v2537 = vpop.xlane.xlu0 %2536
      %v2538 = vmax.f32 %v2330, %v2443
      %2539 = vmax.xlane.f32.xlu0 %v2538
      %v2540 = vpop.xlane.xlu0 %2539
      %v2541 = vmax.f32 %v2333, %v2446
      %2542 = vmax.xlane.f32.xlu0 %v2541
      %v2543 = vpop.xlane.xlu0 %2542
      %v2544 = vmax.f32 %v2336, %v2449
      %2545 = vmax.xlane.f32.xlu0 %v2544
      %v2546 = vpop.xlane.xlu0 %2545
      %v2547 = vmax.f32 %v2339, %v2452
      %2548 = vmax.xlane.f32.xlu0 %v2547
      %v2549 = vpop.xlane.xlu0 %2548
      %v2550 = vmax.f32 %v2342, %v2455
      %2551 = vmax.xlane.f32.xlu0 %v2550
      %v2552 = vpop.xlane.xlu0 %2551
      %v2553 = vsub.f32 %v2249, %v2459
      %v2554 = vsub.f32 %v2362, %v2459
      %v2555 = vsub.f32 %v2252, %v2462
      %v2556 = vsub.f32 %v2365, %v2462
      %v2557 = vsub.f32 %v2255, %v2465
      %v2558 = vsub.f32 %v2368, %v2465
      %v2559 = vsub.f32 %v2258, %v2468
      %v2560 = vsub.f32 %v2371, %v2468
      %v2561 = vsub.f32 %v2261, %v2471
      %v2562 = vsub.f32 %v2374, %v2471
      %v2563 = vsub.f32 %v2264, %v2474
      %v2564 = vsub.f32 %v2377, %v2474
      %v2565 = vsub.f32 %v2267, %v2477
      %v2566 = vsub.f32 %v2380, %v2477
      %v2567 = vsub.f32 %v2270, %v2480
      %v2568 = vsub.f32 %v2383, %v2480
      %v2569 = vsub.f32 %v2273, %v2483
      %v2570 = vsub.f32 %v2386, %v2483
      %v2571 = vsub.f32 %v2276, %v2486
      %v2572 = vsub.f32 %v2389, %v2486
      %v2573 = vsub.f32 %v2279, %v2489
      %v2574 = vsub.f32 %v2392, %v2489
      %v2575 = vsub.f32 %v2282, %v2492
      %v2576 = vsub.f32 %v2395, %v2492
      %v2577 = vsub.f32 %v2285, %v2495
      %v2578 = vsub.f32 %v2398, %v2495
      %v2579 = vsub.f32 %v2288, %v2498
      %v2580 = vsub.f32 %v2401, %v2498
      %v2581 = vsub.f32 %v2291, %v2501
      %v2582 = vsub.f32 %v2404, %v2501
      %v2583 = vsub.f32 %v2294, %v2504
      %v2584 = vsub.f32 %v2407, %v2504
      %v2585 = vsub.f32 %v2297, %v2507
      %v2586 = vsub.f32 %v2410, %v2507
      %v2587 = vsub.f32 %v2300, %v2510
      %v2588 = vsub.f32 %v2413, %v2510
      %v2589 = vsub.f32 %v2303, %v2513
      %v2590 = vsub.f32 %v2416, %v2513
      %v2591 = vsub.f32 %v2306, %v2516
      %v2592 = vsub.f32 %v2419, %v2516
      %v2593 = vsub.f32 %v2309, %v2519
      %v2594 = vsub.f32 %v2422, %v2519
      %v2595 = vsub.f32 %v2312, %v2522
      %v2596 = vsub.f32 %v2425, %v2522
      %v2597 = vsub.f32 %v2315, %v2525
      %v2598 = vsub.f32 %v2428, %v2525
      %v2599 = vsub.f32 %v2318, %v2528
      %v2600 = vsub.f32 %v2431, %v2528
      %v2601 = vsub.f32 %v2321, %v2531
      %v2602 = vsub.f32 %v2434, %v2531
      %v2603 = vsub.f32 %v2324, %v2534
      %v2604 = vsub.f32 %v2437, %v2534
      %v2605 = vsub.f32 %v2327, %v2537
      %v2606 = vsub.f32 %v2440, %v2537
      %v2607 = vsub.f32 %v2330, %v2540
      %v2608 = vsub.f32 %v2443, %v2540
      %v2609 = vsub.f32 %v2333, %v2543
      %v2610 = vsub.f32 %v2446, %v2543
      %v2611 = vsub.f32 %v2336, %v2546
      %v2612 = vsub.f32 %v2449, %v2546
      %v2613 = vsub.f32 %v2339, %v2549
      %v2614 = vsub.f32 %v2452, %v2549
      %v2615 = vsub.f32 %v2342, %v2552
      %v2616 = vsub.f32 %v2455, %v2552
      %v2617 = vmul.f32 %v2553, 1.442695
      %v2618 = vpow.pop %v2617
      %v2619 = vmul.f32 %v2554, 1.442695
      %v2620 = vpow.pop %v2619
      %v2621 = vmul.f32 %v2555, 1.442695
      %v2622 = vpow.pop %v2621
      %v2623 = vmul.f32 %v2556, 1.442695
      %v2624 = vpow.pop %v2623
      %v2625 = vmul.f32 %v2557, 1.442695
      %v2626 = vpow.pop %v2625
      %v2627 = vmul.f32 %v2558, 1.442695
      %v2628 = vpow.pop %v2627
      %v2629 = vmul.f32 %v2559, 1.442695
      %v2630 = vpow.pop %v2629
      %v2631 = vmul.f32 %v2560, 1.442695
      %v2632 = vpow.pop %v2631
      %v2633 = vmul.f32 %v2561, 1.442695
      %v2634 = vpow.pop %v2633
      %v2635 = vmul.f32 %v2562, 1.442695
      %v2636 = vpow.pop %v2635
      %v2637 = vmul.f32 %v2563, 1.442695
      %v2638 = vpow.pop %v2637
      %v2639 = vmul.f32 %v2564, 1.442695
      %v2640 = vpow.pop %v2639
      %v2641 = vmul.f32 %v2565, 1.442695
      %v2642 = vpow.pop %v2641
      %v2643 = vmul.f32 %v2566, 1.442695
      %v2644 = vpow.pop %v2643
      %v2645 = vmul.f32 %v2567, 1.442695
      %v2646 = vpow.pop %v2645
      %v2647 = vmul.f32 %v2568, 1.442695
      %v2648 = vpow.pop %v2647
      %v2649 = vmul.f32 %v2569, 1.442695
      %v2650 = vpow.pop %v2649
      %v2651 = vmul.f32 %v2570, 1.442695
      %v2652 = vpow.pop %v2651
      %v2653 = vmul.f32 %v2571, 1.442695
      %v2654 = vpow.pop %v2653
      %v2655 = vmul.f32 %v2572, 1.442695
      %v2656 = vpow.pop %v2655
      %v2657 = vmul.f32 %v2573, 1.442695
      %v2658 = vpow.pop %v2657
      %v2659 = vmul.f32 %v2574, 1.442695
      %v2660 = vpow.pop %v2659
      %v2661 = vmul.f32 %v2575, 1.442695
      %v2662 = vpow.pop %v2661
      %v2663 = vmul.f32 %v2576, 1.442695
      %v2664 = vpow.pop %v2663
      %v2665 = vmul.f32 %v2577, 1.442695
      %v2666 = vpow.pop %v2665
      %v2667 = vmul.f32 %v2578, 1.442695
      %v2668 = vpow.pop %v2667
      %v2669 = vmul.f32 %v2579, 1.442695
      %v2670 = vpow.pop %v2669
      %v2671 = vmul.f32 %v2580, 1.442695
      %v2672 = vpow.pop %v2671
      %v2673 = vmul.f32 %v2581, 1.442695
      %v2674 = vpow.pop %v2673
      %v2675 = vmul.f32 %v2582, 1.442695
      %v2676 = vpow.pop %v2675
      %v2677 = vmul.f32 %v2583, 1.442695
      %v2678 = vpow.pop %v2677
      %v2679 = vmul.f32 %v2584, 1.442695
      %v2680 = vpow.pop %v2679
      %v2681 = vmul.f32 %v2585, 1.442695
      %v2682 = vpow.pop %v2681
      %v2683 = vmul.f32 %v2586, 1.442695
      %v2684 = vpow.pop %v2683
      %v2685 = vmul.f32 %v2587, 1.442695
      %v2686 = vpow.pop %v2685
      %v2687 = vmul.f32 %v2588, 1.442695
      %v2688 = vpow.pop %v2687
      %v2689 = vmul.f32 %v2589, 1.442695
      %v2690 = vpow.pop %v2689
      %v2691 = vmul.f32 %v2590, 1.442695
      %v2692 = vpow.pop %v2691
      %v2693 = vmul.f32 %v2591, 1.442695
      %v2694 = vpow.pop %v2693
      %v2695 = vmul.f32 %v2592, 1.442695
      %v2696 = vpow.pop %v2695
      %v2697 = vmul.f32 %v2593, 1.442695
      %v2698 = vpow.pop %v2697
      %v2699 = vmul.f32 %v2594, 1.442695
      %v2700 = vpow.pop %v2699
      %v2701 = vmul.f32 %v2595, 1.442695
      %v2702 = vpow.pop %v2701
      %v2703 = vmul.f32 %v2596, 1.442695
      %v2704 = vpow.pop %v2703
      %v2705 = vmul.f32 %v2597, 1.442695
      %v2706 = vpow.pop %v2705
      %v2707 = vmul.f32 %v2598, 1.442695
      %v2708 = vpow.pop %v2707
      %v2709 = vmul.f32 %v2599, 1.442695
      %v2710 = vpow.pop %v2709
      %v2711 = vmul.f32 %v2600, 1.442695
      %v2712 = vpow.pop %v2711
      %v2713 = vmul.f32 %v2601, 1.442695
      %v2714 = vpow.pop %v2713
      %v2715 = vmul.f32 %v2602, 1.442695
      %v2716 = vpow.pop %v2715
      %v2717 = vmul.f32 %v2603, 1.442695
      %v2718 = vpow.pop %v2717
      %v2719 = vmul.f32 %v2604, 1.442695
      %v2720 = vpow.pop %v2719
      %v2721 = vmul.f32 %v2605, 1.442695
      %v2722 = vpow.pop %v2721
      %v2723 = vmul.f32 %v2606, 1.442695
      %v2724 = vpow.pop %v2723
      %v2725 = vmul.f32 %v2607, 1.442695
      %v2726 = vpow.pop %v2725
      %v2727 = vmul.f32 %v2608, 1.442695
      %v2728 = vpow.pop %v2727
      %v2729 = vmul.f32 %v2609, 1.442695
      %v2730 = vpow.pop %v2729
      %v2731 = vmul.f32 %v2610, 1.442695
      %v2732 = vpow.pop %v2731
      %v2733 = vmul.f32 %v2611, 1.442695
      %v2734 = vpow.pop %v2733
      %v2735 = vmul.f32 %v2612, 1.442695
      %v2736 = vpow.pop %v2735
      %v2737 = vmul.f32 %v2613, 1.442695
      %v2738 = vpow.pop %v2737
      %v2739 = vmul.f32 %v2614, 1.442695
      %v2740 = vpow.pop %v2739
      %v2741 = vmul.f32 %v2615, 1.442695
      %v2742 = vpow.pop %v2741
      %v2743 = vmul.f32 %v2616, 1.442695
      %v2744 = vpow.pop %v2743
      %v2745 = vadd.f32 %v2618, %v2620
      %2746 = vadd.xlane.f32.xlu0 %v2745
      %v2747 = vpop.xlane.xlu0 %2746
      %v2748 = vadd.f32 %v2622, %v2624
      %2749 = vadd.xlane.f32.xlu0 %v2748
      %v2750 = vpop.xlane.xlu0 %2749
      %v2751 = vadd.f32 %v2626, %v2628
      %2752 = vadd.xlane.f32.xlu0 %v2751
      %v2753 = vpop.xlane.xlu0 %2752
      %v2754 = vadd.f32 %v2630, %v2632
      %2755 = vadd.xlane.f32.xlu0 %v2754
      %v2756 = vpop.xlane.xlu0 %2755
      %v2757 = vadd.f32 %v2634, %v2636
      %2758 = vadd.xlane.f32.xlu0 %v2757
      %v2759 = vpop.xlane.xlu0 %2758
      %v2760 = vadd.f32 %v2638, %v2640
      %2761 = vadd.xlane.f32.xlu0 %v2760
      %v2762 = vpop.xlane.xlu0 %2761
      %v2763 = vadd.f32 %v2642, %v2644
      %2764 = vadd.xlane.f32.xlu0 %v2763
      %v2765 = vpop.xlane.xlu0 %2764
      %v2766 = vadd.f32 %v2646, %v2648
      %2767 = vadd.xlane.f32.xlu0 %v2766
      %v2768 = vpop.xlane.xlu0 %2767
      %v2769 = vadd.f32 %v2650, %v2652
      %2770 = vadd.xlane.f32.xlu0 %v2769
      %v2771 = vpop.xlane.xlu0 %2770
      %v2772 = vadd.f32 %v2654, %v2656
      %2773 = vadd.xlane.f32.xlu0 %v2772
      %v2774 = vpop.xlane.xlu0 %2773
      %v2775 = vadd.f32 %v2658, %v2660
      %2776 = vadd.xlane.f32.xlu0 %v2775
      %v2777 = vpop.xlane.xlu0 %2776
      %v2778 = vadd.f32 %v2662, %v2664
      %2779 = vadd.xlane.f32.xlu0 %v2778
      %v2780 = vpop.xlane.xlu0 %2779
      %v2781 = vadd.f32 %v2666, %v2668
      %2782 = vadd.xlane.f32.xlu0 %v2781
      %v2783 = vpop.xlane.xlu0 %2782
      %v2784 = vadd.f32 %v2670, %v2672
      %2785 = vadd.xlane.f32.xlu0 %v2784
      %v2786 = vpop.xlane.xlu0 %2785
      %v2787 = vadd.f32 %v2674, %v2676
      %2788 = vadd.xlane.f32.xlu0 %v2787
      %v2789 = vpop.xlane.xlu0 %2788
      %v2790 = vadd.f32 %v2678, %v2680
      %2791 = vadd.xlane.f32.xlu0 %v2790
      %v2792 = vpop.xlane.xlu0 %2791
      %v2793 = vadd.f32 %v2682, %v2684
      %2794 = vadd.xlane.f32.xlu0 %v2793
      %v2795 = vpop.xlane.xlu0 %2794
      %v2796 = vadd.f32 %v2686, %v2688
      %2797 = vadd.xlane.f32.xlu0 %v2796
      %v2798 = vpop.xlane.xlu0 %2797
      %v2799 = vadd.f32 %v2690, %v2692
      %2800 = vadd.xlane.f32.xlu0 %v2799
      %v2801 = vpop.xlane.xlu0 %2800
      %v2802 = vadd.f32 %v2694, %v2696
      %2803 = vadd.xlane.f32.xlu0 %v2802
      %v2804 = vpop.xlane.xlu0 %2803
      %v2805 = vadd.f32 %v2698, %v2700
      %2806 = vadd.xlane.f32.xlu0 %v2805
      %v2807 = vpop.xlane.xlu0 %2806
      %v2808 = vadd.f32 %v2702, %v2704
      %2809 = vadd.xlane.f32.xlu0 %v2808
      %v2810 = vpop.xlane.xlu0 %2809
      %v2811 = vadd.f32 %v2706, %v2708
      %2812 = vadd.xlane.f32.xlu0 %v2811
      %v2813 = vpop.xlane.xlu0 %2812
      %v2814 = vadd.f32 %v2710, %v2712
      %2815 = vadd.xlane.f32.xlu0 %v2814
      %v2816 = vpop.xlane.xlu0 %2815
      %v2817 = vadd.f32 %v2714, %v2716
      %2818 = vadd.xlane.f32.xlu0 %v2817
      %v2819 = vpop.xlane.xlu0 %2818
      %v2820 = vadd.f32 %v2718, %v2720
      %2821 = vadd.xlane.f32.xlu0 %v2820
      %v2822 = vpop.xlane.xlu0 %2821
      %v2823 = vadd.f32 %v2722, %v2724
      %2824 = vadd.xlane.f32.xlu0 %v2823
      %v2825 = vpop.xlane.xlu0 %2824
      %v2826 = vadd.f32 %v2726, %v2728
      %2827 = vadd.xlane.f32.xlu0 %v2826
      %v2828 = vpop.xlane.xlu0 %2827
      %v2829 = vadd.f32 %v2730, %v2732
      %2830 = vadd.xlane.f32.xlu0 %v2829
      %v2831 = vpop.xlane.xlu0 %2830
      %v2832 = vadd.f32 %v2734, %v2736
      %2833 = vadd.xlane.f32.xlu0 %v2832
      %v2834 = vpop.xlane.xlu0 %2833
      %v2835 = vadd.f32 %v2738, %v2740
      %2836 = vadd.xlane.f32.xlu0 %v2835
      %v2837 = vpop.xlane.xlu0 %2836
      %v2838 = vadd.f32 %v2742, %v2744
      %2839 = vadd.xlane.f32.xlu0 %v2838
      %v2840 = vpop.xlane.xlu0 %2839
      %v2841 = vrcp.pop %v2747
      %v2842 = vmul.f32 %v2747, %v2841
      %v2843 = vsub.f32 1.0, %v2842
      %v2844 = vmul.f32 %v2841, %v2843
      %v2845 = vadd.f32 %v2841, %v2844
      %vm2846 = vweird.f32 %v2747
      %vm2847 = vweird.f32 %v2841
      %vm2848 = vmor %vm2846, %vm2847
      %v2849 = vsel %vm2848, %v2841, %v2845
      %v2850 = vand.u32 2147483647, %v2747
      %vm2851 = vcmp.eq.f32.partialorder %v2850, 8.507059e+37
      %v2852 = vand.u32 %v2747, 2147483648
      %v2853 = vor.u32 1.1754944e-38, %v2852
      %v2854 = vsel %vm2851, %v2853, %v2849
      %v2855 = vrcp.pop %v2750
      %v2856 = vmul.f32 %v2750, %v2855
      %v2857 = vsub.f32 1.0, %v2856
      %v2858 = vmul.f32 %v2855, %v2857
      %v2859 = vadd.f32 %v2855, %v2858
      %vm2860 = vweird.f32 %v2750
      %vm2861 = vweird.f32 %v2855
      %vm2862 = vmor %vm2860, %vm2861
      %v2863 = vsel %vm2862, %v2855, %v2859
      %v2864 = vand.u32 2147483647, %v2750
      %vm2865 = vcmp.eq.f32.partialorder %v2864, 8.507059e+37
      %v2866 = vand.u32 %v2750, 2147483648
      %v2867 = vor.u32 1.1754944e-38, %v2866
      %v2868 = vsel %vm2865, %v2867, %v2863
      %v2869 = vrcp.pop %v2753
      %v2870 = vmul.f32 %v2753, %v2869
      %v2871 = vsub.f32 1.0, %v2870
      %v2872 = vmul.f32 %v2869, %v2871
      %v2873 = vadd.f32 %v2869, %v2872
      %vm2874 = vweird.f32 %v2753
      %vm2875 = vweird.f32 %v2869
      %vm2876 = vmor %vm2874, %vm2875
      %v2877 = vsel %vm2876, %v2869, %v2873
      %v2878 = vand.u32 2147483647, %v2753
      %vm2879 = vcmp.eq.f32.partialorder %v2878, 8.507059e+37
      %v2880 = vand.u32 %v2753, 2147483648
      %v2881 = vor.u32 1.1754944e-38, %v2880
      %v2882 = vsel %vm2879, %v2881, %v2877
      %v2883 = vrcp.pop %v2756
      %v2884 = vmul.f32 %v2756, %v2883
      %v2885 = vsub.f32 1.0, %v2884
      %v2886 = vmul.f32 %v2883, %v2885
      %v2887 = vadd.f32 %v2883, %v2886
      %vm2888 = vweird.f32 %v2756
      %vm2889 = vweird.f32 %v2883
      %vm2890 = vmor %vm2888, %vm2889
      %v2891 = vsel %vm2890, %v2883, %v2887
      %v2892 = vand.u32 2147483647, %v2756
      %vm2893 = vcmp.eq.f32.partialorder %v2892, 8.507059e+37
      %v2894 = vand.u32 %v2756, 2147483648
      %v2895 = vor.u32 1.1754944e-38, %v2894
      %v2896 = vsel %vm2893, %v2895, %v2891
      %v2897 = vrcp.pop %v2759
      %v2898 = vmul.f32 %v2759, %v2897
      %v2899 = vsub.f32 1.0, %v2898
      %v2900 = vmul.f32 %v2897, %v2899
      %v2901 = vadd.f32 %v2897, %v2900
      %vm2902 = vweird.f32 %v2759
      %vm2903 = vweird.f32 %v2897
      %vm2904 = vmor %vm2902, %vm2903
      %v2905 = vsel %vm2904, %v2897, %v2901
      %v2906 = vand.u32 2147483647, %v2759
      %vm2907 = vcmp.eq.f32.partialorder %v2906, 8.507059e+37
      %v2908 = vand.u32 %v2759, 2147483648
      %v2909 = vor.u32 1.1754944e-38, %v2908
      %v2910 = vsel %vm2907, %v2909, %v2905
      %v2911 = vrcp.pop %v2762
      %v2912 = vmul.f32 %v2762, %v2911
      %v2913 = vsub.f32 1.0, %v2912
      %v2914 = vmul.f32 %v2911, %v2913
      %v2915 = vadd.f32 %v2911, %v2914
      %vm2916 = vweird.f32 %v2762
      %vm2917 = vweird.f32 %v2911
      %vm2918 = vmor %vm2916, %vm2917
      %v2919 = vsel %vm2918, %v2911, %v2915
      %v2920 = vand.u32 2147483647, %v2762
      %vm2921 = vcmp.eq.f32.partialorder %v2920, 8.507059e+37
      %v2922 = vand.u32 %v2762, 2147483648
      %v2923 = vor.u32 1.1754944e-38, %v2922
      %v2924 = vsel %vm2921, %v2923, %v2919
      %v2925 = vrcp.pop %v2765
      %v2926 = vmul.f32 %v2765, %v2925
      %v2927 = vsub.f32 1.0, %v2926
      %v2928 = vmul.f32 %v2925, %v2927
      %v2929 = vadd.f32 %v2925, %v2928
      %vm2930 = vweird.f32 %v2765
      %vm2931 = vweird.f32 %v2925
      %vm2932 = vmor %vm2930, %vm2931
      %v2933 = vsel %vm2932, %v2925, %v2929
      %v2934 = vand.u32 2147483647, %v2765
      %vm2935 = vcmp.eq.f32.partialorder %v2934, 8.507059e+37
      %v2936 = vand.u32 %v2765, 2147483648
      %v2937 = vor.u32 1.1754944e-38, %v2936
      %v2938 = vsel %vm2935, %v2937, %v2933
      %v2939 = vrcp.pop %v2768
      %v2940 = vmul.f32 %v2768, %v2939
      %v2941 = vsub.f32 1.0, %v2940
      %v2942 = vmul.f32 %v2939, %v2941
      %v2943 = vadd.f32 %v2939, %v2942
      %vm2944 = vweird.f32 %v2768
      %vm2945 = vweird.f32 %v2939
      %vm2946 = vmor %vm2944, %vm2945
      %v2947 = vsel %vm2946, %v2939, %v2943
      %v2948 = vand.u32 2147483647, %v2768
      %vm2949 = vcmp.eq.f32.partialorder %v2948, 8.507059e+37
      %v2950 = vand.u32 %v2768, 2147483648
      %v2951 = vor.u32 1.1754944e-38, %v2950
      %v2952 = vsel %vm2949, %v2951, %v2947
      %v2953 = vrcp.pop %v2771
      %v2954 = vmul.f32 %v2771, %v2953
      %v2955 = vsub.f32 1.0, %v2954
      %v2956 = vmul.f32 %v2953, %v2955
      %v2957 = vadd.f32 %v2953, %v2956
      %vm2958 = vweird.f32 %v2771
      %vm2959 = vweird.f32 %v2953
      %vm2960 = vmor %vm2958, %vm2959
      %v2961 = vsel %vm2960, %v2953, %v2957
      %v2962 = vand.u32 2147483647, %v2771
      %vm2963 = vcmp.eq.f32.partialorder %v2962, 8.507059e+37
      %v2964 = vand.u32 %v2771, 2147483648
      %v2965 = vor.u32 1.1754944e-38, %v2964
      %v2966 = vsel %vm2963, %v2965, %v2961
      %v2967 = vrcp.pop %v2774
      %v2968 = vmul.f32 %v2774, %v2967
      %v2969 = vsub.f32 1.0, %v2968
      %v2970 = vmul.f32 %v2967, %v2969
      %v2971 = vadd.f32 %v2967, %v2970
      %vm2972 = vweird.f32 %v2774
      %vm2973 = vweird.f32 %v2967
      %vm2974 = vmor %vm2972, %vm2973
      %v2975 = vsel %vm2974, %v2967, %v2971
      %v2976 = vand.u32 2147483647, %v2774
      %vm2977 = vcmp.eq.f32.partialorder %v2976, 8.507059e+37
      %v2978 = vand.u32 %v2774, 2147483648
      %v2979 = vor.u32 1.1754944e-38, %v2978
      %v2980 = vsel %vm2977, %v2979, %v2975
      %v2981 = vrcp.pop %v2777
      %v2982 = vmul.f32 %v2777, %v2981
      %v2983 = vsub.f32 1.0, %v2982
      %v2984 = vmul.f32 %v2981, %v2983
      %v2985 = vadd.f32 %v2981, %v2984
      %vm2986 = vweird.f32 %v2777
      %vm2987 = vweird.f32 %v2981
      %vm2988 = vmor %vm2986, %vm2987
      %v2989 = vsel %vm2988, %v2981, %v2985
      %v2990 = vand.u32 2147483647, %v2777
      %vm2991 = vcmp.eq.f32.partialorder %v2990, 8.507059e+37
      %v2992 = vand.u32 %v2777, 2147483648
      %v2993 = vor.u32 1.1754944e-38, %v2992
      %v2994 = vsel %vm2991, %v2993, %v2989
      %v2995 = vrcp.pop %v2780
      %v2996 = vmul.f32 %v2780, %v2995
      %v2997 = vsub.f32 1.0, %v2996
      %v2998 = vmul.f32 %v2995, %v2997
      %v2999 = vadd.f32 %v2995, %v2998
      %vm3000 = vweird.f32 %v2780
      %vm3001 = vweird.f32 %v2995
      %vm3002 = vmor %vm3000, %vm3001
      %v3003 = vsel %vm3002, %v2995, %v2999
      %v3004 = vand.u32 2147483647, %v2780
      %vm3005 = vcmp.eq.f32.partialorder %v3004, 8.507059e+37
      %v3006 = vand.u32 %v2780, 2147483648
      %v3007 = vor.u32 1.1754944e-38, %v3006
      %v3008 = vsel %vm3005, %v3007, %v3003
      %v3009 = vrcp.pop %v2783
      %v3010 = vmul.f32 %v2783, %v3009
      %v3011 = vsub.f32 1.0, %v3010
      %v3012 = vmul.f32 %v3009, %v3011
      %v3013 = vadd.f32 %v3009, %v3012
      %vm3014 = vweird.f32 %v2783
      %vm3015 = vweird.f32 %v3009
      %vm3016 = vmor %vm3014, %vm3015
      %v3017 = vsel %vm3016, %v3009, %v3013
      %v3018 = vand.u32 2147483647, %v2783
      %vm3019 = vcmp.eq.f32.partialorder %v3018, 8.507059e+37
      %v3020 = vand.u32 %v2783, 2147483648
      %v3021 = vor.u32 1.1754944e-38, %v3020
      %v3022 = vsel %vm3019, %v3021, %v3017
      %v3023 = vrcp.pop %v2786
      %v3024 = vmul.f32 %v2786, %v3023
      %v3025 = vsub.f32 1.0, %v3024
      %v3026 = vmul.f32 %v3023, %v3025
      %v3027 = vadd.f32 %v3023, %v3026
      %vm3028 = vweird.f32 %v2786
      %vm3029 = vweird.f32 %v3023
      %vm3030 = vmor %vm3028, %vm3029
      %v3031 = vsel %vm3030, %v3023, %v3027
      %v3032 = vand.u32 2147483647, %v2786
      %vm3033 = vcmp.eq.f32.partialorder %v3032, 8.507059e+37
      %v3034 = vand.u32 %v2786, 2147483648
      %v3035 = vor.u32 1.1754944e-38, %v3034
      %v3036 = vsel %vm3033, %v3035, %v3031
      %v3037 = vrcp.pop %v2789
      %v3038 = vmul.f32 %v2789, %v3037
      %v3039 = vsub.f32 1.0, %v3038
      %v3040 = vmul.f32 %v3037, %v3039
      %v3041 = vadd.f32 %v3037, %v3040
      %vm3042 = vweird.f32 %v2789
      %vm3043 = vweird.f32 %v3037
      %vm3044 = vmor %vm3042, %vm3043
      %v3045 = vsel %vm3044, %v3037, %v3041
      %v3046 = vand.u32 2147483647, %v2789
      %vm3047 = vcmp.eq.f32.partialorder %v3046, 8.507059e+37
      %v3048 = vand.u32 %v2789, 2147483648
      %v3049 = vor.u32 1.1754944e-38, %v3048
      %v3050 = vsel %vm3047, %v3049, %v3045
      %v3051 = vrcp.pop %v2792
      %v3052 = vmul.f32 %v2792, %v3051
      %v3053 = vsub.f32 1.0, %v3052
      %v3054 = vmul.f32 %v3051, %v3053
      %v3055 = vadd.f32 %v3051, %v3054
      %vm3056 = vweird.f32 %v2792
      %vm3057 = vweird.f32 %v3051
      %vm3058 = vmor %vm3056, %vm3057
      %v3059 = vsel %vm3058, %v3051, %v3055
      %v3060 = vand.u32 2147483647, %v2792
      %vm3061 = vcmp.eq.f32.partialorder %v3060, 8.507059e+37
      %v3062 = vand.u32 %v2792, 2147483648
      %v3063 = vor.u32 1.1754944e-38, %v3062
      %v3064 = vsel %vm3061, %v3063, %v3059
      %v3065 = vrcp.pop %v2795
      %v3066 = vmul.f32 %v2795, %v3065
      %v3067 = vsub.f32 1.0, %v3066
      %v3068 = vmul.f32 %v3065, %v3067
      %v3069 = vadd.f32 %v3065, %v3068
      %vm3070 = vweird.f32 %v2795
      %vm3071 = vweird.f32 %v3065
      %vm3072 = vmor %vm3070, %vm3071
      %v3073 = vsel %vm3072, %v3065, %v3069
      %v3074 = vand.u32 2147483647, %v2795
      %vm3075 = vcmp.eq.f32.partialorder %v3074, 8.507059e+37
      %v3076 = vand.u32 %v2795, 2147483648
      %v3077 = vor.u32 1.1754944e-38, %v3076
      %v3078 = vsel %vm3075, %v3077, %v3073
      %v3079 = vrcp.pop %v2798
      %v3080 = vmul.f32 %v2798, %v3079
      %v3081 = vsub.f32 1.0, %v3080
      %v3082 = vmul.f32 %v3079, %v3081
      %v3083 = vadd.f32 %v3079, %v3082
      %vm3084 = vweird.f32 %v2798
      %vm3085 = vweird.f32 %v3079
      %vm3086 = vmor %vm3084, %vm3085
      %v3087 = vsel %vm3086, %v3079, %v3083
      %v3088 = vand.u32 2147483647, %v2798
      %vm3089 = vcmp.eq.f32.partialorder %v3088, 8.507059e+37
      %v3090 = vand.u32 %v2798, 2147483648
      %v3091 = vor.u32 1.1754944e-38, %v3090
      %v3092 = vsel %vm3089, %v3091, %v3087
      %v3093 = vrcp.pop %v2801
      %v3094 = vmul.f32 %v2801, %v3093
      %v3095 = vsub.f32 1.0, %v3094
      %v3096 = vmul.f32 %v3093, %v3095
      %v3097 = vadd.f32 %v3093, %v3096
      %vm3098 = vweird.f32 %v2801
      %vm3099 = vweird.f32 %v3093
      %vm3100 = vmor %vm3098, %vm3099
      %v3101 = vsel %vm3100, %v3093, %v3097
      %v3102 = vand.u32 2147483647, %v2801
      %vm3103 = vcmp.eq.f32.partialorder %v3102, 8.507059e+37
      %v3104 = vand.u32 %v2801, 2147483648
      %v3105 = vor.u32 1.1754944e-38, %v3104
      %v3106 = vsel %vm3103, %v3105, %v3101
      %v3107 = vrcp.pop %v2804
      %v3108 = vmul.f32 %v2804, %v3107
      %v3109 = vsub.f32 1.0, %v3108
      %v3110 = vmul.f32 %v3107, %v3109
      %v3111 = vadd.f32 %v3107, %v3110
      %vm3112 = vweird.f32 %v2804
      %vm3113 = vweird.f32 %v3107
      %vm3114 = vmor %vm3112, %vm3113
      %v3115 = vsel %vm3114, %v3107, %v3111
      %v3116 = vand.u32 2147483647, %v2804
      %vm3117 = vcmp.eq.f32.partialorder %v3116, 8.507059e+37
      %v3118 = vand.u32 %v2804, 2147483648
      %v3119 = vor.u32 1.1754944e-38, %v3118
      %v3120 = vsel %vm3117, %v3119, %v3115
      %v3121 = vrcp.pop %v2807
      %v3122 = vmul.f32 %v2807, %v3121
      %v3123 = vsub.f32 1.0, %v3122
      %v3124 = vmul.f32 %v3121, %v3123
      %v3125 = vadd.f32 %v3121, %v3124
      %vm3126 = vweird.f32 %v2807
      %vm3127 = vweird.f32 %v3121
      %vm3128 = vmor %vm3126, %vm3127
      %v3129 = vsel %vm3128, %v3121, %v3125
      %v3130 = vand.u32 2147483647, %v2807
      %vm3131 = vcmp.eq.f32.partialorder %v3130, 8.507059e+37
      %v3132 = vand.u32 %v2807, 2147483648
      %v3133 = vor.u32 1.1754944e-38, %v3132
      %v3134 = vsel %vm3131, %v3133, %v3129
      %v3135 = vrcp.pop %v2810
      %v3136 = vmul.f32 %v2810, %v3135
      %v3137 = vsub.f32 1.0, %v3136
      %v3138 = vmul.f32 %v3135, %v3137
      %v3139 = vadd.f32 %v3135, %v3138
      %vm3140 = vweird.f32 %v2810
      %vm3141 = vweird.f32 %v3135
      %vm3142 = vmor %vm3140, %vm3141
      %v3143 = vsel %vm3142, %v3135, %v3139
      %v3144 = vand.u32 2147483647, %v2810
      %vm3145 = vcmp.eq.f32.partialorder %v3144, 8.507059e+37
      %v3146 = vand.u32 %v2810, 2147483648
      %v3147 = vor.u32 1.1754944e-38, %v3146
      %v3148 = vsel %vm3145, %v3147, %v3143
      %v3149 = vrcp.pop %v2813
      %v3150 = vmul.f32 %v2813, %v3149
      %v3151 = vsub.f32 1.0, %v3150
      %v3152 = vmul.f32 %v3149, %v3151
      %v3153 = vadd.f32 %v3149, %v3152
      %vm3154 = vweird.f32 %v2813
      %vm3155 = vweird.f32 %v3149
      %vm3156 = vmor %vm3154, %vm3155
      %v3157 = vsel %vm3156, %v3149, %v3153
      %v3158 = vand.u32 2147483647, %v2813
      %vm3159 = vcmp.eq.f32.partialorder %v3158, 8.507059e+37
      %v3160 = vand.u32 %v2813, 2147483648
      %v3161 = vor.u32 1.1754944e-38, %v3160
      %v3162 = vsel %vm3159, %v3161, %v3157
      %v3163 = vrcp.pop %v2816
      %v3164 = vmul.f32 %v2816, %v3163
      %v3165 = vsub.f32 1.0, %v3164
      %v3166 = vmul.f32 %v3163, %v3165
      %v3167 = vadd.f32 %v3163, %v3166
      %vm3168 = vweird.f32 %v2816
      %vm3169 = vweird.f32 %v3163
      %vm3170 = vmor %vm3168, %vm3169
      %v3171 = vsel %vm3170, %v3163, %v3167
      %v3172 = vand.u32 2147483647, %v2816
      %vm3173 = vcmp.eq.f32.partialorder %v3172, 8.507059e+37
      %v3174 = vand.u32 %v2816, 2147483648
      %v3175 = vor.u32 1.1754944e-38, %v3174
      %v3176 = vsel %vm3173, %v3175, %v3171
      %v3177 = vrcp.pop %v2819
      %v3178 = vmul.f32 %v2819, %v3177
      %v3179 = vsub.f32 1.0, %v3178
      %v3180 = vmul.f32 %v3177, %v3179
      %v3181 = vadd.f32 %v3177, %v3180
      %vm3182 = vweird.f32 %v2819
      %vm3183 = vweird.f32 %v3177
      %vm3184 = vmor %vm3182, %vm3183
      %v3185 = vsel %vm3184, %v3177, %v3181
      %v3186 = vand.u32 2147483647, %v2819
      %vm3187 = vcmp.eq.f32.partialorder %v3186, 8.507059e+37
      %v3188 = vand.u32 %v2819, 2147483648
      %v3189 = vor.u32 1.1754944e-38, %v3188
      %v3190 = vsel %vm3187, %v3189, %v3185
      %v3191 = vrcp.pop %v2822
      %v3192 = vmul.f32 %v2822, %v3191
      %v3193 = vsub.f32 1.0, %v3192
      %v3194 = vmul.f32 %v3191, %v3193
      %v3195 = vadd.f32 %v3191, %v3194
      %vm3196 = vweird.f32 %v2822
      %vm3197 = vweird.f32 %v3191
      %vm3198 = vmor %vm3196, %vm3197
      %v3199 = vsel %vm3198, %v3191, %v3195
      %v3200 = vand.u32 2147483647, %v2822
      %vm3201 = vcmp.eq.f32.partialorder %v3200, 8.507059e+37
      %v3202 = vand.u32 %v2822, 2147483648
      %v3203 = vor.u32 1.1754944e-38, %v3202
      %v3204 = vsel %vm3201, %v3203, %v3199
      %v3205 = vrcp.pop %v2825
      %v3206 = vmul.f32 %v2825, %v3205
      %v3207 = vsub.f32 1.0, %v3206
      %v3208 = vmul.f32 %v3205, %v3207
      %v3209 = vadd.f32 %v3205, %v3208
      %vm3210 = vweird.f32 %v2825
      %vm3211 = vweird.f32 %v3205
      %vm3212 = vmor %vm3210, %vm3211
      %v3213 = vsel %vm3212, %v3205, %v3209
      %v3214 = vand.u32 2147483647, %v2825
      %vm3215 = vcmp.eq.f32.partialorder %v3214, 8.507059e+37
      %v3216 = vand.u32 %v2825, 2147483648
      %v3217 = vor.u32 1.1754944e-38, %v3216
      %v3218 = vsel %vm3215, %v3217, %v3213
      %v3219 = vrcp.pop %v2828
      %v3220 = vmul.f32 %v2828, %v3219
      %v3221 = vsub.f32 1.0, %v3220
      %v3222 = vmul.f32 %v3219, %v3221
      %v3223 = vadd.f32 %v3219, %v3222
      %vm3224 = vweird.f32 %v2828
      %vm3225 = vweird.f32 %v3219
      %vm3226 = vmor %vm3224, %vm3225
      %v3227 = vsel %vm3226, %v3219, %v3223
      %v3228 = vand.u32 2147483647, %v2828
      %vm3229 = vcmp.eq.f32.partialorder %v3228, 8.507059e+37
      %v3230 = vand.u32 %v2828, 2147483648
      %v3231 = vor.u32 1.1754944e-38, %v3230
      %v3232 = vsel %vm3229, %v3231, %v3227
      %v3233 = vrcp.pop %v2831
      %v3234 = vmul.f32 %v2831, %v3233
      %v3235 = vsub.f32 1.0, %v3234
      %v3236 = vmul.f32 %v3233, %v3235
      %v3237 = vadd.f32 %v3233, %v3236
      %vm3238 = vweird.f32 %v2831
      %vm3239 = vweird.f32 %v3233
      %vm3240 = vmor %vm3238, %vm3239
      %v3241 = vsel %vm3240, %v3233, %v3237
      %v3242 = vand.u32 2147483647, %v2831
      %vm3243 = vcmp.eq.f32.partialorder %v3242, 8.507059e+37
      %v3244 = vand.u32 %v2831, 2147483648
      %v3245 = vor.u32 1.1754944e-38, %v3244
      %v3246 = vsel %vm3243, %v3245, %v3241
      %v3247 = vrcp.pop %v2834
      %v3248 = vmul.f32 %v2834, %v3247
      %v3249 = vsub.f32 1.0, %v3248
      %v3250 = vmul.f32 %v3247, %v3249
      %v3251 = vadd.f32 %v3247, %v3250
      %vm3252 = vweird.f32 %v2834
      %vm3253 = vweird.f32 %v3247
      %vm3254 = vmor %vm3252, %vm3253
      %v3255 = vsel %vm3254, %v3247, %v3251
      %v3256 = vand.u32 2147483647, %v2834
      %vm3257 = vcmp.eq.f32.partialorder %v3256, 8.507059e+37
      %v3258 = vand.u32 %v2834, 2147483648
      %v3259 = vor.u32 1.1754944e-38, %v3258
      %v3260 = vsel %vm3257, %v3259, %v3255
      %v3261 = vrcp.pop %v2837
      %v3262 = vmul.f32 %v2837, %v3261
      %v3263 = vsub.f32 1.0, %v3262
      %v3264 = vmul.f32 %v3261, %v3263
      %v3265 = vadd.f32 %v3261, %v3264
      %vm3266 = vweird.f32 %v2837
      %vm3267 = vweird.f32 %v3261
      %vm3268 = vmor %vm3266, %vm3267
      %v3269 = vsel %vm3268, %v3261, %v3265
      %v3270 = vand.u32 2147483647, %v2837
      %vm3271 = vcmp.eq.f32.partialorder %v3270, 8.507059e+37
      %v3272 = vand.u32 %v2837, 2147483648
      %v3273 = vor.u32 1.1754944e-38, %v3272
      %v3274 = vsel %vm3271, %v3273, %v3269
      %v3275 = vrcp.pop %v2840
      %v3276 = vmul.f32 %v2840, %v3275
      %v3277 = vsub.f32 1.0, %v3276
      %v3278 = vmul.f32 %v3275, %v3277
      %v3279 = vadd.f32 %v3275, %v3278
      %vm3280 = vweird.f32 %v2840
      %vm3281 = vweird.f32 %v3275
      %vm3282 = vmor %vm3280, %vm3281
      %v3283 = vsel %vm3282, %v3275, %v3279
      %v3284 = vand.u32 2147483647, %v2840
      %vm3285 = vcmp.eq.f32.partialorder %v3284, 8.507059e+37
      %v3286 = vand.u32 %v2840, 2147483648
      %v3287 = vor.u32 1.1754944e-38, %v3286
      %v3288 = vsel %vm3285, %v3287, %v3283
      %v3289 = vmul.f32 %v2618, %v2854
      %v3290 = vmul.f32 %v2620, %v2854
      %v3291 = vmul.f32 %v2622, %v2868
      %v3292 = vmul.f32 %v2624, %v2868
      %v3293 = vmul.f32 %v2626, %v2882
      %v3294 = vmul.f32 %v2628, %v2882
      %v3295 = vmul.f32 %v2630, %v2896
      %v3296 = vmul.f32 %v2632, %v2896
      %v3297 = vmul.f32 %v2634, %v2910
      %v3298 = vmul.f32 %v2636, %v2910
      %v3299 = vmul.f32 %v2638, %v2924
      %v3300 = vmul.f32 %v2640, %v2924
      %v3301 = vmul.f32 %v2642, %v2938
      %v3302 = vmul.f32 %v2644, %v2938
      %v3303 = vmul.f32 %v2646, %v2952
      %v3304 = vmul.f32 %v2648, %v2952
      %v3305 = vmul.f32 %v2650, %v2966
      %v3306 = vmul.f32 %v2652, %v2966
      %v3307 = vmul.f32 %v2654, %v2980
      %v3308 = vmul.f32 %v2656, %v2980
      %v3309 = vmul.f32 %v2658, %v2994
      %v3310 = vmul.f32 %v2660, %v2994
      %v3311 = vmul.f32 %v2662, %v3008
      %v3312 = vmul.f32 %v2664, %v3008
      %v3313 = vmul.f32 %v2666, %v3022
      %v3314 = vmul.f32 %v2668, %v3022
      %v3315 = vmul.f32 %v2670, %v3036
      %v3316 = vmul.f32 %v2672, %v3036
      %v3317 = vmul.f32 %v2674, %v3050
      %v3318 = vmul.f32 %v2676, %v3050
      %v3319 = vmul.f32 %v2678, %v3064
      %v3320 = vmul.f32 %v2680, %v3064
      %v3321 = vmul.f32 %v2682, %v3078
      %v3322 = vmul.f32 %v2684, %v3078
      %v3323 = vmul.f32 %v2686, %v3092
      %v3324 = vmul.f32 %v2688, %v3092
      %v3325 = vmul.f32 %v2690, %v3106
      %v3326 = vmul.f32 %v2692, %v3106
      %v3327 = vmul.f32 %v2694, %v3120
      %v3328 = vmul.f32 %v2696, %v3120
      %v3329 = vmul.f32 %v2698, %v3134
      %v3330 = vmul.f32 %v2700, %v3134
      %v3331 = vmul.f32 %v2702, %v3148
      %v3332 = vmul.f32 %v2704, %v3148
      %v3333 = vmul.f32 %v2706, %v3162
      %v3334 = vmul.f32 %v2708, %v3162
      %v3335 = vmul.f32 %v2710, %v3176
      %v3336 = vmul.f32 %v2712, %v3176
      %v3337 = vmul.f32 %v2714, %v3190
      %v3338 = vmul.f32 %v2716, %v3190
      %v3339 = vmul.f32 %v2718, %v3204
      %v3340 = vmul.f32 %v2720, %v3204
      %v3341 = vmul.f32 %v2722, %v3218
      %v3342 = vmul.f32 %v2724, %v3218
      %v3343 = vmul.f32 %v2726, %v3232
      %v3344 = vmul.f32 %v2728, %v3232
      %v3345 = vmul.f32 %v2730, %v3246
      %v3346 = vmul.f32 %v2732, %v3246
      %v3347 = vmul.f32 %v2734, %v3260
      %v3348 = vmul.f32 %v2736, %v3260
      %v3349 = vmul.f32 %v2738, %v3274
      %v3350 = vmul.f32 %v2740, %v3274
      %v3351 = vmul.f32 %v2742, %v3288
      %v3352 = vmul.f32 %v2744, %v3288
      %3353 = vmatpush.xpose.msra.mxu0 %v3319
      %3354 = vmatpush.xpose.msra.mxu0 %v3317
      %3355 = vmatpush.xpose.msra.mxu0 %v3315
      %3356 = vmatpush.xpose.msra.mxu0 %v3313
      %3357 = vmatpush.xpose.msra.mxu0 %v3311
      %3358 = vmatpush.xpose.msra.mxu0 %v3309
      %3359 = vmatpush.xpose.msra.mxu0 %v3307
      %3360 = vmatpush.xpose.msra.mxu0 %v3305
      %3361 = vmatpush.xpose.msra.mxu0 %v3303
      %3362 = vmatpush.xpose.msra.mxu0 %v3301
      %3363 = vmatpush.xpose.msra.mxu0 %v3299
      %3364 = vmatpush.xpose.msra.mxu0 %v3297
      %3365 = vmatpush.xpose.msra.mxu0 %v3295
      %3366 = vmatpush.xpose.msra.mxu0 %v3293
      %3367 = vmatpush.xpose.msra.mxu0 %v3291
      %3368 = vmatpush.xpose.msra.mxu0 %v3289
      %3369 = vmatmul.f32.gmra.mxu0 %v647
      %v3370 = vpop.f32.mrf.mxu0
      %v3371 = vadd.f32 0.0, %v3370
      %3372 = vdwg.mxu0
      %3373 = vmatpush.xpose.msra.mxu0 %v3320
      %3374 = vmatpush.xpose.msra.mxu0 %v3318
      %3375 = vmatpush.xpose.msra.mxu0 %v3316
      %3376 = vmatpush.xpose.msra.mxu0 %v3314
      %3377 = vmatpush.xpose.msra.mxu0 %v3312
      %3378 = vmatpush.xpose.msra.mxu0 %v3310
      %3379 = vmatpush.xpose.msra.mxu0 %v3308
      %3380 = vmatpush.xpose.msra.mxu0 %v3306
      %3381 = vmatpush.xpose.msra.mxu0 %v3304
      %3382 = vmatpush.xpose.msra.mxu0 %v3302
      %3383 = vmatpush.xpose.msra.mxu0 %v3300
      %3384 = vmatpush.xpose.msra.mxu0 %v3298
      %3385 = vmatpush.xpose.msra.mxu0 %v3296
      %3386 = vmatpush.xpose.msra.mxu0 %v3294
      %3387 = vmatpush.xpose.msra.mxu0 %v3292
      %3388 = vmatpush.xpose.msra.mxu0 %v3290
      %3389 = vmatmul.f32.gmra.mxu0 %v700
      %v3390 = vpop.f32.mrf.mxu0
      %v3391 = vadd.f32 %v3371, %v3390
      %3392 = vdwg.mxu0
      %3393 = vmatpush.xpose.msra.mxu0 %v3351
      %3394 = vmatpush.xpose.msra.mxu0 %v3349
      %3395 = vmatpush.xpose.msra.mxu0 %v3347
      %3396 = vmatpush.xpose.msra.mxu0 %v3345
      %3397 = vmatpush.xpose.msra.mxu0 %v3343
      %3398 = vmatpush.xpose.msra.mxu0 %v3341
      %3399 = vmatpush.xpose.msra.mxu0 %v3339
      %3400 = vmatpush.xpose.msra.mxu0 %v3337
      %3401 = vmatpush.xpose.msra.mxu0 %v3335
      %3402 = vmatpush.xpose.msra.mxu0 %v3333
      %3403 = vmatpush.xpose.msra.mxu0 %v3331
      %3404 = vmatpush.xpose.msra.mxu0 %v3329
      %3405 = vmatpush.xpose.msra.mxu0 %v3327
      %3406 = vmatpush.xpose.msra.mxu0 %v3325
      %3407 = vmatpush.xpose.msra.mxu0 %v3323
      %3408 = vmatpush.xpose.msra.mxu0 %v3321
      %3409 = vmatmul.f32.gmra.mxu0 %v647
      %v3410 = vpop.f32.mrf.mxu0
      %v3411 = vadd.f32 0.0, %v3410
      %3412 = vdwg.mxu0
      %3413 = vmatpush.xpose.msra.mxu0 %v3352
      %3414 = vmatpush.xpose.msra.mxu0 %v3350
      %3415 = vmatpush.xpose.msra.mxu0 %v3348
      %3416 = vmatpush.xpose.msra.mxu0 %v3346
      %3417 = vmatpush.xpose.msra.mxu0 %v3344
      %3418 = vmatpush.xpose.msra.mxu0 %v3342
      %3419 = vmatpush.xpose.msra.mxu0 %v3340
      %3420 = vmatpush.xpose.msra.mxu0 %v3338
      %3421 = vmatpush.xpose.msra.mxu0 %v3336
      %3422 = vmatpush.xpose.msra.mxu0 %v3334
      %3423 = vmatpush.xpose.msra.mxu0 %v3332
      %3424 = vmatpush.xpose.msra.mxu0 %v3330
      %3425 = vmatpush.xpose.msra.mxu0 %v3328
      %3426 = vmatpush.xpose.msra.mxu0 %v3326
      %3427 = vmatpush.xpose.msra.mxu0 %v3324
      %3428 = vmatpush.xpose.msra.mxu0 %v3322
      %3429 = vmatmul.f32.gmra.mxu0 %v700
      %v3430 = vpop.f32.mrf.mxu0
      %v3431 = vadd.f32 %v3411, %v3430
      %3432 = vdwg.mxu0
      %3437 = vrot.lane.b32.xlu0 %v304, 120
      %v3438 = vpop.permute.xlu0 %3437
      %3439 = vrot.lane.b32.xlu0 %v305, 120
      %v3440 = vpop.permute.xlu0 %3439
      %3441 = vrot.lane.b32.xlu0 %v306, 120
      %v3442 = vpop.permute.xlu0 %3441
      %3443 = vrot.lane.b32.xlu0 %v307, 120
      %v3444 = vpop.permute.xlu0 %3443
      %v3445 = vsel %vm772, %v3438, 0
      %v3447 = vsel %vm772, %v3440, 0
      %v3449 = vsel %vm772, %v3442, 0
      %v3451 = vsel %vm772, %v3444, 0
      %3453 = vmatpush.msra.mxu0 0.0
      %3454 = vmatpush.msra.mxu0 0.0
      %3455 = vmatpush.msra.mxu0 0.0
      %3456 = vmatpush.msra.mxu0 0.0
      %3457 = vmatpush.msra.mxu0 0.0
      %3458 = vmatpush.msra.mxu0 0.0
      %3459 = vmatpush.msra.mxu0 0.0
      %3460 = vmatpush.msra.mxu0 0.0
      %3461 = vmatpush.msra.mxu0 0.0
      %3462 = vmatpush.msra.mxu0 0.0
      %3463 = vmatpush.msra.mxu0 0.0
      %3464 = vmatpush.msra.mxu0 0.0
      %3465 = vmatpush.msra.mxu0 0.0
      %3466 = vmatpush.msra.mxu0 0.0
      %3467 = vmatpush.msra.mxu0 0.0
      %3468 = vmatpush.msra.mxu0 %v3391
      %3469 = vmatmul.f32.gmra.mxu0 %v3445
      %v3470 = vpop.f32.mrf.mxu0
      %v3471 = vadd.f32 0.0, %v3470
      %3472 = vmatmul.f32.gmra.mxu0 %v3447
      %v3473 = vpop.f32.mrf.mxu0
      %v3474 = vadd.f32 0.0, %v3473
      %3475 = vmatmul.f32.gmra.mxu0 %v3449
      %v3476 = vpop.f32.mrf.mxu0
      %v3477 = vadd.f32 0.0, %v3476
      %3478 = vmatmul.f32.gmra.mxu0 %v3451
      %v3479 = vpop.f32.mrf.mxu0
      %v3480 = vadd.f32 0.0, %v3479
      %3481 = vdwg.mxu0
      %3482 = vmatpush.msra.mxu0 0.0
      %3483 = vmatpush.msra.mxu0 0.0
      %3484 = vmatpush.msra.mxu0 0.0
      %3485 = vmatpush.msra.mxu0 0.0
      %3486 = vmatpush.msra.mxu0 0.0
      %3487 = vmatpush.msra.mxu0 0.0
      %3488 = vmatpush.msra.mxu0 0.0
      %3489 = vmatpush.msra.mxu0 0.0
      %3490 = vmatpush.msra.mxu0 0.0
      %3491 = vmatpush.msra.mxu0 0.0
      %3492 = vmatpush.msra.mxu0 0.0
      %3493 = vmatpush.msra.mxu0 0.0
      %3494 = vmatpush.msra.mxu0 0.0
      %3495 = vmatpush.msra.mxu0 0.0
      %3496 = vmatpush.msra.mxu0 0.0
      %3497 = vmatpush.msra.mxu0 %v3431
      %3498 = vmatmul.f32.gmra.mxu0 %v3445
      %v3499 = vpop.f32.mrf.mxu0
      %v3500 = vadd.f32 0.0, %v3499
      %3501 = vmatmul.f32.gmra.mxu0 %v3447
      %v3502 = vpop.f32.mrf.mxu0
      %v3503 = vadd.f32 0.0, %v3502
      %3504 = vmatmul.f32.gmra.mxu0 %v3449
      %v3505 = vpop.f32.mrf.mxu0
      %v3506 = vadd.f32 0.0, %v3505
      %3507 = vmatmul.f32.gmra.mxu0 %v3451
      %v3508 = vpop.f32.mrf.mxu0
      %v3509 = vadd.f32 0.0, %v3508
      %3510 = vdwg.mxu0
      %v3511 = vsel %vm772, %v304, 0
      %v3513 = vsel %vm772, %v305, 0
      %v3515 = vsel %vm772, %v306, 0
      %v3517 = vsel %vm772, %v307, 0
      %3519 = vmatpush.msra.mxu0 0.0
      %3520 = vmatpush.msra.mxu0 0.0
      %3521 = vmatpush.msra.mxu0 0.0
      %3522 = vmatpush.msra.mxu0 0.0
      %3523 = vmatpush.msra.mxu0 0.0
      %3524 = vmatpush.msra.mxu0 0.0
      %3525 = vmatpush.msra.mxu0 0.0
      %3526 = vmatpush.msra.mxu0 0.0
      %3527 = vmatpush.msra.mxu0 0.0
      %3528 = vmatpush.msra.mxu0 0.0
      %3529 = vmatpush.msra.mxu0 0.0
      %3530 = vmatpush.msra.mxu0 0.0
      %3531 = vmatpush.msra.mxu0 0.0
      %3532 = vmatpush.msra.mxu0 0.0
      %3533 = vmatpush.msra.mxu0 0.0
      %3534 = vmatpush.msra.mxu0 %v2029
      %3535 = vmatmul.f32.gmra.mxu0 %v3511
      %v3536 = vpop.f32.mrf.mxu0
      %v3537 = vadd.f32 %v3471, %v3536
      %3538 = vmatmul.f32.gmra.mxu0 %v3513
      %v3539 = vpop.f32.mrf.mxu0
      %v3540 = vadd.f32 %v3474, %v3539
      %3541 = vmatmul.f32.gmra.mxu0 %v3515
      %v3542 = vpop.f32.mrf.mxu0
      %v3543 = vadd.f32 %v3477, %v3542
      %3544 = vmatmul.f32.gmra.mxu0 %v3517
      %v3545 = vpop.f32.mrf.mxu0
      %v3546 = vadd.f32 %v3480, %v3545
      %3547 = vdwg.mxu0
      %3548 = vmatpush.msra.mxu0 0.0
      %3549 = vmatpush.msra.mxu0 0.0
      %3550 = vmatpush.msra.mxu0 0.0
      %3551 = vmatpush.msra.mxu0 0.0
      %3552 = vmatpush.msra.mxu0 0.0
      %3553 = vmatpush.msra.mxu0 0.0
      %3554 = vmatpush.msra.mxu0 0.0
      %3555 = vmatpush.msra.mxu0 0.0
      %3556 = vmatpush.msra.mxu0 0.0
      %3557 = vmatpush.msra.mxu0 0.0
      %3558 = vmatpush.msra.mxu0 0.0
      %3559 = vmatpush.msra.mxu0 0.0
      %3560 = vmatpush.msra.mxu0 0.0
      %3561 = vmatpush.msra.mxu0 0.0
      %3562 = vmatpush.msra.mxu0 0.0
      %3563 = vmatpush.msra.mxu0 %v2069
      %3564 = vmatmul.f32.gmra.mxu0 %v3511
      %v3565 = vpop.f32.mrf.mxu0
      %v3566 = vadd.f32 %v3500, %v3565
      %3567 = vmatmul.f32.gmra.mxu0 %v3513
      %v3568 = vpop.f32.mrf.mxu0
      %v3569 = vadd.f32 %v3503, %v3568
      %3570 = vmatmul.f32.gmra.mxu0 %v3515
      %v3571 = vpop.f32.mrf.mxu0
      %v3572 = vadd.f32 %v3506, %v3571
      %3573 = vmatmul.f32.gmra.mxu0 %v3517
      %v3574 = vpop.f32.mrf.mxu0
      %v3575 = vadd.f32 %v3509, %v3574
      %3576 = vdwg.mxu0
      %3577 = vxpose.xlu0.b32.start [1/16] %v626, 128
      %3578 = vxpose.xlu0.b32.cont [2/16] 0.0, 128
      %3579 = vxpose.xlu0.b32.cont [3/16] 0.0, 128
      %3580 = vxpose.xlu0.b32.cont [4/16] 0.0, 128
      %3581 = vxpose.xlu0.b32.cont [5/16] 0.0, 128
      %3582 = vxpose.xlu0.b32.cont [6/16] 0.0, 128
      %3583 = vxpose.xlu0.b32.cont [7/16] 0.0, 128
      %3584 = vxpose.xlu0.b32.cont [8/16] 0.0, 128
      %3585 = vxpose.xlu0.b32.cont [9/16] 0.0, 128
      %3586 = vxpose.xlu0.b32.cont [10/16] 0.0, 128
      %3587 = vxpose.xlu0.b32.cont [11/16] 0.0, 128
      %3588 = vxpose.xlu0.b32.cont [12/16] 0.0, 128
      %3589 = vxpose.xlu0.b32.cont [13/16] 0.0, 128
      %3590 = vxpose.xlu0.b32.cont [14/16] 0.0, 128
      %3591 = vxpose.xlu0.b32.cont [15/16] 0.0, 128
      %3592 = vxpose.xlu0.b32.end [16/16] 0.0, 128
      %v3593 = vpop.trf.xlu0
      %v3594 = vpop.trf.xlu0
      %v3595 = vpop.trf.xlu0
      %v3596 = vpop.trf.xlu0
      %v3597 = vpop.trf.xlu0
      %v3598 = vpop.trf.xlu0
      %v3599 = vpop.trf.xlu0
      %v3600 = vpop.trf.xlu0
      %v3601 = vpop.trf.xlu0
      %v3602 = vpop.trf.xlu0
      %v3603 = vpop.trf.xlu0
      %v3604 = vpop.trf.xlu0
      %v3605 = vpop.trf.xlu0
      %v3606 = vpop.trf.xlu0
      %v3607 = vpop.trf.xlu0
      %v3608 = vpop.trf.xlu0
      %3609 = vxpose.xlu0.b32.start [1/16] %v679, 128
      %3610 = vxpose.xlu0.b32.cont [2/16] 0.0, 128
      %3611 = vxpose.xlu0.b32.cont [3/16] 0.0, 128
      %3612 = vxpose.xlu0.b32.cont [4/16] 0.0, 128
      %3613 = vxpose.xlu0.b32.cont [5/16] 0.0, 128
      %3614 = vxpose.xlu0.b32.cont [6/16] 0.0, 128
      %3615 = vxpose.xlu0.b32.cont [7/16] 0.0, 128
      %3616 = vxpose.xlu0.b32.cont [8/16] 0.0, 128
      %3617 = vxpose.xlu0.b32.cont [9/16] 0.0, 128
      %3618 = vxpose.xlu0.b32.cont [10/16] 0.0, 128
      %3619 = vxpose.xlu0.b32.cont [11/16] 0.0, 128
      %3620 = vxpose.xlu0.b32.cont [12/16] 0.0, 128
      %3621 = vxpose.xlu0.b32.cont [13/16] 0.0, 128
      %3622 = vxpose.xlu0.b32.cont [14/16] 0.0, 128
      %3623 = vxpose.xlu0.b32.cont [15/16] 0.0, 128
      %3624 = vxpose.xlu0.b32.end [16/16] 0.0, 128
      %v3625 = vpop.trf.xlu0
      %v3626 = vpop.trf.xlu0
      %v3627 = vpop.trf.xlu0
      %v3628 = vpop.trf.xlu0
      %v3629 = vpop.trf.xlu0
      %v3630 = vpop.trf.xlu0
      %v3631 = vpop.trf.xlu0
      %v3632 = vpop.trf.xlu0
      %v3633 = vpop.trf.xlu0
      %v3634 = vpop.trf.xlu0
      %v3635 = vpop.trf.xlu0
      %v3636 = vpop.trf.xlu0
      %v3637 = vpop.trf.xlu0
      %v3638 = vpop.trf.xlu0
      %v3639 = vpop.trf.xlu0
      %v3640 = vpop.trf.xlu0
      %v3642 = vsel %vm772, %v3593, 0
      %v3645 = vsel %vm772, %v3594, 0
      %v3648 = vsel %vm772, %v3595, 0
      %v3651 = vsel %vm772, %v3596, 0
      %v3654 = vsel %vm772, %v3597, 0
      %v3657 = vsel %vm772, %v3598, 0
      %v3660 = vsel %vm772, %v3599, 0
      %v3663 = vsel %vm772, %v3600, 0
      %v3666 = vsel %vm772, %v3601, 0
      %v3669 = vsel %vm772, %v3602, 0
      %v3672 = vsel %vm772, %v3603, 0
      %v3675 = vsel %vm772, %v3604, 0
      %v3678 = vsel %vm772, %v3605, 0
      %v3681 = vsel %vm772, %v3606, 0
      %v3684 = vsel %vm772, %v3607, 0
      %v3687 = vsel %vm772, %v3608, 0
      %v3690 = vsel %vm772, %v3625, 0
      %v3693 = vsel %vm772, %v3626, 0
      %v3696 = vsel %vm772, %v3627, 0
      %v3699 = vsel %vm772, %v3628, 0
      %v3702 = vsel %vm772, %v3629, 0
      %v3705 = vsel %vm772, %v3630, 0
      %v3708 = vsel %vm772, %v3631, 0
      %v3711 = vsel %vm772, %v3632, 0
      %v3714 = vsel %vm772, %v3633, 0
      %v3717 = vsel %vm772, %v3634, 0
      %v3720 = vsel %vm772, %v3635, 0
      %v3723 = vsel %vm772, %v3636, 0
      %v3726 = vsel %vm772, %v3637, 0
      %v3729 = vsel %vm772, %v3638, 0
      %v3732 = vsel %vm772, %v3639, 0
      %v3735 = vsel %vm772, %v3640, 0
      %3737 = vmatpush.msra.mxu0 0.0
      %3738 = vmatpush.msra.mxu0 0.0
      %3739 = vmatpush.msra.mxu0 0.0
      %3740 = vmatpush.msra.mxu0 0.0
      %3741 = vmatpush.msra.mxu0 0.0
      %3742 = vmatpush.msra.mxu0 0.0
      %3743 = vmatpush.msra.mxu0 0.0
      %3744 = vmatpush.msra.mxu0 0.0
      %3745 = vmatpush.msra.mxu0 0.0
      %3746 = vmatpush.msra.mxu0 0.0
      %3747 = vmatpush.msra.mxu0 0.0
      %3748 = vmatpush.msra.mxu0 0.0
      %3749 = vmatpush.msra.mxu0 0.0
      %3750 = vmatpush.msra.mxu0 0.0
      %3751 = vmatpush.msra.mxu0 0.0
      %3752 = vmatpush.msra.mxu0 %v638
      %3753 = vmatmul.f32.gmra.mxu0 %v3642
      %v3754 = vpop.f32.mrf.mxu0
      %v3755 = vadd.f32 0.0, %v3754
      %3756 = vmatmul.f32.gmra.mxu0 %v3645
      %v3757 = vpop.f32.mrf.mxu0
      %v3758 = vadd.f32 0.0, %v3757
      %3759 = vmatmul.f32.gmra.mxu0 %v3648
      %v3760 = vpop.f32.mrf.mxu0
      %v3761 = vadd.f32 0.0, %v3760
      %3762 = vmatmul.f32.gmra.mxu0 %v3651
      %v3763 = vpop.f32.mrf.mxu0
      %v3764 = vadd.f32 0.0, %v3763
      %3765 = vmatmul.f32.gmra.mxu0 %v3654
      %v3766 = vpop.f32.mrf.mxu0
      %v3767 = vadd.f32 0.0, %v3766
      %3768 = vmatmul.f32.gmra.mxu0 %v3657
      %v3769 = vpop.f32.mrf.mxu0
      %v3770 = vadd.f32 0.0, %v3769
      %3771 = vmatmul.f32.gmra.mxu0 %v3660
      %v3772 = vpop.f32.mrf.mxu0
      %v3773 = vadd.f32 0.0, %v3772
      %3774 = vmatmul.f32.gmra.mxu0 %v3663
      %v3775 = vpop.f32.mrf.mxu0
      %v3776 = vadd.f32 0.0, %v3775
      %3777 = vmatmul.f32.gmra.mxu0 %v3666
      %v3778 = vpop.f32.mrf.mxu0
      %v3779 = vadd.f32 0.0, %v3778
      %3780 = vmatmul.f32.gmra.mxu0 %v3669
      %v3781 = vpop.f32.mrf.mxu0
      %v3782 = vadd.f32 0.0, %v3781
      %3783 = vmatmul.f32.gmra.mxu0 %v3672
      %v3784 = vpop.f32.mrf.mxu0
      %v3785 = vadd.f32 0.0, %v3784
      %3786 = vmatmul.f32.gmra.mxu0 %v3675
      %v3787 = vpop.f32.mrf.mxu0
      %v3788 = vadd.f32 0.0, %v3787
      %3789 = vmatmul.f32.gmra.mxu0 %v3678
      %v3790 = vpop.f32.mrf.mxu0
      %v3791 = vadd.f32 0.0, %v3790
      %3792 = vmatmul.f32.gmra.mxu0 %v3681
      %v3793 = vpop.f32.mrf.mxu0
      %v3794 = vadd.f32 0.0, %v3793
      %3795 = vmatmul.f32.gmra.mxu0 %v3684
      %v3796 = vpop.f32.mrf.mxu0
      %v3797 = vadd.f32 0.0, %v3796
      %3798 = vmatmul.f32.gmra.mxu0 %v3687
      %v3799 = vpop.f32.mrf.mxu0
      %v3800 = vadd.f32 0.0, %v3799
      %3801 = vmatmul.f32.gmra.mxu0 %v3690
      %v3802 = vpop.f32.mrf.mxu0
      %v3803 = vadd.f32 0.0, %v3802
      %3804 = vmatmul.f32.gmra.mxu0 %v3693
      %v3805 = vpop.f32.mrf.mxu0
      %v3806 = vadd.f32 0.0, %v3805
      %3807 = vmatmul.f32.gmra.mxu0 %v3696
      %v3808 = vpop.f32.mrf.mxu0
      %v3809 = vadd.f32 0.0, %v3808
      %3810 = vmatmul.f32.gmra.mxu0 %v3699
      %v3811 = vpop.f32.mrf.mxu0
      %v3812 = vadd.f32 0.0, %v3811
      %3813 = vmatmul.f32.gmra.mxu0 %v3702
      %v3814 = vpop.f32.mrf.mxu0
      %v3815 = vadd.f32 0.0, %v3814
      %3816 = vmatmul.f32.gmra.mxu0 %v3705
      %v3817 = vpop.f32.mrf.mxu0
      %v3818 = vadd.f32 0.0, %v3817
      %3819 = vmatmul.f32.gmra.mxu0 %v3708
      %v3820 = vpop.f32.mrf.mxu0
      %v3821 = vadd.f32 0.0, %v3820
      %3822 = vmatmul.f32.gmra.mxu0 %v3711
      %v3823 = vpop.f32.mrf.mxu0
      %v3824 = vadd.f32 0.0, %v3823
      %3825 = vmatmul.f32.gmra.mxu0 %v3714
      %v3826 = vpop.f32.mrf.mxu0
      %v3827 = vadd.f32 0.0, %v3826
      %3828 = vmatmul.f32.gmra.mxu0 %v3717
      %v3829 = vpop.f32.mrf.mxu0
      %v3830 = vadd.f32 0.0, %v3829
      %3831 = vmatmul.f32.gmra.mxu0 %v3720
      %v3832 = vpop.f32.mrf.mxu0
      %v3833 = vadd.f32 0.0, %v3832
      %3834 = vmatmul.f32.gmra.mxu0 %v3723
      %v3835 = vpop.f32.mrf.mxu0
      %v3836 = vadd.f32 0.0, %v3835
      %3837 = vmatmul.f32.gmra.mxu0 %v3726
      %v3838 = vpop.f32.mrf.mxu0
      %v3839 = vadd.f32 0.0, %v3838
      %3840 = vmatmul.f32.gmra.mxu0 %v3729
      %v3841 = vpop.f32.mrf.mxu0
      %v3842 = vadd.f32 0.0, %v3841
      %3843 = vmatmul.f32.gmra.mxu0 %v3732
      %v3844 = vpop.f32.mrf.mxu0
      %v3845 = vadd.f32 0.0, %v3844
      %3846 = vmatmul.f32.gmra.mxu0 %v3735
      %v3847 = vpop.f32.mrf.mxu0
      %v3848 = vadd.f32 0.0, %v3847
      %3849 = vdwg.mxu0
      %3850 = vmatpush.msra.mxu0 0.0
      %3851 = vmatpush.msra.mxu0 0.0
      %3852 = vmatpush.msra.mxu0 0.0
      %3853 = vmatpush.msra.mxu0 0.0
      %3854 = vmatpush.msra.mxu0 0.0
      %3855 = vmatpush.msra.mxu0 0.0
      %3856 = vmatpush.msra.mxu0 0.0
      %3857 = vmatpush.msra.mxu0 0.0
      %3858 = vmatpush.msra.mxu0 0.0
      %3859 = vmatpush.msra.mxu0 0.0
      %3860 = vmatpush.msra.mxu0 0.0
      %3861 = vmatpush.msra.mxu0 0.0
      %3862 = vmatpush.msra.mxu0 0.0
      %3863 = vmatpush.msra.mxu0 0.0
      %3864 = vmatpush.msra.mxu0 0.0
      %3865 = vmatpush.msra.mxu0 %v691
      %3866 = vmatmul.f32.gmra.mxu0 %v3642
      %v3867 = vpop.f32.mrf.mxu0
      %v3868 = vadd.f32 0.0, %v3867
      %3869 = vmatmul.f32.gmra.mxu0 %v3645
      %v3870 = vpop.f32.mrf.mxu0
      %v3871 = vadd.f32 0.0, %v3870
      %3872 = vmatmul.f32.gmra.mxu0 %v3648
      %v3873 = vpop.f32.mrf.mxu0
      %v3874 = vadd.f32 0.0, %v3873
      %3875 = vmatmul.f32.gmra.mxu0 %v3651
      %v3876 = vpop.f32.mrf.mxu0
      %v3877 = vadd.f32 0.0, %v3876
      %3878 = vmatmul.f32.gmra.mxu0 %v3654
      %v3879 = vpop.f32.mrf.mxu0
      %v3880 = vadd.f32 0.0, %v3879
      %3881 = vmatmul.f32.gmra.mxu0 %v3657
      %v3882 = vpop.f32.mrf.mxu0
      %v3883 = vadd.f32 0.0, %v3882
      %3884 = vmatmul.f32.gmra.mxu0 %v3660
      %v3885 = vpop.f32.mrf.mxu0
      %v3886 = vadd.f32 0.0, %v3885
      %3887 = vmatmul.f32.gmra.mxu0 %v3663
      %v3888 = vpop.f32.mrf.mxu0
      %v3889 = vadd.f32 0.0, %v3888
      %3890 = vmatmul.f32.gmra.mxu0 %v3666
      %v3891 = vpop.f32.mrf.mxu0
      %v3892 = vadd.f32 0.0, %v3891
      %3893 = vmatmul.f32.gmra.mxu0 %v3669
      %v3894 = vpop.f32.mrf.mxu0
      %v3895 = vadd.f32 0.0, %v3894
      %3896 = vmatmul.f32.gmra.mxu0 %v3672
      %v3897 = vpop.f32.mrf.mxu0
      %v3898 = vadd.f32 0.0, %v3897
      %3899 = vmatmul.f32.gmra.mxu0 %v3675
      %v3900 = vpop.f32.mrf.mxu0
      %v3901 = vadd.f32 0.0, %v3900
      %3902 = vmatmul.f32.gmra.mxu0 %v3678
      %v3903 = vpop.f32.mrf.mxu0
      %v3904 = vadd.f32 0.0, %v3903
      %3905 = vmatmul.f32.gmra.mxu0 %v3681
      %v3906 = vpop.f32.mrf.mxu0
      %v3907 = vadd.f32 0.0, %v3906
      %3908 = vmatmul.f32.gmra.mxu0 %v3684
      %v3909 = vpop.f32.mrf.mxu0
      %v3910 = vadd.f32 0.0, %v3909
      %3911 = vmatmul.f32.gmra.mxu0 %v3687
      %v3912 = vpop.f32.mrf.mxu0
      %v3913 = vadd.f32 0.0, %v3912
      %3914 = vmatmul.f32.gmra.mxu0 %v3690
      %v3915 = vpop.f32.mrf.mxu0
      %v3916 = vadd.f32 0.0, %v3915
      %3917 = vmatmul.f32.gmra.mxu0 %v3693
      %v3918 = vpop.f32.mrf.mxu0
      %v3919 = vadd.f32 0.0, %v3918
      %3920 = vmatmul.f32.gmra.mxu0 %v3696
      %v3921 = vpop.f32.mrf.mxu0
      %v3922 = vadd.f32 0.0, %v3921
      %3923 = vmatmul.f32.gmra.mxu0 %v3699
      %v3924 = vpop.f32.mrf.mxu0
      %v3925 = vadd.f32 0.0, %v3924
      %3926 = vmatmul.f32.gmra.mxu0 %v3702
      %v3927 = vpop.f32.mrf.mxu0
      %v3928 = vadd.f32 0.0, %v3927
      %3929 = vmatmul.f32.gmra.mxu0 %v3705
      %v3930 = vpop.f32.mrf.mxu0
      %v3931 = vadd.f32 0.0, %v3930
      %3932 = vmatmul.f32.gmra.mxu0 %v3708
      %v3933 = vpop.f32.mrf.mxu0
      %v3934 = vadd.f32 0.0, %v3933
      %3935 = vmatmul.f32.gmra.mxu0 %v3711
      %v3936 = vpop.f32.mrf.mxu0
      %v3937 = vadd.f32 0.0, %v3936
      %3938 = vmatmul.f32.gmra.mxu0 %v3714
      %v3939 = vpop.f32.mrf.mxu0
      %v3940 = vadd.f32 0.0, %v3939
      %3941 = vmatmul.f32.gmra.mxu0 %v3717
      %v3942 = vpop.f32.mrf.mxu0
      %v3943 = vadd.f32 0.0, %v3942
      %3944 = vmatmul.f32.gmra.mxu0 %v3720
      %v3945 = vpop.f32.mrf.mxu0
      %v3946 = vadd.f32 0.0, %v3945
      %3947 = vmatmul.f32.gmra.mxu0 %v3723
      %v3948 = vpop.f32.mrf.mxu0
      %v3949 = vadd.f32 0.0, %v3948
      %3950 = vmatmul.f32.gmra.mxu0 %v3726
      %v3951 = vpop.f32.mrf.mxu0
      %v3952 = vadd.f32 0.0, %v3951
      %3953 = vmatmul.f32.gmra.mxu0 %v3729
      %v3954 = vpop.f32.mrf.mxu0
      %v3955 = vadd.f32 0.0, %v3954
      %3956 = vmatmul.f32.gmra.mxu0 %v3732
      %v3957 = vpop.f32.mrf.mxu0
      %v3958 = vadd.f32 0.0, %v3957
      %3959 = vmatmul.f32.gmra.mxu0 %v3735
      %v3960 = vpop.f32.mrf.mxu0
      %v3961 = vadd.f32 0.0, %v3960
      %3962 = vdwg.mxu0
      %v3963 = vmax.f32 %v3755, %v3868
      %3964 = vmax.xlane.f32.xlu0 %v3963
      %v3965 = vpop.xlane.xlu0 %3964
      %v3966 = vmax.f32 %v3758, %v3871
      %3967 = vmax.xlane.f32.xlu0 %v3966
      %v3968 = vpop.xlane.xlu0 %3967
      %v3969 = vmax.f32 %v3761, %v3874
      %3970 = vmax.xlane.f32.xlu0 %v3969
      %v3971 = vpop.xlane.xlu0 %3970
      %v3972 = vmax.f32 %v3764, %v3877
      %3973 = vmax.xlane.f32.xlu0 %v3972
      %v3974 = vpop.xlane.xlu0 %3973
      %v3975 = vmax.f32 %v3767, %v3880
      %3976 = vmax.xlane.f32.xlu0 %v3975
      %v3977 = vpop.xlane.xlu0 %3976
      %v3978 = vmax.f32 %v3770, %v3883
      %3979 = vmax.xlane.f32.xlu0 %v3978
      %v3980 = vpop.xlane.xlu0 %3979
      %v3981 = vmax.f32 %v3773, %v3886
      %3982 = vmax.xlane.f32.xlu0 %v3981
      %v3983 = vpop.xlane.xlu0 %3982
      %v3984 = vmax.f32 %v3776, %v3889
      %3985 = vmax.xlane.f32.xlu0 %v3984
      %v3986 = vpop.xlane.xlu0 %3985
      %v3987 = vmax.f32 %v3779, %v3892
      %3988 = vmax.xlane.f32.xlu0 %v3987
      %v3989 = vpop.xlane.xlu0 %3988
      %v3990 = vmax.f32 %v3782, %v3895
      %3991 = vmax.xlane.f32.xlu0 %v3990
      %v3992 = vpop.xlane.xlu0 %3991
      %v3993 = vmax.f32 %v3785, %v3898
      %3994 = vmax.xlane.f32.xlu0 %v3993
      %v3995 = vpop.xlane.xlu0 %3994
      %v3996 = vmax.f32 %v3788, %v3901
      %3997 = vmax.xlane.f32.xlu0 %v3996
      %v3998 = vpop.xlane.xlu0 %3997
      %v3999 = vmax.f32 %v3791, %v3904
      %4000 = vmax.xlane.f32.xlu0 %v3999
      %v4001 = vpop.xlane.xlu0 %4000
      %v4002 = vmax.f32 %v3794, %v3907
      %4003 = vmax.xlane.f32.xlu0 %v4002
      %v4004 = vpop.xlane.xlu0 %4003
      %v4005 = vmax.f32 %v3797, %v3910
      %4006 = vmax.xlane.f32.xlu0 %v4005
      %v4007 = vpop.xlane.xlu0 %4006
      %v4008 = vmax.f32 %v3800, %v3913
      %4009 = vmax.xlane.f32.xlu0 %v4008
      %v4010 = vpop.xlane.xlu0 %4009
      %v4011 = vmax.f32 %v3803, %v3916
      %4012 = vmax.xlane.f32.xlu0 %v4011
      %v4013 = vpop.xlane.xlu0 %4012
      %v4014 = vmax.f32 %v3806, %v3919
      %4015 = vmax.xlane.f32.xlu0 %v4014
      %v4016 = vpop.xlane.xlu0 %4015
      %v4017 = vmax.f32 %v3809, %v3922
      %4018 = vmax.xlane.f32.xlu0 %v4017
      %v4019 = vpop.xlane.xlu0 %4018
      %v4020 = vmax.f32 %v3812, %v3925
      %4021 = vmax.xlane.f32.xlu0 %v4020
      %v4022 = vpop.xlane.xlu0 %4021
      %v4023 = vmax.f32 %v3815, %v3928
      %4024 = vmax.xlane.f32.xlu0 %v4023
      %v4025 = vpop.xlane.xlu0 %4024
      %v4026 = vmax.f32 %v3818, %v3931
      %4027 = vmax.xlane.f32.xlu0 %v4026
      %v4028 = vpop.xlane.xlu0 %4027
      %v4029 = vmax.f32 %v3821, %v3934
      %4030 = vmax.xlane.f32.xlu0 %v4029
      %v4031 = vpop.xlane.xlu0 %4030
      %v4032 = vmax.f32 %v3824, %v3937
      %4033 = vmax.xlane.f32.xlu0 %v4032
      %v4034 = vpop.xlane.xlu0 %4033
      %v4035 = vmax.f32 %v3827, %v3940
      %4036 = vmax.xlane.f32.xlu0 %v4035
      %v4037 = vpop.xlane.xlu0 %4036
      %v4038 = vmax.f32 %v3830, %v3943
      %4039 = vmax.xlane.f32.xlu0 %v4038
      %v4040 = vpop.xlane.xlu0 %4039
      %v4041 = vmax.f32 %v3833, %v3946
      %4042 = vmax.xlane.f32.xlu0 %v4041
      %v4043 = vpop.xlane.xlu0 %4042
      %v4044 = vmax.f32 %v3836, %v3949
      %4045 = vmax.xlane.f32.xlu0 %v4044
      %v4046 = vpop.xlane.xlu0 %4045
      %v4047 = vmax.f32 %v3839, %v3952
      %4048 = vmax.xlane.f32.xlu0 %v4047
      %v4049 = vpop.xlane.xlu0 %4048
      %v4050 = vmax.f32 %v3842, %v3955
      %4051 = vmax.xlane.f32.xlu0 %v4050
      %v4052 = vpop.xlane.xlu0 %4051
      %v4053 = vmax.f32 %v3845, %v3958
      %4054 = vmax.xlane.f32.xlu0 %v4053
      %v4055 = vpop.xlane.xlu0 %4054
      %v4056 = vmax.f32 %v3848, %v3961
      %4057 = vmax.xlane.f32.xlu0 %v4056
      %v4058 = vpop.xlane.xlu0 %4057
      %v4059 = vsub.f32 %v3755, %v3965
      %v4060 = vsub.f32 %v3868, %v3965
      %v4061 = vsub.f32 %v3758, %v3968
      %v4062 = vsub.f32 %v3871, %v3968
      %v4063 = vsub.f32 %v3761, %v3971
      %v4064 = vsub.f32 %v3874, %v3971
      %v4065 = vsub.f32 %v3764, %v3974
      %v4066 = vsub.f32 %v3877, %v3974
      %v4067 = vsub.f32 %v3767, %v3977
      %v4068 = vsub.f32 %v3880, %v3977
      %v4069 = vsub.f32 %v3770, %v3980
      %v4070 = vsub.f32 %v3883, %v3980
      %v4071 = vsub.f32 %v3773, %v3983
      %v4072 = vsub.f32 %v3886, %v3983
      %v4073 = vsub.f32 %v3776, %v3986
      %v4074 = vsub.f32 %v3889, %v3986
      %v4075 = vsub.f32 %v3779, %v3989
      %v4076 = vsub.f32 %v3892, %v3989
      %v4077 = vsub.f32 %v3782, %v3992
      %v4078 = vsub.f32 %v3895, %v3992
      %v4079 = vsub.f32 %v3785, %v3995
      %v4080 = vsub.f32 %v3898, %v3995
      %v4081 = vsub.f32 %v3788, %v3998
      %v4082 = vsub.f32 %v3901, %v3998
      %v4083 = vsub.f32 %v3791, %v4001
      %v4084 = vsub.f32 %v3904, %v4001
      %v4085 = vsub.f32 %v3794, %v4004
      %v4086 = vsub.f32 %v3907, %v4004
      %v4087 = vsub.f32 %v3797, %v4007
      %v4088 = vsub.f32 %v3910, %v4007
      %v4089 = vsub.f32 %v3800, %v4010
      %v4090 = vsub.f32 %v3913, %v4010
      %v4091 = vsub.f32 %v3803, %v4013
      %v4092 = vsub.f32 %v3916, %v4013
      %v4093 = vsub.f32 %v3806, %v4016
      %v4094 = vsub.f32 %v3919, %v4016
      %v4095 = vsub.f32 %v3809, %v4019
      %v4096 = vsub.f32 %v3922, %v4019
      %v4097 = vsub.f32 %v3812, %v4022
      %v4098 = vsub.f32 %v3925, %v4022
      %v4099 = vsub.f32 %v3815, %v4025
      %v4100 = vsub.f32 %v3928, %v4025
      %v4101 = vsub.f32 %v3818, %v4028
      %v4102 = vsub.f32 %v3931, %v4028
      %v4103 = vsub.f32 %v3821, %v4031
      %v4104 = vsub.f32 %v3934, %v4031
      %v4105 = vsub.f32 %v3824, %v4034
      %v4106 = vsub.f32 %v3937, %v4034
      %v4107 = vsub.f32 %v3827, %v4037
      %v4108 = vsub.f32 %v3940, %v4037
      %v4109 = vsub.f32 %v3830, %v4040
      %v4110 = vsub.f32 %v3943, %v4040
      %v4111 = vsub.f32 %v3833, %v4043
      %v4112 = vsub.f32 %v3946, %v4043
      %v4113 = vsub.f32 %v3836, %v4046
      %v4114 = vsub.f32 %v3949, %v4046
      %v4115 = vsub.f32 %v3839, %v4049
      %v4116 = vsub.f32 %v3952, %v4049
      %v4117 = vsub.f32 %v3842, %v4052
      %v4118 = vsub.f32 %v3955, %v4052
      %v4119 = vsub.f32 %v3845, %v4055
      %v4120 = vsub.f32 %v3958, %v4055
      %v4121 = vsub.f32 %v3848, %v4058
      %v4122 = vsub.f32 %v3961, %v4058
      %v4123 = vmul.f32 %v4059, 1.442695
      %v4124 = vpow.pop %v4123
      %v4125 = vmul.f32 %v4060, 1.442695
      %v4126 = vpow.pop %v4125
      %v4127 = vmul.f32 %v4061, 1.442695
      %v4128 = vpow.pop %v4127
      %v4129 = vmul.f32 %v4062, 1.442695
      %v4130 = vpow.pop %v4129
      %v4131 = vmul.f32 %v4063, 1.442695
      %v4132 = vpow.pop %v4131
      %v4133 = vmul.f32 %v4064, 1.442695
      %v4134 = vpow.pop %v4133
      %v4135 = vmul.f32 %v4065, 1.442695
      %v4136 = vpow.pop %v4135
      %v4137 = vmul.f32 %v4066, 1.442695
      %v4138 = vpow.pop %v4137
      %v4139 = vmul.f32 %v4067, 1.442695
      %v4140 = vpow.pop %v4139
      %v4141 = vmul.f32 %v4068, 1.442695
      %v4142 = vpow.pop %v4141
      %v4143 = vmul.f32 %v4069, 1.442695
      %v4144 = vpow.pop %v4143
      %v4145 = vmul.f32 %v4070, 1.442695
      %v4146 = vpow.pop %v4145
      %v4147 = vmul.f32 %v4071, 1.442695
      %v4148 = vpow.pop %v4147
      %v4149 = vmul.f32 %v4072, 1.442695
      %v4150 = vpow.pop %v4149
      %v4151 = vmul.f32 %v4073, 1.442695
      %v4152 = vpow.pop %v4151
      %v4153 = vmul.f32 %v4074, 1.442695
      %v4154 = vpow.pop %v4153
      %v4155 = vmul.f32 %v4075, 1.442695
      %v4156 = vpow.pop %v4155
      %v4157 = vmul.f32 %v4076, 1.442695
      %v4158 = vpow.pop %v4157
      %v4159 = vmul.f32 %v4077, 1.442695
      %v4160 = vpow.pop %v4159
      %v4161 = vmul.f32 %v4078, 1.442695
      %v4162 = vpow.pop %v4161
      %v4163 = vmul.f32 %v4079, 1.442695
      %v4164 = vpow.pop %v4163
      %v4165 = vmul.f32 %v4080, 1.442695
      %v4166 = vpow.pop %v4165
      %v4167 = vmul.f32 %v4081, 1.442695
      %v4168 = vpow.pop %v4167
      %v4169 = vmul.f32 %v4082, 1.442695
      %v4170 = vpow.pop %v4169
      %v4171 = vmul.f32 %v4083, 1.442695
      %v4172 = vpow.pop %v4171
      %v4173 = vmul.f32 %v4084, 1.442695
      %v4174 = vpow.pop %v4173
      %v4175 = vmul.f32 %v4085, 1.442695
      %v4176 = vpow.pop %v4175
      %v4177 = vmul.f32 %v4086, 1.442695
      %v4178 = vpow.pop %v4177
      %v4179 = vmul.f32 %v4087, 1.442695
      %v4180 = vpow.pop %v4179
      %v4181 = vmul.f32 %v4088, 1.442695
      %v4182 = vpow.pop %v4181
      %v4183 = vmul.f32 %v4089, 1.442695
      %v4184 = vpow.pop %v4183
      %v4185 = vmul.f32 %v4090, 1.442695
      %v4186 = vpow.pop %v4185
      %v4187 = vmul.f32 %v4091, 1.442695
      %v4188 = vpow.pop %v4187
      %v4189 = vmul.f32 %v4092, 1.442695
      %v4190 = vpow.pop %v4189
      %v4191 = vmul.f32 %v4093, 1.442695
      %v4192 = vpow.pop %v4191
      %v4193 = vmul.f32 %v4094, 1.442695
      %v4194 = vpow.pop %v4193
      %v4195 = vmul.f32 %v4095, 1.442695
      %v4196 = vpow.pop %v4195
      %v4197 = vmul.f32 %v4096, 1.442695
      %v4198 = vpow.pop %v4197
      %v4199 = vmul.f32 %v4097, 1.442695
      %v4200 = vpow.pop %v4199
      %v4201 = vmul.f32 %v4098, 1.442695
      %v4202 = vpow.pop %v4201
      %v4203 = vmul.f32 %v4099, 1.442695
      %v4204 = vpow.pop %v4203
      %v4205 = vmul.f32 %v4100, 1.442695
      %v4206 = vpow.pop %v4205
      %v4207 = vmul.f32 %v4101, 1.442695
      %v4208 = vpow.pop %v4207
      %v4209 = vmul.f32 %v4102, 1.442695
      %v4210 = vpow.pop %v4209
      %v4211 = vmul.f32 %v4103, 1.442695
      %v4212 = vpow.pop %v4211
      %v4213 = vmul.f32 %v4104, 1.442695
      %v4214 = vpow.pop %v4213
      %v4215 = vmul.f32 %v4105, 1.442695
      %v4216 = vpow.pop %v4215
      %v4217 = vmul.f32 %v4106, 1.442695
      %v4218 = vpow.pop %v4217
      %v4219 = vmul.f32 %v4107, 1.442695
      %v4220 = vpow.pop %v4219
      %v4221 = vmul.f32 %v4108, 1.442695
      %v4222 = vpow.pop %v4221
      %v4223 = vmul.f32 %v4109, 1.442695
      %v4224 = vpow.pop %v4223
      %v4225 = vmul.f32 %v4110, 1.442695
      %v4226 = vpow.pop %v4225
      %v4227 = vmul.f32 %v4111, 1.442695
      %v4228 = vpow.pop %v4227
      %v4229 = vmul.f32 %v4112, 1.442695
      %v4230 = vpow.pop %v4229
      %v4231 = vmul.f32 %v4113, 1.442695
      %v4232 = vpow.pop %v4231
      %v4233 = vmul.f32 %v4114, 1.442695
      %v4234 = vpow.pop %v4233
      %v4235 = vmul.f32 %v4115, 1.442695
      %v4236 = vpow.pop %v4235
      %v4237 = vmul.f32 %v4116, 1.442695
      %v4238 = vpow.pop %v4237
      %v4239 = vmul.f32 %v4117, 1.442695
      %v4240 = vpow.pop %v4239
      %v4241 = vmul.f32 %v4118, 1.442695
      %v4242 = vpow.pop %v4241
      %v4243 = vmul.f32 %v4119, 1.442695
      %v4244 = vpow.pop %v4243
      %v4245 = vmul.f32 %v4120, 1.442695
      %v4246 = vpow.pop %v4245
      %v4247 = vmul.f32 %v4121, 1.442695
      %v4248 = vpow.pop %v4247
      %v4249 = vmul.f32 %v4122, 1.442695
      %v4250 = vpow.pop %v4249
      %v4251 = vadd.f32 %v4124, %v4126
      %4252 = vadd.xlane.f32.xlu0 %v4251
      %v4253 = vpop.xlane.xlu0 %4252
      %v4254 = vadd.f32 %v4128, %v4130
      %4255 = vadd.xlane.f32.xlu0 %v4254
      %v4256 = vpop.xlane.xlu0 %4255
      %v4257 = vadd.f32 %v4132, %v4134
      %4258 = vadd.xlane.f32.xlu0 %v4257
      %v4259 = vpop.xlane.xlu0 %4258
      %v4260 = vadd.f32 %v4136, %v4138
      %4261 = vadd.xlane.f32.xlu0 %v4260
      %v4262 = vpop.xlane.xlu0 %4261
      %v4263 = vadd.f32 %v4140, %v4142
      %4264 = vadd.xlane.f32.xlu0 %v4263
      %v4265 = vpop.xlane.xlu0 %4264
      %v4266 = vadd.f32 %v4144, %v4146
      %4267 = vadd.xlane.f32.xlu0 %v4266
      %v4268 = vpop.xlane.xlu0 %4267
      %v4269 = vadd.f32 %v4148, %v4150
      %4270 = vadd.xlane.f32.xlu0 %v4269
      %v4271 = vpop.xlane.xlu0 %4270
      %v4272 = vadd.f32 %v4152, %v4154
      %4273 = vadd.xlane.f32.xlu0 %v4272
      %v4274 = vpop.xlane.xlu0 %4273
      %v4275 = vadd.f32 %v4156, %v4158
      %4276 = vadd.xlane.f32.xlu0 %v4275
      %v4277 = vpop.xlane.xlu0 %4276
      %v4278 = vadd.f32 %v4160, %v4162
      %4279 = vadd.xlane.f32.xlu0 %v4278
      %v4280 = vpop.xlane.xlu0 %4279
      %v4281 = vadd.f32 %v4164, %v4166
      %4282 = vadd.xlane.f32.xlu0 %v4281
      %v4283 = vpop.xlane.xlu0 %4282
      %v4284 = vadd.f32 %v4168, %v4170
      %4285 = vadd.xlane.f32.xlu0 %v4284
      %v4286 = vpop.xlane.xlu0 %4285
      %v4287 = vadd.f32 %v4172, %v4174
      %4288 = vadd.xlane.f32.xlu0 %v4287
      %v4289 = vpop.xlane.xlu0 %4288
      %v4290 = vadd.f32 %v4176, %v4178
      %4291 = vadd.xlane.f32.xlu0 %v4290
      %v4292 = vpop.xlane.xlu0 %4291
      %v4293 = vadd.f32 %v4180, %v4182
      %4294 = vadd.xlane.f32.xlu0 %v4293
      %v4295 = vpop.xlane.xlu0 %4294
      %v4296 = vadd.f32 %v4184, %v4186
      %4297 = vadd.xlane.f32.xlu0 %v4296
      %v4298 = vpop.xlane.xlu0 %4297
      %v4299 = vadd.f32 %v4188, %v4190
      %4300 = vadd.xlane.f32.xlu0 %v4299
      %v4301 = vpop.xlane.xlu0 %4300
      %v4302 = vadd.f32 %v4192, %v4194
      %4303 = vadd.xlane.f32.xlu0 %v4302
      %v4304 = vpop.xlane.xlu0 %4303
      %v4305 = vadd.f32 %v4196, %v4198
      %4306 = vadd.xlane.f32.xlu0 %v4305
      %v4307 = vpop.xlane.xlu0 %4306
      %v4308 = vadd.f32 %v4200, %v4202
      %4309 = vadd.xlane.f32.xlu0 %v4308
      %v4310 = vpop.xlane.xlu0 %4309
      %v4311 = vadd.f32 %v4204, %v4206
      %4312 = vadd.xlane.f32.xlu0 %v4311
      %v4313 = vpop.xlane.xlu0 %4312
      %v4314 = vadd.f32 %v4208, %v4210
      %4315 = vadd.xlane.f32.xlu0 %v4314
      %v4316 = vpop.xlane.xlu0 %4315
      %v4317 = vadd.f32 %v4212, %v4214
      %4318 = vadd.xlane.f32.xlu0 %v4317
      %v4319 = vpop.xlane.xlu0 %4318
      %v4320 = vadd.f32 %v4216, %v4218
      %4321 = vadd.xlane.f32.xlu0 %v4320
      %v4322 = vpop.xlane.xlu0 %4321
      %v4323 = vadd.f32 %v4220, %v4222
      %4324 = vadd.xlane.f32.xlu0 %v4323
      %v4325 = vpop.xlane.xlu0 %4324
      %v4326 = vadd.f32 %v4224, %v4226
      %4327 = vadd.xlane.f32.xlu0 %v4326
      %v4328 = vpop.xlane.xlu0 %4327
      %v4329 = vadd.f32 %v4228, %v4230
      %4330 = vadd.xlane.f32.xlu0 %v4329
      %v4331 = vpop.xlane.xlu0 %4330
      %v4332 = vadd.f32 %v4232, %v4234
      %4333 = vadd.xlane.f32.xlu0 %v4332
      %v4334 = vpop.xlane.xlu0 %4333
      %v4335 = vadd.f32 %v4236, %v4238
      %4336 = vadd.xlane.f32.xlu0 %v4335
      %v4337 = vpop.xlane.xlu0 %4336
      %v4338 = vadd.f32 %v4240, %v4242
      %4339 = vadd.xlane.f32.xlu0 %v4338
      %v4340 = vpop.xlane.xlu0 %4339
      %v4341 = vadd.f32 %v4244, %v4246
      %4342 = vadd.xlane.f32.xlu0 %v4341
      %v4343 = vpop.xlane.xlu0 %4342
      %v4344 = vadd.f32 %v4248, %v4250
      %4345 = vadd.xlane.f32.xlu0 %v4344
      %v4346 = vpop.xlane.xlu0 %4345
      %v4347 = vrcp.pop %v4253
      %v4348 = vmul.f32 %v4253, %v4347
      %v4349 = vsub.f32 1.0, %v4348
      %v4350 = vmul.f32 %v4347, %v4349
      %v4351 = vadd.f32 %v4347, %v4350
      %vm4352 = vweird.f32 %v4253
      %vm4353 = vweird.f32 %v4347
      %vm4354 = vmor %vm4352, %vm4353
      %v4355 = vsel %vm4354, %v4347, %v4351
      %v4356 = vand.u32 2147483647, %v4253
      %vm4357 = vcmp.eq.f32.partialorder %v4356, 8.507059e+37
      %v4358 = vand.u32 %v4253, 2147483648
      %v4359 = vor.u32 1.1754944e-38, %v4358
      %v4360 = vsel %vm4357, %v4359, %v4355
      %v4361 = vrcp.pop %v4256
      %v4362 = vmul.f32 %v4256, %v4361
      %v4363 = vsub.f32 1.0, %v4362
      %v4364 = vmul.f32 %v4361, %v4363
      %v4365 = vadd.f32 %v4361, %v4364
      %vm4366 = vweird.f32 %v4256
      %vm4367 = vweird.f32 %v4361
      %vm4368 = vmor %vm4366, %vm4367
      %v4369 = vsel %vm4368, %v4361, %v4365
      %v4370 = vand.u32 2147483647, %v4256
      %vm4371 = vcmp.eq.f32.partialorder %v4370, 8.507059e+37
      %v4372 = vand.u32 %v4256, 2147483648
      %v4373 = vor.u32 1.1754944e-38, %v4372
      %v4374 = vsel %vm4371, %v4373, %v4369
      %v4375 = vrcp.pop %v4259
      %v4376 = vmul.f32 %v4259, %v4375
      %v4377 = vsub.f32 1.0, %v4376
      %v4378 = vmul.f32 %v4375, %v4377
      %v4379 = vadd.f32 %v4375, %v4378
      %vm4380 = vweird.f32 %v4259
      %vm4381 = vweird.f32 %v4375
      %vm4382 = vmor %vm4380, %vm4381
      %v4383 = vsel %vm4382, %v4375, %v4379
      %v4384 = vand.u32 2147483647, %v4259
      %vm4385 = vcmp.eq.f32.partialorder %v4384, 8.507059e+37
      %v4386 = vand.u32 %v4259, 2147483648
      %v4387 = vor.u32 1.1754944e-38, %v4386
      %v4388 = vsel %vm4385, %v4387, %v4383
      %v4389 = vrcp.pop %v4262
      %v4390 = vmul.f32 %v4262, %v4389
      %v4391 = vsub.f32 1.0, %v4390
      %v4392 = vmul.f32 %v4389, %v4391
      %v4393 = vadd.f32 %v4389, %v4392
      %vm4394 = vweird.f32 %v4262
      %vm4395 = vweird.f32 %v4389
      %vm4396 = vmor %vm4394, %vm4395
      %v4397 = vsel %vm4396, %v4389, %v4393
      %v4398 = vand.u32 2147483647, %v4262
      %vm4399 = vcmp.eq.f32.partialorder %v4398, 8.507059e+37
      %v4400 = vand.u32 %v4262, 2147483648
      %v4401 = vor.u32 1.1754944e-38, %v4400
      %v4402 = vsel %vm4399, %v4401, %v4397
      %v4403 = vrcp.pop %v4265
      %v4404 = vmul.f32 %v4265, %v4403
      %v4405 = vsub.f32 1.0, %v4404
      %v4406 = vmul.f32 %v4403, %v4405
      %v4407 = vadd.f32 %v4403, %v4406
      %vm4408 = vweird.f32 %v4265
      %vm4409 = vweird.f32 %v4403
      %vm4410 = vmor %vm4408, %vm4409
      %v4411 = vsel %vm4410, %v4403, %v4407
      %v4412 = vand.u32 2147483647, %v4265
      %vm4413 = vcmp.eq.f32.partialorder %v4412, 8.507059e+37
      %v4414 = vand.u32 %v4265, 2147483648
      %v4415 = vor.u32 1.1754944e-38, %v4414
      %v4416 = vsel %vm4413, %v4415, %v4411
      %v4417 = vrcp.pop %v4268
      %v4418 = vmul.f32 %v4268, %v4417
      %v4419 = vsub.f32 1.0, %v4418
      %v4420 = vmul.f32 %v4417, %v4419
      %v4421 = vadd.f32 %v4417, %v4420
      %vm4422 = vweird.f32 %v4268
      %vm4423 = vweird.f32 %v4417
      %vm4424 = vmor %vm4422, %vm4423
      %v4425 = vsel %vm4424, %v4417, %v4421
      %v4426 = vand.u32 2147483647, %v4268
      %vm4427 = vcmp.eq.f32.partialorder %v4426, 8.507059e+37
      %v4428 = vand.u32 %v4268, 2147483648
      %v4429 = vor.u32 1.1754944e-38, %v4428
      %v4430 = vsel %vm4427, %v4429, %v4425
      %v4431 = vrcp.pop %v4271
      %v4432 = vmul.f32 %v4271, %v4431
      %v4433 = vsub.f32 1.0, %v4432
      %v4434 = vmul.f32 %v4431, %v4433
      %v4435 = vadd.f32 %v4431, %v4434
      %vm4436 = vweird.f32 %v4271
      %vm4437 = vweird.f32 %v4431
      %vm4438 = vmor %vm4436, %vm4437
      %v4439 = vsel %vm4438, %v4431, %v4435
      %v4440 = vand.u32 2147483647, %v4271
      %vm4441 = vcmp.eq.f32.partialorder %v4440, 8.507059e+37
      %v4442 = vand.u32 %v4271, 2147483648
      %v4443 = vor.u32 1.1754944e-38, %v4442
      %v4444 = vsel %vm4441, %v4443, %v4439
      %v4445 = vrcp.pop %v4274
      %v4446 = vmul.f32 %v4274, %v4445
      %v4447 = vsub.f32 1.0, %v4446
      %v4448 = vmul.f32 %v4445, %v4447
      %v4449 = vadd.f32 %v4445, %v4448
      %vm4450 = vweird.f32 %v4274
      %vm4451 = vweird.f32 %v4445
      %vm4452 = vmor %vm4450, %vm4451
      %v4453 = vsel %vm4452, %v4445, %v4449
      %v4454 = vand.u32 2147483647, %v4274
      %vm4455 = vcmp.eq.f32.partialorder %v4454, 8.507059e+37
      %v4456 = vand.u32 %v4274, 2147483648
      %v4457 = vor.u32 1.1754944e-38, %v4456
      %v4458 = vsel %vm4455, %v4457, %v4453
      %v4459 = vrcp.pop %v4277
      %v4460 = vmul.f32 %v4277, %v4459
      %v4461 = vsub.f32 1.0, %v4460
      %v4462 = vmul.f32 %v4459, %v4461
      %v4463 = vadd.f32 %v4459, %v4462
      %vm4464 = vweird.f32 %v4277
      %vm4465 = vweird.f32 %v4459
      %vm4466 = vmor %vm4464, %vm4465
      %v4467 = vsel %vm4466, %v4459, %v4463
      %v4468 = vand.u32 2147483647, %v4277
      %vm4469 = vcmp.eq.f32.partialorder %v4468, 8.507059e+37
      %v4470 = vand.u32 %v4277, 2147483648
      %v4471 = vor.u32 1.1754944e-38, %v4470
      %v4472 = vsel %vm4469, %v4471, %v4467
      %v4473 = vrcp.pop %v4280
      %v4474 = vmul.f32 %v4280, %v4473
      %v4475 = vsub.f32 1.0, %v4474
      %v4476 = vmul.f32 %v4473, %v4475
      %v4477 = vadd.f32 %v4473, %v4476
      %vm4478 = vweird.f32 %v4280
      %vm4479 = vweird.f32 %v4473
      %vm4480 = vmor %vm4478, %vm4479
      %v4481 = vsel %vm4480, %v4473, %v4477
      %v4482 = vand.u32 2147483647, %v4280
      %vm4483 = vcmp.eq.f32.partialorder %v4482, 8.507059e+37
      %v4484 = vand.u32 %v4280, 2147483648
      %v4485 = vor.u32 1.1754944e-38, %v4484
      %v4486 = vsel %vm4483, %v4485, %v4481
      %v4487 = vrcp.pop %v4283
      %v4488 = vmul.f32 %v4283, %v4487
      %v4489 = vsub.f32 1.0, %v4488
      %v4490 = vmul.f32 %v4487, %v4489
      %v4491 = vadd.f32 %v4487, %v4490
      %vm4492 = vweird.f32 %v4283
      %vm4493 = vweird.f32 %v4487
      %vm4494 = vmor %vm4492, %vm4493
      %v4495 = vsel %vm4494, %v4487, %v4491
      %v4496 = vand.u32 2147483647, %v4283
      %vm4497 = vcmp.eq.f32.partialorder %v4496, 8.507059e+37
      %v4498 = vand.u32 %v4283, 2147483648
      %v4499 = vor.u32 1.1754944e-38, %v4498
      %v4500 = vsel %vm4497, %v4499, %v4495
      %v4501 = vrcp.pop %v4286
      %v4502 = vmul.f32 %v4286, %v4501
      %v4503 = vsub.f32 1.0, %v4502
      %v4504 = vmul.f32 %v4501, %v4503
      %v4505 = vadd.f32 %v4501, %v4504
      %vm4506 = vweird.f32 %v4286
      %vm4507 = vweird.f32 %v4501
      %vm4508 = vmor %vm4506, %vm4507
      %v4509 = vsel %vm4508, %v4501, %v4505
      %v4510 = vand.u32 2147483647, %v4286
      %vm4511 = vcmp.eq.f32.partialorder %v4510, 8.507059e+37
      %v4512 = vand.u32 %v4286, 2147483648
      %v4513 = vor.u32 1.1754944e-38, %v4512
      %v4514 = vsel %vm4511, %v4513, %v4509
      %v4515 = vrcp.pop %v4289
      %v4516 = vmul.f32 %v4289, %v4515
      %v4517 = vsub.f32 1.0, %v4516
      %v4518 = vmul.f32 %v4515, %v4517
      %v4519 = vadd.f32 %v4515, %v4518
      %vm4520 = vweird.f32 %v4289
      %vm4521 = vweird.f32 %v4515
      %vm4522 = vmor %vm4520, %vm4521
      %v4523 = vsel %vm4522, %v4515, %v4519
      %v4524 = vand.u32 2147483647, %v4289
      %vm4525 = vcmp.eq.f32.partialorder %v4524, 8.507059e+37
      %v4526 = vand.u32 %v4289, 2147483648
      %v4527 = vor.u32 1.1754944e-38, %v4526
      %v4528 = vsel %vm4525, %v4527, %v4523
      %v4529 = vrcp.pop %v4292
      %v4530 = vmul.f32 %v4292, %v4529
      %v4531 = vsub.f32 1.0, %v4530
      %v4532 = vmul.f32 %v4529, %v4531
      %v4533 = vadd.f32 %v4529, %v4532
      %vm4534 = vweird.f32 %v4292
      %vm4535 = vweird.f32 %v4529
      %vm4536 = vmor %vm4534, %vm4535
      %v4537 = vsel %vm4536, %v4529, %v4533
      %v4538 = vand.u32 2147483647, %v4292
      %vm4539 = vcmp.eq.f32.partialorder %v4538, 8.507059e+37
      %v4540 = vand.u32 %v4292, 2147483648
      %v4541 = vor.u32 1.1754944e-38, %v4540
      %v4542 = vsel %vm4539, %v4541, %v4537
      %v4543 = vrcp.pop %v4295
      %v4544 = vmul.f32 %v4295, %v4543
      %v4545 = vsub.f32 1.0, %v4544
      %v4546 = vmul.f32 %v4543, %v4545
      %v4547 = vadd.f32 %v4543, %v4546
      %vm4548 = vweird.f32 %v4295
      %vm4549 = vweird.f32 %v4543
      %vm4550 = vmor %vm4548, %vm4549
      %v4551 = vsel %vm4550, %v4543, %v4547
      %v4552 = vand.u32 2147483647, %v4295
      %vm4553 = vcmp.eq.f32.partialorder %v4552, 8.507059e+37
      %v4554 = vand.u32 %v4295, 2147483648
      %v4555 = vor.u32 1.1754944e-38, %v4554
      %v4556 = vsel %vm4553, %v4555, %v4551
      %v4557 = vrcp.pop %v4298
      %v4558 = vmul.f32 %v4298, %v4557
      %v4559 = vsub.f32 1.0, %v4558
      %v4560 = vmul.f32 %v4557, %v4559
      %v4561 = vadd.f32 %v4557, %v4560
      %vm4562 = vweird.f32 %v4298
      %vm4563 = vweird.f32 %v4557
      %vm4564 = vmor %vm4562, %vm4563
      %v4565 = vsel %vm4564, %v4557, %v4561
      %v4566 = vand.u32 2147483647, %v4298
      %vm4567 = vcmp.eq.f32.partialorder %v4566, 8.507059e+37
      %v4568 = vand.u32 %v4298, 2147483648
      %v4569 = vor.u32 1.1754944e-38, %v4568
      %v4570 = vsel %vm4567, %v4569, %v4565
      %v4571 = vrcp.pop %v4301
      %v4572 = vmul.f32 %v4301, %v4571
      %v4573 = vsub.f32 1.0, %v4572
      %v4574 = vmul.f32 %v4571, %v4573
      %v4575 = vadd.f32 %v4571, %v4574
      %vm4576 = vweird.f32 %v4301
      %vm4577 = vweird.f32 %v4571
      %vm4578 = vmor %vm4576, %vm4577
      %v4579 = vsel %vm4578, %v4571, %v4575
      %v4580 = vand.u32 2147483647, %v4301
      %vm4581 = vcmp.eq.f32.partialorder %v4580, 8.507059e+37
      %v4582 = vand.u32 %v4301, 2147483648
      %v4583 = vor.u32 1.1754944e-38, %v4582
      %v4584 = vsel %vm4581, %v4583, %v4579
      %v4585 = vrcp.pop %v4304
      %v4586 = vmul.f32 %v4304, %v4585
      %v4587 = vsub.f32 1.0, %v4586
      %v4588 = vmul.f32 %v4585, %v4587
      %v4589 = vadd.f32 %v4585, %v4588
      %vm4590 = vweird.f32 %v4304
      %vm4591 = vweird.f32 %v4585
      %vm4592 = vmor %vm4590, %vm4591
      %v4593 = vsel %vm4592, %v4585, %v4589
      %v4594 = vand.u32 2147483647, %v4304
      %vm4595 = vcmp.eq.f32.partialorder %v4594, 8.507059e+37
      %v4596 = vand.u32 %v4304, 2147483648
      %v4597 = vor.u32 1.1754944e-38, %v4596
      %v4598 = vsel %vm4595, %v4597, %v4593
      %v4599 = vrcp.pop %v4307
      %v4600 = vmul.f32 %v4307, %v4599
      %v4601 = vsub.f32 1.0, %v4600
      %v4602 = vmul.f32 %v4599, %v4601
      %v4603 = vadd.f32 %v4599, %v4602
      %vm4604 = vweird.f32 %v4307
      %vm4605 = vweird.f32 %v4599
      %vm4606 = vmor %vm4604, %vm4605
      %v4607 = vsel %vm4606, %v4599, %v4603
      %v4608 = vand.u32 2147483647, %v4307
      %vm4609 = vcmp.eq.f32.partialorder %v4608, 8.507059e+37
      %v4610 = vand.u32 %v4307, 2147483648
      %v4611 = vor.u32 1.1754944e-38, %v4610
      %v4612 = vsel %vm4609, %v4611, %v4607
      %v4613 = vrcp.pop %v4310
      %v4614 = vmul.f32 %v4310, %v4613
      %v4615 = vsub.f32 1.0, %v4614
      %v4616 = vmul.f32 %v4613, %v4615
      %v4617 = vadd.f32 %v4613, %v4616
      %vm4618 = vweird.f32 %v4310
      %vm4619 = vweird.f32 %v4613
      %vm4620 = vmor %vm4618, %vm4619
      %v4621 = vsel %vm4620, %v4613, %v4617
      %v4622 = vand.u32 2147483647, %v4310
      %vm4623 = vcmp.eq.f32.partialorder %v4622, 8.507059e+37
      %v4624 = vand.u32 %v4310, 2147483648
      %v4625 = vor.u32 1.1754944e-38, %v4624
      %v4626 = vsel %vm4623, %v4625, %v4621
      %v4627 = vrcp.pop %v4313
      %v4628 = vmul.f32 %v4313, %v4627
      %v4629 = vsub.f32 1.0, %v4628
      %v4630 = vmul.f32 %v4627, %v4629
      %v4631 = vadd.f32 %v4627, %v4630
      %vm4632 = vweird.f32 %v4313
      %vm4633 = vweird.f32 %v4627
      %vm4634 = vmor %vm4632, %vm4633
      %v4635 = vsel %vm4634, %v4627, %v4631
      %v4636 = vand.u32 2147483647, %v4313
      %vm4637 = vcmp.eq.f32.partialorder %v4636, 8.507059e+37
      %v4638 = vand.u32 %v4313, 2147483648
      %v4639 = vor.u32 1.1754944e-38, %v4638
      %v4640 = vsel %vm4637, %v4639, %v4635
      %v4641 = vrcp.pop %v4316
      %v4642 = vmul.f32 %v4316, %v4641
      %v4643 = vsub.f32 1.0, %v4642
      %v4644 = vmul.f32 %v4641, %v4643
      %v4645 = vadd.f32 %v4641, %v4644
      %vm4646 = vweird.f32 %v4316
      %vm4647 = vweird.f32 %v4641
      %vm4648 = vmor %vm4646, %vm4647
      %v4649 = vsel %vm4648, %v4641, %v4645
      %v4650 = vand.u32 2147483647, %v4316
      %vm4651 = vcmp.eq.f32.partialorder %v4650, 8.507059e+37
      %v4652 = vand.u32 %v4316, 2147483648
      %v4653 = vor.u32 1.1754944e-38, %v4652
      %v4654 = vsel %vm4651, %v4653, %v4649
      %v4655 = vrcp.pop %v4319
      %v4656 = vmul.f32 %v4319, %v4655
      %v4657 = vsub.f32 1.0, %v4656
      %v4658 = vmul.f32 %v4655, %v4657
      %v4659 = vadd.f32 %v4655, %v4658
      %vm4660 = vweird.f32 %v4319
      %vm4661 = vweird.f32 %v4655
      %vm4662 = vmor %vm4660, %vm4661
      %v4663 = vsel %vm4662, %v4655, %v4659
      %v4664 = vand.u32 2147483647, %v4319
      %vm4665 = vcmp.eq.f32.partialorder %v4664, 8.507059e+37
      %v4666 = vand.u32 %v4319, 2147483648
      %v4667 = vor.u32 1.1754944e-38, %v4666
      %v4668 = vsel %vm4665, %v4667, %v4663
      %v4669 = vrcp.pop %v4322
      %v4670 = vmul.f32 %v4322, %v4669
      %v4671 = vsub.f32 1.0, %v4670
      %v4672 = vmul.f32 %v4669, %v4671
      %v4673 = vadd.f32 %v4669, %v4672
      %vm4674 = vweird.f32 %v4322
      %vm4675 = vweird.f32 %v4669
      %vm4676 = vmor %vm4674, %vm4675
      %v4677 = vsel %vm4676, %v4669, %v4673
      %v4678 = vand.u32 2147483647, %v4322
      %vm4679 = vcmp.eq.f32.partialorder %v4678, 8.507059e+37
      %v4680 = vand.u32 %v4322, 2147483648
      %v4681 = vor.u32 1.1754944e-38, %v4680
      %v4682 = vsel %vm4679, %v4681, %v4677
      %v4683 = vrcp.pop %v4325
      %v4684 = vmul.f32 %v4325, %v4683
      %v4685 = vsub.f32 1.0, %v4684
      %v4686 = vmul.f32 %v4683, %v4685
      %v4687 = vadd.f32 %v4683, %v4686
      %vm4688 = vweird.f32 %v4325
      %vm4689 = vweird.f32 %v4683
      %vm4690 = vmor %vm4688, %vm4689
      %v4691 = vsel %vm4690, %v4683, %v4687
      %v4692 = vand.u32 2147483647, %v4325
      %vm4693 = vcmp.eq.f32.partialorder %v4692, 8.507059e+37
      %v4694 = vand.u32 %v4325, 2147483648
      %v4695 = vor.u32 1.1754944e-38, %v4694
      %v4696 = vsel %vm4693, %v4695, %v4691
      %v4697 = vrcp.pop %v4328
      %v4698 = vmul.f32 %v4328, %v4697
      %v4699 = vsub.f32 1.0, %v4698
      %v4700 = vmul.f32 %v4697, %v4699
      %v4701 = vadd.f32 %v4697, %v4700
      %vm4702 = vweird.f32 %v4328
      %vm4703 = vweird.f32 %v4697
      %vm4704 = vmor %vm4702, %vm4703
      %v4705 = vsel %vm4704, %v4697, %v4701
      %v4706 = vand.u32 2147483647, %v4328
      %vm4707 = vcmp.eq.f32.partialorder %v4706, 8.507059e+37
      %v4708 = vand.u32 %v4328, 2147483648
      %v4709 = vor.u32 1.1754944e-38, %v4708
      %v4710 = vsel %vm4707, %v4709, %v4705
      %v4711 = vrcp.pop %v4331
      %v4712 = vmul.f32 %v4331, %v4711
      %v4713 = vsub.f32 1.0, %v4712
      %v4714 = vmul.f32 %v4711, %v4713
      %v4715 = vadd.f32 %v4711, %v4714
      %vm4716 = vweird.f32 %v4331
      %vm4717 = vweird.f32 %v4711
      %vm4718 = vmor %vm4716, %vm4717
      %v4719 = vsel %vm4718, %v4711, %v4715
      %v4720 = vand.u32 2147483647, %v4331
      %vm4721 = vcmp.eq.f32.partialorder %v4720, 8.507059e+37
      %v4722 = vand.u32 %v4331, 2147483648
      %v4723 = vor.u32 1.1754944e-38, %v4722
      %v4724 = vsel %vm4721, %v4723, %v4719
      %v4725 = vrcp.pop %v4334
      %v4726 = vmul.f32 %v4334, %v4725
      %v4727 = vsub.f32 1.0, %v4726
      %v4728 = vmul.f32 %v4725, %v4727
      %v4729 = vadd.f32 %v4725, %v4728
      %vm4730 = vweird.f32 %v4334
      %vm4731 = vweird.f32 %v4725
      %vm4732 = vmor %vm4730, %vm4731
      %v4733 = vsel %vm4732, %v4725, %v4729
      %v4734 = vand.u32 2147483647, %v4334
      %vm4735 = vcmp.eq.f32.partialorder %v4734, 8.507059e+37
      %v4736 = vand.u32 %v4334, 2147483648
      %v4737 = vor.u32 1.1754944e-38, %v4736
      %v4738 = vsel %vm4735, %v4737, %v4733
      %v4739 = vrcp.pop %v4337
      %v4740 = vmul.f32 %v4337, %v4739
      %v4741 = vsub.f32 1.0, %v4740
      %v4742 = vmul.f32 %v4739, %v4741
      %v4743 = vadd.f32 %v4739, %v4742
      %vm4744 = vweird.f32 %v4337
      %vm4745 = vweird.f32 %v4739
      %vm4746 = vmor %vm4744, %vm4745
      %v4747 = vsel %vm4746, %v4739, %v4743
      %v4748 = vand.u32 2147483647, %v4337
      %vm4749 = vcmp.eq.f32.partialorder %v4748, 8.507059e+37
      %v4750 = vand.u32 %v4337, 2147483648
      %v4751 = vor.u32 1.1754944e-38, %v4750
      %v4752 = vsel %vm4749, %v4751, %v4747
      %v4753 = vrcp.pop %v4340
      %v4754 = vmul.f32 %v4340, %v4753
      %v4755 = vsub.f32 1.0, %v4754
      %v4756 = vmul.f32 %v4753, %v4755
      %v4757 = vadd.f32 %v4753, %v4756
      %vm4758 = vweird.f32 %v4340
      %vm4759 = vweird.f32 %v4753
      %vm4760 = vmor %vm4758, %vm4759
      %v4761 = vsel %vm4760, %v4753, %v4757
      %v4762 = vand.u32 2147483647, %v4340
      %vm4763 = vcmp.eq.f32.partialorder %v4762, 8.507059e+37
      %v4764 = vand.u32 %v4340, 2147483648
      %v4765 = vor.u32 1.1754944e-38, %v4764
      %v4766 = vsel %vm4763, %v4765, %v4761
      %v4767 = vrcp.pop %v4343
      %v4768 = vmul.f32 %v4343, %v4767
      %v4769 = vsub.f32 1.0, %v4768
      %v4770 = vmul.f32 %v4767, %v4769
      %v4771 = vadd.f32 %v4767, %v4770
      %vm4772 = vweird.f32 %v4343
      %vm4773 = vweird.f32 %v4767
      %vm4774 = vmor %vm4772, %vm4773
      %v4775 = vsel %vm4774, %v4767, %v4771
      %v4776 = vand.u32 2147483647, %v4343
      %vm4777 = vcmp.eq.f32.partialorder %v4776, 8.507059e+37
      %v4778 = vand.u32 %v4343, 2147483648
      %v4779 = vor.u32 1.1754944e-38, %v4778
      %v4780 = vsel %vm4777, %v4779, %v4775
      %v4781 = vrcp.pop %v4346
      %v4782 = vmul.f32 %v4346, %v4781
      %v4783 = vsub.f32 1.0, %v4782
      %v4784 = vmul.f32 %v4781, %v4783
      %v4785 = vadd.f32 %v4781, %v4784
      %vm4786 = vweird.f32 %v4346
      %vm4787 = vweird.f32 %v4781
      %vm4788 = vmor %vm4786, %vm4787
      %v4789 = vsel %vm4788, %v4781, %v4785
      %v4790 = vand.u32 2147483647, %v4346
      %vm4791 = vcmp.eq.f32.partialorder %v4790, 8.507059e+37
      %v4792 = vand.u32 %v4346, 2147483648
      %v4793 = vor.u32 1.1754944e-38, %v4792
      %v4794 = vsel %vm4791, %v4793, %v4789
      %v4795 = vmul.f32 %v4124, %v4360
      %v4796 = vmul.f32 %v4126, %v4360
      %v4797 = vmul.f32 %v4128, %v4374
      %v4798 = vmul.f32 %v4130, %v4374
      %v4799 = vmul.f32 %v4132, %v4388
      %v4800 = vmul.f32 %v4134, %v4388
      %v4801 = vmul.f32 %v4136, %v4402
      %v4802 = vmul.f32 %v4138, %v4402
      %v4803 = vmul.f32 %v4140, %v4416
      %v4804 = vmul.f32 %v4142, %v4416
      %v4805 = vmul.f32 %v4144, %v4430
      %v4806 = vmul.f32 %v4146, %v4430
      %v4807 = vmul.f32 %v4148, %v4444
      %v4808 = vmul.f32 %v4150, %v4444
      %v4809 = vmul.f32 %v4152, %v4458
      %v4810 = vmul.f32 %v4154, %v4458
      %v4811 = vmul.f32 %v4156, %v4472
      %v4812 = vmul.f32 %v4158, %v4472
      %v4813 = vmul.f32 %v4160, %v4486
      %v4814 = vmul.f32 %v4162, %v4486
      %v4815 = vmul.f32 %v4164, %v4500
      %v4816 = vmul.f32 %v4166, %v4500
      %v4817 = vmul.f32 %v4168, %v4514
      %v4818 = vmul.f32 %v4170, %v4514
      %v4819 = vmul.f32 %v4172, %v4528
      %v4820 = vmul.f32 %v4174, %v4528
      %v4821 = vmul.f32 %v4176, %v4542
      %v4822 = vmul.f32 %v4178, %v4542
      %v4823 = vmul.f32 %v4180, %v4556
      %v4824 = vmul.f32 %v4182, %v4556
      %v4825 = vmul.f32 %v4184, %v4570
      %v4826 = vmul.f32 %v4186, %v4570
      %v4827 = vmul.f32 %v4188, %v4584
      %v4828 = vmul.f32 %v4190, %v4584
      %v4829 = vmul.f32 %v4192, %v4598
      %v4830 = vmul.f32 %v4194, %v4598
      %v4831 = vmul.f32 %v4196, %v4612
      %v4832 = vmul.f32 %v4198, %v4612
      %v4833 = vmul.f32 %v4200, %v4626
      %v4834 = vmul.f32 %v4202, %v4626
      %v4835 = vmul.f32 %v4204, %v4640
      %v4836 = vmul.f32 %v4206, %v4640
      %v4837 = vmul.f32 %v4208, %v4654
      %v4838 = vmul.f32 %v4210, %v4654
      %v4839 = vmul.f32 %v4212, %v4668
      %v4840 = vmul.f32 %v4214, %v4668
      %v4841 = vmul.f32 %v4216, %v4682
      %v4842 = vmul.f32 %v4218, %v4682
      %v4843 = vmul.f32 %v4220, %v4696
      %v4844 = vmul.f32 %v4222, %v4696
      %v4845 = vmul.f32 %v4224, %v4710
      %v4846 = vmul.f32 %v4226, %v4710
      %v4847 = vmul.f32 %v4228, %v4724
      %v4848 = vmul.f32 %v4230, %v4724
      %v4849 = vmul.f32 %v4232, %v4738
      %v4850 = vmul.f32 %v4234, %v4738
      %v4851 = vmul.f32 %v4236, %v4752
      %v4852 = vmul.f32 %v4238, %v4752
      %v4853 = vmul.f32 %v4240, %v4766
      %v4854 = vmul.f32 %v4242, %v4766
      %v4855 = vmul.f32 %v4244, %v4780
      %v4856 = vmul.f32 %v4246, %v4780
      %v4857 = vmul.f32 %v4248, %v4794
      %v4858 = vmul.f32 %v4250, %v4794
      %4859 = vmatpush.xpose.msra.mxu0 %v4825
      %4860 = vmatpush.xpose.msra.mxu0 %v4823
      %4861 = vmatpush.xpose.msra.mxu0 %v4821
      %4862 = vmatpush.xpose.msra.mxu0 %v4819
      %4863 = vmatpush.xpose.msra.mxu0 %v4817
      %4864 = vmatpush.xpose.msra.mxu0 %v4815
      %4865 = vmatpush.xpose.msra.mxu0 %v4813
      %4866 = vmatpush.xpose.msra.mxu0 %v4811
      %4867 = vmatpush.xpose.msra.mxu0 %v4809
      %4868 = vmatpush.xpose.msra.mxu0 %v4807
      %4869 = vmatpush.xpose.msra.mxu0 %v4805
      %4870 = vmatpush.xpose.msra.mxu0 %v4803
      %4871 = vmatpush.xpose.msra.mxu0 %v4801
      %4872 = vmatpush.xpose.msra.mxu0 %v4799
      %4873 = vmatpush.xpose.msra.mxu0 %v4797
      %4874 = vmatpush.xpose.msra.mxu0 %v4795
      %4875 = vmatmul.f32.gmra.mxu0 %v650
      %v4876 = vpop.f32.mrf.mxu0
      %v4877 = vadd.f32 0.0, %v4876
      %4878 = vdwg.mxu0
      %4879 = vmatpush.xpose.msra.mxu0 %v4826
      %4880 = vmatpush.xpose.msra.mxu0 %v4824
      %4881 = vmatpush.xpose.msra.mxu0 %v4822
      %4882 = vmatpush.xpose.msra.mxu0 %v4820
      %4883 = vmatpush.xpose.msra.mxu0 %v4818
      %4884 = vmatpush.xpose.msra.mxu0 %v4816
      %4885 = vmatpush.xpose.msra.mxu0 %v4814
      %4886 = vmatpush.xpose.msra.mxu0 %v4812
      %4887 = vmatpush.xpose.msra.mxu0 %v4810
      %4888 = vmatpush.xpose.msra.mxu0 %v4808
      %4889 = vmatpush.xpose.msra.mxu0 %v4806
      %4890 = vmatpush.xpose.msra.mxu0 %v4804
      %4891 = vmatpush.xpose.msra.mxu0 %v4802
      %4892 = vmatpush.xpose.msra.mxu0 %v4800
      %4893 = vmatpush.xpose.msra.mxu0 %v4798
      %4894 = vmatpush.xpose.msra.mxu0 %v4796
      %4895 = vmatmul.f32.gmra.mxu0 %v703
      %v4896 = vpop.f32.mrf.mxu0
      %v4897 = vadd.f32 %v4877, %v4896
      %4898 = vdwg.mxu0
      %4899 = vmatpush.xpose.msra.mxu0 %v4857
      %4900 = vmatpush.xpose.msra.mxu0 %v4855
      %4901 = vmatpush.xpose.msra.mxu0 %v4853
      %4902 = vmatpush.xpose.msra.mxu0 %v4851
      %4903 = vmatpush.xpose.msra.mxu0 %v4849
      %4904 = vmatpush.xpose.msra.mxu0 %v4847
      %4905 = vmatpush.xpose.msra.mxu0 %v4845
      %4906 = vmatpush.xpose.msra.mxu0 %v4843
      %4907 = vmatpush.xpose.msra.mxu0 %v4841
      %4908 = vmatpush.xpose.msra.mxu0 %v4839
      %4909 = vmatpush.xpose.msra.mxu0 %v4837
      %4910 = vmatpush.xpose.msra.mxu0 %v4835
      %4911 = vmatpush.xpose.msra.mxu0 %v4833
      %4912 = vmatpush.xpose.msra.mxu0 %v4831
      %4913 = vmatpush.xpose.msra.mxu0 %v4829
      %4914 = vmatpush.xpose.msra.mxu0 %v4827
      %4915 = vmatmul.f32.gmra.mxu0 %v650
      %v4916 = vpop.f32.mrf.mxu0
      %v4917 = vadd.f32 0.0, %v4916
      %4918 = vdwg.mxu0
      %4919 = vmatpush.xpose.msra.mxu0 %v4858
      %4920 = vmatpush.xpose.msra.mxu0 %v4856
      %4921 = vmatpush.xpose.msra.mxu0 %v4854
      %4922 = vmatpush.xpose.msra.mxu0 %v4852
      %4923 = vmatpush.xpose.msra.mxu0 %v4850
      %4924 = vmatpush.xpose.msra.mxu0 %v4848
      %4925 = vmatpush.xpose.msra.mxu0 %v4846
      %4926 = vmatpush.xpose.msra.mxu0 %v4844
      %4927 = vmatpush.xpose.msra.mxu0 %v4842
      %4928 = vmatpush.xpose.msra.mxu0 %v4840
      %4929 = vmatpush.xpose.msra.mxu0 %v4838
      %4930 = vmatpush.xpose.msra.mxu0 %v4836
      %4931 = vmatpush.xpose.msra.mxu0 %v4834
      %4932 = vmatpush.xpose.msra.mxu0 %v4832
      %4933 = vmatpush.xpose.msra.mxu0 %v4830
      %4934 = vmatpush.xpose.msra.mxu0 %v4828
      %4935 = vmatmul.f32.gmra.mxu0 %v703
      %v4936 = vpop.f32.mrf.mxu0
      %v4937 = vadd.f32 %v4917, %v4936
      %4938 = vdwg.mxu0
      %4939 = vrot.lane.b32.xlu0 %v304, 112
      %v4940 = vpop.permute.xlu0 %4939
      %4941 = vrot.lane.b32.xlu0 %v305, 112
      %v4942 = vpop.permute.xlu0 %4941
      %4943 = vrot.lane.b32.xlu0 %v306, 112
      %v4944 = vpop.permute.xlu0 %4943
      %4945 = vrot.lane.b32.xlu0 %v307, 112
      %v4946 = vpop.permute.xlu0 %4945
      %v4947 = vsel %vm772, %v4940, 0
      %v4949 = vsel %vm772, %v4942, 0
      %v4951 = vsel %vm772, %v4944, 0
      %v4953 = vsel %vm772, %v4946, 0
      %4955 = vmatpush.msra.mxu0 0.0
      %4956 = vmatpush.msra.mxu0 0.0
      %4957 = vmatpush.msra.mxu0 0.0
      %4958 = vmatpush.msra.mxu0 0.0
      %4959 = vmatpush.msra.mxu0 0.0
      %4960 = vmatpush.msra.mxu0 0.0
      %4961 = vmatpush.msra.mxu0 0.0
      %4962 = vmatpush.msra.mxu0 0.0
      %4963 = vmatpush.msra.mxu0 0.0
      %4964 = vmatpush.msra.mxu0 0.0
      %4965 = vmatpush.msra.mxu0 0.0
      %4966 = vmatpush.msra.mxu0 0.0
      %4967 = vmatpush.msra.mxu0 0.0
      %4968 = vmatpush.msra.mxu0 0.0
      %4969 = vmatpush.msra.mxu0 0.0
      %4970 = vmatpush.msra.mxu0 %v4897
      %4971 = vmatmul.f32.gmra.mxu0 %v4947
      %v4972 = vpop.f32.mrf.mxu0
      %v4973 = vadd.f32 0.0, %v4972
      %4974 = vmatmul.f32.gmra.mxu0 %v4949
      %v4975 = vpop.f32.mrf.mxu0
      %v4976 = vadd.f32 0.0, %v4975
      %4977 = vmatmul.f32.gmra.mxu0 %v4951
      %v4978 = vpop.f32.mrf.mxu0
      %v4979 = vadd.f32 0.0, %v4978
      %4980 = vmatmul.f32.gmra.mxu0 %v4953
      %v4981 = vpop.f32.mrf.mxu0
      %v4982 = vadd.f32 0.0, %v4981
      %4983 = vdwg.mxu0
      %4984 = vmatpush.msra.mxu0 0.0
      %4985 = vmatpush.msra.mxu0 0.0
      %4986 = vmatpush.msra.mxu0 0.0
      %4987 = vmatpush.msra.mxu0 0.0
      %4988 = vmatpush.msra.mxu0 0.0
      %4989 = vmatpush.msra.mxu0 0.0
      %4990 = vmatpush.msra.mxu0 0.0
      %4991 = vmatpush.msra.mxu0 0.0
      %4992 = vmatpush.msra.mxu0 0.0
      %4993 = vmatpush.msra.mxu0 0.0
      %4994 = vmatpush.msra.mxu0 0.0
      %4995 = vmatpush.msra.mxu0 0.0
      %4996 = vmatpush.msra.mxu0 0.0
      %4997 = vmatpush.msra.mxu0 0.0
      %4998 = vmatpush.msra.mxu0 0.0
      %4999 = vmatpush.msra.mxu0 %v4937
      %5000 = vmatmul.f32.gmra.mxu0 %v4947
      %v5001 = vpop.f32.mrf.mxu0
      %v5002 = vadd.f32 0.0, %v5001
      %5003 = vmatmul.f32.gmra.mxu0 %v4949
      %v5004 = vpop.f32.mrf.mxu0
      %v5005 = vadd.f32 0.0, %v5004
      %5006 = vmatmul.f32.gmra.mxu0 %v4951
      %v5007 = vpop.f32.mrf.mxu0
      %v5008 = vadd.f32 0.0, %v5007
      %5009 = vmatmul.f32.gmra.mxu0 %v4953
      %v5010 = vpop.f32.mrf.mxu0
      %v5011 = vadd.f32 0.0, %v5010
      %5012 = vdwg.mxu0
      %v5013 = vadd.f32 %v3537, %v4973
      %v5014 = vadd.f32 %v3566, %v5002
      %v5015 = vadd.f32 %v3540, %v4976
      %v5016 = vadd.f32 %v3569, %v5005
      %v5017 = vadd.f32 %v3543, %v4979
      %v5018 = vadd.f32 %v3572, %v5008
      %v5019 = vadd.f32 %v3546, %v4982
      %v5020 = vadd.f32 %v3575, %v5011
      %5021 = vxpose.xlu0.b32.start [1/16] %v629, 128
      %5022 = vxpose.xlu0.b32.cont [2/16] 0.0, 128
      %5023 = vxpose.xlu0.b32.cont [3/16] 0.0, 128
      %5024 = vxpose.xlu0.b32.cont [4/16] 0.0, 128
      %5025 = vxpose.xlu0.b32.cont [5/16] 0.0, 128
      %5026 = vxpose.xlu0.b32.cont [6/16] 0.0, 128
      %5027 = vxpose.xlu0.b32.cont [7/16] 0.0, 128
      %5028 = vxpose.xlu0.b32.cont [8/16] 0.0, 128
      %5029 = vxpose.xlu0.b32.cont [9/16] 0.0, 128
      %5030 = vxpose.xlu0.b32.cont [10/16] 0.0, 128
      %5031 = vxpose.xlu0.b32.cont [11/16] 0.0, 128
      %5032 = vxpose.xlu0.b32.cont [12/16] 0.0, 128
      %5033 = vxpose.xlu0.b32.cont [13/16] 0.0, 128
      %5034 = vxpose.xlu0.b32.cont [14/16] 0.0, 128
      %5035 = vxpose.xlu0.b32.cont [15/16] 0.0, 128
      %5036 = vxpose.xlu0.b32.end [16/16] 0.0, 128
      %v5037 = vpop.trf.xlu0
      %v5038 = vpop.trf.xlu0
      %v5039 = vpop.trf.xlu0
      %v5040 = vpop.trf.xlu0
      %v5041 = vpop.trf.xlu0
      %v5042 = vpop.trf.xlu0
      %v5043 = vpop.trf.xlu0
      %v5044 = vpop.trf.xlu0
      %v5045 = vpop.trf.xlu0
      %v5046 = vpop.trf.xlu0
      %v5047 = vpop.trf.xlu0
      %v5048 = vpop.trf.xlu0
      %v5049 = vpop.trf.xlu0
      %v5050 = vpop.trf.xlu0
      %v5051 = vpop.trf.xlu0
      %v5052 = vpop.trf.xlu0
      %5053 = vxpose.xlu0.b32.start [1/16] %v682, 128
      %5054 = vxpose.xlu0.b32.cont [2/16] 0.0, 128
      %5055 = vxpose.xlu0.b32.cont [3/16] 0.0, 128
      %5056 = vxpose.xlu0.b32.cont [4/16] 0.0, 128
      %5057 = vxpose.xlu0.b32.cont [5/16] 0.0, 128
      %5058 = vxpose.xlu0.b32.cont [6/16] 0.0, 128
      %5059 = vxpose.xlu0.b32.cont [7/16] 0.0, 128
      %5060 = vxpose.xlu0.b32.cont [8/16] 0.0, 128
      %5061 = vxpose.xlu0.b32.cont [9/16] 0.0, 128
      %5062 = vxpose.xlu0.b32.cont [10/16] 0.0, 128
      %5063 = vxpose.xlu0.b32.cont [11/16] 0.0, 128
      %5064 = vxpose.xlu0.b32.cont [12/16] 0.0, 128
      %5065 = vxpose.xlu0.b32.cont [13/16] 0.0, 128
      %5066 = vxpose.xlu0.b32.cont [14/16] 0.0, 128
      %5067 = vxpose.xlu0.b32.cont [15/16] 0.0, 128
      %5068 = vxpose.xlu0.b32.end [16/16] 0.0, 128
      %v5069 = vpop.trf.xlu0
      %v5070 = vpop.trf.xlu0
      %v5071 = vpop.trf.xlu0
      %v5072 = vpop.trf.xlu0
      %v5073 = vpop.trf.xlu0
      %v5074 = vpop.trf.xlu0
      %v5075 = vpop.trf.xlu0
      %v5076 = vpop.trf.xlu0
      %v5077 = vpop.trf.xlu0
      %v5078 = vpop.trf.xlu0
      %v5079 = vpop.trf.xlu0
      %v5080 = vpop.trf.xlu0
      %v5081 = vpop.trf.xlu0
      %v5082 = vpop.trf.xlu0
      %v5083 = vpop.trf.xlu0
      %v5084 = vpop.trf.xlu0
      %v5086 = vsel %vm772, %v5037, 0
      %v5089 = vsel %vm772, %v5038, 0
      %v5092 = vsel %vm772, %v5039, 0
      %v5095 = vsel %vm772, %v5040, 0
      %v5098 = vsel %vm772, %v5041, 0
      %v5101 = vsel %vm772, %v5042, 0
      %v5104 = vsel %vm772, %v5043, 0
      %v5107 = vsel %vm772, %v5044, 0
      %v5110 = vsel %vm772, %v5045, 0
      %v5113 = vsel %vm772, %v5046, 0
      %v5116 = vsel %vm772, %v5047, 0
      %v5119 = vsel %vm772, %v5048, 0
      %v5122 = vsel %vm772, %v5049, 0
      %v5125 = vsel %vm772, %v5050, 0
      %v5128 = vsel %vm772, %v5051, 0
      %v5131 = vsel %vm772, %v5052, 0
      %v5134 = vsel %vm772, %v5069, 0
      %v5137 = vsel %vm772, %v5070, 0
      %v5140 = vsel %vm772, %v5071, 0
      %v5143 = vsel %vm772, %v5072, 0
      %v5146 = vsel %vm772, %v5073, 0
      %v5149 = vsel %vm772, %v5074, 0
      %v5152 = vsel %vm772, %v5075, 0
      %v5155 = vsel %vm772, %v5076, 0
      %v5158 = vsel %vm772, %v5077, 0
      %v5161 = vsel %vm772, %v5078, 0
      %v5164 = vsel %vm772, %v5079, 0
      %v5167 = vsel %vm772, %v5080, 0
      %v5170 = vsel %vm772, %v5081, 0
      %v5173 = vsel %vm772, %v5082, 0
      %v5176 = vsel %vm772, %v5083, 0
      %v5179 = vsel %vm772, %v5084, 0
      %5181 = vmatpush.msra.mxu0 0.0
      %5182 = vmatpush.msra.mxu0 0.0
      %5183 = vmatpush.msra.mxu0 0.0
      %5184 = vmatpush.msra.mxu0 0.0
      %5185 = vmatpush.msra.mxu0 0.0
      %5186 = vmatpush.msra.mxu0 0.0
      %5187 = vmatpush.msra.mxu0 0.0
      %5188 = vmatpush.msra.mxu0 0.0
      %5189 = vmatpush.msra.mxu0 0.0
      %5190 = vmatpush.msra.mxu0 0.0
      %5191 = vmatpush.msra.mxu0 0.0
      %5192 = vmatpush.msra.mxu0 0.0
      %5193 = vmatpush.msra.mxu0 0.0
      %5194 = vmatpush.msra.mxu0 0.0
      %5195 = vmatpush.msra.mxu0 0.0
      %5196 = vmatpush.msra.mxu0 %v641
      %5197 = vmatmul.f32.gmra.mxu0 %v5086
      %v5198 = vpop.f32.mrf.mxu0
      %v5199 = vadd.f32 0.0, %v5198
      %5200 = vmatmul.f32.gmra.mxu0 %v5089
      %v5201 = vpop.f32.mrf.mxu0
      %v5202 = vadd.f32 0.0, %v5201
      %5203 = vmatmul.f32.gmra.mxu0 %v5092
      %v5204 = vpop.f32.mrf.mxu0
      %v5205 = vadd.f32 0.0, %v5204
      %5206 = vmatmul.f32.gmra.mxu0 %v5095
      %v5207 = vpop.f32.mrf.mxu0
      %v5208 = vadd.f32 0.0, %v5207
      %5209 = vmatmul.f32.gmra.mxu0 %v5098
      %v5210 = vpop.f32.mrf.mxu0
      %v5211 = vadd.f32 0.0, %v5210
      %5212 = vmatmul.f32.gmra.mxu0 %v5101
      %v5213 = vpop.f32.mrf.mxu0
      %v5214 = vadd.f32 0.0, %v5213
      %5215 = vmatmul.f32.gmra.mxu0 %v5104
      %v5216 = vpop.f32.mrf.mxu0
      %v5217 = vadd.f32 0.0, %v5216
      %5218 = vmatmul.f32.gmra.mxu0 %v5107
      %v5219 = vpop.f32.mrf.mxu0
      %v5220 = vadd.f32 0.0, %v5219
      %5221 = vmatmul.f32.gmra.mxu0 %v5110
      %v5222 = vpop.f32.mrf.mxu0
      %v5223 = vadd.f32 0.0, %v5222
      %5224 = vmatmul.f32.gmra.mxu0 %v5113
      %v5225 = vpop.f32.mrf.mxu0
      %v5226 = vadd.f32 0.0, %v5225
      %5227 = vmatmul.f32.gmra.mxu0 %v5116
      %v5228 = vpop.f32.mrf.mxu0
      %v5229 = vadd.f32 0.0, %v5228
      %5230 = vmatmul.f32.gmra.mxu0 %v5119
      %v5231 = vpop.f32.mrf.mxu0
      %v5232 = vadd.f32 0.0, %v5231
      %5233 = vmatmul.f32.gmra.mxu0 %v5122
      %v5234 = vpop.f32.mrf.mxu0
      %v5235 = vadd.f32 0.0, %v5234
      %5236 = vmatmul.f32.gmra.mxu0 %v5125
      %v5237 = vpop.f32.mrf.mxu0
      %v5238 = vadd.f32 0.0, %v5237
      %5239 = vmatmul.f32.gmra.mxu0 %v5128
      %v5240 = vpop.f32.mrf.mxu0
      %v5241 = vadd.f32 0.0, %v5240
      %5242 = vmatmul.f32.gmra.mxu0 %v5131
      %v5243 = vpop.f32.mrf.mxu0
      %v5244 = vadd.f32 0.0, %v5243
      %5245 = vmatmul.f32.gmra.mxu0 %v5134
      %v5246 = vpop.f32.mrf.mxu0
      %v5247 = vadd.f32 0.0, %v5246
      %5248 = vmatmul.f32.gmra.mxu0 %v5137
      %v5249 = vpop.f32.mrf.mxu0
      %v5250 = vadd.f32 0.0, %v5249
      %5251 = vmatmul.f32.gmra.mxu0 %v5140
      %v5252 = vpop.f32.mrf.mxu0
      %v5253 = vadd.f32 0.0, %v5252
      %5254 = vmatmul.f32.gmra.mxu0 %v5143
      %v5255 = vpop.f32.mrf.mxu0
      %v5256 = vadd.f32 0.0, %v5255
      %5257 = vmatmul.f32.gmra.mxu0 %v5146
      %v5258 = vpop.f32.mrf.mxu0
      %v5259 = vadd.f32 0.0, %v5258
      %5260 = vmatmul.f32.gmra.mxu0 %v5149
      %v5261 = vpop.f32.mrf.mxu0
      %v5262 = vadd.f32 0.0, %v5261
      %5263 = vmatmul.f32.gmra.mxu0 %v5152
      %v5264 = vpop.f32.mrf.mxu0
      %v5265 = vadd.f32 0.0, %v5264
      %5266 = vmatmul.f32.gmra.mxu0 %v5155
      %v5267 = vpop.f32.mrf.mxu0
      %v5268 = vadd.f32 0.0, %v5267
      %5269 = vmatmul.f32.gmra.mxu0 %v5158
      %v5270 = vpop.f32.mrf.mxu0
      %v5271 = vadd.f32 0.0, %v5270
      %5272 = vmatmul.f32.gmra.mxu0 %v5161
      %v5273 = vpop.f32.mrf.mxu0
      %v5274 = vadd.f32 0.0, %v5273
      %5275 = vmatmul.f32.gmra.mxu0 %v5164
      %v5276 = vpop.f32.mrf.mxu0
      %v5277 = vadd.f32 0.0, %v5276
      %5278 = vmatmul.f32.gmra.mxu0 %v5167
      %v5279 = vpop.f32.mrf.mxu0
      %v5280 = vadd.f32 0.0, %v5279
      %5281 = vmatmul.f32.gmra.mxu0 %v5170
      %v5282 = vpop.f32.mrf.mxu0
      %v5283 = vadd.f32 0.0, %v5282
      %5284 = vmatmul.f32.gmra.mxu0 %v5173
      %v5285 = vpop.f32.mrf.mxu0
      %v5286 = vadd.f32 0.0, %v5285
      %5287 = vmatmul.f32.gmra.mxu0 %v5176
      %v5288 = vpop.f32.mrf.mxu0
      %v5289 = vadd.f32 0.0, %v5288
      %5290 = vmatmul.f32.gmra.mxu0 %v5179
      %v5291 = vpop.f32.mrf.mxu0
      %v5292 = vadd.f32 0.0, %v5291
      %5293 = vdwg.mxu0
      %5294 = vmatpush.msra.mxu0 0.0
      %5295 = vmatpush.msra.mxu0 0.0
      %5296 = vmatpush.msra.mxu0 0.0
      %5297 = vmatpush.msra.mxu0 0.0
      %5298 = vmatpush.msra.mxu0 0.0
      %5299 = vmatpush.msra.mxu0 0.0
      %5300 = vmatpush.msra.mxu0 0.0
      %5301 = vmatpush.msra.mxu0 0.0
      %5302 = vmatpush.msra.mxu0 0.0
      %5303 = vmatpush.msra.mxu0 0.0
      %5304 = vmatpush.msra.mxu0 0.0
      %5305 = vmatpush.msra.mxu0 0.0
      %5306 = vmatpush.msra.mxu0 0.0
      %5307 = vmatpush.msra.mxu0 0.0
      %5308 = vmatpush.msra.mxu0 0.0
      %5309 = vmatpush.msra.mxu0 %v694
      %5310 = vmatmul.f32.gmra.mxu0 %v5086
      %v5311 = vpop.f32.mrf.mxu0
      %v5312 = vadd.f32 0.0, %v5311
      %5313 = vmatmul.f32.gmra.mxu0 %v5089
      %v5314 = vpop.f32.mrf.mxu0
      %v5315 = vadd.f32 0.0, %v5314
      %5316 = vmatmul.f32.gmra.mxu0 %v5092
      %v5317 = vpop.f32.mrf.mxu0
      %v5318 = vadd.f32 0.0, %v5317
      %5319 = vmatmul.f32.gmra.mxu0 %v5095
      %v5320 = vpop.f32.mrf.mxu0
      %v5321 = vadd.f32 0.0, %v5320
      %5322 = vmatmul.f32.gmra.mxu0 %v5098
      %v5323 = vpop.f32.mrf.mxu0
      %v5324 = vadd.f32 0.0, %v5323
      %5325 = vmatmul.f32.gmra.mxu0 %v5101
      %v5326 = vpop.f32.mrf.mxu0
      %v5327 = vadd.f32 0.0, %v5326
      %5328 = vmatmul.f32.gmra.mxu0 %v5104
      %v5329 = vpop.f32.mrf.mxu0
      %v5330 = vadd.f32 0.0, %v5329
      %5331 = vmatmul.f32.gmra.mxu0 %v5107
      %v5332 = vpop.f32.mrf.mxu0
      %v5333 = vadd.f32 0.0, %v5332
      %5334 = vmatmul.f32.gmra.mxu0 %v5110
      %v5335 = vpop.f32.mrf.mxu0
      %v5336 = vadd.f32 0.0, %v5335
      %5337 = vmatmul.f32.gmra.mxu0 %v5113
      %v5338 = vpop.f32.mrf.mxu0
      %v5339 = vadd.f32 0.0, %v5338
      %5340 = vmatmul.f32.gmra.mxu0 %v5116
      %v5341 = vpop.f32.mrf.mxu0
      %v5342 = vadd.f32 0.0, %v5341
      %5343 = vmatmul.f32.gmra.mxu0 %v5119
      %v5344 = vpop.f32.mrf.mxu0
      %v5345 = vadd.f32 0.0, %v5344
      %5346 = vmatmul.f32.gmra.mxu0 %v5122
      %v5347 = vpop.f32.mrf.mxu0
      %v5348 = vadd.f32 0.0, %v5347
      %5349 = vmatmul.f32.gmra.mxu0 %v5125
      %v5350 = vpop.f32.mrf.mxu0
      %v5351 = vadd.f32 0.0, %v5350
      %5352 = vmatmul.f32.gmra.mxu0 %v5128
      %v5353 = vpop.f32.mrf.mxu0
      %v5354 = vadd.f32 0.0, %v5353
      %5355 = vmatmul.f32.gmra.mxu0 %v5131
      %v5356 = vpop.f32.mrf.mxu0
      %v5357 = vadd.f32 0.0, %v5356
      %5358 = vmatmul.f32.gmra.mxu0 %v5134
      %v5359 = vpop.f32.mrf.mxu0
      %v5360 = vadd.f32 0.0, %v5359
      %5361 = vmatmul.f32.gmra.mxu0 %v5137
      %v5362 = vpop.f32.mrf.mxu0
      %v5363 = vadd.f32 0.0, %v5362
      %5364 = vmatmul.f32.gmra.mxu0 %v5140
      %v5365 = vpop.f32.mrf.mxu0
      %v5366 = vadd.f32 0.0, %v5365
      %5367 = vmatmul.f32.gmra.mxu0 %v5143
      %v5368 = vpop.f32.mrf.mxu0
      %v5369 = vadd.f32 0.0, %v5368
      %5370 = vmatmul.f32.gmra.mxu0 %v5146
      %v5371 = vpop.f32.mrf.mxu0
      %v5372 = vadd.f32 0.0, %v5371
      %5373 = vmatmul.f32.gmra.mxu0 %v5149
      %v5374 = vpop.f32.mrf.mxu0
      %v5375 = vadd.f32 0.0, %v5374
      %5376 = vmatmul.f32.gmra.mxu0 %v5152
      %v5377 = vpop.f32.mrf.mxu0
      %v5378 = vadd.f32 0.0, %v5377
      %5379 = vmatmul.f32.gmra.mxu0 %v5155
      %v5380 = vpop.f32.mrf.mxu0
      %v5381 = vadd.f32 0.0, %v5380
      %5382 = vmatmul.f32.gmra.mxu0 %v5158
      %v5383 = vpop.f32.mrf.mxu0
      %v5384 = vadd.f32 0.0, %v5383
      %5385 = vmatmul.f32.gmra.mxu0 %v5161
      %v5386 = vpop.f32.mrf.mxu0
      %v5387 = vadd.f32 0.0, %v5386
      %5388 = vmatmul.f32.gmra.mxu0 %v5164
      %v5389 = vpop.f32.mrf.mxu0
      %v5390 = vadd.f32 0.0, %v5389
      %5391 = vmatmul.f32.gmra.mxu0 %v5167
      %v5392 = vpop.f32.mrf.mxu0
      %v5393 = vadd.f32 0.0, %v5392
      %5394 = vmatmul.f32.gmra.mxu0 %v5170
      %v5395 = vpop.f32.mrf.mxu0
      %v5396 = vadd.f32 0.0, %v5395
      %5397 = vmatmul.f32.gmra.mxu0 %v5173
      %v5398 = vpop.f32.mrf.mxu0
      %v5399 = vadd.f32 0.0, %v5398
      %5400 = vmatmul.f32.gmra.mxu0 %v5176
      %v5401 = vpop.f32.mrf.mxu0
      %v5402 = vadd.f32 0.0, %v5401
      %5403 = vmatmul.f32.gmra.mxu0 %v5179
      %v5404 = vpop.f32.mrf.mxu0
      %v5405 = vadd.f32 0.0, %v5404
      %5406 = vdwg.mxu0
      %v5407 = vmax.f32 %v5199, %v5312
      %5408 = vmax.xlane.f32.xlu0 %v5407
      %v5409 = vpop.xlane.xlu0 %5408
      %v5410 = vmax.f32 %v5202, %v5315
      %5411 = vmax.xlane.f32.xlu0 %v5410
      %v5412 = vpop.xlane.xlu0 %5411
      %v5413 = vmax.f32 %v5205, %v5318
      %5414 = vmax.xlane.f32.xlu0 %v5413
      %v5415 = vpop.xlane.xlu0 %5414
      %v5416 = vmax.f32 %v5208, %v5321
      %5417 = vmax.xlane.f32.xlu0 %v5416
      %v5418 = vpop.xlane.xlu0 %5417
      %v5419 = vmax.f32 %v5211, %v5324
      %5420 = vmax.xlane.f32.xlu0 %v5419
      %v5421 = vpop.xlane.xlu0 %5420
      %v5422 = vmax.f32 %v5214, %v5327
      %5423 = vmax.xlane.f32.xlu0 %v5422
      %v5424 = vpop.xlane.xlu0 %5423
      %v5425 = vmax.f32 %v5217, %v5330
      %5426 = vmax.xlane.f32.xlu0 %v5425
      %v5427 = vpop.xlane.xlu0 %5426
      %v5428 = vmax.f32 %v5220, %v5333
      %5429 = vmax.xlane.f32.xlu0 %v5428
      %v5430 = vpop.xlane.xlu0 %5429
      %v5431 = vmax.f32 %v5223, %v5336
      %5432 = vmax.xlane.f32.xlu0 %v5431
      %v5433 = vpop.xlane.xlu0 %5432
      %v5434 = vmax.f32 %v5226, %v5339
      %5435 = vmax.xlane.f32.xlu0 %v5434
      %v5436 = vpop.xlane.xlu0 %5435
      %v5437 = vmax.f32 %v5229, %v5342
      %5438 = vmax.xlane.f32.xlu0 %v5437
      %v5439 = vpop.xlane.xlu0 %5438
      %v5440 = vmax.f32 %v5232, %v5345
      %5441 = vmax.xlane.f32.xlu0 %v5440
      %v5442 = vpop.xlane.xlu0 %5441
      %v5443 = vmax.f32 %v5235, %v5348
      %5444 = vmax.xlane.f32.xlu0 %v5443
      %v5445 = vpop.xlane.xlu0 %5444
      %v5446 = vmax.f32 %v5238, %v5351
      %5447 = vmax.xlane.f32.xlu0 %v5446
      %v5448 = vpop.xlane.xlu0 %5447
      %v5449 = vmax.f32 %v5241, %v5354
      %5450 = vmax.xlane.f32.xlu0 %v5449
      %v5451 = vpop.xlane.xlu0 %5450
      %v5452 = vmax.f32 %v5244, %v5357
      %5453 = vmax.xlane.f32.xlu0 %v5452
      %v5454 = vpop.xlane.xlu0 %5453
      %v5455 = vmax.f32 %v5247, %v5360
      %5456 = vmax.xlane.f32.xlu0 %v5455
      %v5457 = vpop.xlane.xlu0 %5456
      %v5458 = vmax.f32 %v5250, %v5363
      %5459 = vmax.xlane.f32.xlu0 %v5458
      %v5460 = vpop.xlane.xlu0 %5459
      %v5461 = vmax.f32 %v5253, %v5366
      %5462 = vmax.xlane.f32.xlu0 %v5461
      %v5463 = vpop.xlane.xlu0 %5462
      %v5464 = vmax.f32 %v5256, %v5369
      %5465 = vmax.xlane.f32.xlu0 %v5464
      %v5466 = vpop.xlane.xlu0 %5465
      %v5467 = vmax.f32 %v5259, %v5372
      %5468 = vmax.xlane.f32.xlu0 %v5467
      %v5469 = vpop.xlane.xlu0 %5468
      %v5470 = vmax.f32 %v5262, %v5375
      %5471 = vmax.xlane.f32.xlu0 %v5470
      %v5472 = vpop.xlane.xlu0 %5471
      %v5473 = vmax.f32 %v5265, %v5378
      %5474 = vmax.xlane.f32.xlu0 %v5473
      %v5475 = vpop.xlane.xlu0 %5474
      %v5476 = vmax.f32 %v5268, %v5381
      %5477 = vmax.xlane.f32.xlu0 %v5476
      %v5478 = vpop.xlane.xlu0 %5477
      %v5479 = vmax.f32 %v5271, %v5384
      %5480 = vmax.xlane.f32.xlu0 %v5479
      %v5481 = vpop.xlane.xlu0 %5480
      %v5482 = vmax.f32 %v5274, %v5387
      %5483 = vmax.xlane.f32.xlu0 %v5482
      %v5484 = vpop.xlane.xlu0 %5483
      %v5485 = vmax.f32 %v5277, %v5390
      %5486 = vmax.xlane.f32.xlu0 %v5485
      %v5487 = vpop.xlane.xlu0 %5486
      %v5488 = vmax.f32 %v5280, %v5393
      %5489 = vmax.xlane.f32.xlu0 %v5488
      %v5490 = vpop.xlane.xlu0 %5489
      %v5491 = vmax.f32 %v5283, %v5396
      %5492 = vmax.xlane.f32.xlu0 %v5491
      %v5493 = vpop.xlane.xlu0 %5492
      %v5494 = vmax.f32 %v5286, %v5399
      %5495 = vmax.xlane.f32.xlu0 %v5494
      %v5496 = vpop.xlane.xlu0 %5495
      %v5497 = vmax.f32 %v5289, %v5402
      %5498 = vmax.xlane.f32.xlu0 %v5497
      %v5499 = vpop.xlane.xlu0 %5498
      %v5500 = vmax.f32 %v5292, %v5405
      %5501 = vmax.xlane.f32.xlu0 %v5500
      %v5502 = vpop.xlane.xlu0 %5501
      %v5503 = vsub.f32 %v5199, %v5409
      %v5504 = vsub.f32 %v5312, %v5409
      %v5505 = vsub.f32 %v5202, %v5412
      %v5506 = vsub.f32 %v5315, %v5412
      %v5507 = vsub.f32 %v5205, %v5415
      %v5508 = vsub.f32 %v5318, %v5415
      %v5509 = vsub.f32 %v5208, %v5418
      %v5510 = vsub.f32 %v5321, %v5418
      %v5511 = vsub.f32 %v5211, %v5421
      %v5512 = vsub.f32 %v5324, %v5421
      %v5513 = vsub.f32 %v5214, %v5424
      %v5514 = vsub.f32 %v5327, %v5424
      %v5515 = vsub.f32 %v5217, %v5427
      %v5516 = vsub.f32 %v5330, %v5427
      %v5517 = vsub.f32 %v5220, %v5430
      %v5518 = vsub.f32 %v5333, %v5430
      %v5519 = vsub.f32 %v5223, %v5433
      %v5520 = vsub.f32 %v5336, %v5433
      %v5521 = vsub.f32 %v5226, %v5436
      %v5522 = vsub.f32 %v5339, %v5436
      %v5523 = vsub.f32 %v5229, %v5439
      %v5524 = vsub.f32 %v5342, %v5439
      %v5525 = vsub.f32 %v5232, %v5442
      %v5526 = vsub.f32 %v5345, %v5442
      %v5527 = vsub.f32 %v5235, %v5445
      %v5528 = vsub.f32 %v5348, %v5445
      %v5529 = vsub.f32 %v5238, %v5448
      %v5530 = vsub.f32 %v5351, %v5448
      %v5531 = vsub.f32 %v5241, %v5451
      %v5532 = vsub.f32 %v5354, %v5451
      %v5533 = vsub.f32 %v5244, %v5454
      %v5534 = vsub.f32 %v5357, %v5454
      %v5535 = vsub.f32 %v5247, %v5457
      %v5536 = vsub.f32 %v5360, %v5457
      %v5537 = vsub.f32 %v5250, %v5460
      %v5538 = vsub.f32 %v5363, %v5460
      %v5539 = vsub.f32 %v5253, %v5463
      %v5540 = vsub.f32 %v5366, %v5463
      %v5541 = vsub.f32 %v5256, %v5466
      %v5542 = vsub.f32 %v5369, %v5466
      %v5543 = vsub.f32 %v5259, %v5469
      %v5544 = vsub.f32 %v5372, %v5469
      %v5545 = vsub.f32 %v5262, %v5472
      %v5546 = vsub.f32 %v5375, %v5472
      %v5547 = vsub.f32 %v5265, %v5475
      %v5548 = vsub.f32 %v5378, %v5475
      %v5549 = vsub.f32 %v5268, %v5478
      %v5550 = vsub.f32 %v5381, %v5478
      %v5551 = vsub.f32 %v5271, %v5481
      %v5552 = vsub.f32 %v5384, %v5481
      %v5553 = vsub.f32 %v5274, %v5484
      %v5554 = vsub.f32 %v5387, %v5484
      %v5555 = vsub.f32 %v5277, %v5487
      %v5556 = vsub.f32 %v5390, %v5487
      %v5557 = vsub.f32 %v5280, %v5490
      %v5558 = vsub.f32 %v5393, %v5490
      %v5559 = vsub.f32 %v5283, %v5493
      %v5560 = vsub.f32 %v5396, %v5493
      %v5561 = vsub.f32 %v5286, %v5496
      %v5562 = vsub.f32 %v5399, %v5496
      %v5563 = vsub.f32 %v5289, %v5499
      %v5564 = vsub.f32 %v5402, %v5499
      %v5565 = vsub.f32 %v5292, %v5502
      %v5566 = vsub.f32 %v5405, %v5502
      %v5567 = vmul.f32 %v5503, 1.442695
      %v5568 = vpow.pop %v5567
      %v5569 = vmul.f32 %v5504, 1.442695
      %v5570 = vpow.pop %v5569
      %v5571 = vmul.f32 %v5505, 1.442695
      %v5572 = vpow.pop %v5571
      %v5573 = vmul.f32 %v5506, 1.442695
      %v5574 = vpow.pop %v5573
      %v5575 = vmul.f32 %v5507, 1.442695
      %v5576 = vpow.pop %v5575
      %v5577 = vmul.f32 %v5508, 1.442695
      %v5578 = vpow.pop %v5577
      %v5579 = vmul.f32 %v5509, 1.442695
      %v5580 = vpow.pop %v5579
      %v5581 = vmul.f32 %v5510, 1.442695
      %v5582 = vpow.pop %v5581
      %v5583 = vmul.f32 %v5511, 1.442695
      %v5584 = vpow.pop %v5583
      %v5585 = vmul.f32 %v5512, 1.442695
      %v5586 = vpow.pop %v5585
      %v5587 = vmul.f32 %v5513, 1.442695
      %v5588 = vpow.pop %v5587
      %v5589 = vmul.f32 %v5514, 1.442695
      %v5590 = vpow.pop %v5589
      %v5591 = vmul.f32 %v5515, 1.442695
      %v5592 = vpow.pop %v5591
      %v5593 = vmul.f32 %v5516, 1.442695
      %v5594 = vpow.pop %v5593
      %v5595 = vmul.f32 %v5517, 1.442695
      %v5596 = vpow.pop %v5595
      %v5597 = vmul.f32 %v5518, 1.442695
      %v5598 = vpow.pop %v5597
      %v5599 = vmul.f32 %v5519, 1.442695
      %v5600 = vpow.pop %v5599
      %v5601 = vmul.f32 %v5520, 1.442695
      %v5602 = vpow.pop %v5601
      %v5603 = vmul.f32 %v5521, 1.442695
      %v5604 = vpow.pop %v5603
      %v5605 = vmul.f32 %v5522, 1.442695
      %v5606 = vpow.pop %v5605
      %v5607 = vmul.f32 %v5523, 1.442695
      %v5608 = vpow.pop %v5607
      %v5609 = vmul.f32 %v5524, 1.442695
      %v5610 = vpow.pop %v5609
      %v5611 = vmul.f32 %v5525, 1.442695
      %v5612 = vpow.pop %v5611
      %v5613 = vmul.f32 %v5526, 1.442695
      %v5614 = vpow.pop %v5613
      %v5615 = vmul.f32 %v5527, 1.442695
      %v5616 = vpow.pop %v5615
      %v5617 = vmul.f32 %v5528, 1.442695
      %v5618 = vpow.pop %v5617
      %v5619 = vmul.f32 %v5529, 1.442695
      %v5620 = vpow.pop %v5619
      %v5621 = vmul.f32 %v5530, 1.442695
      %v5622 = vpow.pop %v5621
      %v5623 = vmul.f32 %v5531, 1.442695
      %v5624 = vpow.pop %v5623
      %v5625 = vmul.f32 %v5532, 1.442695
      %v5626 = vpow.pop %v5625
      %v5627 = vmul.f32 %v5533, 1.442695
      %v5628 = vpow.pop %v5627
      %v5629 = vmul.f32 %v5534, 1.442695
      %v5630 = vpow.pop %v5629
      %v5631 = vmul.f32 %v5535, 1.442695
      %v5632 = vpow.pop %v5631
      %v5633 = vmul.f32 %v5536, 1.442695
      %v5634 = vpow.pop %v5633
      %v5635 = vmul.f32 %v5537, 1.442695
      %v5636 = vpow.pop %v5635
      %v5637 = vmul.f32 %v5538, 1.442695
      %v5638 = vpow.pop %v5637
      %v5639 = vmul.f32 %v5539, 1.442695
      %v5640 = vpow.pop %v5639
      %v5641 = vmul.f32 %v5540, 1.442695
      %v5642 = vpow.pop %v5641
      %v5643 = vmul.f32 %v5541, 1.442695
      %v5644 = vpow.pop %v5643
      %v5645 = vmul.f32 %v5542, 1.442695
      %v5646 = vpow.pop %v5645
      %v5647 = vmul.f32 %v5543, 1.442695
      %v5648 = vpow.pop %v5647
      %v5649 = vmul.f32 %v5544, 1.442695
      %v5650 = vpow.pop %v5649
      %v5651 = vmul.f32 %v5545, 1.442695
      %v5652 = vpow.pop %v5651
      %v5653 = vmul.f32 %v5546, 1.442695
      %v5654 = vpow.pop %v5653
      %v5655 = vmul.f32 %v5547, 1.442695
      %v5656 = vpow.pop %v5655
      %v5657 = vmul.f32 %v5548, 1.442695
      %v5658 = vpow.pop %v5657
      %v5659 = vmul.f32 %v5549, 1.442695
      %v5660 = vpow.pop %v5659
      %v5661 = vmul.f32 %v5550, 1.442695
      %v5662 = vpow.pop %v5661
      %v5663 = vmul.f32 %v5551, 1.442695
      %v5664 = vpow.pop %v5663
      %v5665 = vmul.f32 %v5552, 1.442695
      %v5666 = vpow.pop %v5665
      %v5667 = vmul.f32 %v5553, 1.442695
      %v5668 = vpow.pop %v5667
      %v5669 = vmul.f32 %v5554, 1.442695
      %v5670 = vpow.pop %v5669
      %v5671 = vmul.f32 %v5555, 1.442695
      %v5672 = vpow.pop %v5671
      %v5673 = vmul.f32 %v5556, 1.442695
      %v5674 = vpow.pop %v5673
      %v5675 = vmul.f32 %v5557, 1.442695
      %v5676 = vpow.pop %v5675
      %v5677 = vmul.f32 %v5558, 1.442695
      %v5678 = vpow.pop %v5677
      %v5679 = vmul.f32 %v5559, 1.442695
      %v5680 = vpow.pop %v5679
      %v5681 = vmul.f32 %v5560, 1.442695
      %v5682 = vpow.pop %v5681
      %v5683 = vmul.f32 %v5561, 1.442695
      %v5684 = vpow.pop %v5683
      %v5685 = vmul.f32 %v5562, 1.442695
      %v5686 = vpow.pop %v5685
      %v5687 = vmul.f32 %v5563, 1.442695
      %v5688 = vpow.pop %v5687
      %v5689 = vmul.f32 %v5564, 1.442695
      %v5690 = vpow.pop %v5689
      %v5691 = vmul.f32 %v5565, 1.442695
      %v5692 = vpow.pop %v5691
      %v5693 = vmul.f32 %v5566, 1.442695
      %v5694 = vpow.pop %v5693
      %v5695 = vadd.f32 %v5568, %v5570
      %5696 = vadd.xlane.f32.xlu0 %v5695
      %v5697 = vpop.xlane.xlu0 %5696
      %v5698 = vadd.f32 %v5572, %v5574
      %5699 = vadd.xlane.f32.xlu0 %v5698
      %v5700 = vpop.xlane.xlu0 %5699
      %v5701 = vadd.f32 %v5576, %v5578
      %5702 = vadd.xlane.f32.xlu0 %v5701
      %v5703 = vpop.xlane.xlu0 %5702
      %v5704 = vadd.f32 %v5580, %v5582
      %5705 = vadd.xlane.f32.xlu0 %v5704
      %v5706 = vpop.xlane.xlu0 %5705
      %v5707 = vadd.f32 %v5584, %v5586
      %5708 = vadd.xlane.f32.xlu0 %v5707
      %v5709 = vpop.xlane.xlu0 %5708
      %v5710 = vadd.f32 %v5588, %v5590
      %5711 = vadd.xlane.f32.xlu0 %v5710
      %v5712 = vpop.xlane.xlu0 %5711
      %v5713 = vadd.f32 %v5592, %v5594
      %5714 = vadd.xlane.f32.xlu0 %v5713
      %v5715 = vpop.xlane.xlu0 %5714
      %v5716 = vadd.f32 %v5596, %v5598
      %5717 = vadd.xlane.f32.xlu0 %v5716
      %v5718 = vpop.xlane.xlu0 %5717
      %v5719 = vadd.f32 %v5600, %v5602
      %5720 = vadd.xlane.f32.xlu0 %v5719
      %v5721 = vpop.xlane.xlu0 %5720
      %v5722 = vadd.f32 %v5604, %v5606
      %5723 = vadd.xlane.f32.xlu0 %v5722
      %v5724 = vpop.xlane.xlu0 %5723
      %v5725 = vadd.f32 %v5608, %v5610
      %5726 = vadd.xlane.f32.xlu0 %v5725
      %v5727 = vpop.xlane.xlu0 %5726
      %v5728 = vadd.f32 %v5612, %v5614
      %5729 = vadd.xlane.f32.xlu0 %v5728
      %v5730 = vpop.xlane.xlu0 %5729
      %v5731 = vadd.f32 %v5616, %v5618
      %5732 = vadd.xlane.f32.xlu0 %v5731
      %v5733 = vpop.xlane.xlu0 %5732
      %v5734 = vadd.f32 %v5620, %v5622
      %5735 = vadd.xlane.f32.xlu0 %v5734
      %v5736 = vpop.xlane.xlu0 %5735
      %v5737 = vadd.f32 %v5624, %v5626
      %5738 = vadd.xlane.f32.xlu0 %v5737
      %v5739 = vpop.xlane.xlu0 %5738
      %v5740 = vadd.f32 %v5628, %v5630
      %5741 = vadd.xlane.f32.xlu0 %v5740
      %v5742 = vpop.xlane.xlu0 %5741
      %v5743 = vadd.f32 %v5632, %v5634
      %5744 = vadd.xlane.f32.xlu0 %v5743
      %v5745 = vpop.xlane.xlu0 %5744
      %v5746 = vadd.f32 %v5636, %v5638
      %5747 = vadd.xlane.f32.xlu0 %v5746
      %v5748 = vpop.xlane.xlu0 %5747
      %v5749 = vadd.f32 %v5640, %v5642
      %5750 = vadd.xlane.f32.xlu0 %v5749
      %v5751 = vpop.xlane.xlu0 %5750
      %v5752 = vadd.f32 %v5644, %v5646
      %5753 = vadd.xlane.f32.xlu0 %v5752
      %v5754 = vpop.xlane.xlu0 %5753
      %v5755 = vadd.f32 %v5648, %v5650
      %5756 = vadd.xlane.f32.xlu0 %v5755
      %v5757 = vpop.xlane.xlu0 %5756
      %v5758 = vadd.f32 %v5652, %v5654
      %5759 = vadd.xlane.f32.xlu0 %v5758
      %v5760 = vpop.xlane.xlu0 %5759
      %v5761 = vadd.f32 %v5656, %v5658
      %5762 = vadd.xlane.f32.xlu0 %v5761
      %v5763 = vpop.xlane.xlu0 %5762
      %v5764 = vadd.f32 %v5660, %v5662
      %5765 = vadd.xlane.f32.xlu0 %v5764
      %v5766 = vpop.xlane.xlu0 %5765
      %v5767 = vadd.f32 %v5664, %v5666
      %5768 = vadd.xlane.f32.xlu0 %v5767
      %v5769 = vpop.xlane.xlu0 %5768
      %v5770 = vadd.f32 %v5668, %v5670
      %5771 = vadd.xlane.f32.xlu0 %v5770
      %v5772 = vpop.xlane.xlu0 %5771
      %v5773 = vadd.f32 %v5672, %v5674
      %5774 = vadd.xlane.f32.xlu0 %v5773
      %v5775 = vpop.xlane.xlu0 %5774
      %v5776 = vadd.f32 %v5676, %v5678
      %5777 = vadd.xlane.f32.xlu0 %v5776
      %v5778 = vpop.xlane.xlu0 %5777
      %v5779 = vadd.f32 %v5680, %v5682
      %5780 = vadd.xlane.f32.xlu0 %v5779
      %v5781 = vpop.xlane.xlu0 %5780
      %v5782 = vadd.f32 %v5684, %v5686
      %5783 = vadd.xlane.f32.xlu0 %v5782
      %v5784 = vpop.xlane.xlu0 %5783
      %v5785 = vadd.f32 %v5688, %v5690
      %5786 = vadd.xlane.f32.xlu0 %v5785
      %v5787 = vpop.xlane.xlu0 %5786
      %v5788 = vadd.f32 %v5692, %v5694
      %5789 = vadd.xlane.f32.xlu0 %v5788
      %v5790 = vpop.xlane.xlu0 %5789
      %v5791 = vrcp.pop %v5697
      %v5792 = vmul.f32 %v5697, %v5791
      %v5793 = vsub.f32 1.0, %v5792
      %v5794 = vmul.f32 %v5791, %v5793
      %v5795 = vadd.f32 %v5791, %v5794
      %vm5796 = vweird.f32 %v5697
      %vm5797 = vweird.f32 %v5791
      %vm5798 = vmor %vm5796, %vm5797
      %v5799 = vsel %vm5798, %v5791, %v5795
      %v5800 = vand.u32 2147483647, %v5697
      %vm5801 = vcmp.eq.f32.partialorder %v5800, 8.507059e+37
      %v5802 = vand.u32 %v5697, 2147483648
      %v5803 = vor.u32 1.1754944e-38, %v5802
      %v5804 = vsel %vm5801, %v5803, %v5799
      %v5805 = vrcp.pop %v5700
      %v5806 = vmul.f32 %v5700, %v5805
      %v5807 = vsub.f32 1.0, %v5806
      %v5808 = vmul.f32 %v5805, %v5807
      %v5809 = vadd.f32 %v5805, %v5808
      %vm5810 = vweird.f32 %v5700
      %vm5811 = vweird.f32 %v5805
      %vm5812 = vmor %vm5810, %vm5811
      %v5813 = vsel %vm5812, %v5805, %v5809
      %v5814 = vand.u32 2147483647, %v5700
      %vm5815 = vcmp.eq.f32.partialorder %v5814, 8.507059e+37
      %v5816 = vand.u32 %v5700, 2147483648
      %v5817 = vor.u32 1.1754944e-38, %v5816
      %v5818 = vsel %vm5815, %v5817, %v5813
      %v5819 = vrcp.pop %v5703
      %v5820 = vmul.f32 %v5703, %v5819
      %v5821 = vsub.f32 1.0, %v5820
      %v5822 = vmul.f32 %v5819, %v5821
      %v5823 = vadd.f32 %v5819, %v5822
      %vm5824 = vweird.f32 %v5703
      %vm5825 = vweird.f32 %v5819
      %vm5826 = vmor %vm5824, %vm5825
      %v5827 = vsel %vm5826, %v5819, %v5823
      %v5828 = vand.u32 2147483647, %v5703
      %vm5829 = vcmp.eq.f32.partialorder %v5828, 8.507059e+37
      %v5830 = vand.u32 %v5703, 2147483648
      %v5831 = vor.u32 1.1754944e-38, %v5830
      %v5832 = vsel %vm5829, %v5831, %v5827
      %v5833 = vrcp.pop %v5706
      %v5834 = vmul.f32 %v5706, %v5833
      %v5835 = vsub.f32 1.0, %v5834
      %v5836 = vmul.f32 %v5833, %v5835
      %v5837 = vadd.f32 %v5833, %v5836
      %vm5838 = vweird.f32 %v5706
      %vm5839 = vweird.f32 %v5833
      %vm5840 = vmor %vm5838, %vm5839
      %v5841 = vsel %vm5840, %v5833, %v5837
      %v5842 = vand.u32 2147483647, %v5706
      %vm5843 = vcmp.eq.f32.partialorder %v5842, 8.507059e+37
      %v5844 = vand.u32 %v5706, 2147483648
      %v5845 = vor.u32 1.1754944e-38, %v5844
      %v5846 = vsel %vm5843, %v5845, %v5841
      %v5847 = vrcp.pop %v5709
      %v5848 = vmul.f32 %v5709, %v5847
      %v5849 = vsub.f32 1.0, %v5848
      %v5850 = vmul.f32 %v5847, %v5849
      %v5851 = vadd.f32 %v5847, %v5850
      %vm5852 = vweird.f32 %v5709
      %vm5853 = vweird.f32 %v5847
      %vm5854 = vmor %vm5852, %vm5853
      %v5855 = vsel %vm5854, %v5847, %v5851
      %v5856 = vand.u32 2147483647, %v5709
      %vm5857 = vcmp.eq.f32.partialorder %v5856, 8.507059e+37
      %v5858 = vand.u32 %v5709, 2147483648
      %v5859 = vor.u32 1.1754944e-38, %v5858
      %v5860 = vsel %vm5857, %v5859, %v5855
      %v5861 = vrcp.pop %v5712
      %v5862 = vmul.f32 %v5712, %v5861
      %v5863 = vsub.f32 1.0, %v5862
      %v5864 = vmul.f32 %v5861, %v5863
      %v5865 = vadd.f32 %v5861, %v5864
      %vm5866 = vweird.f32 %v5712
      %vm5867 = vweird.f32 %v5861
      %vm5868 = vmor %vm5866, %vm5867
      %v5869 = vsel %vm5868, %v5861, %v5865
      %v5870 = vand.u32 2147483647, %v5712
      %vm5871 = vcmp.eq.f32.partialorder %v5870, 8.507059e+37
      %v5872 = vand.u32 %v5712, 2147483648
      %v5873 = vor.u32 1.1754944e-38, %v5872
      %v5874 = vsel %vm5871, %v5873, %v5869
      %v5875 = vrcp.pop %v5715
      %v5876 = vmul.f32 %v5715, %v5875
      %v5877 = vsub.f32 1.0, %v5876
      %v5878 = vmul.f32 %v5875, %v5877
      %v5879 = vadd.f32 %v5875, %v5878
      %vm5880 = vweird.f32 %v5715
      %vm5881 = vweird.f32 %v5875
      %vm5882 = vmor %vm5880, %vm5881
      %v5883 = vsel %vm5882, %v5875, %v5879
      %v5884 = vand.u32 2147483647, %v5715
      %vm5885 = vcmp.eq.f32.partialorder %v5884, 8.507059e+37
      %v5886 = vand.u32 %v5715, 2147483648
      %v5887 = vor.u32 1.1754944e-38, %v5886
      %v5888 = vsel %vm5885, %v5887, %v5883
      %v5889 = vrcp.pop %v5718
      %v5890 = vmul.f32 %v5718, %v5889
      %v5891 = vsub.f32 1.0, %v5890
      %v5892 = vmul.f32 %v5889, %v5891
      %v5893 = vadd.f32 %v5889, %v5892
      %vm5894 = vweird.f32 %v5718
      %vm5895 = vweird.f32 %v5889
      %vm5896 = vmor %vm5894, %vm5895
      %v5897 = vsel %vm5896, %v5889, %v5893
      %v5898 = vand.u32 2147483647, %v5718
      %vm5899 = vcmp.eq.f32.partialorder %v5898, 8.507059e+37
      %v5900 = vand.u32 %v5718, 2147483648
      %v5901 = vor.u32 1.1754944e-38, %v5900
      %v5902 = vsel %vm5899, %v5901, %v5897
      %v5903 = vrcp.pop %v5721
      %v5904 = vmul.f32 %v5721, %v5903
      %v5905 = vsub.f32 1.0, %v5904
      %v5906 = vmul.f32 %v5903, %v5905
      %v5907 = vadd.f32 %v5903, %v5906
      %vm5908 = vweird.f32 %v5721
      %vm5909 = vweird.f32 %v5903
      %vm5910 = vmor %vm5908, %vm5909
      %v5911 = vsel %vm5910, %v5903, %v5907
      %v5912 = vand.u32 2147483647, %v5721
      %vm5913 = vcmp.eq.f32.partialorder %v5912, 8.507059e+37
      %v5914 = vand.u32 %v5721, 2147483648
      %v5915 = vor.u32 1.1754944e-38, %v5914
      %v5916 = vsel %vm5913, %v5915, %v5911
      %v5917 = vrcp.pop %v5724
      %v5918 = vmul.f32 %v5724, %v5917
      %v5919 = vsub.f32 1.0, %v5918
      %v5920 = vmul.f32 %v5917, %v5919
      %v5921 = vadd.f32 %v5917, %v5920
      %vm5922 = vweird.f32 %v5724
      %vm5923 = vweird.f32 %v5917
      %vm5924 = vmor %vm5922, %vm5923
      %v5925 = vsel %vm5924, %v5917, %v5921
      %v5926 = vand.u32 2147483647, %v5724
      %vm5927 = vcmp.eq.f32.partialorder %v5926, 8.507059e+37
      %v5928 = vand.u32 %v5724, 2147483648
      %v5929 = vor.u32 1.1754944e-38, %v5928
      %v5930 = vsel %vm5927, %v5929, %v5925
      %v5931 = vrcp.pop %v5727
      %v5932 = vmul.f32 %v5727, %v5931
      %v5933 = vsub.f32 1.0, %v5932
      %v5934 = vmul.f32 %v5931, %v5933
      %v5935 = vadd.f32 %v5931, %v5934
      %vm5936 = vweird.f32 %v5727
      %vm5937 = vweird.f32 %v5931
      %vm5938 = vmor %vm5936, %vm5937
      %v5939 = vsel %vm5938, %v5931, %v5935
      %v5940 = vand.u32 2147483647, %v5727
      %vm5941 = vcmp.eq.f32.partialorder %v5940, 8.507059e+37
      %v5942 = vand.u32 %v5727, 2147483648
      %v5943 = vor.u32 1.1754944e-38, %v5942
      %v5944 = vsel %vm5941, %v5943, %v5939
      %v5945 = vrcp.pop %v5730
      %v5946 = vmul.f32 %v5730, %v5945
      %v5947 = vsub.f32 1.0, %v5946
      %v5948 = vmul.f32 %v5945, %v5947
      %v5949 = vadd.f32 %v5945, %v5948
      %vm5950 = vweird.f32 %v5730
      %vm5951 = vweird.f32 %v5945
      %vm5952 = vmor %vm5950, %vm5951
      %v5953 = vsel %vm5952, %v5945, %v5949
      %v5954 = vand.u32 2147483647, %v5730
      %vm5955 = vcmp.eq.f32.partialorder %v5954, 8.507059e+37
      %v5956 = vand.u32 %v5730, 2147483648
      %v5957 = vor.u32 1.1754944e-38, %v5956
      %v5958 = vsel %vm5955, %v5957, %v5953
      %v5959 = vrcp.pop %v5733
      %v5960 = vmul.f32 %v5733, %v5959
      %v5961 = vsub.f32 1.0, %v5960
      %v5962 = vmul.f32 %v5959, %v5961
      %v5963 = vadd.f32 %v5959, %v5962
      %vm5964 = vweird.f32 %v5733
      %vm5965 = vweird.f32 %v5959
      %vm5966 = vmor %vm5964, %vm5965
      %v5967 = vsel %vm5966, %v5959, %v5963
      %v5968 = vand.u32 2147483647, %v5733
      %vm5969 = vcmp.eq.f32.partialorder %v5968, 8.507059e+37
      %v5970 = vand.u32 %v5733, 2147483648
      %v5971 = vor.u32 1.1754944e-38, %v5970
      %v5972 = vsel %vm5969, %v5971, %v5967
      %v5973 = vrcp.pop %v5736
      %v5974 = vmul.f32 %v5736, %v5973
      %v5975 = vsub.f32 1.0, %v5974
      %v5976 = vmul.f32 %v5973, %v5975
      %v5977 = vadd.f32 %v5973, %v5976
      %vm5978 = vweird.f32 %v5736
      %vm5979 = vweird.f32 %v5973
      %vm5980 = vmor %vm5978, %vm5979
      %v5981 = vsel %vm5980, %v5973, %v5977
      %v5982 = vand.u32 2147483647, %v5736
      %vm5983 = vcmp.eq.f32.partialorder %v5982, 8.507059e+37
      %v5984 = vand.u32 %v5736, 2147483648
      %v5985 = vor.u32 1.1754944e-38, %v5984
      %v5986 = vsel %vm5983, %v5985, %v5981
      %v5987 = vrcp.pop %v5739
      %v5988 = vmul.f32 %v5739, %v5987
      %v5989 = vsub.f32 1.0, %v5988
      %v5990 = vmul.f32 %v5987, %v5989
      %v5991 = vadd.f32 %v5987, %v5990
      %vm5992 = vweird.f32 %v5739
      %vm5993 = vweird.f32 %v5987
      %vm5994 = vmor %vm5992, %vm5993
      %v5995 = vsel %vm5994, %v5987, %v5991
      %v5996 = vand.u32 2147483647, %v5739
      %vm5997 = vcmp.eq.f32.partialorder %v5996, 8.507059e+37
      %v5998 = vand.u32 %v5739, 2147483648
      %v5999 = vor.u32 1.1754944e-38, %v5998
      %v6000 = vsel %vm5997, %v5999, %v5995
      %v6001 = vrcp.pop %v5742
      %v6002 = vmul.f32 %v5742, %v6001
      %v6003 = vsub.f32 1.0, %v6002
      %v6004 = vmul.f32 %v6001, %v6003
      %v6005 = vadd.f32 %v6001, %v6004
      %vm6006 = vweird.f32 %v5742
      %vm6007 = vweird.f32 %v6001
      %vm6008 = vmor %vm6006, %vm6007
      %v6009 = vsel %vm6008, %v6001, %v6005
      %v6010 = vand.u32 2147483647, %v5742
      %vm6011 = vcmp.eq.f32.partialorder %v6010, 8.507059e+37
      %v6012 = vand.u32 %v5742, 2147483648
      %v6013 = vor.u32 1.1754944e-38, %v6012
      %v6014 = vsel %vm6011, %v6013, %v6009
      %v6015 = vrcp.pop %v5745
      %v6016 = vmul.f32 %v5745, %v6015
      %v6017 = vsub.f32 1.0, %v6016
      %v6018 = vmul.f32 %v6015, %v6017
      %v6019 = vadd.f32 %v6015, %v6018
      %vm6020 = vweird.f32 %v5745
      %vm6021 = vweird.f32 %v6015
      %vm6022 = vmor %vm6020, %vm6021
      %v6023 = vsel %vm6022, %v6015, %v6019
      %v6024 = vand.u32 2147483647, %v5745
      %vm6025 = vcmp.eq.f32.partialorder %v6024, 8.507059e+37
      %v6026 = vand.u32 %v5745, 2147483648
      %v6027 = vor.u32 1.1754944e-38, %v6026
      %v6028 = vsel %vm6025, %v6027, %v6023
      %v6029 = vrcp.pop %v5748
      %v6030 = vmul.f32 %v5748, %v6029
      %v6031 = vsub.f32 1.0, %v6030
      %v6032 = vmul.f32 %v6029, %v6031
      %v6033 = vadd.f32 %v6029, %v6032
      %vm6034 = vweird.f32 %v5748
      %vm6035 = vweird.f32 %v6029
      %vm6036 = vmor %vm6034, %vm6035
      %v6037 = vsel %vm6036, %v6029, %v6033
      %v6038 = vand.u32 2147483647, %v5748
      %vm6039 = vcmp.eq.f32.partialorder %v6038, 8.507059e+37
      %v6040 = vand.u32 %v5748, 2147483648
      %v6041 = vor.u32 1.1754944e-38, %v6040
      %v6042 = vsel %vm6039, %v6041, %v6037
      %v6043 = vrcp.pop %v5751
      %v6044 = vmul.f32 %v5751, %v6043
      %v6045 = vsub.f32 1.0, %v6044
      %v6046 = vmul.f32 %v6043, %v6045
      %v6047 = vadd.f32 %v6043, %v6046
      %vm6048 = vweird.f32 %v5751
      %vm6049 = vweird.f32 %v6043
      %vm6050 = vmor %vm6048, %vm6049
      %v6051 = vsel %vm6050, %v6043, %v6047
      %v6052 = vand.u32 2147483647, %v5751
      %vm6053 = vcmp.eq.f32.partialorder %v6052, 8.507059e+37
      %v6054 = vand.u32 %v5751, 2147483648
      %v6055 = vor.u32 1.1754944e-38, %v6054
      %v6056 = vsel %vm6053, %v6055, %v6051
      %v6057 = vrcp.pop %v5754
      %v6058 = vmul.f32 %v5754, %v6057
      %v6059 = vsub.f32 1.0, %v6058
      %v6060 = vmul.f32 %v6057, %v6059
      %v6061 = vadd.f32 %v6057, %v6060
      %vm6062 = vweird.f32 %v5754
      %vm6063 = vweird.f32 %v6057
      %vm6064 = vmor %vm6062, %vm6063
      %v6065 = vsel %vm6064, %v6057, %v6061
      %v6066 = vand.u32 2147483647, %v5754
      %vm6067 = vcmp.eq.f32.partialorder %v6066, 8.507059e+37
      %v6068 = vand.u32 %v5754, 2147483648
      %v6069 = vor.u32 1.1754944e-38, %v6068
      %v6070 = vsel %vm6067, %v6069, %v6065
      %v6071 = vrcp.pop %v5757
      %v6072 = vmul.f32 %v5757, %v6071
      %v6073 = vsub.f32 1.0, %v6072
      %v6074 = vmul.f32 %v6071, %v6073
      %v6075 = vadd.f32 %v6071, %v6074
      %vm6076 = vweird.f32 %v5757
      %vm6077 = vweird.f32 %v6071
      %vm6078 = vmor %vm6076, %vm6077
      %v6079 = vsel %vm6078, %v6071, %v6075
      %v6080 = vand.u32 2147483647, %v5757
      %vm6081 = vcmp.eq.f32.partialorder %v6080, 8.507059e+37
      %v6082 = vand.u32 %v5757, 2147483648
      %v6083 = vor.u32 1.1754944e-38, %v6082
      %v6084 = vsel %vm6081, %v6083, %v6079
      %v6085 = vrcp.pop %v5760
      %v6086 = vmul.f32 %v5760, %v6085
      %v6087 = vsub.f32 1.0, %v6086
      %v6088 = vmul.f32 %v6085, %v6087
      %v6089 = vadd.f32 %v6085, %v6088
      %vm6090 = vweird.f32 %v5760
      %vm6091 = vweird.f32 %v6085
      %vm6092 = vmor %vm6090, %vm6091
      %v6093 = vsel %vm6092, %v6085, %v6089
      %v6094 = vand.u32 2147483647, %v5760
      %vm6095 = vcmp.eq.f32.partialorder %v6094, 8.507059e+37
      %v6096 = vand.u32 %v5760, 2147483648
      %v6097 = vor.u32 1.1754944e-38, %v6096
      %v6098 = vsel %vm6095, %v6097, %v6093
      %v6099 = vrcp.pop %v5763
      %v6100 = vmul.f32 %v5763, %v6099
      %v6101 = vsub.f32 1.0, %v6100
      %v6102 = vmul.f32 %v6099, %v6101
      %v6103 = vadd.f32 %v6099, %v6102
      %vm6104 = vweird.f32 %v5763
      %vm6105 = vweird.f32 %v6099
      %vm6106 = vmor %vm6104, %vm6105
      %v6107 = vsel %vm6106, %v6099, %v6103
      %v6108 = vand.u32 2147483647, %v5763
      %vm6109 = vcmp.eq.f32.partialorder %v6108, 8.507059e+37
      %v6110 = vand.u32 %v5763, 2147483648
      %v6111 = vor.u32 1.1754944e-38, %v6110
      %v6112 = vsel %vm6109, %v6111, %v6107
      %v6113 = vrcp.pop %v5766
      %v6114 = vmul.f32 %v5766, %v6113
      %v6115 = vsub.f32 1.0, %v6114
      %v6116 = vmul.f32 %v6113, %v6115
      %v6117 = vadd.f32 %v6113, %v6116
      %vm6118 = vweird.f32 %v5766
      %vm6119 = vweird.f32 %v6113
      %vm6120 = vmor %vm6118, %vm6119
      %v6121 = vsel %vm6120, %v6113, %v6117
      %v6122 = vand.u32 2147483647, %v5766
      %vm6123 = vcmp.eq.f32.partialorder %v6122, 8.507059e+37
      %v6124 = vand.u32 %v5766, 2147483648
      %v6125 = vor.u32 1.1754944e-38, %v6124
      %v6126 = vsel %vm6123, %v6125, %v6121
      %v6127 = vrcp.pop %v5769
      %v6128 = vmul.f32 %v5769, %v6127
      %v6129 = vsub.f32 1.0, %v6128
      %v6130 = vmul.f32 %v6127, %v6129
      %v6131 = vadd.f32 %v6127, %v6130
      %vm6132 = vweird.f32 %v5769
      %vm6133 = vweird.f32 %v6127
      %vm6134 = vmor %vm6132, %vm6133
      %v6135 = vsel %vm6134, %v6127, %v6131
      %v6136 = vand.u32 2147483647, %v5769
      %vm6137 = vcmp.eq.f32.partialorder %v6136, 8.507059e+37
      %v6138 = vand.u32 %v5769, 2147483648
      %v6139 = vor.u32 1.1754944e-38, %v6138
      %v6140 = vsel %vm6137, %v6139, %v6135
      %v6141 = vrcp.pop %v5772
      %v6142 = vmul.f32 %v5772, %v6141
      %v6143 = vsub.f32 1.0, %v6142
      %v6144 = vmul.f32 %v6141, %v6143
      %v6145 = vadd.f32 %v6141, %v6144
      %vm6146 = vweird.f32 %v5772
      %vm6147 = vweird.f32 %v6141
      %vm6148 = vmor %vm6146, %vm6147
      %v6149 = vsel %vm6148, %v6141, %v6145
      %v6150 = vand.u32 2147483647, %v5772
      %vm6151 = vcmp.eq.f32.partialorder %v6150, 8.507059e+37
      %v6152 = vand.u32 %v5772, 2147483648
      %v6153 = vor.u32 1.1754944e-38, %v6152
      %v6154 = vsel %vm6151, %v6153, %v6149
      %v6155 = vrcp.pop %v5775
      %v6156 = vmul.f32 %v5775, %v6155
      %v6157 = vsub.f32 1.0, %v6156
      %v6158 = vmul.f32 %v6155, %v6157
      %v6159 = vadd.f32 %v6155, %v6158
      %vm6160 = vweird.f32 %v5775
      %vm6161 = vweird.f32 %v6155
      %vm6162 = vmor %vm6160, %vm6161
      %v6163 = vsel %vm6162, %v6155, %v6159
      %v6164 = vand.u32 2147483647, %v5775
      %vm6165 = vcmp.eq.f32.partialorder %v6164, 8.507059e+37
      %v6166 = vand.u32 %v5775, 2147483648
      %v6167 = vor.u32 1.1754944e-38, %v6166
      %v6168 = vsel %vm6165, %v6167, %v6163
      %v6169 = vrcp.pop %v5778
      %v6170 = vmul.f32 %v5778, %v6169
      %v6171 = vsub.f32 1.0, %v6170
      %v6172 = vmul.f32 %v6169, %v6171
      %v6173 = vadd.f32 %v6169, %v6172
      %vm6174 = vweird.f32 %v5778
      %vm6175 = vweird.f32 %v6169
      %vm6176 = vmor %vm6174, %vm6175
      %v6177 = vsel %vm6176, %v6169, %v6173
      %v6178 = vand.u32 2147483647, %v5778
      %vm6179 = vcmp.eq.f32.partialorder %v6178, 8.507059e+37
      %v6180 = vand.u32 %v5778, 2147483648
      %v6181 = vor.u32 1.1754944e-38, %v6180
      %v6182 = vsel %vm6179, %v6181, %v6177
      %v6183 = vrcp.pop %v5781
      %v6184 = vmul.f32 %v5781, %v6183
      %v6185 = vsub.f32 1.0, %v6184
      %v6186 = vmul.f32 %v6183, %v6185
      %v6187 = vadd.f32 %v6183, %v6186
      %vm6188 = vweird.f32 %v5781
      %vm6189 = vweird.f32 %v6183
      %vm6190 = vmor %vm6188, %vm6189
      %v6191 = vsel %vm6190, %v6183, %v6187
      %v6192 = vand.u32 2147483647, %v5781
      %vm6193 = vcmp.eq.f32.partialorder %v6192, 8.507059e+37
      %v6194 = vand.u32 %v5781, 2147483648
      %v6195 = vor.u32 1.1754944e-38, %v6194
      %v6196 = vsel %vm6193, %v6195, %v6191
      %v6197 = vrcp.pop %v5784
      %v6198 = vmul.f32 %v5784, %v6197
      %v6199 = vsub.f32 1.0, %v6198
      %v6200 = vmul.f32 %v6197, %v6199
      %v6201 = vadd.f32 %v6197, %v6200
      %vm6202 = vweird.f32 %v5784
      %vm6203 = vweird.f32 %v6197
      %vm6204 = vmor %vm6202, %vm6203
      %v6205 = vsel %vm6204, %v6197, %v6201
      %v6206 = vand.u32 2147483647, %v5784
      %vm6207 = vcmp.eq.f32.partialorder %v6206, 8.507059e+37
      %v6208 = vand.u32 %v5784, 2147483648
      %v6209 = vor.u32 1.1754944e-38, %v6208
      %v6210 = vsel %vm6207, %v6209, %v6205
      %v6211 = vrcp.pop %v5787
      %v6212 = vmul.f32 %v5787, %v6211
      %v6213 = vsub.f32 1.0, %v6212
      %v6214 = vmul.f32 %v6211, %v6213
      %v6215 = vadd.f32 %v6211, %v6214
      %vm6216 = vweird.f32 %v5787
      %vm6217 = vweird.f32 %v6211
      %vm6218 = vmor %vm6216, %vm6217
      %v6219 = vsel %vm6218, %v6211, %v6215
      %v6220 = vand.u32 2147483647, %v5787
      %vm6221 = vcmp.eq.f32.partialorder %v6220, 8.507059e+37
      %v6222 = vand.u32 %v5787, 2147483648
      %v6223 = vor.u32 1.1754944e-38, %v6222
      %v6224 = vsel %vm6221, %v6223, %v6219
      %v6225 = vrcp.pop %v5790
      %v6226 = vmul.f32 %v5790, %v6225
      %v6227 = vsub.f32 1.0, %v6226
      %v6228 = vmul.f32 %v6225, %v6227
      %v6229 = vadd.f32 %v6225, %v6228
      %vm6230 = vweird.f32 %v5790
      %vm6231 = vweird.f32 %v6225
      %vm6232 = vmor %vm6230, %vm6231
      %v6233 = vsel %vm6232, %v6225, %v6229
      %v6234 = vand.u32 2147483647, %v5790
      %vm6235 = vcmp.eq.f32.partialorder %v6234, 8.507059e+37
      %v6236 = vand.u32 %v5790, 2147483648
      %v6237 = vor.u32 1.1754944e-38, %v6236
      %v6238 = vsel %vm6235, %v6237, %v6233
      %v6239 = vmul.f32 %v5568, %v5804
      %v6240 = vmul.f32 %v5570, %v5804
      %v6241 = vmul.f32 %v5572, %v5818
      %v6242 = vmul.f32 %v5574, %v5818
      %v6243 = vmul.f32 %v5576, %v5832
      %v6244 = vmul.f32 %v5578, %v5832
      %v6245 = vmul.f32 %v5580, %v5846
      %v6246 = vmul.f32 %v5582, %v5846
      %v6247 = vmul.f32 %v5584, %v5860
      %v6248 = vmul.f32 %v5586, %v5860
      %v6249 = vmul.f32 %v5588, %v5874
      %v6250 = vmul.f32 %v5590, %v5874
      %v6251 = vmul.f32 %v5592, %v5888
      %v6252 = vmul.f32 %v5594, %v5888
      %v6253 = vmul.f32 %v5596, %v5902
      %v6254 = vmul.f32 %v5598, %v5902
      %v6255 = vmul.f32 %v5600, %v5916
      %v6256 = vmul.f32 %v5602, %v5916
      %v6257 = vmul.f32 %v5604, %v5930
      %v6258 = vmul.f32 %v5606, %v5930
      %v6259 = vmul.f32 %v5608, %v5944
      %v6260 = vmul.f32 %v5610, %v5944
      %v6261 = vmul.f32 %v5612, %v5958
      %v6262 = vmul.f32 %v5614, %v5958
      %v6263 = vmul.f32 %v5616, %v5972
      %v6264 = vmul.f32 %v5618, %v5972
      %v6265 = vmul.f32 %v5620, %v5986
      %v6266 = vmul.f32 %v5622, %v5986
      %v6267 = vmul.f32 %v5624, %v6000
      %v6268 = vmul.f32 %v5626, %v6000
      %v6269 = vmul.f32 %v5628, %v6014
      %v6270 = vmul.f32 %v5630, %v6014
      %v6271 = vmul.f32 %v5632, %v6028
      %v6272 = vmul.f32 %v5634, %v6028
      %v6273 = vmul.f32 %v5636, %v6042
      %v6274 = vmul.f32 %v5638, %v6042
      %v6275 = vmul.f32 %v5640, %v6056
      %v6276 = vmul.f32 %v5642, %v6056
      %v6277 = vmul.f32 %v5644, %v6070
      %v6278 = vmul.f32 %v5646, %v6070
      %v6279 = vmul.f32 %v5648, %v6084
      %v6280 = vmul.f32 %v5650, %v6084
      %v6281 = vmul.f32 %v5652, %v6098
      %v6282 = vmul.f32 %v5654, %v6098
      %v6283 = vmul.f32 %v5656, %v6112
      %v6284 = vmul.f32 %v5658, %v6112
      %v6285 = vmul.f32 %v5660, %v6126
      %v6286 = vmul.f32 %v5662, %v6126
      %v6287 = vmul.f32 %v5664, %v6140
      %v6288 = vmul.f32 %v5666, %v6140
      %v6289 = vmul.f32 %v5668, %v6154
      %v6290 = vmul.f32 %v5670, %v6154
      %v6291 = vmul.f32 %v5672, %v6168
      %v6292 = vmul.f32 %v5674, %v6168
      %v6293 = vmul.f32 %v5676, %v6182
      %v6294 = vmul.f32 %v5678, %v6182
      %v6295 = vmul.f32 %v5680, %v6196
      %v6296 = vmul.f32 %v5682, %v6196
      %v6297 = vmul.f32 %v5684, %v6210
      %v6298 = vmul.f32 %v5686, %v6210
      %v6299 = vmul.f32 %v5688, %v6224
      %v6300 = vmul.f32 %v5690, %v6224
      %v6301 = vmul.f32 %v5692, %v6238
      %v6302 = vmul.f32 %v5694, %v6238
      %6303 = vmatpush.xpose.msra.mxu0 %v6269
      %6304 = vmatpush.xpose.msra.mxu0 %v6267
      %6305 = vmatpush.xpose.msra.mxu0 %v6265
      %6306 = vmatpush.xpose.msra.mxu0 %v6263
      %6307 = vmatpush.xpose.msra.mxu0 %v6261
      %6308 = vmatpush.xpose.msra.mxu0 %v6259
      %6309 = vmatpush.xpose.msra.mxu0 %v6257
      %6310 = vmatpush.xpose.msra.mxu0 %v6255
      %6311 = vmatpush.xpose.msra.mxu0 %v6253
      %6312 = vmatpush.xpose.msra.mxu0 %v6251
      %6313 = vmatpush.xpose.msra.mxu0 %v6249
      %6314 = vmatpush.xpose.msra.mxu0 %v6247
      %6315 = vmatpush.xpose.msra.mxu0 %v6245
      %6316 = vmatpush.xpose.msra.mxu0 %v6243
      %6317 = vmatpush.xpose.msra.mxu0 %v6241
      %6318 = vmatpush.xpose.msra.mxu0 %v6239
      %6319 = vmatmul.f32.gmra.mxu0 %v653
      %v6320 = vpop.f32.mrf.mxu0
      %v6321 = vadd.f32 0.0, %v6320
      %6322 = vdwg.mxu0
      %6323 = vmatpush.xpose.msra.mxu0 %v6270
      %6324 = vmatpush.xpose.msra.mxu0 %v6268
      %6325 = vmatpush.xpose.msra.mxu0 %v6266
      %6326 = vmatpush.xpose.msra.mxu0 %v6264
      %6327 = vmatpush.xpose.msra.mxu0 %v6262
      %6328 = vmatpush.xpose.msra.mxu0 %v6260
      %6329 = vmatpush.xpose.msra.mxu0 %v6258
      %6330 = vmatpush.xpose.msra.mxu0 %v6256
      %6331 = vmatpush.xpose.msra.mxu0 %v6254
      %6332 = vmatpush.xpose.msra.mxu0 %v6252
      %6333 = vmatpush.xpose.msra.mxu0 %v6250
      %6334 = vmatpush.xpose.msra.mxu0 %v6248
      %6335 = vmatpush.xpose.msra.mxu0 %v6246
      %6336 = vmatpush.xpose.msra.mxu0 %v6244
      %6337 = vmatpush.xpose.msra.mxu0 %v6242
      %6338 = vmatpush.xpose.msra.mxu0 %v6240
      %6339 = vmatmul.f32.gmra.mxu0 %v706
      %v6340 = vpop.f32.mrf.mxu0
      %v6341 = vadd.f32 %v6321, %v6340
      %6342 = vdwg.mxu0
      %6343 = vmatpush.xpose.msra.mxu0 %v6301
      %6344 = vmatpush.xpose.msra.mxu0 %v6299
      %6345 = vmatpush.xpose.msra.mxu0 %v6297
      %6346 = vmatpush.xpose.msra.mxu0 %v6295
      %6347 = vmatpush.xpose.msra.mxu0 %v6293
      %6348 = vmatpush.xpose.msra.mxu0 %v6291
      %6349 = vmatpush.xpose.msra.mxu0 %v6289
      %6350 = vmatpush.xpose.msra.mxu0 %v6287
      %6351 = vmatpush.xpose.msra.mxu0 %v6285
      %6352 = vmatpush.xpose.msra.mxu0 %v6283
      %6353 = vmatpush.xpose.msra.mxu0 %v6281
      %6354 = vmatpush.xpose.msra.mxu0 %v6279
      %6355 = vmatpush.xpose.msra.mxu0 %v6277
      %6356 = vmatpush.xpose.msra.mxu0 %v6275
      %6357 = vmatpush.xpose.msra.mxu0 %v6273
      %6358 = vmatpush.xpose.msra.mxu0 %v6271
      %6359 = vmatmul.f32.gmra.mxu0 %v653
      %v6360 = vpop.f32.mrf.mxu0
      %v6361 = vadd.f32 0.0, %v6360
      %6362 = vdwg.mxu0
      %6363 = vmatpush.xpose.msra.mxu0 %v6302
      %6364 = vmatpush.xpose.msra.mxu0 %v6300
      %6365 = vmatpush.xpose.msra.mxu0 %v6298
      %6366 = vmatpush.xpose.msra.mxu0 %v6296
      %6367 = vmatpush.xpose.msra.mxu0 %v6294
      %6368 = vmatpush.xpose.msra.mxu0 %v6292
      %6369 = vmatpush.xpose.msra.mxu0 %v6290
      %6370 = vmatpush.xpose.msra.mxu0 %v6288
      %6371 = vmatpush.xpose.msra.mxu0 %v6286
      %6372 = vmatpush.xpose.msra.mxu0 %v6284
      %6373 = vmatpush.xpose.msra.mxu0 %v6282
      %6374 = vmatpush.xpose.msra.mxu0 %v6280
      %6375 = vmatpush.xpose.msra.mxu0 %v6278
      %6376 = vmatpush.xpose.msra.mxu0 %v6276
      %6377 = vmatpush.xpose.msra.mxu0 %v6274
      %6378 = vmatpush.xpose.msra.mxu0 %v6272
      %6379 = vmatmul.f32.gmra.mxu0 %v706
      %v6380 = vpop.f32.mrf.mxu0
      %v6381 = vadd.f32 %v6361, %v6380
      %6382 = vdwg.mxu0
      %6383 = vrot.lane.b32.xlu0 %v304, 104
      %v6384 = vpop.permute.xlu0 %6383
      %6385 = vrot.lane.b32.xlu0 %v305, 104
      %v6386 = vpop.permute.xlu0 %6385
      %6387 = vrot.lane.b32.xlu0 %v306, 104
      %v6388 = vpop.permute.xlu0 %6387
      %6389 = vrot.lane.b32.xlu0 %v307, 104
      %v6390 = vpop.permute.xlu0 %6389
      %v6391 = vsel %vm772, %v6384, 0
      %v6393 = vsel %vm772, %v6386, 0
      %v6395 = vsel %vm772, %v6388, 0
      %v6397 = vsel %vm772, %v6390, 0
      %6399 = vmatpush.msra.mxu0 0.0
      %6400 = vmatpush.msra.mxu0 0.0
      %6401 = vmatpush.msra.mxu0 0.0
      %6402 = vmatpush.msra.mxu0 0.0
      %6403 = vmatpush.msra.mxu0 0.0
      %6404 = vmatpush.msra.mxu0 0.0
      %6405 = vmatpush.msra.mxu0 0.0
      %6406 = vmatpush.msra.mxu0 0.0
      %6407 = vmatpush.msra.mxu0 0.0
      %6408 = vmatpush.msra.mxu0 0.0
      %6409 = vmatpush.msra.mxu0 0.0
      %6410 = vmatpush.msra.mxu0 0.0
      %6411 = vmatpush.msra.mxu0 0.0
      %6412 = vmatpush.msra.mxu0 0.0
      %6413 = vmatpush.msra.mxu0 0.0
      %6414 = vmatpush.msra.mxu0 %v6341
      %6415 = vmatmul.f32.gmra.mxu0 %v6391
      %v6416 = vpop.f32.mrf.mxu0
      %v6417 = vadd.f32 0.0, %v6416
      %6418 = vmatmul.f32.gmra.mxu0 %v6393
      %v6419 = vpop.f32.mrf.mxu0
      %v6420 = vadd.f32 0.0, %v6419
      %6421 = vmatmul.f32.gmra.mxu0 %v6395
      %v6422 = vpop.f32.mrf.mxu0
      %v6423 = vadd.f32 0.0, %v6422
      %6424 = vmatmul.f32.gmra.mxu0 %v6397
      %v6425 = vpop.f32.mrf.mxu0
      %v6426 = vadd.f32 0.0, %v6425
      %6427 = vdwg.mxu0
      %6428 = vmatpush.msra.mxu0 0.0
      %6429 = vmatpush.msra.mxu0 0.0
      %6430 = vmatpush.msra.mxu0 0.0
      %6431 = vmatpush.msra.mxu0 0.0
      %6432 = vmatpush.msra.mxu0 0.0
      %6433 = vmatpush.msra.mxu0 0.0
      %6434 = vmatpush.msra.mxu0 0.0
      %6435 = vmatpush.msra.mxu0 0.0
      %6436 = vmatpush.msra.mxu0 0.0
      %6437 = vmatpush.msra.mxu0 0.0
      %6438 = vmatpush.msra.mxu0 0.0
      %6439 = vmatpush.msra.mxu0 0.0
      %6440 = vmatpush.msra.mxu0 0.0
      %6441 = vmatpush.msra.mxu0 0.0
      %6442 = vmatpush.msra.mxu0 0.0
      %6443 = vmatpush.msra.mxu0 %v6381
      %6444 = vmatmul.f32.gmra.mxu0 %v6391
      %v6445 = vpop.f32.mrf.mxu0
      %v6446 = vadd.f32 0.0, %v6445
      %6447 = vmatmul.f32.gmra.mxu0 %v6393
      %v6448 = vpop.f32.mrf.mxu0
      %v6449 = vadd.f32 0.0, %v6448
      %6450 = vmatmul.f32.gmra.mxu0 %v6395
      %v6451 = vpop.f32.mrf.mxu0
      %v6452 = vadd.f32 0.0, %v6451
      %6453 = vmatmul.f32.gmra.mxu0 %v6397
      %v6454 = vpop.f32.mrf.mxu0
      %v6455 = vadd.f32 0.0, %v6454
      %6456 = vdwg.mxu0
      %v6457 = vadd.f32 %v5013, %v6417
      %v6458 = vadd.f32 %v5014, %v6446
      %v6459 = vadd.f32 %v5015, %v6420
      %v6460 = vadd.f32 %v5016, %v6449
      %v6461 = vadd.f32 %v5017, %v6423
      %v6462 = vadd.f32 %v5018, %v6452
      %v6463 = vadd.f32 %v5019, %v6426
      %v6464 = vadd.f32 %v5020, %v6455
      %v6465 = vadd.f32 %v252, %v6457
      %v6466 = vadd.f32 %v281, %v6458
      %v6467 = vadd.f32 %v255, %v6459
      %v6468 = vadd.f32 %v284, %v6460
      %v6469 = vadd.f32 %v258, %v6461
      %v6470 = vadd.f32 %v287, %v6462
      %v6471 = vadd.f32 %v261, %v6463
      %v6472 = vadd.f32 %v290, %v6464
      %6474 = vset.pattern.permute.xlu0 0
      %6475 = vperm.xlu0 %6474, %v336
      %v6476 = vpop.permute.xlu0 %6475
      %6479 = vset.pattern.permute.xlu0 0
      %6480 = vperm.xlu0 %6479, %v337
      %v6481 = vpop.permute.xlu0 %6480
      %6484 = vset.pattern.permute.xlu0 0
      %6485 = vperm.xlu0 %6484, %v338
      %v6486 = vpop.permute.xlu0 %6485
      %6489 = vset.pattern.permute.xlu0 0
      %6490 = vperm.xlu0 %6489, %v339
      %v6491 = vpop.permute.xlu0 %6490
      %v6493 = vadd.f32 %v6465, %v6476
      %v6494 = vadd.f32 %v6466, %v6476
      %v6495 = vadd.f32 %v6467, %v6481
      %v6496 = vadd.f32 %v6468, %v6481
      %v6497 = vadd.f32 %v6469, %v6486
      %v6498 = vadd.f32 %v6470, %v6486
      %v6499 = vadd.f32 %v6471, %v6491
      %v6500 = vadd.f32 %v6472, %v6491
      %v6501 = vadd.f32 %v6493, %v6495
      %v6502 = vadd.f32 %v6501, %v6497
      %v6503 = vadd.f32 %v6502, %v6499
      %v6504 = vrot.slane %v6503, 4
      %v6505 = vadd.f32 %v6503, %v6504
      %v6506 = vrot.slane %v6505, 2
      %v6507 = vadd.f32 %v6505, %v6506
      %v6508 = vrot.slane %v6507, 1
      %v6509 = vadd.f32 %v6507, %v6508
      %v6510 = vadd.f32 %v6494, %v6496
      %v6511 = vadd.f32 %v6510, %v6498
      %v6512 = vadd.f32 %v6511, %v6500
      %v6513 = vrot.slane %v6512, 4
      %v6514 = vadd.f32 %v6512, %v6513
      %v6515 = vrot.slane %v6514, 2
      %v6516 = vadd.f32 %v6514, %v6515
      %v6517 = vrot.slane %v6516, 1
      %v6518 = vadd.f32 %v6516, %v6517
      %v6519 = vmul.f32 %v6509, %v380
      %v6520 = vmul.f32 %v6518, %v380
      %v6521 = vsub.f32 %v6493, %v6519
      %v6522 = vsub.f32 %v6494, %v6520
      %v6523 = vsub.f32 %v6495, %v6519
      %v6524 = vsub.f32 %v6496, %v6520
      %v6525 = vsub.f32 %v6497, %v6519
      %v6526 = vsub.f32 %v6498, %v6520
      %v6527 = vsub.f32 %v6499, %v6519
      %v6528 = vsub.f32 %v6500, %v6520
      %v6529 = vmul.f32 %v6521, %v6521
      %v6530 = vmul.f32 %v6522, %v6522
      %v6531 = vmul.f32 %v6523, %v6523
      %v6532 = vmul.f32 %v6524, %v6524
      %v6533 = vmul.f32 %v6525, %v6525
      %v6534 = vmul.f32 %v6526, %v6526
      %v6535 = vmul.f32 %v6527, %v6527
      %v6536 = vmul.f32 %v6528, %v6528
      %v6537 = vadd.f32 %v6529, %v6531
      %v6538 = vadd.f32 %v6537, %v6533
      %v6539 = vadd.f32 %v6538, %v6535
      %v6540 = vrot.slane %v6539, 4
      %v6541 = vadd.f32 %v6539, %v6540
      %v6542 = vrot.slane %v6541, 2
      %v6543 = vadd.f32 %v6541, %v6542
      %v6544 = vrot.slane %v6543, 1
      %v6545 = vadd.f32 %v6543, %v6544
      %v6546 = vadd.f32 %v6530, %v6532
      %v6547 = vadd.f32 %v6546, %v6534
      %v6548 = vadd.f32 %v6547, %v6536
      %v6549 = vrot.slane %v6548, 4
      %v6550 = vadd.f32 %v6548, %v6549
      %v6551 = vrot.slane %v6550, 2
      %v6552 = vadd.f32 %v6550, %v6551
      %v6553 = vrot.slane %v6552, 1
      %v6554 = vadd.f32 %v6552, %v6553
      %v6555 = vmul.f32 %v6545, %v380
      %v6556 = vmul.f32 %v6554, %v380
      %v6557 = vadd.f32 %v6555, 1e-05
      %v6558 = vadd.f32 %v6556, 1e-05
      %v6559 = vrsqrt.pop %v6557
      %v6560 = vmul.f32 %v6559, %v6557
      %v6561 = vmul.f32 %v6560, %v6559
      %v6562 = vmul.f32 0.5, %v6561
      %v6563 = vsub.f32 1.5, %v6562
      %v6564 = vmul.f32 %v6559, %v6563
      %vm6565 = vweird.f32 %v6557
      %vm6566 = vweird.f32 %v6559
      %vm6567 = vmor %vm6565, %vm6566
      %v6568 = vsel %vm6567, %v6559, %v6564
      %v6569 = vrsqrt.pop %v6558
      %v6570 = vmul.f32 %v6569, %v6558
      %v6571 = vmul.f32 %v6570, %v6569
      %v6572 = vmul.f32 0.5, %v6571
      %v6573 = vsub.f32 1.5, %v6572
      %v6574 = vmul.f32 %v6569, %v6573
      %vm6575 = vweird.f32 %v6558
      %vm6576 = vweird.f32 %v6569
      %vm6577 = vmor %vm6575, %vm6576
      %v6578 = vsel %vm6577, %v6569, %v6574
      %v6579 = vmul.f32 %v6521, %v6568
      %v6580 = vmul.f32 %v6522, %v6578
      %v6581 = vmul.f32 %v6523, %v6568
      %v6582 = vmul.f32 %v6524, %v6578
      %v6583 = vmul.f32 %v6525, %v6568
      %v6584 = vmul.f32 %v6526, %v6578
      %v6585 = vmul.f32 %v6527, %v6568
      %v6586 = vmul.f32 %v6528, %v6578
      %6588 = vset.pattern.permute.xlu0 0
      %6589 = vperm.xlu0 %6588, %v340
      %v6590 = vpop.permute.xlu0 %6589
      %6593 = vset.pattern.permute.xlu0 0
      %6594 = vperm.xlu0 %6593, %v341
      %v6595 = vpop.permute.xlu0 %6594
      %6598 = vset.pattern.permute.xlu0 0
      %6599 = vperm.xlu0 %6598, %v342
      %v6600 = vpop.permute.xlu0 %6599
      %6603 = vset.pattern.permute.xlu0 0
      %6604 = vperm.xlu0 %6603, %v343
      %v6605 = vpop.permute.xlu0 %6604
      %v6607 = vmul.f32 %v6579, %v6590
      %v6608 = vmul.f32 %v6580, %v6590
      %v6609 = vmul.f32 %v6581, %v6595
      %v6610 = vmul.f32 %v6582, %v6595
      %v6611 = vmul.f32 %v6583, %v6600
      %v6612 = vmul.f32 %v6584, %v6600
      %v6613 = vmul.f32 %v6585, %v6605
      %v6614 = vmul.f32 %v6586, %v6605
      %6616 = vset.pattern.permute.xlu0 0
      %6617 = vperm.xlu0 %6616, %v344
      %v6618 = vpop.permute.xlu0 %6617
      %6621 = vset.pattern.permute.xlu0 0
      %6622 = vperm.xlu0 %6621, %v345
      %v6623 = vpop.permute.xlu0 %6622
      %6626 = vset.pattern.permute.xlu0 0
      %6627 = vperm.xlu0 %6626, %v346
      %v6628 = vpop.permute.xlu0 %6627
      %6631 = vset.pattern.permute.xlu0 0
      %6632 = vperm.xlu0 %6631, %v347
      %v6633 = vpop.permute.xlu0 %6632
      %v6635 = vadd.f32 %v6607, %v6618
      %v6636 = vadd.f32 %v6608, %v6618
      %v6637 = vadd.f32 %v6609, %v6623
      %v6638 = vadd.f32 %v6610, %v6623
      %v6639 = vadd.f32 %v6611, %v6628
      %v6640 = vadd.f32 %v6612, %v6628
      %v6641 = vadd.f32 %v6613, %v6633
      %v6642 = vadd.f32 %v6614, %v6633
      %6644 = vset.pattern.permute.xlu0 0
      %6645 = vperm.xlu0 %6644, %v348
      %v6646 = vpop.permute.xlu0 %6645
      %6649 = vset.pattern.permute.xlu0 0
      %6650 = vperm.xlu0 %6649, %v349
      %v6651 = vpop.permute.xlu0 %6650
      %6654 = vset.pattern.permute.xlu0 0
      %6655 = vperm.xlu0 %6654, %v350
      %v6656 = vpop.permute.xlu0 %6655
      %6659 = vset.pattern.permute.xlu0 0
      %6660 = vperm.xlu0 %6659, %v351
      %v6661 = vpop.permute.xlu0 %6660
      %v6664 = vsel %vm565, %v308, 0
      %v6667 = vsel %vm565, %v309, 0
      %v6670 = vsel %vm565, %v310, 0
      %v6673 = vsel %vm565, %v311, 0
      %6675 = vmatpush.msra.mxu0 0.0
      %6676 = vmatpush.msra.mxu0 0.0
      %6677 = vmatpush.msra.mxu0 0.0
      %6678 = vmatpush.msra.mxu0 0.0
      %6679 = vmatpush.msra.mxu0 0.0
      %6680 = vmatpush.msra.mxu0 0.0
      %6681 = vmatpush.msra.mxu0 0.0
      %6682 = vmatpush.msra.mxu0 0.0
      %6683 = vmatpush.msra.mxu0 0.0
      %6684 = vmatpush.msra.mxu0 0.0
      %6685 = vmatpush.msra.mxu0 0.0
      %6686 = vmatpush.msra.mxu0 0.0
      %6687 = vmatpush.msra.mxu0 %v6641
      %6688 = vmatpush.msra.mxu0 %v6639
      %6689 = vmatpush.msra.mxu0 %v6637
      %6690 = vmatpush.msra.mxu0 %v6635
      %6691 = vmatmul.f32.gmra.mxu0 %v6664
      %v6692 = vpop.f32.mrf.mxu0
      %v6693 = vadd.f32 %v6646, %v6692
      %6694 = vmatmul.f32.gmra.mxu0 %v6667
      %v6695 = vpop.f32.mrf.mxu0
      %v6696 = vadd.f32 %v6651, %v6695
      %6697 = vmatmul.f32.gmra.mxu0 %v6670
      %v6698 = vpop.f32.mrf.mxu0
      %v6699 = vadd.f32 %v6656, %v6698
      %6700 = vmatmul.f32.gmra.mxu0 %v6673
      %v6701 = vpop.f32.mrf.mxu0
      %v6702 = vadd.f32 %v6661, %v6701
      %6703 = vdwg.mxu0
      %6704 = vmatpush.msra.mxu0 0.0
      %6705 = vmatpush.msra.mxu0 0.0
      %6706 = vmatpush.msra.mxu0 0.0
      %6707 = vmatpush.msra.mxu0 0.0
      %6708 = vmatpush.msra.mxu0 0.0
      %6709 = vmatpush.msra.mxu0 0.0
      %6710 = vmatpush.msra.mxu0 0.0
      %6711 = vmatpush.msra.mxu0 0.0
      %6712 = vmatpush.msra.mxu0 0.0
      %6713 = vmatpush.msra.mxu0 0.0
      %6714 = vmatpush.msra.mxu0 0.0
      %6715 = vmatpush.msra.mxu0 0.0
      %6716 = vmatpush.msra.mxu0 %v6642
      %6717 = vmatpush.msra.mxu0 %v6640
      %6718 = vmatpush.msra.mxu0 %v6638
      %6719 = vmatpush.msra.mxu0 %v6636
      %6720 = vmatmul.f32.gmra.mxu0 %v6664
      %v6721 = vpop.f32.mrf.mxu0
      %v6722 = vadd.f32 %v6646, %v6721
      %6723 = vmatmul.f32.gmra.mxu0 %v6667
      %v6724 = vpop.f32.mrf.mxu0
      %v6725 = vadd.f32 %v6651, %v6724
      %6726 = vmatmul.f32.gmra.mxu0 %v6670
      %v6727 = vpop.f32.mrf.mxu0
      %v6728 = vadd.f32 %v6656, %v6727
      %6729 = vmatmul.f32.gmra.mxu0 %v6673
      %v6730 = vpop.f32.mrf.mxu0
      %v6731 = vadd.f32 %v6661, %v6730
      %6732 = vdwg.mxu0
      %v6733 = vmul.f32 %v6693, 0.5
      %v6734 = vmul.f32 %v6722, 0.5
      %v6735 = vmul.f32 %v6696, 0.5
      %v6736 = vmul.f32 %v6725, 0.5
      %v6737 = vmul.f32 %v6699, 0.5
      %v6738 = vmul.f32 %v6728, 0.5
      %v6739 = vmul.f32 %v6702, 0.5
      %v6740 = vmul.f32 %v6731, 0.5
      %v6741 = vmul.f32 %v6693, 0.70710677
      %v6742 = vmul.f32 %v6722, 0.70710677
      %v6743 = vmul.f32 %v6696, 0.70710677
      %v6744 = vmul.f32 %v6725, 0.70710677
      %v6745 = vmul.f32 %v6699, 0.70710677
      %v6746 = vmul.f32 %v6728, 0.70710677
      %v6747 = vmul.f32 %v6702, 0.70710677
      %v6748 = vmul.f32 %v6731, 0.70710677
      %v6749 = vmul.f32 %v6741, %v6741
      %v6750 = vmin.f32 16.0, %v6749
      %v6751 = vmul.f32 %v6750, 2.1237322e-06
      %v6752 = vadd.f32 %v6751, 0.00028619796
      %v6753 = vmul.f32 %v6750, %v6752
      %v6754 = vadd.f32 %v6753, 0.0036580483
      %v6755 = vmul.f32 %v6750, %v6754
      %v6756 = vadd.f32 %v6755, 0.05243302
      %v6757 = vmul.f32 %v6750, %v6756
      %v6758 = vadd.f32 %v6757, 0.18741608
      %v6759 = vmul.f32 %v6750, %v6758
      %v6760 = vadd.f32 %v6759, 1.1283791
      %v6761 = vmul.f32 %v6741, %v6760
      %v6762 = vmul.f32 %v6750, 3.8918573e-05
      %v6763 = vadd.f32 %v6762, 0.001143296
      %v6764 = vmul.f32 %v6750, %v6763
      %v6765 = vadd.f32 %v6764, 0.014752088
      %v6766 = vmul.f32 %v6750, %v6765
      %v6767 = vadd.f32 %v6766, 0.112945676
      %v6768 = vmul.f32 %v6750, %v6767
      %v6769 = vadd.f32 %v6768, 0.4994258
      %v6770 = vmul.f32 %v6750, %v6769
      %v6771 = vadd.f32 %v6770, 1.0
      %v6772 = vrcp.pop %v6771
      %v6773 = vmul.f32 %v6771, %v6772
      %v6774 = vsub.f32 1.0, %v6773
      %v6775 = vmul.f32 %v6772, %v6774
      %v6776 = vadd.f32 %v6772, %v6775
      %vm6777 = vweird.f32 %v6771
      %vm6778 = vweird.f32 %v6772
      %vm6779 = vmor %vm6777, %vm6778
      %v6780 = vsel %vm6779, %v6772, %v6776
      %v6781 = vand.u32 2147483647, %v6771
      %vm6782 = vcmp.eq.f32.partialorder %v6781, 8.507059e+37
      %v6783 = vand.u32 %v6771, 2147483648
      %v6784 = vor.u32 1.1754944e-38, %v6783
      %v6785 = vsel %vm6782, %v6784, %v6780
      %v6786 = vmul.f32 %v6761, %v6785
      %v6787 = vmin.f32 %v6786, 1.0
      %v6788 = vmax.f32 %v6787, -1.0
      %v6789 = vmul.f32 %v6742, %v6742
      %v6790 = vmin.f32 16.0, %v6789
      %v6791 = vmul.f32 %v6790, 2.1237322e-06
      %v6792 = vadd.f32 %v6791, 0.00028619796
      %v6793 = vmul.f32 %v6790, %v6792
      %v6794 = vadd.f32 %v6793, 0.0036580483
      %v6795 = vmul.f32 %v6790, %v6794
      %v6796 = vadd.f32 %v6795, 0.05243302
      %v6797 = vmul.f32 %v6790, %v6796
      %v6798 = vadd.f32 %v6797, 0.18741608
      %v6799 = vmul.f32 %v6790, %v6798
      %v6800 = vadd.f32 %v6799, 1.1283791
      %v6801 = vmul.f32 %v6742, %v6800
      %v6802 = vmul.f32 %v6790, 3.8918573e-05
      %v6803 = vadd.f32 %v6802, 0.001143296
      %v6804 = vmul.f32 %v6790, %v6803
      %v6805 = vadd.f32 %v6804, 0.014752088
      %v6806 = vmul.f32 %v6790, %v6805
      %v6807 = vadd.f32 %v6806, 0.112945676
      %v6808 = vmul.f32 %v6790, %v6807
      %v6809 = vadd.f32 %v6808, 0.4994258
      %v6810 = vmul.f32 %v6790, %v6809
      %v6811 = vadd.f32 %v6810, 1.0
      %v6812 = vrcp.pop %v6811
      %v6813 = vmul.f32 %v6811, %v6812
      %v6814 = vsub.f32 1.0, %v6813
      %v6815 = vmul.f32 %v6812, %v6814
      %v6816 = vadd.f32 %v6812, %v6815
      %vm6817 = vweird.f32 %v6811
      %vm6818 = vweird.f32 %v6812
      %vm6819 = vmor %vm6817, %vm6818
      %v6820 = vsel %vm6819, %v6812, %v6816
      %v6821 = vand.u32 2147483647, %v6811
      %vm6822 = vcmp.eq.f32.partialorder %v6821, 8.507059e+37
      %v6823 = vand.u32 %v6811, 2147483648
      %v6824 = vor.u32 1.1754944e-38, %v6823
      %v6825 = vsel %vm6822, %v6824, %v6820
      %v6826 = vmul.f32 %v6801, %v6825
      %v6827 = vmin.f32 %v6826, 1.0
      %v6828 = vmax.f32 %v6827, -1.0
      %v6829 = vmul.f32 %v6743, %v6743
      %v6830 = vmin.f32 16.0, %v6829
      %v6831 = vmul.f32 %v6830, 2.1237322e-06
      %v6832 = vadd.f32 %v6831, 0.00028619796
      %v6833 = vmul.f32 %v6830, %v6832
      %v6834 = vadd.f32 %v6833, 0.0036580483
      %v6835 = vmul.f32 %v6830, %v6834
      %v6836 = vadd.f32 %v6835, 0.05243302
      %v6837 = vmul.f32 %v6830, %v6836
      %v6838 = vadd.f32 %v6837, 0.18741608
      %v6839 = vmul.f32 %v6830, %v6838
      %v6840 = vadd.f32 %v6839, 1.1283791
      %v6841 = vmul.f32 %v6743, %v6840
      %v6842 = vmul.f32 %v6830, 3.8918573e-05
      %v6843 = vadd.f32 %v6842, 0.001143296
      %v6844 = vmul.f32 %v6830, %v6843
      %v6845 = vadd.f32 %v6844, 0.014752088
      %v6846 = vmul.f32 %v6830, %v6845
      %v6847 = vadd.f32 %v6846, 0.112945676
      %v6848 = vmul.f32 %v6830, %v6847
      %v6849 = vadd.f32 %v6848, 0.4994258
      %v6850 = vmul.f32 %v6830, %v6849
      %v6851 = vadd.f32 %v6850, 1.0
      %v6852 = vrcp.pop %v6851
      %v6853 = vmul.f32 %v6851, %v6852
      %v6854 = vsub.f32 1.0, %v6853
      %v6855 = vmul.f32 %v6852, %v6854
      %v6856 = vadd.f32 %v6852, %v6855
      %vm6857 = vweird.f32 %v6851
      %vm6858 = vweird.f32 %v6852
      %vm6859 = vmor %vm6857, %vm6858
      %v6860 = vsel %vm6859, %v6852, %v6856
      %v6861 = vand.u32 2147483647, %v6851
      %vm6862 = vcmp.eq.f32.partialorder %v6861, 8.507059e+37
      %v6863 = vand.u32 %v6851, 2147483648
      %v6864 = vor.u32 1.1754944e-38, %v6863
      %v6865 = vsel %vm6862, %v6864, %v6860
      %v6866 = vmul.f32 %v6841, %v6865
      %v6867 = vmin.f32 %v6866, 1.0
      %v6868 = vmax.f32 %v6867, -1.0
      %v6869 = vmul.f32 %v6744, %v6744
      %v6870 = vmin.f32 16.0, %v6869
      %v6871 = vmul.f32 %v6870, 2.1237322e-06
      %v6872 = vadd.f32 %v6871, 0.00028619796
      %v6873 = vmul.f32 %v6870, %v6872
      %v6874 = vadd.f32 %v6873, 0.0036580483
      %v6875 = vmul.f32 %v6870, %v6874
      %v6876 = vadd.f32 %v6875, 0.05243302
      %v6877 = vmul.f32 %v6870, %v6876
      %v6878 = vadd.f32 %v6877, 0.18741608
      %v6879 = vmul.f32 %v6870, %v6878
      %v6880 = vadd.f32 %v6879, 1.1283791
      %v6881 = vmul.f32 %v6744, %v6880
      %v6882 = vmul.f32 %v6870, 3.8918573e-05
      %v6883 = vadd.f32 %v6882, 0.001143296
      %v6884 = vmul.f32 %v6870, %v6883
      %v6885 = vadd.f32 %v6884, 0.014752088
      %v6886 = vmul.f32 %v6870, %v6885
      %v6887 = vadd.f32 %v6886, 0.112945676
      %v6888 = vmul.f32 %v6870, %v6887
      %v6889 = vadd.f32 %v6888, 0.4994258
      %v6890 = vmul.f32 %v6870, %v6889
      %v6891 = vadd.f32 %v6890, 1.0
      %v6892 = vrcp.pop %v6891
      %v6893 = vmul.f32 %v6891, %v6892
      %v6894 = vsub.f32 1.0, %v6893
      %v6895 = vmul.f32 %v6892, %v6894
      %v6896 = vadd.f32 %v6892, %v6895
      %vm6897 = vweird.f32 %v6891
      %vm6898 = vweird.f32 %v6892
      %vm6899 = vmor %vm6897, %vm6898
      %v6900 = vsel %vm6899, %v6892, %v6896
      %v6901 = vand.u32 2147483647, %v6891
      %vm6902 = vcmp.eq.f32.partialorder %v6901, 8.507059e+37
      %v6903 = vand.u32 %v6891, 2147483648
      %v6904 = vor.u32 1.1754944e-38, %v6903
      %v6905 = vsel %vm6902, %v6904, %v6900
      %v6906 = vmul.f32 %v6881, %v6905
      %v6907 = vmin.f32 %v6906, 1.0
      %v6908 = vmax.f32 %v6907, -1.0
      %v6909 = vmul.f32 %v6745, %v6745
      %v6910 = vmin.f32 16.0, %v6909
      %v6911 = vmul.f32 %v6910, 2.1237322e-06
      %v6912 = vadd.f32 %v6911, 0.00028619796
      %v6913 = vmul.f32 %v6910, %v6912
      %v6914 = vadd.f32 %v6913, 0.0036580483
      %v6915 = vmul.f32 %v6910, %v6914
      %v6916 = vadd.f32 %v6915, 0.05243302
      %v6917 = vmul.f32 %v6910, %v6916
      %v6918 = vadd.f32 %v6917, 0.18741608
      %v6919 = vmul.f32 %v6910, %v6918
      %v6920 = vadd.f32 %v6919, 1.1283791
      %v6921 = vmul.f32 %v6745, %v6920
      %v6922 = vmul.f32 %v6910, 3.8918573e-05
      %v6923 = vadd.f32 %v6922, 0.001143296
      %v6924 = vmul.f32 %v6910, %v6923
      %v6925 = vadd.f32 %v6924, 0.014752088
      %v6926 = vmul.f32 %v6910, %v6925
      %v6927 = vadd.f32 %v6926, 0.112945676
      %v6928 = vmul.f32 %v6910, %v6927
      %v6929 = vadd.f32 %v6928, 0.4994258
      %v6930 = vmul.f32 %v6910, %v6929
      %v6931 = vadd.f32 %v6930, 1.0
      %v6932 = vrcp.pop %v6931
      %v6933 = vmul.f32 %v6931, %v6932
      %v6934 = vsub.f32 1.0, %v6933
      %v6935 = vmul.f32 %v6932, %v6934
      %v6936 = vadd.f32 %v6932, %v6935
      %vm6937 = vweird.f32 %v6931
      %vm6938 = vweird.f32 %v6932
      %vm6939 = vmor %vm6937, %vm6938
      %v6940 = vsel %vm6939, %v6932, %v6936
      %v6941 = vand.u32 2147483647, %v6931
      %vm6942 = vcmp.eq.f32.partialorder %v6941, 8.507059e+37
      %v6943 = vand.u32 %v6931, 2147483648
      %v6944 = vor.u32 1.1754944e-38, %v6943
      %v6945 = vsel %vm6942, %v6944, %v6940
      %v6946 = vmul.f32 %v6921, %v6945
      %v6947 = vmin.f32 %v6946, 1.0
      %v6948 = vmax.f32 %v6947, -1.0
      %v6949 = vmul.f32 %v6746, %v6746
      %v6950 = vmin.f32 16.0, %v6949
      %v6951 = vmul.f32 %v6950, 2.1237322e-06
      %v6952 = vadd.f32 %v6951, 0.00028619796
      %v6953 = vmul.f32 %v6950, %v6952
      %v6954 = vadd.f32 %v6953, 0.0036580483
      %v6955 = vmul.f32 %v6950, %v6954
      %v6956 = vadd.f32 %v6955, 0.05243302
      %v6957 = vmul.f32 %v6950, %v6956
      %v6958 = vadd.f32 %v6957, 0.18741608
      %v6959 = vmul.f32 %v6950, %v6958
      %v6960 = vadd.f32 %v6959, 1.1283791
      %v6961 = vmul.f32 %v6746, %v6960
      %v6962 = vmul.f32 %v6950, 3.8918573e-05
      %v6963 = vadd.f32 %v6962, 0.001143296
      %v6964 = vmul.f32 %v6950, %v6963
      %v6965 = vadd.f32 %v6964, 0.014752088
      %v6966 = vmul.f32 %v6950, %v6965
      %v6967 = vadd.f32 %v6966, 0.112945676
      %v6968 = vmul.f32 %v6950, %v6967
      %v6969 = vadd.f32 %v6968, 0.4994258
      %v6970 = vmul.f32 %v6950, %v6969
      %v6971 = vadd.f32 %v6970, 1.0
      %v6972 = vrcp.pop %v6971
      %v6973 = vmul.f32 %v6971, %v6972
      %v6974 = vsub.f32 1.0, %v6973
      %v6975 = vmul.f32 %v6972, %v6974
      %v6976 = vadd.f32 %v6972, %v6975
      %vm6977 = vweird.f32 %v6971
      %vm6978 = vweird.f32 %v6972
      %vm6979 = vmor %vm6977, %vm6978
      %v6980 = vsel %vm6979, %v6972, %v6976
      %v6981 = vand.u32 2147483647, %v6971
      %vm6982 = vcmp.eq.f32.partialorder %v6981, 8.507059e+37
      %v6983 = vand.u32 %v6971, 2147483648
      %v6984 = vor.u32 1.1754944e-38, %v6983
      %v6985 = vsel %vm6982, %v6984, %v6980
      %v6986 = vmul.f32 %v6961, %v6985
      %v6987 = vmin.f32 %v6986, 1.0
      %v6988 = vmax.f32 %v6987, -1.0
      %v6989 = vmul.f32 %v6747, %v6747
      %v6990 = vmin.f32 16.0, %v6989
      %v6991 = vmul.f32 %v6990, 2.1237322e-06
      %v6992 = vadd.f32 %v6991, 0.00028619796
      %v6993 = vmul.f32 %v6990, %v6992
      %v6994 = vadd.f32 %v6993, 0.0036580483
      %v6995 = vmul.f32 %v6990, %v6994
      %v6996 = vadd.f32 %v6995, 0.05243302
      %v6997 = vmul.f32 %v6990, %v6996
      %v6998 = vadd.f32 %v6997, 0.18741608
      %v6999 = vmul.f32 %v6990, %v6998
      %v7000 = vadd.f32 %v6999, 1.1283791
      %v7001 = vmul.f32 %v6747, %v7000
      %v7002 = vmul.f32 %v6990, 3.8918573e-05
      %v7003 = vadd.f32 %v7002, 0.001143296
      %v7004 = vmul.f32 %v6990, %v7003
      %v7005 = vadd.f32 %v7004, 0.014752088
      %v7006 = vmul.f32 %v6990, %v7005
      %v7007 = vadd.f32 %v7006, 0.112945676
      %v7008 = vmul.f32 %v6990, %v7007
      %v7009 = vadd.f32 %v7008, 0.4994258
      %v7010 = vmul.f32 %v6990, %v7009
      %v7011 = vadd.f32 %v7010, 1.0
      %v7012 = vrcp.pop %v7011
      %v7013 = vmul.f32 %v7011, %v7012
      %v7014 = vsub.f32 1.0, %v7013
      %v7015 = vmul.f32 %v7012, %v7014
      %v7016 = vadd.f32 %v7012, %v7015
      %vm7017 = vweird.f32 %v7011
      %vm7018 = vweird.f32 %v7012
      %vm7019 = vmor %vm7017, %vm7018
      %v7020 = vsel %vm7019, %v7012, %v7016
      %v7021 = vand.u32 2147483647, %v7011
      %vm7022 = vcmp.eq.f32.partialorder %v7021, 8.507059e+37
      %v7023 = vand.u32 %v7011, 2147483648
      %v7024 = vor.u32 1.1754944e-38, %v7023
      %v7025 = vsel %vm7022, %v7024, %v7020
      %v7026 = vmul.f32 %v7001, %v7025
      %v7027 = vmin.f32 %v7026, 1.0
      %v7028 = vmax.f32 %v7027, -1.0
      %v7029 = vmul.f32 %v6748, %v6748
      %v7030 = vmin.f32 16.0, %v7029
      %v7031 = vmul.f32 %v7030, 2.1237322e-06
      %v7032 = vadd.f32 %v7031, 0.00028619796
      %v7033 = vmul.f32 %v7030, %v7032
      %v7034 = vadd.f32 %v7033, 0.0036580483
      %v7035 = vmul.f32 %v7030, %v7034
      %v7036 = vadd.f32 %v7035, 0.05243302
      %v7037 = vmul.f32 %v7030, %v7036
      %v7038 = vadd.f32 %v7037, 0.18741608
      %v7039 = vmul.f32 %v7030, %v7038
      %v7040 = vadd.f32 %v7039, 1.1283791
      %v7041 = vmul.f32 %v6748, %v7040
      %v7042 = vmul.f32 %v7030, 3.8918573e-05
      %v7043 = vadd.f32 %v7042, 0.001143296
      %v7044 = vmul.f32 %v7030, %v7043
      %v7045 = vadd.f32 %v7044, 0.014752088
      %v7046 = vmul.f32 %v7030, %v7045
      %v7047 = vadd.f32 %v7046, 0.112945676
      %v7048 = vmul.f32 %v7030, %v7047
      %v7049 = vadd.f32 %v7048, 0.4994258
      %v7050 = vmul.f32 %v7030, %v7049
      %v7051 = vadd.f32 %v7050, 1.0
      %v7052 = vrcp.pop %v7051
      %v7053 = vmul.f32 %v7051, %v7052
      %v7054 = vsub.f32 1.0, %v7053
      %v7055 = vmul.f32 %v7052, %v7054
      %v7056 = vadd.f32 %v7052, %v7055
      %vm7057 = vweird.f32 %v7051
      %vm7058 = vweird.f32 %v7052
      %vm7059 = vmor %vm7057, %vm7058
      %v7060 = vsel %vm7059, %v7052, %v7056
      %v7061 = vand.u32 2147483647, %v7051
      %vm7062 = vcmp.eq.f32.partialorder %v7061, 8.507059e+37
      %v7063 = vand.u32 %v7051, 2147483648
      %v7064 = vor.u32 1.1754944e-38, %v7063
      %v7065 = vsel %vm7062, %v7064, %v7060
      %v7066 = vmul.f32 %v7041, %v7065
      %v7067 = vmin.f32 %v7066, 1.0
      %v7068 = vmax.f32 %v7067, -1.0
      %v7069 = vadd.f32 %v6788, 1.0
      %v7070 = vadd.f32 %v6828, 1.0
      %v7071 = vadd.f32 %v6868, 1.0
      %v7072 = vadd.f32 %v6908, 1.0
      %v7073 = vadd.f32 %v6948, 1.0
      %v7074 = vadd.f32 %v6988, 1.0
      %v7075 = vadd.f32 %v7028, 1.0
      %v7076 = vadd.f32 %v7068, 1.0
      %v7077 = vmul.f32 %v6733, %v7069
      %v7078 = vmul.f32 %v6734, %v7070
      %v7079 = vmul.f32 %v6735, %v7071
      %v7080 = vmul.f32 %v6736, %v7072
      %v7081 = vmul.f32 %v6737, %v7073
      %v7082 = vmul.f32 %v6738, %v7074
      %v7083 = vmul.f32 %v6739, %v7075
      %v7084 = vmul.f32 %v6740, %v7076
      %v7086 = vsel %vm565, %v312, 0
      %v7089 = vsel %vm565, %v313, 0
      %v7092 = vsel %vm565, %v314, 0
      %v7095 = vsel %vm565, %v315, 0
      %7097 = vmatpush.msra.mxu0 0.0
      %7098 = vmatpush.msra.mxu0 0.0
      %7099 = vmatpush.msra.mxu0 0.0
      %7100 = vmatpush.msra.mxu0 0.0
      %7101 = vmatpush.msra.mxu0 0.0
      %7102 = vmatpush.msra.mxu0 0.0
      %7103 = vmatpush.msra.mxu0 0.0
      %7104 = vmatpush.msra.mxu0 0.0
      %7105 = vmatpush.msra.mxu0 0.0
      %7106 = vmatpush.msra.mxu0 0.0
      %7107 = vmatpush.msra.mxu0 0.0
      %7108 = vmatpush.msra.mxu0 0.0
      %7109 = vmatpush.msra.mxu0 %v7083
      %7110 = vmatpush.msra.mxu0 %v7081
      %7111 = vmatpush.msra.mxu0 %v7079
      %7112 = vmatpush.msra.mxu0 %v7077
      %7113 = vmatmul.f32.gmra.mxu0 %v7086
      %v7114 = vpop.f32.mrf.mxu0
      %v7115 = vadd.f32 0.0, %v7114
      %7116 = vmatmul.f32.gmra.mxu0 %v7089
      %v7117 = vpop.f32.mrf.mxu0
      %v7118 = vadd.f32 0.0, %v7117
      %7119 = vmatmul.f32.gmra.mxu0 %v7092
      %v7120 = vpop.f32.mrf.mxu0
      %v7121 = vadd.f32 0.0, %v7120
      %7122 = vmatmul.f32.gmra.mxu0 %v7095
      %v7123 = vpop.f32.mrf.mxu0
      %v7124 = vadd.f32 0.0, %v7123
      %7125 = vdwg.mxu0
      %7126 = vmatpush.msra.mxu0 0.0
      %7127 = vmatpush.msra.mxu0 0.0
      %7128 = vmatpush.msra.mxu0 0.0
      %7129 = vmatpush.msra.mxu0 0.0
      %7130 = vmatpush.msra.mxu0 0.0
      %7131 = vmatpush.msra.mxu0 0.0
      %7132 = vmatpush.msra.mxu0 0.0
      %7133 = vmatpush.msra.mxu0 0.0
      %7134 = vmatpush.msra.mxu0 0.0
      %7135 = vmatpush.msra.mxu0 0.0
      %7136 = vmatpush.msra.mxu0 0.0
      %7137 = vmatpush.msra.mxu0 0.0
      %7138 = vmatpush.msra.mxu0 %v7084
      %7139 = vmatpush.msra.mxu0 %v7082
      %7140 = vmatpush.msra.mxu0 %v7080
      %7141 = vmatpush.msra.mxu0 %v7078
      %7142 = vmatmul.f32.gmra.mxu0 %v7086
      %v7143 = vpop.f32.mrf.mxu0
      %v7144 = vadd.f32 0.0, %v7143
      %7145 = vmatmul.f32.gmra.mxu0 %v7089
      %v7146 = vpop.f32.mrf.mxu0
      %v7147 = vadd.f32 0.0, %v7146
      %7148 = vmatmul.f32.gmra.mxu0 %v7092
      %v7149 = vpop.f32.mrf.mxu0
      %v7150 = vadd.f32 0.0, %v7149
      %7151 = vmatmul.f32.gmra.mxu0 %v7095
      %v7152 = vpop.f32.mrf.mxu0
      %v7153 = vadd.f32 0.0, %v7152
      %7154 = vdwg.mxu0
      %v7155 = vadd.f32 %v6493, %v7115
      %v7156 = vadd.f32 %v6494, %v7144
      %v7157 = vadd.f32 %v6495, %v7118
      %v7158 = vadd.f32 %v6496, %v7147
      %v7159 = vadd.f32 %v6497, %v7121
      %v7160 = vadd.f32 %v6498, %v7150
      %v7161 = vadd.f32 %v6499, %v7124
      %v7162 = vadd.f32 %v6500, %v7153
      %7164 = vset.pattern.permute.xlu0 0
      %7165 = vperm.xlu0 %7164, %v352
      %v7166 = vpop.permute.xlu0 %7165
      %7169 = vset.pattern.permute.xlu0 0
      %7170 = vperm.xlu0 %7169, %v353
      %v7171 = vpop.permute.xlu0 %7170
      %7174 = vset.pattern.permute.xlu0 0
      %7175 = vperm.xlu0 %7174, %v354
      %v7176 = vpop.permute.xlu0 %7175
      %7179 = vset.pattern.permute.xlu0 0
      %7180 = vperm.xlu0 %7179, %v355
      %v7181 = vpop.permute.xlu0 %7180
      %v7183 = vadd.f32 %v7155, %v7166
      %v7184 = vadd.f32 %v7156, %v7166
      %v7185 = vadd.f32 %v7157, %v7171
      %v7186 = vadd.f32 %v7158, %v7171
      %v7187 = vadd.f32 %v7159, %v7176
      %v7188 = vadd.f32 %v7160, %v7176
      %v7189 = vadd.f32 %v7161, %v7181
      %v7190 = vadd.f32 %v7162, %v7181
      %7191 = vst [vmem:[%s197] sm:$0xff] %v7183
      %7192 = vst [vmem:[%s197 + $0x8] sm:$0xff] %v7184
      %7193 = vst [vmem:[%s197 + $0x10] sm:$0xff] %v7185
      %7194 = vst [vmem:[%s197 + $0x18] sm:$0xff] %v7186
      %7195 = vst [vmem:[%s197 + $0x20] sm:$0xff] %v7187
      %7196 = vst [vmem:[%s197 + $0x28] sm:$0xff] %v7188
      %7197 = vst [vmem:[%s197 + $0x30] sm:$0xff] %v7189
      %7198 = vst [vmem:[%s197 + $0x38] sm:$0xff] %v7190
      %p7199 = scmp.lt.s32.totalorder %s15, 1
      %s7200 = scalar_select %p7199, %s15, 1
      %s7201 = smul.addr %s7200, 8
      %s7202 = smul.addr %s7201, 8
      %s7203 = scalar_lea.vmem %s4, %s7202
      // Predicated region
      $region37: #{simple_vit_forward.1} parent=35 // pred_check
        %p7204 = pneg %p122
      $region38: #{simple_vit_forward.1} parent=35 // pred_check_branch
        %7206 = sbr.rel (%p7204) target = $region40
      $region39: #{simple_vit_forward.1} parent=35 // pred_region
        _
      $region40: #{simple_vit_forward.1} parent=35 // pred_fallthru
        _
    $region36: #{simple_vit_forward.1} parent=5 // pred_fallthru
      _
    %p7207 = scmp.le.s32.totalorder 2, %s10
    // Predicated region
    $region41: #{simple_vit_forward.1} parent=5 // pred_check
      %p7208 = pneg %p7207
    $region42: #{simple_vit_forward.1} parent=5 // pred_check_branch
      %7210 = sbr.rel (%p7208) target = $region44
    $region43: #{simple_vit_forward.1} parent=5 // pred_region
      %s7211 = ssub.s32 %s10, 2
      // Predicated region
      $region45: #{simple_vit_forward.1} parent=43 // pred_check
        %p7212 = pneg %p128
      $region46: #{simple_vit_forward.1} parent=43 // pred_check_branch
        %7214 = sbr.rel (%p7212) target = $region48
      $region47: #{simple_vit_forward.1} parent=43 // pred_region
        %p7215 = scmp.lt.s32.totalorder %s16, 1
        %s7216 = scalar_select %p7215, %s16, 1
        %s7217 = smul.addr %s7216, 8
        %s7218 = smul.addr %s7217, 8
        %s7219 = scalar_lea.vmem %s4, %s7218
      $region48: #{simple_vit_forward.1} parent=43 // pred_fallthru
        _
    $region44: #{simple_vit_forward.1} parent=5 // pred_fallthru
      _
  $region6: #{simple_vit_forward.1} parent=0 // loop_footer
    %s14 = sadd.s32 1, %s10
  $region7: #{simple_vit_forward.1} parent=0 // loop_footer_branch
    %9 = sbr.rel target = $region3
  $region8: #{simple_vit_forward.1} parent=0 // loop_exit
    _

</llo_original>
